<compile_context>
chip_gen: v7x
topology: tpu7x:2x2x1
jax: 0.10.0
libtpu: 0.0.40
codegen_flags: <defaults>
</compile_context>

<pallas_src>
import math
import functools

import jax
import jax.numpy as jnp
from jax import lax
from jax.experimental import pallas as pl
from jax.experimental.pallas import tpu as pltpu

_INV_SQRT2 = 1.0 / math.sqrt(2.0)


def _round_up(a, m):
    return (a + m - 1) // m * m


def _gelu(h, approximate):
    if approximate:
        # tanh-approximate GELU: the tanh goes to the EUP slot (free alongside
        # MXU work) instead of a long f32 erf polynomial on the VALU.
        return jax.nn.gelu(h, approximate=True)
    # Exact (erf-based) GELU, matching torch.nn.functional.gelu's default.
    return 0.5 * h * (1.0 + lax.erf(h * _INV_SQRT2))


def _pick_ff_chunk(d_ff, ff_chunk):
    """Largest 128-aligned chunk <= ff_chunk dividing d_ff; else pad d_ff."""
    c_max = min(ff_chunk, d_ff)
    start = (c_max // 128) * 128
    for c in range(start, 127, -128):
        if d_ff % c == 0:
            return c, d_ff
    # No clean 128-aligned divisor: zero-pad d_ff (safe: gelu(x@0 + 0) == 0,
    # so padded d_ff columns/rows contribute exactly nothing).
    c = _round_up(min(ff_chunk, d_ff), 128)
    return c, _round_up(d_ff, c)


def pack_ffn_params(w1, b1, w2, b2, *, ff_chunk=1024,
                    compute_dtype=jnp.bfloat16):
    """Pre-pack FFN weights into the kernel layout (do this ONCE per weight
    update, outside the hot path — the transpose/cast reads+writes
    ~3*d_model*d_ff*itemsize of HBM).

    Returns (w1_c [C, d_model, fc] bf16, b1_c [C, 1, fc] f32,
             w2_c [C, fc, d_model] bf16, b2_2 [1, d_model] f32).
    """
    d_model, d_ff = w1.shape
    fc, d_ff_pad = _pick_ff_chunk(d_ff, ff_chunk)
    if d_ff_pad != d_ff:
        pad = d_ff_pad - d_ff
        w1 = jnp.pad(w1, ((0, 0), (0, pad)))
        b1 = jnp.pad(b1, ((0, pad),))
        w2 = jnp.pad(w2, ((0, pad), (0, 0)))
    n_chunks = d_ff_pad // fc
    w1_c = (w1.reshape(d_model, n_chunks, fc)
              .transpose(1, 0, 2).astype(compute_dtype))      # [C, d_model, fc]
    w2_c = w2.reshape(n_chunks, fc, d_model).astype(compute_dtype)
    b1_c = b1.reshape(n_chunks, 1, fc).astype(jnp.float32)
    b2_2 = b2.reshape(1, d_model).astype(jnp.float32)
    return w1_c, b1_c, w2_c, b2_2


# --------------------------- kernels ----------------------------------------


def _ffn_kernel_resident(x_ref, w1_ref, b1_ref, w2_ref, b2_ref, o_ref, acc_ref,
                         *, n_chunks, compute_dtype, approximate_gelu):
    """Weights VMEM-resident; 1-D grid over row tiles; in-kernel d_ff loop."""
    # Init accumulator with broadcast b2 (drops the epilogue add pass).
    acc_ref[...] = jnp.broadcast_to(b2_ref[...], acc_ref.shape)
    # Cast the input tile once, in VMEM (hidden under the matmuls).
    x_c = x_ref[...].astype(compute_dtype)

    def body(c, carry):
        h = jnp.dot(x_c, w1_ref[c], preferred_element_type=jnp.float32)
        h = h + b1_ref[c]
        g = _gelu(h, approximate_gelu)
        # Dropout: eval mode -> identity.
        acc_ref[...] += jnp.dot(g.astype(compute_dtype), w2_ref[c],
                                preferred_element_type=jnp.float32)
        return carry

    lax.fori_loop(0, n_chunks, body, 0, unroll=n_chunks <= 4)
    o_ref[...] = acc_ref[...].astype(o_ref.dtype)


def _ffn_kernel_stream(x_ref, w1_ref, b1_ref, w2_ref, b2_ref, o_ref, acc_ref,
                       *, compute_dtype, approximate_gelu):
    """Weights streamed from HBM; 2-D grid (row tiles, d_ff chunks)."""
    j = pl.program_id(1)

    @pl.when(j == 0)
    def _():
        acc_ref[...] = jnp.broadcast_to(b2_ref[...], acc_ref.shape)

    x_c = x_ref[...].astype(compute_dtype)
    h = jnp.dot(x_c, w1_ref[0], preferred_element_type=jnp.float32) + b1_ref[0]
    g = _gelu(h, approximate_gelu)
    acc_ref[...] += jnp.dot(g.astype(compute_dtype), w2_ref[0],
                            preferred_element_type=jnp.float32)

    @pl.when(j == pl.num_programs(1) - 1)
    def _():
        o_ref[...] = acc_ref[...].astype(o_ref.dtype)


# --------------------------- wrappers ----------------------------------------


def _device_vmem_capacity():
    try:
        return int(pltpu.get_tpu_info().vmem_capacity_bytes)
    except Exception:
        return 128 * 2**20  # v5e / v6e per-TC VMEM


@functools.partial(jax.jit, static_argnames=("tm", "compute_dtype",
                                             "approximate_gelu",
                                             "weight_resident"))
def positionwise_ffn_packed(x, w1_c, b1_c, w2_c, b2_2, *, tm=512,
                            compute_dtype=jnp.bfloat16, approximate_gelu=True,
                            weight_resident=None):
    """x: [batch, seq, d_model]; packed params from pack_ffn_params()."""
    batch, seq, d_model = x.shape
    n_chunks, _, fc = w1_c.shape
    d_ff_pad = n_chunks * fc
    n = batch * seq

    isz_c = jnp.dtype(compute_dtype).itemsize
    isz_x = jnp.dtype(x.dtype).itemsize
    isz_o = isz_x

    vmem_cap = _device_vmem_capacity()
    vmem_budget = max(16 * 2**20, vmem_cap - 8 * 2**20)   # ~8 MiB headroom

    # Row tile: clamp for small inputs (multiple of 8) and keep >= 2 grid
    # steps whenever possible so the "parallel" axis can split across the two
    # v7x TensorCores.
    n8 = _round_up(max(n, 1), 8)
    tm = max(8, min(tm, n8))
    if n8 >= 16 and _round_up(n8, tm) // tm < 2:
        tm = _round_up((n8 + 1) // 2, 8)
    n_pad = _round_up(n, tm)

    # Residency decision: keep weights VMEM-resident (fetched once, single
    # buffered) unless they would hog VMEM; then stream d_ff over a grid axis.
    resident_w_bytes = 2 * d_model * d_ff_pad * isz_c
    if weight_resident is None:
        weight_resident = resident_w_bytes <= min(40 * 2**20,
                                                  int(0.6 * vmem_budget))

    # Keep x in its original dtype in HBM; only reshape + (maybe) pad rows.
    x2 = x.reshape(n, d_model)
    if n_pad != n:
        x2 = jnp.pad(x2, ((0, n_pad - n), (0, 0)))

    out_shape = jax.ShapeDtypeStruct((n_pad, d_model), x.dtype)

    if weight_resident:
        # ---- Path A: resident, single-buffered weights; 1-D row grid -------
        est = (resident_w_bytes                          # w1 + w2 (Buffered(1))
               + (d_ff_pad + d_model) * 4                # b1 + b2 (Buffered(1))
               + 2 * tm * d_model * isz_x                # x tiles (dbl-buf)
               + 2 * tm * d_model * isz_o                # out tiles (dbl-buf)
               + tm * d_model * (4 + isz_c)              # f32 acc + x cast
               + tm * fc * (2 * 4 + isz_c))              # h / g intermediates
        vmem_limit = int(min(vmem_budget, max(32 * 2**20, int(est * 1.3))))

        kernel = functools.partial(_ffn_kernel_resident, n_chunks=n_chunks,
                                   compute_dtype=compute_dtype,
                                   approximate_gelu=approximate_gelu)
        resident = pl.Buffered(1)     # fetched once -> no second buffer
        grid_spec = pltpu.PrefetchScalarGridSpec(
            num_scalar_prefetch=0,
            grid=(n_pad // tm,),
            in_specs=[
                pl.BlockSpec((tm, d_model), lambda i: (i, 0)),          # x
                pl.BlockSpec((n_chunks, d_model, fc), lambda i: (0, 0, 0),
                             pipeline_mode=resident),                   # w1
                pl.BlockSpec((n_chunks, 1, fc), lambda i: (0, 0, 0),
                             pipeline_mode=resident),                   # b1
                pl.BlockSpec((n_chunks, fc, d_model), lambda i: (0, 0, 0),
                             pipeline_mode=resident),                   # w2
                pl.BlockSpec((1, d_model), lambda i: (0, 0),
                             pipeline_mode=resident),                   # b2
            ],
            out_specs=pl.BlockSpec((tm, d_model), lambda i: (i, 0)),
            scratch_shapes=[pltpu.VMEM((tm, d_model), jnp.float32)],
        )
        compiler_params = pltpu.CompilerParams(
            dimension_semantics=("parallel",),
            vmem_limit_bytes=vmem_limit)
    else:
        # ---- Path B: stream d_ff chunks over an inner "arbitrary" axis -----
        est = (2 * (2 * d_model * fc * isz_c)            # w1/w2 chunks (dbl-buf)
               + 2 * fc * 4 + d_model * 4                # b1 chunk + b2
               + 2 * tm * d_model * isz_x
               + 2 * tm * d_model * isz_o
               + tm * d_model * (4 + isz_c)
               + tm * fc * (2 * 4 + isz_c))
        vmem_limit = int(min(vmem_budget, max(32 * 2**20, int(est * 1.3))))

        kernel = functools.partial(_ffn_kernel_stream,
                                   compute_dtype=compute_dtype,
                                   approximate_gelu=approximate_gelu)
        grid_spec = pltpu.PrefetchScalarGridSpec(
            num_scalar_prefetch=0,
            grid=(n_pad // tm, n_chunks),
            in_specs=[
                pl.BlockSpec((tm, d_model), lambda i, j: (i, 0)),        # x
                pl.BlockSpec((1, d_model, fc), lambda i, j: (j, 0, 0)),  # w1
                pl.BlockSpec((1, 1, fc), lambda i, j: (j, 0, 0)),        # b1
                pl.BlockSpec((1, fc, d_model), lambda i, j: (j, 0, 0)),  # w2
                pl.BlockSpec((1, d_model), lambda i, j: (0, 0),
                             pipeline_mode=pl.Buffered(1)),              # b2
            ],
            out_specs=pl.BlockSpec((tm, d_model), lambda i, j: (i, 0)),
            scratch_shapes=[pltpu.VMEM((tm, d_model), jnp.float32)],
        )
        compiler_params = pltpu.CompilerParams(
            dimension_semantics=("parallel", "arbitrary"),
            vmem_limit_bytes=vmem_limit)

    out = pl.pallas_call(kernel, out_shape=out_shape, grid_spec=grid_spec,
                         compiler_params=compiler_params)(
        x2, w1_c, b1_c, w2_c, b2_2)

    if n_pad != n:
        out = out[:n]
    return out.reshape(batch, seq, d_model)


def positionwise_ffn(x, w1, b1, w2, b2, *, tm=512, ff_chunk=1024,
                     compute_dtype=jnp.bfloat16, approximate_gelu=True,
                     weight_resident=None):
    """Convenience wrapper from raw (d_model,d_ff)/(d_ff,)/(d_ff,d_model)/
    (d_model,) params. For repeated calls with the same weights, call
    pack_ffn_params() once and use positionwise_ffn_packed()."""
    packed = pack_ffn_params(w1, b1, w2, b2, ff_chunk=ff_chunk,
                             compute_dtype=compute_dtype)
    return positionwise_ffn_packed(x, *packed, tm=tm,
                                   compute_dtype=compute_dtype,
                                   approximate_gelu=approximate_gelu,
                                   weight_resident=weight_resident)


# --------------------------- reference / test --------------------------------


def _reference(x, w1, b1, w2, b2, approximate_gelu):
    h = jnp.einsum("bsd,df->bsf", x, w1) + b1
    if approximate_gelu:
        g = jax.nn.gelu(h, approximate=True)
    else:
        g = 0.5 * h * (1.0 + lax.erf(h * jnp.float32(_INV_SQRT2)))
    return jnp.einsum("bsf,fd->bsd", g, w2) + b2


def _make_params(key, d_model, d_ff):
    k1, kb1, k2, kb2 = jax.random.split(key, 4)
    lim1 = 1.0 / math.sqrt(d_model)
    lim2 = 1.0 / math.sqrt(d_ff)
    w1 = jax.random.uniform(k1, (d_model, d_ff), jnp.float32, -lim1, lim1)
    b1 = jax.random.uniform(kb1, (d_ff,), jnp.float32, -lim1, lim1)
    w2 = jax.random.uniform(k2, (d_ff, d_model), jnp.float32, -lim2, lim2)
    b2 = jax.random.uniform(kb2, (d_model,), jnp.float32, -lim2, lim2)
    return w1, b1, w2, b2


if __name__ == "__main__":
    key = jax.random.PRNGKey(0)
    kx1, kp1, kx2, kp2, kx3, kp3 = jax.random.split(key, 6)

    # Case 1: resident-weight path, multi-chunk d_ff loop, multi-step row grid,
    # tanh-approximate GELU, pre-packed weights (hot-path usage).
    bsz, slen, dm, dff = 4, 128, 256, 1024
    x = jax.random.normal(kx1, (bsz, slen, dm), dtype=jnp.float32)
    w1, b1, w2, b2 = _make_params(kp1, dm, dff)
    packed = pack_ffn_params(w1, b1, w2, b2, ff_chunk=512)   # 2 chunks
    out = positionwise_ffn_packed(x, *packed)
    jax.block_until_ready(out)
    ref = _reference(x, w1, b1, w2, b2, approximate_gelu=True)
    assert out.shape == (bsz, slen, dm)
    assert jnp.allclose(out, ref, atol=2e-2, rtol=2e-2)

    # Case 2: row count not divisible by the tile (clamp to >=2 steps + pad),
    # d_ff not a multiple of 128 (zero-padded chunk), exact erf GELU.
    bsz2, slen2, dm2, dff2 = 2, 13, 256, 200
    x2 = jax.random.normal(kx2, (bsz2, slen2, dm2), dtype=jnp.float32)
    w1b, b1b, w2b, b2b = _make_params(kp2, dm2, dff2)
    out2 = positionwise_ffn(x2, w1b, b1b, w2b, b2b, approximate_gelu=False)
    jax.block_until_ready(out2)
    ref2 = _reference(x2, w1b, b1b, w2b, b2b, approximate_gelu=False)
    assert out2.shape == (bsz2, slen2, dm2)
    assert jnp.allclose(out2, ref2, atol=2e-2, rtol=2e-2)

    # Case 3: forced weight-streaming fallback (2-D grid, pl.when accumulator).
    bsz3, slen3, dm3, dff3 = 2, 64, 128, 512
    x3 = jax.random.normal(kx3, (bsz3, slen3, dm3), dtype=jnp.float32)
    w1c, b1c, w2c, b2c = _make_params(kp3, dm3, dff3)
    out3 = positionwise_ffn(x3, w1c, b1c, w2c, b2c, ff_chunk=256,
                            weight_resident=False)
    jax.block_until_ready(out3)
    ref3 = _reference(x3, w1c, b1c, w2c, b2c, approximate_gelu=True)
    assert out3.shape == (bsz3, slen3, dm3)
    assert jnp.allclose(out3, ref3, atol=2e-2, rtol=2e-2)

    print("KERNEL_OK")
</pallas_src>

<mosaic_0001>
module attributes {stable_mosaic.version = 11 : i64} {
  func.func @_ffn_kernel_resident(%arg0: i32, %arg1: memref<256x256xf32, #tpu.memory_space<vmem>>, %arg2: memref<2x256x512xbf16, #tpu.memory_space<vmem>>, %arg3: memref<2x1x512xf32, #tpu.memory_space<vmem>>, %arg4: memref<2x512x256xbf16, #tpu.memory_space<vmem>>, %arg5: memref<1x256xf32, #tpu.memory_space<vmem>>, %arg6: memref<256x256xf32, #tpu.memory_space<vmem>>, %arg7: memref<256x256xf32, #tpu.memory_space<vmem>>) attributes {dimension_semantics = [#tpu.dimension_semantics<parallel>], iteration_bounds = array<i64: 2>, scalar_prefetch = 0 : i64, scratch_operands = 1 : i64, tpu.core_type = #tpu.core_type<tc>, window_params = [{transform_indices = @transform_0, window_bounds = array<i64: 256, 256>}, {pipeline_mode = #tpu.pipeline_mode<synchronous>, transform_indices = @transform_1, window_bounds = array<i64: 2, 256, 512>}, {pipeline_mode = #tpu.pipeline_mode<synchronous>, transform_indices = @transform_2, window_bounds = array<i64: 2, 1, 512>}, {pipeline_mode = #tpu.pipeline_mode<synchronous>, transform_indices = @transform_3, window_bounds = array<i64: 2, 512, 256>}, {pipeline_mode = #tpu.pipeline_mode<synchronous>, transform_indices = @transform_4, window_bounds = array<i64: 1, 256>}, {transform_indices = @transform_5, window_bounds = array<i64: 256, 256>}]} {
    %c0 = arith.constant 0 : index
    %c0_0 = arith.constant 0 : index
    %0 = vector.load %arg5[%c0, %c0_0] : memref<1x256xf32, #tpu.memory_space<vmem>>, vector<1x256xf32>
    %1 = vector.shape_cast %0 : vector<1x256xf32> to vector<1x256xf32>
    %2 = vector.broadcast %1 : vector<1x256xf32> to vector<256x256xf32>
    %c0_1 = arith.constant 0 : index
    %c0_2 = arith.constant 0 : index
    %3 = vector.load %arg7[%c0_1, %c0_2] : memref<256x256xf32, #tpu.memory_space<vmem>>, vector<256x256xf32>
    tpu.vector_store %arg7[%c0_1, %c0_2], %2 {strides = array<i32>} : memref<256x256xf32, #tpu.memory_space<vmem>>, vector<256x256xf32>,
    %c0_3 = arith.constant 0 : index
    %c0_4 = arith.constant 0 : index
    %4 = vector.load %arg1[%c0_3, %c0_4] : memref<256x256xf32, #tpu.memory_space<vmem>>, vector<256x256xf32>
    %5 = arith.truncf %4 : vector<256x256xf32> to vector<256x256xbf16>
    %c0_i32 = arith.constant 0 : i32
    %6 = arith.index_cast %c0_i32 : i32 to index
    %c0_5 = arith.constant 0 : index
    %c0_6 = arith.constant 0 : index
    %7 = vector.load %arg2[%6, %c0_5, %c0_6] : memref<2x256x512xbf16, #tpu.memory_space<vmem>>, vector<1x256x512xbf16>
    %8 = vector.shape_cast %7 : vector<1x256x512xbf16> to vector<256x512xbf16>
    %cst = arith.constant dense<0.000000e+00> : vector<256x512xf32>
    %9 = tpu.matmul %5, %8, %cst {dimension_numbers = #tpu.dot_dimension_numbers<[1], [0], [0], [1], [0, 0, 1, 1], [], []>} : vector<256x256xbf16>, vector<256x512xbf16>, vector<256x512xf32> -> vector<256x512xf32>
    %10 = arith.index_cast %c0_i32 : i32 to index
    %c0_7 = arith.constant 0 : index
    %c0_8 = arith.constant 0 : index
    %11 = vector.load %arg3[%10, %c0_7, %c0_8] : memref<2x1x512xf32, #tpu.memory_space<vmem>>, vector<1x1x512xf32>
    %12 = vector.shape_cast %11 : vector<1x1x512xf32> to vector<1x512xf32>
    %13 = vector.broadcast %12 : vector<1x512xf32> to vector<256x512xf32>
    %14 = arith.addf %9, %13 : vector<256x512xf32>
    %15 = arith.mulf %14, %14 : vector<256x512xf32>
    %16 = arith.mulf %14, %15 : vector<256x512xf32>
    %cst_9 = arith.constant 4.471500e-02 : f32
    %17 = vector.broadcast %cst_9 : f32 to vector<256x512xf32>
    %18 = arith.mulf %17, %16 : vector<256x512xf32>
    %19 = arith.addf %14, %18 : vector<256x512xf32>
    %cst_10 = arith.constant 0.797884583 : f32
    %20 = vector.broadcast %cst_10 : f32 to vector<256x512xf32>
    %21 = arith.mulf %20, %19 : vector<256x512xf32>
    %22 = math.tanh %21 : vector<256x512xf32>
    %cst_11 = arith.constant 1.000000e+00 : f32
    %23 = vector.broadcast %cst_11 : f32 to vector<256x512xf32>
    %24 = arith.addf %23, %22 : vector<256x512xf32>
    %cst_12 = arith.constant 5.000000e-01 : f32
    %25 = vector.broadcast %cst_12 : f32 to vector<256x512xf32>
    %26 = arith.mulf %25, %24 : vector<256x512xf32>
    %27 = arith.mulf %14, %26 : vector<256x512xf32>
    %c0_13 = arith.constant 0 : index
    %c0_14 = arith.constant 0 : index
    %28 = vector.load %arg7[%c0_13, %c0_14] : memref<256x256xf32, #tpu.memory_space<vmem>>, vector<256x256xf32>
    %29 = arith.truncf %27 : vector<256x512xf32> to vector<256x512xbf16>
    %30 = arith.index_cast %c0_i32 : i32 to index
    %c0_15 = arith.constant 0 : index
    %c0_16 = arith.constant 0 : index
    %31 = vector.load %arg4[%30, %c0_15, %c0_16] : memref<2x512x256xbf16, #tpu.memory_space<vmem>>, vector<1x512x256xbf16>
    %32 = vector.shape_cast %31 : vector<1x512x256xbf16> to vector<512x256xbf16>
    %cst_17 = arith.constant dense<0.000000e+00> : vector<256x256xf32>
    %33 = tpu.matmul %29, %32, %cst_17 {dimension_numbers = #tpu.dot_dimension_numbers<[1], [0], [0], [1], [0, 0, 1, 1], [], []>} : vector<256x512xbf16>, vector<512x256xbf16>, vector<256x256xf32> -> vector<256x256xf32>
    %34 = arith.addf %28, %33 : vector<256x256xf32>
    %c0_18 = arith.constant 0 : index
    %c0_19 = arith.constant 0 : index
    %35 = vector.load %arg7[%c0_18, %c0_19] : memref<256x256xf32, #tpu.memory_space<vmem>>, vector<256x256xf32>
    tpu.vector_store %arg7[%c0_18, %c0_19], %34 {strides = array<i32>} : memref<256x256xf32, #tpu.memory_space<vmem>>, vector<256x256xf32>,
    %c1_i32 = arith.constant 1 : i32
    %36 = arith.index_cast %c1_i32 : i32 to index
    %c0_20 = arith.constant 0 : index
    %c0_21 = arith.constant 0 : index
    %37 = vector.load %arg2[%36, %c0_20, %c0_21] : memref<2x256x512xbf16, #tpu.memory_space<vmem>>, vector<1x256x512xbf16>
    %38 = vector.shape_cast %37 : vector<1x256x512xbf16> to vector<256x512xbf16>
    %cst_22 = arith.constant dense<0.000000e+00> : vector<256x512xf32>
    %39 = tpu.matmul %5, %38, %cst_22 {dimension_numbers = #tpu.dot_dimension_numbers<[1], [0], [0], [1], [0, 0, 1, 1], [], []>} : vector<256x256xbf16>, vector<256x512xbf16>, vector<256x512xf32> -> vector<256x512xf32>
    %40 = arith.index_cast %c1_i32 : i32 to index
    %c0_23 = arith.constant 0 : index
    %c0_24 = arith.constant 0 : index
    %41 = vector.load %arg3[%40, %c0_23, %c0_24] : memref<2x1x512xf32, #tpu.memory_space<vmem>>, vector<1x1x512xf32>
    %42 = vector.shape_cast %41 : vector<1x1x512xf32> to vector<1x512xf32>
    %43 = vector.broadcast %42 : vector<1x512xf32> to vector<256x512xf32>
    %44 = arith.addf %39, %43 : vector<256x512xf32>
    %45 = arith.mulf %44, %44 : vector<256x512xf32>
    %46 = arith.mulf %44, %45 : vector<256x512xf32>
    %cst_25 = arith.constant 4.471500e-02 : f32
    %47 = vector.broadcast %cst_25 : f32 to vector<256x512xf32>
    %48 = arith.mulf %47, %46 : vector<256x512xf32>
    %49 = arith.addf %44, %48 : vector<256x512xf32>
    %cst_26 = arith.constant 0.797884583 : f32
    %50 = vector.broadcast %cst_26 : f32 to vector<256x512xf32>
    %51 = arith.mulf %50, %49 : vector<256x512xf32>
    %52 = math.tanh %51 : vector<256x512xf32>
    %cst_27 = arith.constant 1.000000e+00 : f32
    %53 = vector.broadcast %cst_27 : f32 to vector<256x512xf32>
    %54 = arith.addf %53, %52 : vector<256x512xf32>
    %cst_28 = arith.constant 5.000000e-01 : f32
    %55 = vector.broadcast %cst_28 : f32 to vector<256x512xf32>
    %56 = arith.mulf %55, %54 : vector<256x512xf32>
    %57 = arith.mulf %44, %56 : vector<256x512xf32>
    %c0_29 = arith.constant 0 : index
    %c0_30 = arith.constant 0 : index
    %58 = vector.load %arg7[%c0_29, %c0_30] : memref<256x256xf32, #tpu.memory_space<vmem>>, vector<256x256xf32>
    %59 = arith.truncf %57 : vector<256x512xf32> to vector<256x512xbf16>
    %60 = arith.index_cast %c1_i32 : i32 to index
    %c0_31 = arith.constant 0 : index
    %c0_32 = arith.constant 0 : index
    %61 = vector.load %arg4[%60, %c0_31, %c0_32] : memref<2x512x256xbf16, #tpu.memory_space<vmem>>, vector<1x512x256xbf16>
    %62 = vector.shape_cast %61 : vector<1x512x256xbf16> to vector<512x256xbf16>
    %cst_33 = arith.constant dense<0.000000e+00> : vector<256x256xf32>
    %63 = tpu.matmul %59, %62, %cst_33 {dimension_numbers = #tpu.dot_dimension_numbers<[1], [0], [0], [1], [0, 0, 1, 1], [], []>} : vector<256x512xbf16>, vector<512x256xbf16>, vector<256x256xf32> -> vector<256x256xf32>
    %64 = arith.addf %58, %63 : vector<256x256xf32>
    %c0_34 = arith.constant 0 : index
    %c0_35 = arith.constant 0 : index
    %65 = vector.load %arg7[%c0_34, %c0_35] : memref<256x256xf32, #tpu.memory_space<vmem>>, vector<256x256xf32>
    tpu.vector_store %arg7[%c0_34, %c0_35], %64 {strides = array<i32>} : memref<256x256xf32, #tpu.memory_space<vmem>>, vector<256x256xf32>,
    %c2_i32 = arith.constant 2 : i32
    %c0_36 = arith.constant 0 : index
    %c0_37 = arith.constant 0 : index
    %66 = vector.load %arg7[%c0_36, %c0_37] : memref<256x256xf32, #tpu.memory_space<vmem>>, vector<256x256xf32>
    %c0_38 = arith.constant 0 : index
    %c0_39 = arith.constant 0 : index
    %67 = vector.load %arg6[%c0_38, %c0_39] : memref<256x256xf32, #tpu.memory_space<vmem>>, vector<256x256xf32>
    tpu.vector_store %arg6[%c0_38, %c0_39], %66 {strides = array<i32>} : memref<256x256xf32, #tpu.memory_space<vmem>>, vector<256x256xf32>,
    return
  }
  func.func @transform_0(%arg0: i32) -> (i32, i32) {
    %c0_i32 = arith.constant 0 : i32
    %c0_i32_0 = arith.constant 0 : i32
    return %arg0, %c0_i32 : i32, i32
  }
  func.func @transform_1(%arg0: i32) -> (i32, i32, i32) {
    %c0_i32 = arith.constant 0 : i32
    %c0_i32_0 = arith.constant 0 : i32
    %c0_i32_1 = arith.constant 0 : i32
    %c0_i32_2 = arith.constant 0 : i32
    return %c0_i32, %c0_i32_0, %c0_i32_1 : i32, i32, i32
  }
  func.func @transform_2(%arg0: i32) -> (i32, i32, i32) {
    %c0_i32 = arith.constant 0 : i32
    %c0_i32_0 = arith.constant 0 : i32
    %c0_i32_1 = arith.constant 0 : i32
    %c0_i32_2 = arith.constant 0 : i32
    return %c0_i32, %c0_i32_0, %c0_i32_1 : i32, i32, i32
  }
  func.func @transform_3(%arg0: i32) -> (i32, i32, i32) {
    %c0_i32 = arith.constant 0 : i32
    %c0_i32_0 = arith.constant 0 : i32
    %c0_i32_1 = arith.constant 0 : i32
    %c0_i32_2 = arith.constant 0 : i32
    return %c0_i32, %c0_i32_0, %c0_i32_1 : i32, i32, i32
  }
  func.func @transform_4(%arg0: i32) -> (i32, i32) {
    %c0_i32 = arith.constant 0 : i32
    %c0_i32_0 = arith.constant 0 : i32
    %c0_i32_1 = arith.constant 0 : i32
    return %c0_i32, %c0_i32_0 : i32, i32
  }
  func.func @transform_5(%arg0: i32) -> (i32, i32) {
    %c0_i32 = arith.constant 0 : i32
    %c0_i32_0 = arith.constant 0 : i32
    return %arg0, %c0_i32 : i32, i32
  }
}

</mosaic_0001>

<llo_original>
// kernel: positionwise_ffn_packed.1
$region0: #{positionwise_ffn_packed.1}
  #allocation0 [shape = 'u32[]', space=smem, size = 0x4, offset = 0x4, fixed_abs, tag = 'smem constant byte address 0x4 - core index']
  #allocation1 [shape = 'u32[144,128]{1,0:T(1,128)}', space=vmem, size = 0x12000, scoped, tag = 'internal scratch']
  #allocation2 [shape = 'f32[256,256]{1,0:T(8,128)}', space=vmem, size = 0x40000, scoped, tag = 'scratch operand']
  %s0 = inlined_call_operand.hbm [shape: f32[512,256], index: 0, kind: input, shape index: {}]
  %s1 = inlined_call_operand.hbm [shape: bf16[2,256,512], index: 1, kind: input, shape index: {}]
  %s2 = inlined_call_operand.vmem [shape: f32[2,1,512], index: 2, kind: input, shape index: {}]
  %s3 = inlined_call_operand.hbm [shape: bf16[2,512,256], index: 3, kind: input, shape index: {}]
  %s4 = inlined_call_operand.vmem [shape: f32[1,256], index: 4, kind: input, shape index: {}]
  %s5 = inlined_call_operand.hbm [shape: f32[512,256], index: 5, kind: output, shape index: {}]
  %s6 = sld [smem:[#allocation0]]
  $region65: #{positionwise_ffn_packed.1} parent=0
    _
  %s8 = ssub.s32 1, %s6
  %s9 = scalar_select 0, %s8, %s6
  $region1: #{positionwise_ffn_packed.1} parent=0
    #allocation3 [shape = 'u8[524288]{0}', space=vmem, size = 0x80000, scoped, tag = 'input window, operand 0']
    #allocation4 [shape = 's32[2]{0}', space=sflag, size = 0x8, scoped, tag = 'scoped memory for positionwise_ffn_packed.1']
    #allocation5 [shape = 's32[2]{0}', space=sflag, size = 0x8, scoped, tag = 'scoped memory for positionwise_ffn_packed.1']
    #allocation6 [shape = 'u8[524288]{0}', space=vmem, size = 0x80000, scoped, tag = 'input window, operand 1, single buffered']
    #allocation7 [shape = 's32[1]{0}', space=sflag, size = 0x4, scoped, tag = 'scoped memory for positionwise_ffn_packed.1']
    #allocation8 [shape = 'u8[524288]{0}', space=vmem, size = 0x80000, scoped, tag = 'input window, operand 3, single buffered']
    #allocation9 [shape = 'u8[524288]{0}', space=vmem, size = 0x80000, scoped, tag = 'output window, operand 0']
    %10 = vsyncpa [#allocation4], 0
    %s11 = scalar_lea.sflag [#allocation4], 1
    %12 = vsyncpa %s11, 0
    %13 = vsyncpa [#allocation7], 0
    %14 = vsyncpa [#allocation5], 0
    %s15 = scalar_lea.sflag [#allocation5], 1
    %16 = vsyncpa %s15, 0
    loop: start=0, step=1, limit=4
    $region2: #{positionwise_ffn_packed.1} parent=1 // loop_pre_header
      _
    $region3: #{positionwise_ffn_packed.1} parent=1 // loop_header
      %s18 = sphi 0, %s22
      %p19 = scmp.ge.s32.totalorder %s18, 4
      %s28 = sphi 0, %s30
      %s31 = sphi 0, %s28
      %s32 = sphi 0, %s31
      %s48 = sphi 0, %s32
      %s52 = sphi 0, %s52
      %s54 = sphi 0, %s52
      %s55 = sphi 0, %s54
      %s69 = sphi 0, %s55
      %s73 = sphi 0, %s73
      %s75 = sphi 0, %s73
      %s76 = sphi 0, %s75
      %s90 = sphi 0, %s76
      %s94 = sphi 0, %s94
      %s96 = sphi 0, %s94
      %s97 = sphi 0, %s96
      %s111 = sphi 0, %s97
      %s115 = sphi 0, %s115
      %s117 = sphi 0, %s115
      %s118 = sphi 0, %s117
      %s132 = sphi 0, %s118
      %s138 = sphi 0, %s140
      %s141 = sphi 0, %s138
      %s142 = sphi 0, %s141
      %s158 = sphi 0, %s142
    $region4: #{positionwise_ffn_packed.1} parent=1 // loop_header_branch
      %21 = sbr.rel (%p19) target = $region8
    $region5: #{positionwise_ffn_packed.1} parent=1 // loop_body
      %s23 = ssub.s32 %s18, 1
      %s24 = ssub.s32 %s18, 2
      %s25 = sadd.s32 %s18, 1
      %s26 = ssub.s32 %s18, %s25
      %p27 = scmp.eq.s32.totalorder %s26, 0
      %s29 = sadd.s32 %s28, 1
      %s30 = scalar_select %p27, %s28, %s29
      %p33 = pneg %p27
      %p34 = scmp.eq.s32.totalorder %s18, 1
      %p35 = por %p33, %p34
      %p36 = scmp.ne.s32.totalorder %s28, %s31
      %p37 = scmp.eq.s32.totalorder %s18, 0
      %p38 = por %p36, %p37
      %p39 = scmp.ne.s32.totalorder %s28, %s31
      %p40 = scmp.eq.s32.totalorder %s23, 1
      %p41 = por %p39, %p40
      %p42 = scmp.ne.s32.totalorder %s31, %s32
      %p43 = scmp.eq.s32.totalorder %s23, 0
      %p44 = por %p42, %p43
      %p45 = scmp.ne.s32.totalorder %s31, %s32
      %p46 = scmp.eq.s32.totalorder %s24, 1
      %p47 = por %p45, %p46
      %p49 = scmp.ne.s32.totalorder %s32, %s48
      %p50 = scmp.eq.s32.totalorder %s24, 0
      %p51 = por %p49, %p50
      %s53 = sadd.s32 %s52, 1
      %p56 = scmp.eq.s32.totalorder %s18, 1
      %p57 = scmp.ne.s32.totalorder %s52, %s54
      %p58 = scmp.eq.s32.totalorder %s18, 0
      %p59 = por %p57, %p58
      %p60 = scmp.ne.s32.totalorder %s52, %s54
      %p61 = scmp.eq.s32.totalorder %s23, 1
      %p62 = por %p60, %p61
      %p63 = scmp.ne.s32.totalorder %s54, %s55
      %p64 = scmp.eq.s32.totalorder %s23, 0
      %p65 = por %p63, %p64
      %p66 = scmp.ne.s32.totalorder %s54, %s55
      %p67 = scmp.eq.s32.totalorder %s24, 1
      %p68 = por %p66, %p67
      %p70 = scmp.ne.s32.totalorder %s55, %s69
      %p71 = scmp.eq.s32.totalorder %s24, 0
      %p72 = por %p70, %p71
      %s74 = sadd.s32 %s73, 1
      %p77 = scmp.eq.s32.totalorder %s18, 1
      %p78 = scmp.ne.s32.totalorder %s73, %s75
      %p79 = scmp.eq.s32.totalorder %s18, 0
      %p80 = por %p78, %p79
      %p81 = scmp.ne.s32.totalorder %s73, %s75
      %p82 = scmp.eq.s32.totalorder %s23, 1
      %p83 = por %p81, %p82
      %p84 = scmp.ne.s32.totalorder %s75, %s76
      %p85 = scmp.eq.s32.totalorder %s23, 0
      %p86 = por %p84, %p85
      %p87 = scmp.ne.s32.totalorder %s75, %s76
      %p88 = scmp.eq.s32.totalorder %s24, 1
      %p89 = por %p87, %p88
      %p91 = scmp.ne.s32.totalorder %s76, %s90
      %p92 = scmp.eq.s32.totalorder %s24, 0
      %p93 = por %p91, %p92
      %s95 = sadd.s32 %s94, 1
      %p98 = scmp.eq.s32.totalorder %s18, 1
      %p99 = scmp.ne.s32.totalorder %s94, %s96
      %p100 = scmp.eq.s32.totalorder %s18, 0
      %p101 = por %p99, %p100
      %p102 = scmp.ne.s32.totalorder %s94, %s96
      %p103 = scmp.eq.s32.totalorder %s23, 1
      %p104 = por %p102, %p103
      %p105 = scmp.ne.s32.totalorder %s96, %s97
      %p106 = scmp.eq.s32.totalorder %s23, 0
      %p107 = por %p105, %p106
      %p108 = scmp.ne.s32.totalorder %s96, %s97
      %p109 = scmp.eq.s32.totalorder %s24, 1
      %p110 = por %p108, %p109
      %p112 = scmp.ne.s32.totalorder %s97, %s111
      %p113 = scmp.eq.s32.totalorder %s24, 0
      %p114 = por %p112, %p113
      %s116 = sadd.s32 %s115, 1
      %p119 = scmp.eq.s32.totalorder %s18, 1
      %p120 = scmp.ne.s32.totalorder %s115, %s117
      %p121 = scmp.eq.s32.totalorder %s18, 0
      %p122 = por %p120, %p121
      %p123 = scmp.ne.s32.totalorder %s115, %s117
      %p124 = scmp.eq.s32.totalorder %s23, 1
      %p125 = por %p123, %p124
      %p126 = scmp.ne.s32.totalorder %s117, %s118
      %p127 = scmp.eq.s32.totalorder %s23, 0
      %p128 = por %p126, %p127
      %p129 = scmp.ne.s32.totalorder %s117, %s118
      %p130 = scmp.eq.s32.totalorder %s24, 1
      %p131 = por %p129, %p130
      %p133 = scmp.ne.s32.totalorder %s118, %s132
      %p134 = scmp.eq.s32.totalorder %s24, 0
      %p135 = por %p133, %p134
      %s136 = ssub.s32 %s18, %s25
      %p137 = scmp.eq.s32.totalorder %s136, 0
      %s139 = sadd.s32 %s138, 1
      %s140 = scalar_select %p137, %s138, %s139
      %p143 = pneg %p137
      %p144 = scmp.eq.s32.totalorder %s18, 1
      %p145 = por %p143, %p144
      %p146 = scmp.ne.s32.totalorder %s138, %s141
      %p147 = scmp.eq.s32.totalorder %s18, 0
      %p148 = por %p146, %p147
      %p149 = scmp.ne.s32.totalorder %s138, %s141
      %p150 = scmp.eq.s32.totalorder %s23, 1
      %p151 = por %p149, %p150
      %p152 = scmp.ne.s32.totalorder %s141, %s142
      %p153 = scmp.eq.s32.totalorder %s23, 0
      %p154 = por %p152, %p153
      %p155 = scmp.ne.s32.totalorder %s141, %s142
      %p156 = scmp.eq.s32.totalorder %s24, 1
      %p157 = por %p155, %p156
      %p159 = scmp.ne.s32.totalorder %s142, %s158
      %p160 = scmp.eq.s32.totalorder %s24, 0
      %p161 = por %p159, %p160
      %p162 = scmp.le.s32.totalorder 1, %s18
      %p163 = scmp.lt.s32.totalorder %s18, 3
      %p164 = pnand %p162, %p163
      %p165 = pneg %p164
      // Predicated region
      $region9: #{positionwise_ffn_packed.1} parent=5 // pred_check
        _
      $region10: #{positionwise_ffn_packed.1} parent=5 // pred_check_branch
        %167 = sbr.rel (%p164) target = $region12
      $region11: #{positionwise_ffn_packed.1} parent=5 // pred_region
        %s168 = ssub.s32 %s18, 1
        // Predicated region
        $region13: #{positionwise_ffn_packed.1} parent=11 // pred_check
          %p169 = pneg %p65
        $region14: #{positionwise_ffn_packed.1} parent=11 // pred_check_branch
          %171 = sbr.rel (%p169) target = $region16
        $region15: #{positionwise_ffn_packed.1} parent=11 // pred_region
          %s173 = ssub.s32 16384, 16384
          %174 = vsyncadd [#allocation7], %s173
          %s175 = sshll.u32 [#allocation6], 4
          %s176 = int_to_ptr.vmem [resolvable:$true] %s175
          %181 = dma.hbm_to_vmem [thread:$0]  %s1, 16384, %s176, [#allocation7], 256, 256, 16
        $region16: #{positionwise_ffn_packed.1} parent=11 // pred_fallthru
          _
        // Predicated region
        $region17: #{positionwise_ffn_packed.1} parent=11 // pred_check
          %p182 = pneg %p86
        $region18: #{positionwise_ffn_packed.1} parent=11 // pred_check_branch
          %184 = sbr.rel (%p182) target = $region20
        $region19: #{positionwise_ffn_packed.1} parent=11 // pred_region
          _
        $region20: #{positionwise_ffn_packed.1} parent=11 // pred_fallthru
          _
        // Predicated region
        $region21: #{positionwise_ffn_packed.1} parent=11 // pred_check
          %p185 = pneg %p107
        $region22: #{positionwise_ffn_packed.1} parent=11 // pred_check_branch
          %187 = sbr.rel (%p185) target = $region24
        $region23: #{positionwise_ffn_packed.1} parent=11 // pred_region
          %s189 = ssub.s32 16384, 16384
          %190 = vsyncadd [#allocation7], %s189
          %s191 = sshll.u32 [#allocation8], 4
          %s192 = int_to_ptr.vmem [resolvable:$true] %s191
          %197 = dma.hbm_to_vmem [thread:$0]  %s3, 16384, %s192, [#allocation7], 128, 128, 8
        $region24: #{positionwise_ffn_packed.1} parent=11 // pred_fallthru
          _
        // Predicated region
        $region25: #{positionwise_ffn_packed.1} parent=11 // pred_check
          %p198 = pneg %p128
        $region26: #{positionwise_ffn_packed.1} parent=11 // pred_check_branch
          %200 = sbr.rel (%p198) target = $region28
        $region27: #{positionwise_ffn_packed.1} parent=11 // pred_region
          _
        $region28: #{positionwise_ffn_packed.1} parent=11 // pred_fallthru
          _
      $region12: #{positionwise_ffn_packed.1} parent=5 // pred_fallthru
        _
      %p201 = scmp.lt.s32.totalorder %s18, 2
      // Predicated region
      $region29: #{positionwise_ffn_packed.1} parent=5 // pred_check
        %p202 = pneg %p201
      $region30: #{positionwise_ffn_packed.1} parent=5 // pred_check_branch
        %204 = sbr.rel (%p202) target = $region32
      $region31: #{positionwise_ffn_packed.1} parent=5 // pred_region
        // Predicated region
        $region33: #{positionwise_ffn_packed.1} parent=31 // pred_check
          %p205 = pneg %p38
        $region34: #{positionwise_ffn_packed.1} parent=31 // pred_check_branch
          %207 = sbr.rel (%p205) target = $region36
        $region35: #{positionwise_ffn_packed.1} parent=31 // pred_region
          %s208 = sand.u32 %s28, 1
          %s209 = scalar_lea.sflag [#allocation4], %s208
          %s210 = sand.u32 %s28, 1
          %s211 = smul.addr %s210, 512
          %s212 = scalar_lea.vmem [#allocation3], %s211
          %s213 = smul.u32 32, %s18
          %s215 = ssub.s32 8192, 8192
          %216 = vsyncadd %s209, %s215
          %s217 = smul.addr %s213, 2
          %s218 = smul.addr %s217, 128
          %s219 = scalar_lea.hbm %s0, %s218
          %s220 = sshll.u32 %s212, 4
          %s221 = int_to_ptr.vmem [resolvable:$true] %s220
          %226 = dma.hbm_to_vmem [thread:$0]  %s219, 8192, %s221, %s209, 256, 256, 16
        $region36: #{positionwise_ffn_packed.1} parent=31 // pred_fallthru
          _
      $region32: #{positionwise_ffn_packed.1} parent=5 // pred_fallthru
        _
      %p227 = scmp.le.s32.totalorder 1, %s18
      %p228 = scmp.lt.s32.totalorder %s18, 3
      %p229 = pnand %p227, %p228
      %p230 = pneg %p229
      // Predicated region
      $region37: #{positionwise_ffn_packed.1} parent=5 // pred_check
        _
      $region38: #{positionwise_ffn_packed.1} parent=5 // pred_check_branch
        %232 = sbr.rel (%p229) target = $region40
      $region39: #{positionwise_ffn_packed.1} parent=5 // pred_region
        %s233 = ssub.s32 %s18, 1
        %s234 = sand.u32 %s31, 1
        %s235 = scalar_lea.sflag [#allocation4], %s234
        %s236 = sand.u32 %s31, 1
        %s237 = smul.addr %s236, 512
        %s238 = scalar_lea.vmem [#allocation3], %s237
        // Predicated region
        $region41: #{positionwise_ffn_packed.1} parent=39 // pred_check
          %p239 = pneg %p44
        $region42: #{positionwise_ffn_packed.1} parent=39 // pred_check_branch
          %241 = sbr.rel (%p239) target = $region44
        $region43: #{positionwise_ffn_packed.1} parent=39 // pred_region
          %242 = dma.done %s235, 8192
        $region44: #{positionwise_ffn_packed.1} parent=39 // pred_fallthru
          _
        // Predicated region
        $region45: #{positionwise_ffn_packed.1} parent=39 // pred_check
          %p243 = pneg %p65
        $region46: #{positionwise_ffn_packed.1} parent=39 // pred_check_branch
          %245 = sbr.rel (%p243) target = $region48
        $region47: #{positionwise_ffn_packed.1} parent=39 // pred_region
          %246 = dma.done [#allocation7], 16384
        $region48: #{positionwise_ffn_packed.1} parent=39 // pred_fallthru
          _
        // Predicated region
        $region49: #{positionwise_ffn_packed.1} parent=39 // pred_check
          %p247 = pneg %p107
        $region50: #{positionwise_ffn_packed.1} parent=39 // pred_check_branch
          %249 = sbr.rel (%p247) target = $region52
        $region51: #{positionwise_ffn_packed.1} parent=39 // pred_region
          %250 = dma.done [#allocation7], 16384
        $region52: #{positionwise_ffn_packed.1} parent=39 // pred_fallthru
          _
        %s251 = sand.u32 %s31, 1
        %s252 = scalar_lea.sflag [#allocation4], %s251
        %s253 = sand.u32 %s31, 1
        %s254 = smul.addr %s253, 512
        %s255 = scalar_lea.vmem [#allocation3], %s254
        %p256 = pneg %p44
        %p257 = pneg %p41
        %p258 = pneg %p65
        %p259 = pneg %p62
        %p260 = pneg %p86
        %p261 = pneg %p83
        %p262 = pneg %p107
        %p263 = pneg %p104
        %p264 = pneg %p128
        %p265 = pneg %p125
        %p266 = pneg %p154
        %p267 = pneg %p151
        %s268 = sand.u32 %s141, 1
        %s269 = scalar_lea.sflag [#allocation5], %s268
        %s270 = sand.u32 %s141, 1
        %s271 = smul.addr %s270, 512
        %s272 = scalar_lea.vmem [#allocation9], %s271
        %s273 = smul.u32 32, %s23
        %s274 = smul.u32 32, %s23
        %v275 = vld [vmem:[%s4] sm:$0x3]
        %v277 = vlaneseq
        %v278 = vshrl.u32 %v277, 7
        %v279 = vsub.s32 0, %v278
        %v280 = vrot.slane %v275, %v279
        %v281 = vlaneseq
        %v282 = vshrl.u32 %v281, 7
        %v283 = vsub.s32 1, %v282
        %v284 = vrot.slane %v275, %v283
        %287 = vst [vmem:[#allocation2] sm:$0xff] %v280
        %288 = vst [vmem:[#allocation2 + $0x8] sm:$0xff] %v284
        %289 = vst [vmem:[#allocation2 + $0x10] sm:$0xff] %v280
        %290 = vst [vmem:[#allocation2 + $0x18] sm:$0xff] %v284
        %291 = vst [vmem:[#allocation2 + $0x20] sm:$0xff] %v280
        %292 = vst [vmem:[#allocation2 + $0x28] sm:$0xff] %v284
        %293 = vst [vmem:[#allocation2 + $0x30] sm:$0xff] %v280
        %294 = vst [vmem:[#allocation2 + $0x38] sm:$0xff] %v284
        %295 = vst [vmem:[#allocation2 + $0x40] sm:$0xff] %v280
        %296 = vst [vmem:[#allocation2 + $0x48] sm:$0xff] %v284
        %297 = vst [vmem:[#allocation2 + $0x50] sm:$0xff] %v280
        %298 = vst [vmem:[#allocation2 + $0x58] sm:$0xff] %v284
        %299 = vst [vmem:[#allocation2 + $0x60] sm:$0xff] %v280
        %300 = vst [vmem:[#allocation2 + $0x68] sm:$0xff] %v284
        %301 = vst [vmem:[#allocation2 + $0x70] sm:$0xff] %v280
        %302 = vst [vmem:[#allocation2 + $0x78] sm:$0xff] %v284
        %303 = vst [vmem:[#allocation2 + $0x80] sm:$0xff] %v280
        %304 = vst [vmem:[#allocation2 + $0x88] sm:$0xff] %v284
        %305 = vst [vmem:[#allocation2 + $0x90] sm:$0xff] %v280
        %306 = vst [vmem:[#allocation2 + $0x98] sm:$0xff] %v284
        %307 = vst [vmem:[#allocation2 + $0xa0] sm:$0xff] %v280
        %308 = vst [vmem:[#allocation2 + $0xa8] sm:$0xff] %v284
        %309 = vst [vmem:[#allocation2 + $0xb0] sm:$0xff] %v280
        %310 = vst [vmem:[#allocation2 + $0xb8] sm:$0xff] %v284
        %311 = vst [vmem:[#allocation2 + $0xc0] sm:$0xff] %v280
        %312 = vst [vmem:[#allocation2 + $0xc8] sm:$0xff] %v284
        %313 = vst [vmem:[#allocation2 + $0xd0] sm:$0xff] %v280
        %314 = vst [vmem:[#allocation2 + $0xd8] sm:$0xff] %v284
        %315 = vst [vmem:[#allocation2 + $0xe0] sm:$0xff] %v280
        %316 = vst [vmem:[#allocation2 + $0xe8] sm:$0xff] %v284
        %317 = vst [vmem:[#allocation2 + $0xf0] sm:$0xff] %v280
        %318 = vst [vmem:[#allocation2 + $0xf8] sm:$0xff] %v284
        %319 = vst [vmem:[#allocation2 + $0x100] sm:$0xff] %v280
        %320 = vst [vmem:[#allocation2 + $0x108] sm:$0xff] %v284
        %321 = vst [vmem:[#allocation2 + $0x110] sm:$0xff] %v280
        %322 = vst [vmem:[#allocation2 + $0x118] sm:$0xff] %v284
        %323 = vst [vmem:[#allocation2 + $0x120] sm:$0xff] %v280
        %324 = vst [vmem:[#allocation2 + $0x128] sm:$0xff] %v284
        %325 = vst [vmem:[#allocation2 + $0x130] sm:$0xff] %v280
        %326 = vst [vmem:[#allocation2 + $0x138] sm:$0xff] %v284
        %327 = vst [vmem:[#allocation2 + $0x140] sm:$0xff] %v280
        %328 = vst [vmem:[#allocation2 + $0x148] sm:$0xff] %v284
        %329 = vst [vmem:[#allocation2 + $0x150] sm:$0xff] %v280
        %330 = vst [vmem:[#allocation2 + $0x158] sm:$0xff] %v284
        %331 = vst [vmem:[#allocation2 + $0x160] sm:$0xff] %v280
        %332 = vst [vmem:[#allocation2 + $0x168] sm:$0xff] %v284
        %333 = vst [vmem:[#allocation2 + $0x170] sm:$0xff] %v280
        %334 = vst [vmem:[#allocation2 + $0x178] sm:$0xff] %v284
        %335 = vst [vmem:[#allocation2 + $0x180] sm:$0xff] %v280
        %336 = vst [vmem:[#allocation2 + $0x188] sm:$0xff] %v284
        %337 = vst [vmem:[#allocation2 + $0x190] sm:$0xff] %v280
        %338 = vst [vmem:[#allocation2 + $0x198] sm:$0xff] %v284
        %339 = vst [vmem:[#allocation2 + $0x1a0] sm:$0xff] %v280
        %340 = vst [vmem:[#allocation2 + $0x1a8] sm:$0xff] %v284
        %341 = vst [vmem:[#allocation2 + $0x1b0] sm:$0xff] %v280
        %342 = vst [vmem:[#allocation2 + $0x1b8] sm:$0xff] %v284
        %343 = vst [vmem:[#allocation2 + $0x1c0] sm:$0xff] %v280
        %344 = vst [vmem:[#allocation2 + $0x1c8] sm:$0xff] %v284
        %345 = vst [vmem:[#allocation2 + $0x1d0] sm:$0xff] %v280
        %346 = vst [vmem:[#allocation2 + $0x1d8] sm:$0xff] %v284
        %347 = vst [vmem:[#allocation2 + $0x1e0] sm:$0xff] %v280
        %348 = vst [vmem:[#allocation2 + $0x1e8] sm:$0xff] %v284
        %349 = vst [vmem:[#allocation2 + $0x1f0] sm:$0xff] %v280
        %350 = vst [vmem:[#allocation2 + $0x1f8] sm:$0xff] %v284
        %v351 = vld [vmem:[%s238] sm:$0xff]
        %v352 = vld [vmem:[%s238 + $0x8] sm:$0xff]
        %v353 = vld [vmem:[%s238 + $0x10] sm:$0xff]
        %v354 = vld [vmem:[%s238 + $0x18] sm:$0xff]
        %v355 = vld [vmem:[%s238 + $0x20] sm:$0xff]
        %v356 = vld [vmem:[%s238 + $0x28] sm:$0xff]
        %v357 = vld [vmem:[%s238 + $0x30] sm:$0xff]
        %v358 = vld [vmem:[%s238 + $0x38] sm:$0xff]
        %v359 = vld [vmem:[%s238 + $0x40] sm:$0xff]
        %v360 = vld [vmem:[%s238 + $0x48] sm:$0xff]
        %v361 = vld [vmem:[%s238 + $0x50] sm:$0xff]
        %v362 = vld [vmem:[%s238 + $0x58] sm:$0xff]
        %v363 = vld [vmem:[%s238 + $0x60] sm:$0xff]
        %v364 = vld [vmem:[%s238 + $0x68] sm:$0xff]
        %v365 = vld [vmem:[%s238 + $0x70] sm:$0xff]
        %v366 = vld [vmem:[%s238 + $0x78] sm:$0xff]
        %v367 = vld [vmem:[%s238 + $0x80] sm:$0xff]
        %v368 = vld [vmem:[%s238 + $0x88] sm:$0xff]
        %v369 = vld [vmem:[%s238 + $0x90] sm:$0xff]
        %v370 = vld [vmem:[%s238 + $0x98] sm:$0xff]
        %v371 = vld [vmem:[%s238 + $0xa0] sm:$0xff]
        %v372 = vld [vmem:[%s238 + $0xa8] sm:$0xff]
        %v373 = vld [vmem:[%s238 + $0xb0] sm:$0xff]
        %v374 = vld [vmem:[%s238 + $0xb8] sm:$0xff]
        %v375 = vld [vmem:[%s238 + $0xc0] sm:$0xff]
        %v376 = vld [vmem:[%s238 + $0xc8] sm:$0xff]
        %v377 = vld [vmem:[%s238 + $0xd0] sm:$0xff]
        %v378 = vld [vmem:[%s238 + $0xd8] sm:$0xff]
        %v379 = vld [vmem:[%s238 + $0xe0] sm:$0xff]
        %v380 = vld [vmem:[%s238 + $0xe8] sm:$0xff]
        %v381 = vld [vmem:[%s238 + $0xf0] sm:$0xff]
        %v382 = vld [vmem:[%s238 + $0xf8] sm:$0xff]
        %v383 = vld [vmem:[%s238 + $0x100] sm:$0xff]
        %v384 = vld [vmem:[%s238 + $0x108] sm:$0xff]
        %v385 = vld [vmem:[%s238 + $0x110] sm:$0xff]
        %v386 = vld [vmem:[%s238 + $0x118] sm:$0xff]
        %v387 = vld [vmem:[%s238 + $0x120] sm:$0xff]
        %v388 = vld [vmem:[%s238 + $0x128] sm:$0xff]
        %v389 = vld [vmem:[%s238 + $0x130] sm:$0xff]
        %v390 = vld [vmem:[%s238 + $0x138] sm:$0xff]
        %v391 = vld [vmem:[%s238 + $0x140] sm:$0xff]
        %v392 = vld [vmem:[%s238 + $0x148] sm:$0xff]
        %v393 = vld [vmem:[%s238 + $0x150] sm:$0xff]
        %v394 = vld [vmem:[%s238 + $0x158] sm:$0xff]
        %v395 = vld [vmem:[%s238 + $0x160] sm:$0xff]
        %v396 = vld [vmem:[%s238 + $0x168] sm:$0xff]
        %v397 = vld [vmem:[%s238 + $0x170] sm:$0xff]
        %v398 = vld [vmem:[%s238 + $0x178] sm:$0xff]
        %v399 = vld [vmem:[%s238 + $0x180] sm:$0xff]
        %v400 = vld [vmem:[%s238 + $0x188] sm:$0xff]
        %v401 = vld [vmem:[%s238 + $0x190] sm:$0xff]
        %v402 = vld [vmem:[%s238 + $0x198] sm:$0xff]
        %v403 = vld [vmem:[%s238 + $0x1a0] sm:$0xff]
        %v404 = vld [vmem:[%s238 + $0x1a8] sm:$0xff]
        %v405 = vld [vmem:[%s238 + $0x1b0] sm:$0xff]
        %v406 = vld [vmem:[%s238 + $0x1b8] sm:$0xff]
        %v407 = vld [vmem:[%s238 + $0x1c0] sm:$0xff]
        %v408 = vld [vmem:[%s238 + $0x1c8] sm:$0xff]
        %v409 = vld [vmem:[%s238 + $0x1d0] sm:$0xff]
        %v410 = vld [vmem:[%s238 + $0x1d8] sm:$0xff]
        %v411 = vld [vmem:[%s238 + $0x1e0] sm:$0xff]
        %v412 = vld [vmem:[%s238 + $0x1e8] sm:$0xff]
        %v413 = vld [vmem:[%s238 + $0x1f0] sm:$0xff]
        %v414 = vld [vmem:[%s238 + $0x1f8] sm:$0xff]
        %v415 = vpack.c.bf16 %v353, %v351
        %v416 = vpack.c.bf16 %v354, %v352
        %v417 = vpack.c.bf16 %v357, %v355
        %v418 = vpack.c.bf16 %v358, %v356
        %v419 = vpack.c.bf16 %v361, %v359
        %v420 = vpack.c.bf16 %v362, %v360
        %v421 = vpack.c.bf16 %v365, %v363
        %v422 = vpack.c.bf16 %v366, %v364
        %v423 = vpack.c.bf16 %v369, %v367
        %v424 = vpack.c.bf16 %v370, %v368
        %v425 = vpack.c.bf16 %v373, %v371
        %v426 = vpack.c.bf16 %v374, %v372
        %v427 = vpack.c.bf16 %v377, %v375
        %v428 = vpack.c.bf16 %v378, %v376
        %v429 = vpack.c.bf16 %v381, %v379
        %v430 = vpack.c.bf16 %v382, %v380
        %v431 = vpack.c.bf16 %v385, %v383
        %v432 = vpack.c.bf16 %v386, %v384
        %v433 = vpack.c.bf16 %v389, %v387
        %v434 = vpack.c.bf16 %v390, %v388
        %v435 = vpack.c.bf16 %v393, %v391
        %v436 = vpack.c.bf16 %v394, %v392
        %v437 = vpack.c.bf16 %v397, %v395
        %v438 = vpack.c.bf16 %v398, %v396
        %v439 = vpack.c.bf16 %v401, %v399
        %v440 = vpack.c.bf16 %v402, %v400
        %v441 = vpack.c.bf16 %v405, %v403
        %v442 = vpack.c.bf16 %v406, %v404
        %v443 = vpack.c.bf16 %v409, %v407
        %v444 = vpack.c.bf16 %v410, %v408
        %v445 = vpack.c.bf16 %v413, %v411
        %v446 = vpack.c.bf16 %v414, %v412
        %v447 = vld [vmem:[#allocation6] sm:$0xff]
        %v448 = vld [vmem:[#allocation6 + $0x8] sm:$0xff]
        %v449 = vld [vmem:[#allocation6 + $0x10] sm:$0xff]
        %v450 = vld [vmem:[#allocation6 + $0x18] sm:$0xff]
        %v451 = vld [vmem:[#allocation6 + $0x20] sm:$0xff]
        %v452 = vld [vmem:[#allocation6 + $0x28] sm:$0xff]
        %v453 = vld [vmem:[#allocation6 + $0x30] sm:$0xff]
        %v454 = vld [vmem:[#allocation6 + $0x38] sm:$0xff]
        %v455 = vld [vmem:[#allocation6 + $0x40] sm:$0xff]
        %v456 = vld [vmem:[#allocation6 + $0x48] sm:$0xff]
        %v457 = vld [vmem:[#allocation6 + $0x50] sm:$0xff]
        %v458 = vld [vmem:[#allocation6 + $0x58] sm:$0xff]
        %v459 = vld [vmem:[#allocation6 + $0x60] sm:$0xff]
        %v460 = vld [vmem:[#allocation6 + $0x68] sm:$0xff]
        %v461 = vld [vmem:[#allocation6 + $0x70] sm:$0xff]
        %v462 = vld [vmem:[#allocation6 + $0x78] sm:$0xff]
        %v463 = vld [vmem:[#allocation6 + $0x80] sm:$0xff]
        %v464 = vld [vmem:[#allocation6 + $0x88] sm:$0xff]
        %v465 = vld [vmem:[#allocation6 + $0x90] sm:$0xff]
        %v466 = vld [vmem:[#allocation6 + $0x98] sm:$0xff]
        %v467 = vld [vmem:[#allocation6 + $0xa0] sm:$0xff]
        %v468 = vld [vmem:[#allocation6 + $0xa8] sm:$0xff]
        %v469 = vld [vmem:[#allocation6 + $0xb0] sm:$0xff]
        %v470 = vld [vmem:[#allocation6 + $0xb8] sm:$0xff]
        %v471 = vld [vmem:[#allocation6 + $0xc0] sm:$0xff]
        %v472 = vld [vmem:[#allocation6 + $0xc8] sm:$0xff]
        %v473 = vld [vmem:[#allocation6 + $0xd0] sm:$0xff]
        %v474 = vld [vmem:[#allocation6 + $0xd8] sm:$0xff]
        %v475 = vld [vmem:[#allocation6 + $0xe0] sm:$0xff]
        %v476 = vld [vmem:[#allocation6 + $0xe8] sm:$0xff]
        %v477 = vld [vmem:[#allocation6 + $0xf0] sm:$0xff]
        %v478 = vld [vmem:[#allocation6 + $0xf8] sm:$0xff]
        %v479 = vld [vmem:[#allocation6 + $0x100] sm:$0xff]
        %v480 = vld [vmem:[#allocation6 + $0x108] sm:$0xff]
        %v481 = vld [vmem:[#allocation6 + $0x110] sm:$0xff]
        %v482 = vld [vmem:[#allocation6 + $0x118] sm:$0xff]
        %v483 = vld [vmem:[#allocation6 + $0x120] sm:$0xff]
        %v484 = vld [vmem:[#allocation6 + $0x128] sm:$0xff]
        %v485 = vld [vmem:[#allocation6 + $0x130] sm:$0xff]
        %v486 = vld [vmem:[#allocation6 + $0x138] sm:$0xff]
        %v487 = vld [vmem:[#allocation6 + $0x140] sm:$0xff]
        %v488 = vld [vmem:[#allocation6 + $0x148] sm:$0xff]
        %v489 = vld [vmem:[#allocation6 + $0x150] sm:$0xff]
        %v490 = vld [vmem:[#allocation6 + $0x158] sm:$0xff]
        %v491 = vld [vmem:[#allocation6 + $0x160] sm:$0xff]
        %v492 = vld [vmem:[#allocation6 + $0x168] sm:$0xff]
        %v493 = vld [vmem:[#allocation6 + $0x170] sm:$0xff]
        %v494 = vld [vmem:[#allocation6 + $0x178] sm:$0xff]
        %v495 = vld [vmem:[#allocation6 + $0x180] sm:$0xff]
        %v496 = vld [vmem:[#allocation6 + $0x188] sm:$0xff]
        %v497 = vld [vmem:[#allocation6 + $0x190] sm:$0xff]
        %v498 = vld [vmem:[#allocation6 + $0x198] sm:$0xff]
        %v499 = vld [vmem:[#allocation6 + $0x1a0] sm:$0xff]
        %v500 = vld [vmem:[#allocation6 + $0x1a8] sm:$0xff]
        %v501 = vld [vmem:[#allocation6 + $0x1b0] sm:$0xff]
        %v502 = vld [vmem:[#allocation6 + $0x1b8] sm:$0xff]
        %v503 = vld [vmem:[#allocation6 + $0x1c0] sm:$0xff]
        %v504 = vld [vmem:[#allocation6 + $0x1c8] sm:$0xff]
        %v505 = vld [vmem:[#allocation6 + $0x1d0] sm:$0xff]
        %v506 = vld [vmem:[#allocation6 + $0x1d8] sm:$0xff]
        %v507 = vld [vmem:[#allocation6 + $0x1e0] sm:$0xff]
        %v508 = vld [vmem:[#allocation6 + $0x1e8] sm:$0xff]
        %v509 = vld [vmem:[#allocation6 + $0x1f0] sm:$0xff]
        %v510 = vld [vmem:[#allocation6 + $0x1f8] sm:$0xff]
        %v511 = vld [vmem:[%s2] sm:$0xf]
        %v513 = vlaneseq
        %v514 = vshrl.u32 %v513, 7
        %v515 = vsub.s32 0, %v514
        %v516 = vrot.slane %v511, %v515
        %v517 = vlaneseq
        %v518 = vshrl.u32 %v517, 7
        %v519 = vsub.s32 1, %v518
        %v520 = vrot.slane %v511, %v519
        %v521 = vlaneseq
        %v522 = vshrl.u32 %v521, 7
        %v523 = vsub.s32 2, %v522
        %v524 = vrot.slane %v511, %v523
        %v525 = vlaneseq
        %v526 = vshrl.u32 %v525, 7
        %v527 = vsub.s32 3, %v526
        %v528 = vrot.slane %v511, %v527
        %v597 = vunpack.c.l.b16 %v447
        %v598 = vunpack.c.h.b16 %v447
        %v599 = vunpack.c.l.b16 %v448
        %v600 = vunpack.c.h.b16 %v448
        %v601 = vunpack.c.l.b16 %v449
        %v602 = vunpack.c.h.b16 %v449
        %v603 = vunpack.c.l.b16 %v450
        %v604 = vunpack.c.h.b16 %v450
        %v605 = vunpack.c.l.b16 %v451
        %v606 = vunpack.c.h.b16 %v451
        %v607 = vunpack.c.l.b16 %v452
        %v608 = vunpack.c.h.b16 %v452
        %v609 = vunpack.c.l.b16 %v453
        %v610 = vunpack.c.h.b16 %v453
        %v611 = vunpack.c.l.b16 %v454
        %v612 = vunpack.c.h.b16 %v454
        %v613 = vunpack.c.l.b16 %v455
        %v614 = vunpack.c.h.b16 %v455
        %v615 = vunpack.c.l.b16 %v456
        %v616 = vunpack.c.h.b16 %v456
        %v617 = vunpack.c.l.b16 %v457
        %v618 = vunpack.c.h.b16 %v457
        %v619 = vunpack.c.l.b16 %v458
        %v620 = vunpack.c.h.b16 %v458
        %v621 = vunpack.c.l.b16 %v459
        %v622 = vunpack.c.h.b16 %v459
        %v623 = vunpack.c.l.b16 %v460
        %v624 = vunpack.c.h.b16 %v460
        %v625 = vunpack.c.l.b16 %v461
        %v626 = vunpack.c.h.b16 %v461
        %v627 = vunpack.c.l.b16 %v462
        %v628 = vunpack.c.h.b16 %v462
        %v629 = vunpack.c.l.b16 %v463
        %v630 = vunpack.c.h.b16 %v463
        %v631 = vunpack.c.l.b16 %v464
        %v632 = vunpack.c.h.b16 %v464
        %v633 = vunpack.c.l.b16 %v465
        %v634 = vunpack.c.h.b16 %v465
        %v635 = vunpack.c.l.b16 %v466
        %v636 = vunpack.c.h.b16 %v466
        %v637 = vunpack.c.l.b16 %v467
        %v638 = vunpack.c.h.b16 %v467
        %v639 = vunpack.c.l.b16 %v468
        %v640 = vunpack.c.h.b16 %v468
        %v641 = vunpack.c.l.b16 %v469
        %v642 = vunpack.c.h.b16 %v469
        %v643 = vunpack.c.l.b16 %v470
        %v644 = vunpack.c.h.b16 %v470
        %v645 = vunpack.c.l.b16 %v471
        %v646 = vunpack.c.h.b16 %v471
        %v647 = vunpack.c.l.b16 %v472
        %v648 = vunpack.c.h.b16 %v472
        %v649 = vunpack.c.l.b16 %v473
        %v650 = vunpack.c.h.b16 %v473
        %v651 = vunpack.c.l.b16 %v474
        %v652 = vunpack.c.h.b16 %v474
        %v653 = vunpack.c.l.b16 %v475
        %v654 = vunpack.c.h.b16 %v475
        %v655 = vunpack.c.l.b16 %v476
        %v656 = vunpack.c.h.b16 %v476
        %v657 = vunpack.c.l.b16 %v477
        %v658 = vunpack.c.h.b16 %v477
        %v659 = vunpack.c.l.b16 %v478
        %v660 = vunpack.c.h.b16 %v478
        %v661 = vunpack.c.l.b16 %v479
        %v662 = vunpack.c.h.b16 %v479
        %v663 = vunpack.c.l.b16 %v480
        %v664 = vunpack.c.h.b16 %v480
        %v665 = vunpack.c.l.b16 %v481
        %v666 = vunpack.c.h.b16 %v481
        %v667 = vunpack.c.l.b16 %v482
        %v668 = vunpack.c.h.b16 %v482
        %v669 = vunpack.c.l.b16 %v483
        %v670 = vunpack.c.h.b16 %v483
        %v671 = vunpack.c.l.b16 %v484
        %v672 = vunpack.c.h.b16 %v484
        %v673 = vunpack.c.l.b16 %v485
        %v674 = vunpack.c.h.b16 %v485
        %v675 = vunpack.c.l.b16 %v486
        %v676 = vunpack.c.h.b16 %v486
        %v677 = vunpack.c.l.b16 %v487
        %v678 = vunpack.c.h.b16 %v487
        %v679 = vunpack.c.l.b16 %v488
        %v680 = vunpack.c.h.b16 %v488
        %v681 = vunpack.c.l.b16 %v489
        %v682 = vunpack.c.h.b16 %v489
        %v683 = vunpack.c.l.b16 %v490
        %v684 = vunpack.c.h.b16 %v490
        %v685 = vunpack.c.l.b16 %v491
        %v686 = vunpack.c.h.b16 %v491
        %v687 = vunpack.c.l.b16 %v492
        %v688 = vunpack.c.h.b16 %v492
        %v689 = vunpack.c.l.b16 %v493
        %v690 = vunpack.c.h.b16 %v493
        %v691 = vunpack.c.l.b16 %v494
        %v692 = vunpack.c.h.b16 %v494
        %v693 = vunpack.c.l.b16 %v495
        %v694 = vunpack.c.h.b16 %v495
        %v695 = vunpack.c.l.b16 %v496
        %v696 = vunpack.c.h.b16 %v496
        %v697 = vunpack.c.l.b16 %v497
        %v698 = vunpack.c.h.b16 %v497
        %v699 = vunpack.c.l.b16 %v498
        %v700 = vunpack.c.h.b16 %v498
        %v701 = vunpack.c.l.b16 %v499
        %v702 = vunpack.c.h.b16 %v499
        %v703 = vunpack.c.l.b16 %v500
        %v704 = vunpack.c.h.b16 %v500
        %v705 = vunpack.c.l.b16 %v501
        %v706 = vunpack.c.h.b16 %v501
        %v707 = vunpack.c.l.b16 %v502
        %v708 = vunpack.c.h.b16 %v502
        %v709 = vunpack.c.l.b16 %v503
        %v710 = vunpack.c.h.b16 %v503
        %v711 = vunpack.c.l.b16 %v504
        %v712 = vunpack.c.h.b16 %v504
        %v713 = vunpack.c.l.b16 %v505
        %v714 = vunpack.c.h.b16 %v505
        %v715 = vunpack.c.l.b16 %v506
        %v716 = vunpack.c.h.b16 %v506
        %v717 = vunpack.c.l.b16 %v507
        %v718 = vunpack.c.h.b16 %v507
        %v719 = vunpack.c.l.b16 %v508
        %v720 = vunpack.c.h.b16 %v508
        %v721 = vunpack.c.l.b16 %v509
        %v722 = vunpack.c.h.b16 %v509
        %v723 = vunpack.c.l.b16 %v510
        %v724 = vunpack.c.h.b16 %v510
        %v725 = vpack.c.b16 %v601, %v597
        %v726 = vpack.c.b16 %v602, %v598
        %v727 = vpack.c.b16 %v603, %v599
        %v728 = vpack.c.b16 %v604, %v600
        %v729 = vpack.c.b16 %v609, %v605
        %v730 = vpack.c.b16 %v610, %v606
        %v731 = vpack.c.b16 %v611, %v607
        %v732 = vpack.c.b16 %v612, %v608
        %v733 = vpack.c.b16 %v617, %v613
        %v734 = vpack.c.b16 %v618, %v614
        %v735 = vpack.c.b16 %v619, %v615
        %v736 = vpack.c.b16 %v620, %v616
        %v737 = vpack.c.b16 %v625, %v621
        %v738 = vpack.c.b16 %v626, %v622
        %v739 = vpack.c.b16 %v627, %v623
        %v740 = vpack.c.b16 %v628, %v624
        %v741 = vpack.c.b16 %v633, %v629
        %v742 = vpack.c.b16 %v634, %v630
        %v743 = vpack.c.b16 %v635, %v631
        %v744 = vpack.c.b16 %v636, %v632
        %v745 = vpack.c.b16 %v641, %v637
        %v746 = vpack.c.b16 %v642, %v638
        %v747 = vpack.c.b16 %v643, %v639
        %v748 = vpack.c.b16 %v644, %v640
        %v749 = vpack.c.b16 %v649, %v645
        %v750 = vpack.c.b16 %v650, %v646
        %v751 = vpack.c.b16 %v651, %v647
        %v752 = vpack.c.b16 %v652, %v648
        %v753 = vpack.c.b16 %v657, %v653
        %v754 = vpack.c.b16 %v658, %v654
        %v755 = vpack.c.b16 %v659, %v655
        %v756 = vpack.c.b16 %v660, %v656
        %v757 = vpack.c.b16 %v665, %v661
        %v758 = vpack.c.b16 %v666, %v662
        %v759 = vpack.c.b16 %v667, %v663
        %v760 = vpack.c.b16 %v668, %v664
        %v761 = vpack.c.b16 %v673, %v669
        %v762 = vpack.c.b16 %v674, %v670
        %v763 = vpack.c.b16 %v675, %v671
        %v764 = vpack.c.b16 %v676, %v672
        %v765 = vpack.c.b16 %v681, %v677
        %v766 = vpack.c.b16 %v682, %v678
        %v767 = vpack.c.b16 %v683, %v679
        %v768 = vpack.c.b16 %v684, %v680
        %v769 = vpack.c.b16 %v689, %v685
        %v770 = vpack.c.b16 %v690, %v686
        %v771 = vpack.c.b16 %v691, %v687
        %v772 = vpack.c.b16 %v692, %v688
        %v773 = vpack.c.b16 %v697, %v693
        %v774 = vpack.c.b16 %v698, %v694
        %v775 = vpack.c.b16 %v699, %v695
        %v776 = vpack.c.b16 %v700, %v696
        %v777 = vpack.c.b16 %v705, %v701
        %v778 = vpack.c.b16 %v706, %v702
        %v779 = vpack.c.b16 %v707, %v703
        %v780 = vpack.c.b16 %v708, %v704
        %v781 = vpack.c.b16 %v713, %v709
        %v782 = vpack.c.b16 %v714, %v710
        %v783 = vpack.c.b16 %v715, %v711
        %v784 = vpack.c.b16 %v716, %v712
        %v785 = vpack.c.b16 %v721, %v717
        %v786 = vpack.c.b16 %v722, %v718
        %v787 = vpack.c.b16 %v723, %v719
        %v788 = vpack.c.b16 %v724, %v720
        %853 = vmatprep.subr.bf16.mxu0 %v726
        %854 = vmatpush1.bf16.msra.mxu0 %v725
        %855 = vmatprep.subr.bf16.mxu0 %v730
        %856 = vmatpush1.bf16.msra.mxu0 %v729
        %857 = vmatprep.subr.bf16.mxu0 %v734
        %858 = vmatpush1.bf16.msra.mxu0 %v733
        %859 = vmatprep.subr.bf16.mxu0 %v738
        %860 = vmatpush1.bf16.msra.mxu0 %v737
        %861 = vmatprep.subr.bf16.mxu0 %v742
        %862 = vmatpush1.bf16.msra.mxu0 %v741
        %863 = vmatprep.subr.bf16.mxu0 %v746
        %864 = vmatpush1.bf16.msra.mxu0 %v745
        %865 = vmatprep.subr.bf16.mxu0 %v750
        %866 = vmatpush1.bf16.msra.mxu0 %v749
        %867 = vmatprep.subr.bf16.mxu0 %v754
        %868 = vmatpush1.bf16.msra.mxu0 %v753
        %869 = vmatprep.subr.bf16.mxu0 %v758
        %870 = vmatpush1.bf16.msra.mxu0 %v757
        %871 = vmatprep.subr.bf16.mxu0 %v762
        %872 = vmatpush1.bf16.msra.mxu0 %v761
        %873 = vmatprep.subr.bf16.mxu0 %v766
        %874 = vmatpush1.bf16.msra.mxu0 %v765
        %875 = vmatprep.subr.bf16.mxu0 %v770
        %876 = vmatpush1.bf16.msra.mxu0 %v769
        %877 = vmatprep.subr.bf16.mxu0 %v774
        %878 = vmatpush1.bf16.msra.mxu0 %v773
        %879 = vmatprep.subr.bf16.mxu0 %v778
        %880 = vmatpush1.bf16.msra.mxu0 %v777
        %881 = vmatprep.subr.bf16.mxu0 %v782
        %882 = vmatpush1.bf16.msra.mxu0 %v781
        %883 = vmatprep.subr.bf16.mxu0 %v786
        %884 = vmatpush1.bf16.msra.mxu0 %v785
        %885 = vmatprep.mubr.bf16.mxu0 %v416
        %886 = vmatmul.mubr.bf16.gmra.mrb[0].mxu0 %v415
        %v887 = vpop.f32.mrb[0].mxu0
        %v888 = vadd.f32 %v516, %v887
        %v889 = vpop.f32.mrb[0].mxu0
        %v890 = vadd.f32 %v520, %v889
        %v891 = vpop.f32.mrb[0].mxu0
        %v892 = vadd.f32 %v516, %v891
        %v893 = vpop.f32.mrb[0].mxu0
        %v894 = vadd.f32 %v520, %v893
        %895 = vmatprep.mubr.bf16.mxu0 %v418
        %896 = vmatmul.mubr.bf16.gmra.mrb[0].mxu0 %v417
        %v897 = vpop.f32.mrb[0].mxu0
        %v898 = vadd.f32 %v516, %v897
        %v899 = vpop.f32.mrb[0].mxu0
        %v900 = vadd.f32 %v520, %v899
        %v901 = vpop.f32.mrb[0].mxu0
        %v902 = vadd.f32 %v516, %v901
        %v903 = vpop.f32.mrb[0].mxu0
        %v904 = vadd.f32 %v520, %v903
        %905 = vmatprep.mubr.bf16.mxu0 %v420
        %906 = vmatmul.mubr.bf16.gmra.mrb[0].mxu0 %v419
        %v907 = vpop.f32.mrb[0].mxu0
        %v908 = vadd.f32 %v516, %v907
        %v909 = vpop.f32.mrb[0].mxu0
        %v910 = vadd.f32 %v520, %v909
        %v911 = vpop.f32.mrb[0].mxu0
        %v912 = vadd.f32 %v516, %v911
        %v913 = vpop.f32.mrb[0].mxu0
        %v914 = vadd.f32 %v520, %v913
        %915 = vmatprep.mubr.bf16.mxu0 %v422
        %916 = vmatmul.mubr.bf16.gmra.mrb[0].mxu0 %v421
        %v917 = vpop.f32.mrb[0].mxu0
        %v918 = vadd.f32 %v516, %v917
        %v919 = vpop.f32.mrb[0].mxu0
        %v920 = vadd.f32 %v520, %v919
        %v921 = vpop.f32.mrb[0].mxu0
        %v922 = vadd.f32 %v516, %v921
        %v923 = vpop.f32.mrb[0].mxu0
        %v924 = vadd.f32 %v520, %v923
        %925 = vmatprep.mubr.bf16.mxu0 %v424
        %926 = vmatmul.mubr.bf16.gmra.mrb[0].mxu0 %v423
        %v927 = vpop.f32.mrb[0].mxu0
        %v928 = vadd.f32 %v516, %v927
        %v929 = vpop.f32.mrb[0].mxu0
        %v930 = vadd.f32 %v520, %v929
        %v931 = vpop.f32.mrb[0].mxu0
        %v932 = vadd.f32 %v516, %v931
        %v933 = vpop.f32.mrb[0].mxu0
        %v934 = vadd.f32 %v520, %v933
        %935 = vmatprep.mubr.bf16.mxu0 %v426
        %936 = vmatmul.mubr.bf16.gmra.mrb[0].mxu0 %v425
        %v937 = vpop.f32.mrb[0].mxu0
        %v938 = vadd.f32 %v516, %v937
        %v939 = vpop.f32.mrb[0].mxu0
        %v940 = vadd.f32 %v520, %v939
        %v941 = vpop.f32.mrb[0].mxu0
        %v942 = vadd.f32 %v516, %v941
        %v943 = vpop.f32.mrb[0].mxu0
        %v944 = vadd.f32 %v520, %v943
        %945 = vmatprep.mubr.bf16.mxu0 %v428
        %946 = vmatmul.mubr.bf16.gmra.mrb[0].mxu0 %v427
        %v947 = vpop.f32.mrb[0].mxu0
        %v948 = vadd.f32 %v516, %v947
        %v949 = vpop.f32.mrb[0].mxu0
        %v950 = vadd.f32 %v520, %v949
        %v951 = vpop.f32.mrb[0].mxu0
        %v952 = vadd.f32 %v516, %v951
        %v953 = vpop.f32.mrb[0].mxu0
        %v954 = vadd.f32 %v520, %v953
        %955 = vmatprep.mubr.bf16.mxu0 %v430
        %956 = vmatmul.mubr.bf16.gmra.mrb[0].mxu0 %v429
        %v957 = vpop.f32.mrb[0].mxu0
        %v958 = vadd.f32 %v516, %v957
        %v959 = vpop.f32.mrb[0].mxu0
        %v960 = vadd.f32 %v520, %v959
        %v961 = vpop.f32.mrb[0].mxu0
        %v962 = vadd.f32 %v516, %v961
        %v963 = vpop.f32.mrb[0].mxu0
        %v964 = vadd.f32 %v520, %v963
        %965 = vmatprep.mubr.bf16.mxu0 %v432
        %966 = vmatmul.mubr.bf16.gmra.mrb[0].mxu0 %v431
        %v967 = vpop.f32.mrb[0].mxu0
        %v968 = vadd.f32 %v516, %v967
        %v969 = vpop.f32.mrb[0].mxu0
        %v970 = vadd.f32 %v520, %v969
        %v971 = vpop.f32.mrb[0].mxu0
        %v972 = vadd.f32 %v516, %v971
        %v973 = vpop.f32.mrb[0].mxu0
        %v974 = vadd.f32 %v520, %v973
        %975 = vmatprep.mubr.bf16.mxu0 %v434
        %976 = vmatmul.mubr.bf16.gmra.mrb[0].mxu0 %v433
        %v977 = vpop.f32.mrb[0].mxu0
        %v978 = vadd.f32 %v516, %v977
        %v979 = vpop.f32.mrb[0].mxu0
        %v980 = vadd.f32 %v520, %v979
        %v981 = vpop.f32.mrb[0].mxu0
        %v982 = vadd.f32 %v516, %v981
        %v983 = vpop.f32.mrb[0].mxu0
        %v984 = vadd.f32 %v520, %v983
        %985 = vmatprep.mubr.bf16.mxu0 %v436
        %986 = vmatmul.mubr.bf16.gmra.mrb[0].mxu0 %v435
        %v987 = vpop.f32.mrb[0].mxu0
        %v988 = vadd.f32 %v516, %v987
        %v989 = vpop.f32.mrb[0].mxu0
        %v990 = vadd.f32 %v520, %v989
        %v991 = vpop.f32.mrb[0].mxu0
        %v992 = vadd.f32 %v516, %v991
        %v993 = vpop.f32.mrb[0].mxu0
        %v994 = vadd.f32 %v520, %v993
        %995 = vmatprep.mubr.bf16.mxu0 %v438
        %996 = vmatmul.mubr.bf16.gmra.mrb[0].mxu0 %v437
        %v997 = vpop.f32.mrb[0].mxu0
        %v998 = vadd.f32 %v516, %v997
        %v999 = vpop.f32.mrb[0].mxu0
        %v1000 = vadd.f32 %v520, %v999
        %v1001 = vpop.f32.mrb[0].mxu0
        %v1002 = vadd.f32 %v516, %v1001
        %v1003 = vpop.f32.mrb[0].mxu0
        %v1004 = vadd.f32 %v520, %v1003
        %1005 = vmatprep.mubr.bf16.mxu0 %v440
        %1006 = vmatmul.mubr.bf16.gmra.mrb[0].mxu0 %v439
        %v1007 = vpop.f32.mrb[0].mxu0
        %v1008 = vadd.f32 %v516, %v1007
        %v1009 = vpop.f32.mrb[0].mxu0
        %v1010 = vadd.f32 %v520, %v1009
        %v1011 = vpop.f32.mrb[0].mxu0
        %v1012 = vadd.f32 %v516, %v1011
        %v1013 = vpop.f32.mrb[0].mxu0
        %v1014 = vadd.f32 %v520, %v1013
        %1015 = vmatprep.mubr.bf16.mxu0 %v442
        %1016 = vmatmul.mubr.bf16.gmra.mrb[0].mxu0 %v441
        %v1017 = vpop.f32.mrb[0].mxu0
        %v1018 = vadd.f32 %v516, %v1017
        %v1019 = vpop.f32.mrb[0].mxu0
        %v1020 = vadd.f32 %v520, %v1019
        %v1021 = vpop.f32.mrb[0].mxu0
        %v1022 = vadd.f32 %v516, %v1021
        %v1023 = vpop.f32.mrb[0].mxu0
        %v1024 = vadd.f32 %v520, %v1023
        %1025 = vmatprep.mubr.bf16.mxu0 %v444
        %1026 = vmatmul.mubr.bf16.gmra.mrb[0].mxu0 %v443
        %v1027 = vpop.f32.mrb[0].mxu0
        %v1028 = vadd.f32 %v516, %v1027
        %v1029 = vpop.f32.mrb[0].mxu0
        %v1030 = vadd.f32 %v520, %v1029
        %v1031 = vpop.f32.mrb[0].mxu0
        %v1032 = vadd.f32 %v516, %v1031
        %v1033 = vpop.f32.mrb[0].mxu0
        %v1034 = vadd.f32 %v520, %v1033
        %1035 = vmatprep.mubr.bf16.mxu0 %v446
        %1036 = vmatmul.mubr.bf16.gmra.mrb[0].mxu0 %v445
        %v1037 = vpop.f32.mrb[0].mxu0
        %v1038 = vadd.f32 %v516, %v1037
        %v1039 = vpop.f32.mrb[0].mxu0
        %v1040 = vadd.f32 %v520, %v1039
        %v1041 = vpop.f32.mrb[0].mxu0
        %v1042 = vadd.f32 %v516, %v1041
        %v1043 = vpop.f32.mrb[0].mxu0
        %v1044 = vadd.f32 %v520, %v1043
        %1045 = vdwg.mxu0
        %1046 = vmatprep.subr.bf16.mxu0 %v728
        %1047 = vmatpush1.bf16.msra.mxu0 %v727
        %1048 = vmatprep.subr.bf16.mxu0 %v732
        %1049 = vmatpush1.bf16.msra.mxu0 %v731
        %1050 = vmatprep.subr.bf16.mxu0 %v736
        %1051 = vmatpush1.bf16.msra.mxu0 %v735
        %1052 = vmatprep.subr.bf16.mxu0 %v740
        %1053 = vmatpush1.bf16.msra.mxu0 %v739
        %1054 = vmatprep.subr.bf16.mxu0 %v744
        %1055 = vmatpush1.bf16.msra.mxu0 %v743
        %1056 = vmatprep.subr.bf16.mxu0 %v748
        %1057 = vmatpush1.bf16.msra.mxu0 %v747
        %1058 = vmatprep.subr.bf16.mxu0 %v752
        %1059 = vmatpush1.bf16.msra.mxu0 %v751
        %1060 = vmatprep.subr.bf16.mxu0 %v756
        %1061 = vmatpush1.bf16.msra.mxu0 %v755
        %1062 = vmatprep.subr.bf16.mxu0 %v760
        %1063 = vmatpush1.bf16.msra.mxu0 %v759
        %1064 = vmatprep.subr.bf16.mxu0 %v764
        %1065 = vmatpush1.bf16.msra.mxu0 %v763
        %1066 = vmatprep.subr.bf16.mxu0 %v768
        %1067 = vmatpush1.bf16.msra.mxu0 %v767
        %1068 = vmatprep.subr.bf16.mxu0 %v772
        %1069 = vmatpush1.bf16.msra.mxu0 %v771
        %1070 = vmatprep.subr.bf16.mxu0 %v776
        %1071 = vmatpush1.bf16.msra.mxu0 %v775
        %1072 = vmatprep.subr.bf16.mxu0 %v780
        %1073 = vmatpush1.bf16.msra.mxu0 %v779
        %1074 = vmatprep.subr.bf16.mxu0 %v784
        %1075 = vmatpush1.bf16.msra.mxu0 %v783
        %1076 = vmatprep.subr.bf16.mxu0 %v788
        %1077 = vmatpush1.bf16.msra.mxu0 %v787
        %1078 = vmatprep.mubr.bf16.mxu0 %v416
        %1079 = vmatmul.mubr.bf16.gmra.mrb[0].mxu0 %v415
        %v1080 = vpop.f32.mrb[0].mxu0
        %v1081 = vadd.f32 %v524, %v1080
        %v1082 = vpop.f32.mrb[0].mxu0
        %v1083 = vadd.f32 %v528, %v1082
        %v1084 = vpop.f32.mrb[0].mxu0
        %v1085 = vadd.f32 %v524, %v1084
        %v1086 = vpop.f32.mrb[0].mxu0
        %v1087 = vadd.f32 %v528, %v1086
        %1088 = vmatprep.mubr.bf16.mxu0 %v418
        %1089 = vmatmul.mubr.bf16.gmra.mrb[0].mxu0 %v417
        %v1090 = vpop.f32.mrb[0].mxu0
        %v1091 = vadd.f32 %v524, %v1090
        %v1092 = vpop.f32.mrb[0].mxu0
        %v1093 = vadd.f32 %v528, %v1092
        %v1094 = vpop.f32.mrb[0].mxu0
        %v1095 = vadd.f32 %v524, %v1094
        %v1096 = vpop.f32.mrb[0].mxu0
        %v1097 = vadd.f32 %v528, %v1096
        %1098 = vmatprep.mubr.bf16.mxu0 %v420
        %1099 = vmatmul.mubr.bf16.gmra.mrb[0].mxu0 %v419
        %v1100 = vpop.f32.mrb[0].mxu0
        %v1101 = vadd.f32 %v524, %v1100
        %v1102 = vpop.f32.mrb[0].mxu0
        %v1103 = vadd.f32 %v528, %v1102
        %v1104 = vpop.f32.mrb[0].mxu0
        %v1105 = vadd.f32 %v524, %v1104
        %v1106 = vpop.f32.mrb[0].mxu0
        %v1107 = vadd.f32 %v528, %v1106
        %1108 = vmatprep.mubr.bf16.mxu0 %v422
        %1109 = vmatmul.mubr.bf16.gmra.mrb[0].mxu0 %v421
        %v1110 = vpop.f32.mrb[0].mxu0
        %v1111 = vadd.f32 %v524, %v1110
        %v1112 = vpop.f32.mrb[0].mxu0
        %v1113 = vadd.f32 %v528, %v1112
        %v1114 = vpop.f32.mrb[0].mxu0
        %v1115 = vadd.f32 %v524, %v1114
        %v1116 = vpop.f32.mrb[0].mxu0
        %v1117 = vadd.f32 %v528, %v1116
        %1118 = vmatprep.mubr.bf16.mxu0 %v424
        %1119 = vmatmul.mubr.bf16.gmra.mrb[0].mxu0 %v423
        %v1120 = vpop.f32.mrb[0].mxu0
        %v1121 = vadd.f32 %v524, %v1120
        %v1122 = vpop.f32.mrb[0].mxu0
        %v1123 = vadd.f32 %v528, %v1122
        %v1124 = vpop.f32.mrb[0].mxu0
        %v1125 = vadd.f32 %v524, %v1124
        %v1126 = vpop.f32.mrb[0].mxu0
        %v1127 = vadd.f32 %v528, %v1126
        %1128 = vmatprep.mubr.bf16.mxu0 %v426
        %1129 = vmatmul.mubr.bf16.gmra.mrb[0].mxu0 %v425
        %v1130 = vpop.f32.mrb[0].mxu0
        %v1131 = vadd.f32 %v524, %v1130
        %v1132 = vpop.f32.mrb[0].mxu0
        %v1133 = vadd.f32 %v528, %v1132
        %v1134 = vpop.f32.mrb[0].mxu0
        %v1135 = vadd.f32 %v524, %v1134
        %v1136 = vpop.f32.mrb[0].mxu0
        %v1137 = vadd.f32 %v528, %v1136
        %1138 = vmatprep.mubr.bf16.mxu0 %v428
        %1139 = vmatmul.mubr.bf16.gmra.mrb[0].mxu0 %v427
        %v1140 = vpop.f32.mrb[0].mxu0
        %v1141 = vadd.f32 %v524, %v1140
        %v1142 = vpop.f32.mrb[0].mxu0
        %v1143 = vadd.f32 %v528, %v1142
        %v1144 = vpop.f32.mrb[0].mxu0
        %v1145 = vadd.f32 %v524, %v1144
        %v1146 = vpop.f32.mrb[0].mxu0
        %v1147 = vadd.f32 %v528, %v1146
        %1148 = vmatprep.mubr.bf16.mxu0 %v430
        %1149 = vmatmul.mubr.bf16.gmra.mrb[0].mxu0 %v429
        %v1150 = vpop.f32.mrb[0].mxu0
        %v1151 = vadd.f32 %v524, %v1150
        %v1152 = vpop.f32.mrb[0].mxu0
        %v1153 = vadd.f32 %v528, %v1152
        %v1154 = vpop.f32.mrb[0].mxu0
        %v1155 = vadd.f32 %v524, %v1154
        %v1156 = vpop.f32.mrb[0].mxu0
        %v1157 = vadd.f32 %v528, %v1156
        %1158 = vmatprep.mubr.bf16.mxu0 %v432
        %1159 = vmatmul.mubr.bf16.gmra.mrb[0].mxu0 %v431
        %v1160 = vpop.f32.mrb[0].mxu0
        %v1161 = vadd.f32 %v524, %v1160
        %v1162 = vpop.f32.mrb[0].mxu0
        %v1163 = vadd.f32 %v528, %v1162
        %v1164 = vpop.f32.mrb[0].mxu0
        %v1165 = vadd.f32 %v524, %v1164
        %v1166 = vpop.f32.mrb[0].mxu0
        %v1167 = vadd.f32 %v528, %v1166
        %1168 = vmatprep.mubr.bf16.mxu0 %v434
        %1169 = vmatmul.mubr.bf16.gmra.mrb[0].mxu0 %v433
        %v1170 = vpop.f32.mrb[0].mxu0
        %v1171 = vadd.f32 %v524, %v1170
        %v1172 = vpop.f32.mrb[0].mxu0
        %v1173 = vadd.f32 %v528, %v1172
        %v1174 = vpop.f32.mrb[0].mxu0
        %v1175 = vadd.f32 %v524, %v1174
        %v1176 = vpop.f32.mrb[0].mxu0
        %v1177 = vadd.f32 %v528, %v1176
        %1178 = vmatprep.mubr.bf16.mxu0 %v436
        %1179 = vmatmul.mubr.bf16.gmra.mrb[0].mxu0 %v435
        %v1180 = vpop.f32.mrb[0].mxu0
        %v1181 = vadd.f32 %v524, %v1180
        %v1182 = vpop.f32.mrb[0].mxu0
        %v1183 = vadd.f32 %v528, %v1182
        %v1184 = vpop.f32.mrb[0].mxu0
        %v1185 = vadd.f32 %v524, %v1184
        %v1186 = vpop.f32.mrb[0].mxu0
        %v1187 = vadd.f32 %v528, %v1186
        %1188 = vmatprep.mubr.bf16.mxu0 %v438
        %1189 = vmatmul.mubr.bf16.gmra.mrb[0].mxu0 %v437
        %v1190 = vpop.f32.mrb[0].mxu0
        %v1191 = vadd.f32 %v524, %v1190
        %v1192 = vpop.f32.mrb[0].mxu0
        %v1193 = vadd.f32 %v528, %v1192
        %v1194 = vpop.f32.mrb[0].mxu0
        %v1195 = vadd.f32 %v524, %v1194
        %v1196 = vpop.f32.mrb[0].mxu0
        %v1197 = vadd.f32 %v528, %v1196
        %1198 = vmatprep.mubr.bf16.mxu0 %v440
        %1199 = vmatmul.mubr.bf16.gmra.mrb[0].mxu0 %v439
        %v1200 = vpop.f32.mrb[0].mxu0
        %v1201 = vadd.f32 %v524, %v1200
        %v1202 = vpop.f32.mrb[0].mxu0
        %v1203 = vadd.f32 %v528, %v1202
        %v1204 = vpop.f32.mrb[0].mxu0
        %v1205 = vadd.f32 %v524, %v1204
        %v1206 = vpop.f32.mrb[0].mxu0
        %v1207 = vadd.f32 %v528, %v1206
        %1208 = vmatprep.mubr.bf16.mxu0 %v442
        %1209 = vmatmul.mubr.bf16.gmra.mrb[0].mxu0 %v441
        %v1210 = vpop.f32.mrb[0].mxu0
        %v1211 = vadd.f32 %v524, %v1210
        %v1212 = vpop.f32.mrb[0].mxu0
        %v1213 = vadd.f32 %v528, %v1212
        %v1214 = vpop.f32.mrb[0].mxu0
        %v1215 = vadd.f32 %v524, %v1214
        %v1216 = vpop.f32.mrb[0].mxu0
        %v1217 = vadd.f32 %v528, %v1216
        %1218 = vmatprep.mubr.bf16.mxu0 %v444
        %1219 = vmatmul.mubr.bf16.gmra.mrb[0].mxu0 %v443
        %v1220 = vpop.f32.mrb[0].mxu0
        %v1221 = vadd.f32 %v524, %v1220
        %v1222 = vpop.f32.mrb[0].mxu0
        %v1223 = vadd.f32 %v528, %v1222
        %v1224 = vpop.f32.mrb[0].mxu0
        %v1225 = vadd.f32 %v524, %v1224
        %v1226 = vpop.f32.mrb[0].mxu0
        %v1227 = vadd.f32 %v528, %v1226
        %1228 = vmatprep.mubr.bf16.mxu0 %v446
        %1229 = vmatmul.mubr.bf16.gmra.mrb[0].mxu0 %v445
        %v1230 = vpop.f32.mrb[0].mxu0
        %v1231 = vadd.f32 %v524, %v1230
        %v1232 = vpop.f32.mrb[0].mxu0
        %v1233 = vadd.f32 %v528, %v1232
        %v1234 = vpop.f32.mrb[0].mxu0
        %v1235 = vadd.f32 %v524, %v1234
        %v1236 = vpop.f32.mrb[0].mxu0
        %v1237 = vadd.f32 %v528, %v1236
        %1238 = vdwg.mxu0
        %v1239 = vmul.f32 %v888, %v888
        %v1240 = vmul.f32 %v890, %v890
        %v1241 = vmul.f32 %v1081, %v1081
        %v1242 = vmul.f32 %v1083, %v1083
        %v1243 = vmul.f32 %v892, %v892
        %v1244 = vmul.f32 %v894, %v894
        %v1245 = vmul.f32 %v1085, %v1085
        %v1246 = vmul.f32 %v1087, %v1087
        %v1247 = vmul.f32 %v898, %v898
        %v1248 = vmul.f32 %v900, %v900
        %v1249 = vmul.f32 %v1091, %v1091
        %v1250 = vmul.f32 %v1093, %v1093
        %v1251 = vmul.f32 %v902, %v902
        %v1252 = vmul.f32 %v904, %v904
        %v1253 = vmul.f32 %v1095, %v1095
        %v1254 = vmul.f32 %v1097, %v1097
        %v1255 = vmul.f32 %v908, %v908
        %v1256 = vmul.f32 %v910, %v910
        %v1257 = vmul.f32 %v1101, %v1101
        %v1258 = vmul.f32 %v1103, %v1103
        %v1259 = vmul.f32 %v912, %v912
        %v1260 = vmul.f32 %v914, %v914
        %v1261 = vmul.f32 %v1105, %v1105
        %v1262 = vmul.f32 %v1107, %v1107
        %v1263 = vmul.f32 %v918, %v918
        %v1264 = vmul.f32 %v920, %v920
        %v1265 = vmul.f32 %v1111, %v1111
        %v1266 = vmul.f32 %v1113, %v1113
        %v1267 = vmul.f32 %v922, %v922
        %v1268 = vmul.f32 %v924, %v924
        %v1269 = vmul.f32 %v1115, %v1115
        %v1270 = vmul.f32 %v1117, %v1117
        %v1271 = vmul.f32 %v928, %v928
        %v1272 = vmul.f32 %v930, %v930
        %v1273 = vmul.f32 %v1121, %v1121
        %v1274 = vmul.f32 %v1123, %v1123
        %v1275 = vmul.f32 %v932, %v932
        %v1276 = vmul.f32 %v934, %v934
        %v1277 = vmul.f32 %v1125, %v1125
        %v1278 = vmul.f32 %v1127, %v1127
        %v1279 = vmul.f32 %v938, %v938
        %v1280 = vmul.f32 %v940, %v940
        %v1281 = vmul.f32 %v1131, %v1131
        %v1282 = vmul.f32 %v1133, %v1133
        %v1283 = vmul.f32 %v942, %v942
        %v1284 = vmul.f32 %v944, %v944
        %v1285 = vmul.f32 %v1135, %v1135
        %v1286 = vmul.f32 %v1137, %v1137
        %v1287 = vmul.f32 %v948, %v948
        %v1288 = vmul.f32 %v950, %v950
        %v1289 = vmul.f32 %v1141, %v1141
        %v1290 = vmul.f32 %v1143, %v1143
        %v1291 = vmul.f32 %v952, %v952
        %v1292 = vmul.f32 %v954, %v954
        %v1293 = vmul.f32 %v1145, %v1145
        %v1294 = vmul.f32 %v1147, %v1147
        %v1295 = vmul.f32 %v958, %v958
        %v1296 = vmul.f32 %v960, %v960
        %v1297 = vmul.f32 %v1151, %v1151
        %v1298 = vmul.f32 %v1153, %v1153
        %v1299 = vmul.f32 %v962, %v962
        %v1300 = vmul.f32 %v964, %v964
        %v1301 = vmul.f32 %v1155, %v1155
        %v1302 = vmul.f32 %v1157, %v1157
        %v1303 = vmul.f32 %v968, %v968
        %v1304 = vmul.f32 %v970, %v970
        %v1305 = vmul.f32 %v1161, %v1161
        %v1306 = vmul.f32 %v1163, %v1163
        %v1307 = vmul.f32 %v972, %v972
        %v1308 = vmul.f32 %v974, %v974
        %v1309 = vmul.f32 %v1165, %v1165
        %v1310 = vmul.f32 %v1167, %v1167
        %v1311 = vmul.f32 %v978, %v978
        %v1312 = vmul.f32 %v980, %v980
        %v1313 = vmul.f32 %v1171, %v1171
        %v1314 = vmul.f32 %v1173, %v1173
        %v1315 = vmul.f32 %v982, %v982
        %v1316 = vmul.f32 %v984, %v984
        %v1317 = vmul.f32 %v1175, %v1175
        %v1318 = vmul.f32 %v1177, %v1177
        %v1319 = vmul.f32 %v988, %v988
        %v1320 = vmul.f32 %v990, %v990
        %v1321 = vmul.f32 %v1181, %v1181
        %v1322 = vmul.f32 %v1183, %v1183
        %v1323 = vmul.f32 %v992, %v992
        %v1324 = vmul.f32 %v994, %v994
        %v1325 = vmul.f32 %v1185, %v1185
        %v1326 = vmul.f32 %v1187, %v1187
        %v1327 = vmul.f32 %v998, %v998
        %v1328 = vmul.f32 %v1000, %v1000
        %v1329 = vmul.f32 %v1191, %v1191
        %v1330 = vmul.f32 %v1193, %v1193
        %v1331 = vmul.f32 %v1002, %v1002
        %v1332 = vmul.f32 %v1004, %v1004
        %v1333 = vmul.f32 %v1195, %v1195
        %v1334 = vmul.f32 %v1197, %v1197
        %v1335 = vmul.f32 %v1008, %v1008
        %v1336 = vmul.f32 %v1010, %v1010
        %v1337 = vmul.f32 %v1201, %v1201
        %v1338 = vmul.f32 %v1203, %v1203
        %v1339 = vmul.f32 %v1012, %v1012
        %v1340 = vmul.f32 %v1014, %v1014
        %v1341 = vmul.f32 %v1205, %v1205
        %v1342 = vmul.f32 %v1207, %v1207
        %v1343 = vmul.f32 %v1018, %v1018
        %v1344 = vmul.f32 %v1020, %v1020
        %v1345 = vmul.f32 %v1211, %v1211
        %v1346 = vmul.f32 %v1213, %v1213
        %v1347 = vmul.f32 %v1022, %v1022
        %v1348 = vmul.f32 %v1024, %v1024
        %v1349 = vmul.f32 %v1215, %v1215
        %v1350 = vmul.f32 %v1217, %v1217
        %v1351 = vmul.f32 %v1028, %v1028
        %v1352 = vmul.f32 %v1030, %v1030
        %v1353 = vmul.f32 %v1221, %v1221
        %v1354 = vmul.f32 %v1223, %v1223
        %v1355 = vmul.f32 %v1032, %v1032
        %v1356 = vmul.f32 %v1034, %v1034
        %v1357 = vmul.f32 %v1225, %v1225
        %v1358 = vmul.f32 %v1227, %v1227
        %v1359 = vmul.f32 %v1038, %v1038
        %v1360 = vmul.f32 %v1040, %v1040
        %v1361 = vmul.f32 %v1231, %v1231
        %v1362 = vmul.f32 %v1233, %v1233
        %v1363 = vmul.f32 %v1042, %v1042
        %v1364 = vmul.f32 %v1044, %v1044
        %v1365 = vmul.f32 %v1235, %v1235
        %v1366 = vmul.f32 %v1237, %v1237
        %v1367 = vmul.f32 %v888, %v1239
        %v1368 = vmul.f32 %v890, %v1240
        %v1369 = vmul.f32 %v1081, %v1241
        %v1370 = vmul.f32 %v1083, %v1242
        %v1371 = vmul.f32 %v892, %v1243
        %v1372 = vmul.f32 %v894, %v1244
        %v1373 = vmul.f32 %v1085, %v1245
        %v1374 = vmul.f32 %v1087, %v1246
        %v1375 = vmul.f32 %v898, %v1247
        %v1376 = vmul.f32 %v900, %v1248
        %v1377 = vmul.f32 %v1091, %v1249
        %v1378 = vmul.f32 %v1093, %v1250
        %v1379 = vmul.f32 %v902, %v1251
        %v1380 = vmul.f32 %v904, %v1252
        %v1381 = vmul.f32 %v1095, %v1253
        %v1382 = vmul.f32 %v1097, %v1254
        %v1383 = vmul.f32 %v908, %v1255
        %v1384 = vmul.f32 %v910, %v1256
        %v1385 = vmul.f32 %v1101, %v1257
        %v1386 = vmul.f32 %v1103, %v1258
        %v1387 = vmul.f32 %v912, %v1259
        %v1388 = vmul.f32 %v914, %v1260
        %v1389 = vmul.f32 %v1105, %v1261
        %v1390 = vmul.f32 %v1107, %v1262
        %v1391 = vmul.f32 %v918, %v1263
        %v1392 = vmul.f32 %v920, %v1264
        %v1393 = vmul.f32 %v1111, %v1265
        %v1394 = vmul.f32 %v1113, %v1266
        %v1395 = vmul.f32 %v922, %v1267
        %v1396 = vmul.f32 %v924, %v1268
        %v1397 = vmul.f32 %v1115, %v1269
        %v1398 = vmul.f32 %v1117, %v1270
        %v1399 = vmul.f32 %v928, %v1271
        %v1400 = vmul.f32 %v930, %v1272
        %v1401 = vmul.f32 %v1121, %v1273
        %v1402 = vmul.f32 %v1123, %v1274
        %v1403 = vmul.f32 %v932, %v1275
        %v1404 = vmul.f32 %v934, %v1276
        %v1405 = vmul.f32 %v1125, %v1277
        %v1406 = vmul.f32 %v1127, %v1278
        %v1407 = vmul.f32 %v938, %v1279
        %v1408 = vmul.f32 %v940, %v1280
        %v1409 = vmul.f32 %v1131, %v1281
        %v1410 = vmul.f32 %v1133, %v1282
        %v1411 = vmul.f32 %v942, %v1283
        %v1412 = vmul.f32 %v944, %v1284
        %v1413 = vmul.f32 %v1135, %v1285
        %v1414 = vmul.f32 %v1137, %v1286
        %v1415 = vmul.f32 %v948, %v1287
        %v1416 = vmul.f32 %v950, %v1288
        %v1417 = vmul.f32 %v1141, %v1289
        %v1418 = vmul.f32 %v1143, %v1290
        %v1419 = vmul.f32 %v952, %v1291
        %v1420 = vmul.f32 %v954, %v1292
        %v1421 = vmul.f32 %v1145, %v1293
        %v1422 = vmul.f32 %v1147, %v1294
        %v1423 = vmul.f32 %v958, %v1295
        %v1424 = vmul.f32 %v960, %v1296
        %v1425 = vmul.f32 %v1151, %v1297
        %v1426 = vmul.f32 %v1153, %v1298
        %v1427 = vmul.f32 %v962, %v1299
        %v1428 = vmul.f32 %v964, %v1300
        %v1429 = vmul.f32 %v1155, %v1301
        %v1430 = vmul.f32 %v1157, %v1302
        %v1431 = vmul.f32 %v968, %v1303
        %v1432 = vmul.f32 %v970, %v1304
        %v1433 = vmul.f32 %v1161, %v1305
        %v1434 = vmul.f32 %v1163, %v1306
        %v1435 = vmul.f32 %v972, %v1307
        %v1436 = vmul.f32 %v974, %v1308
        %v1437 = vmul.f32 %v1165, %v1309
        %v1438 = vmul.f32 %v1167, %v1310
        %v1439 = vmul.f32 %v978, %v1311
        %v1440 = vmul.f32 %v980, %v1312
        %v1441 = vmul.f32 %v1171, %v1313
        %v1442 = vmul.f32 %v1173, %v1314
        %v1443 = vmul.f32 %v982, %v1315
        %v1444 = vmul.f32 %v984, %v1316
        %v1445 = vmul.f32 %v1175, %v1317
        %v1446 = vmul.f32 %v1177, %v1318
        %v1447 = vmul.f32 %v988, %v1319
        %v1448 = vmul.f32 %v990, %v1320
        %v1449 = vmul.f32 %v1181, %v1321
        %v1450 = vmul.f32 %v1183, %v1322
        %v1451 = vmul.f32 %v992, %v1323
        %v1452 = vmul.f32 %v994, %v1324
        %v1453 = vmul.f32 %v1185, %v1325
        %v1454 = vmul.f32 %v1187, %v1326
        %v1455 = vmul.f32 %v998, %v1327
        %v1456 = vmul.f32 %v1000, %v1328
        %v1457 = vmul.f32 %v1191, %v1329
        %v1458 = vmul.f32 %v1193, %v1330
        %v1459 = vmul.f32 %v1002, %v1331
        %v1460 = vmul.f32 %v1004, %v1332
        %v1461 = vmul.f32 %v1195, %v1333
        %v1462 = vmul.f32 %v1197, %v1334
        %v1463 = vmul.f32 %v1008, %v1335
        %v1464 = vmul.f32 %v1010, %v1336
        %v1465 = vmul.f32 %v1201, %v1337
        %v1466 = vmul.f32 %v1203, %v1338
        %v1467 = vmul.f32 %v1012, %v1339
        %v1468 = vmul.f32 %v1014, %v1340
        %v1469 = vmul.f32 %v1205, %v1341
        %v1470 = vmul.f32 %v1207, %v1342
        %v1471 = vmul.f32 %v1018, %v1343
        %v1472 = vmul.f32 %v1020, %v1344
        %v1473 = vmul.f32 %v1211, %v1345
        %v1474 = vmul.f32 %v1213, %v1346
        %v1475 = vmul.f32 %v1022, %v1347
        %v1476 = vmul.f32 %v1024, %v1348
        %v1477 = vmul.f32 %v1215, %v1349
        %v1478 = vmul.f32 %v1217, %v1350
        %v1479 = vmul.f32 %v1028, %v1351
        %v1480 = vmul.f32 %v1030, %v1352
        %v1481 = vmul.f32 %v1221, %v1353
        %v1482 = vmul.f32 %v1223, %v1354
        %v1483 = vmul.f32 %v1032, %v1355
        %v1484 = vmul.f32 %v1034, %v1356
        %v1485 = vmul.f32 %v1225, %v1357
        %v1486 = vmul.f32 %v1227, %v1358
        %v1487 = vmul.f32 %v1038, %v1359
        %v1488 = vmul.f32 %v1040, %v1360
        %v1489 = vmul.f32 %v1231, %v1361
        %v1490 = vmul.f32 %v1233, %v1362
        %v1491 = vmul.f32 %v1042, %v1363
        %v1492 = vmul.f32 %v1044, %v1364
        %v1493 = vmul.f32 %v1235, %v1365
        %v1494 = vmul.f32 %v1237, %v1366
        %v1495 = vmul.f32 %v1367, 0.044715
        %v1496 = vmul.f32 %v1368, 0.044715
        %v1497 = vmul.f32 %v1369, 0.044715
        %v1498 = vmul.f32 %v1370, 0.044715
        %v1499 = vmul.f32 %v1371, 0.044715
        %v1500 = vmul.f32 %v1372, 0.044715
        %v1501 = vmul.f32 %v1373, 0.044715
        %v1502 = vmul.f32 %v1374, 0.044715
        %v1503 = vmul.f32 %v1375, 0.044715
        %v1504 = vmul.f32 %v1376, 0.044715
        %v1505 = vmul.f32 %v1377, 0.044715
        %v1506 = vmul.f32 %v1378, 0.044715
        %v1507 = vmul.f32 %v1379, 0.044715
        %v1508 = vmul.f32 %v1380, 0.044715
        %v1509 = vmul.f32 %v1381, 0.044715
        %v1510 = vmul.f32 %v1382, 0.044715
        %v1511 = vmul.f32 %v1383, 0.044715
        %v1512 = vmul.f32 %v1384, 0.044715
        %v1513 = vmul.f32 %v1385, 0.044715
        %v1514 = vmul.f32 %v1386, 0.044715
        %v1515 = vmul.f32 %v1387, 0.044715
        %v1516 = vmul.f32 %v1388, 0.044715
        %v1517 = vmul.f32 %v1389, 0.044715
        %v1518 = vmul.f32 %v1390, 0.044715
        %v1519 = vmul.f32 %v1391, 0.044715
        %v1520 = vmul.f32 %v1392, 0.044715
        %v1521 = vmul.f32 %v1393, 0.044715
        %v1522 = vmul.f32 %v1394, 0.044715
        %v1523 = vmul.f32 %v1395, 0.044715
        %v1524 = vmul.f32 %v1396, 0.044715
        %v1525 = vmul.f32 %v1397, 0.044715
        %v1526 = vmul.f32 %v1398, 0.044715
        %v1527 = vmul.f32 %v1399, 0.044715
        %v1528 = vmul.f32 %v1400, 0.044715
        %v1529 = vmul.f32 %v1401, 0.044715
        %v1530 = vmul.f32 %v1402, 0.044715
        %v1531 = vmul.f32 %v1403, 0.044715
        %v1532 = vmul.f32 %v1404, 0.044715
        %v1533 = vmul.f32 %v1405, 0.044715
        %v1534 = vmul.f32 %v1406, 0.044715
        %v1535 = vmul.f32 %v1407, 0.044715
        %v1536 = vmul.f32 %v1408, 0.044715
        %v1537 = vmul.f32 %v1409, 0.044715
        %v1538 = vmul.f32 %v1410, 0.044715
        %v1539 = vmul.f32 %v1411, 0.044715
        %v1540 = vmul.f32 %v1412, 0.044715
        %v1541 = vmul.f32 %v1413, 0.044715
        %v1542 = vmul.f32 %v1414, 0.044715
        %v1543 = vmul.f32 %v1415, 0.044715
        %v1544 = vmul.f32 %v1416, 0.044715
        %v1545 = vmul.f32 %v1417, 0.044715
        %v1546 = vmul.f32 %v1418, 0.044715
        %v1547 = vmul.f32 %v1419, 0.044715
        %v1548 = vmul.f32 %v1420, 0.044715
        %v1549 = vmul.f32 %v1421, 0.044715
        %v1550 = vmul.f32 %v1422, 0.044715
        %v1551 = vmul.f32 %v1423, 0.044715
        %v1552 = vmul.f32 %v1424, 0.044715
        %v1553 = vmul.f32 %v1425, 0.044715
        %v1554 = vmul.f32 %v1426, 0.044715
        %v1555 = vmul.f32 %v1427, 0.044715
        %v1556 = vmul.f32 %v1428, 0.044715
        %v1557 = vmul.f32 %v1429, 0.044715
        %v1558 = vmul.f32 %v1430, 0.044715
        %v1559 = vmul.f32 %v1431, 0.044715
        %v1560 = vmul.f32 %v1432, 0.044715
        %v1561 = vmul.f32 %v1433, 0.044715
        %v1562 = vmul.f32 %v1434, 0.044715
        %v1563 = vmul.f32 %v1435, 0.044715
        %v1564 = vmul.f32 %v1436, 0.044715
        %v1565 = vmul.f32 %v1437, 0.044715
        %v1566 = vmul.f32 %v1438, 0.044715
        %v1567 = vmul.f32 %v1439, 0.044715
        %v1568 = vmul.f32 %v1440, 0.044715
        %v1569 = vmul.f32 %v1441, 0.044715
        %v1570 = vmul.f32 %v1442, 0.044715
        %v1571 = vmul.f32 %v1443, 0.044715
        %v1572 = vmul.f32 %v1444, 0.044715
        %v1573 = vmul.f32 %v1445, 0.044715
        %v1574 = vmul.f32 %v1446, 0.044715
        %v1575 = vmul.f32 %v1447, 0.044715
        %v1576 = vmul.f32 %v1448, 0.044715
        %v1577 = vmul.f32 %v1449, 0.044715
        %v1578 = vmul.f32 %v1450, 0.044715
        %v1579 = vmul.f32 %v1451, 0.044715
        %v1580 = vmul.f32 %v1452, 0.044715
        %v1581 = vmul.f32 %v1453, 0.044715
        %v1582 = vmul.f32 %v1454, 0.044715
        %v1583 = vmul.f32 %v1455, 0.044715
        %v1584 = vmul.f32 %v1456, 0.044715
        %v1585 = vmul.f32 %v1457, 0.044715
        %v1586 = vmul.f32 %v1458, 0.044715
        %v1587 = vmul.f32 %v1459, 0.044715
        %v1588 = vmul.f32 %v1460, 0.044715
        %v1589 = vmul.f32 %v1461, 0.044715
        %v1590 = vmul.f32 %v1462, 0.044715
        %v1591 = vmul.f32 %v1463, 0.044715
        %v1592 = vmul.f32 %v1464, 0.044715
        %v1593 = vmul.f32 %v1465, 0.044715
        %v1594 = vmul.f32 %v1466, 0.044715
        %v1595 = vmul.f32 %v1467, 0.044715
        %v1596 = vmul.f32 %v1468, 0.044715
        %v1597 = vmul.f32 %v1469, 0.044715
        %v1598 = vmul.f32 %v1470, 0.044715
        %v1599 = vmul.f32 %v1471, 0.044715
        %v1600 = vmul.f32 %v1472, 0.044715
        %v1601 = vmul.f32 %v1473, 0.044715
        %v1602 = vmul.f32 %v1474, 0.044715
        %v1603 = vmul.f32 %v1475, 0.044715
        %v1604 = vmul.f32 %v1476, 0.044715
        %v1605 = vmul.f32 %v1477, 0.044715
        %v1606 = vmul.f32 %v1478, 0.044715
        %v1607 = vmul.f32 %v1479, 0.044715
        %v1608 = vmul.f32 %v1480, 0.044715
        %v1609 = vmul.f32 %v1481, 0.044715
        %v1610 = vmul.f32 %v1482, 0.044715
        %v1611 = vmul.f32 %v1483, 0.044715
        %v1612 = vmul.f32 %v1484, 0.044715
        %v1613 = vmul.f32 %v1485, 0.044715
        %v1614 = vmul.f32 %v1486, 0.044715
        %v1615 = vmul.f32 %v1487, 0.044715
        %v1616 = vmul.f32 %v1488, 0.044715
        %v1617 = vmul.f32 %v1489, 0.044715
        %v1618 = vmul.f32 %v1490, 0.044715
        %v1619 = vmul.f32 %v1491, 0.044715
        %v1620 = vmul.f32 %v1492, 0.044715
        %v1621 = vmul.f32 %v1493, 0.044715
        %v1622 = vmul.f32 %v1494, 0.044715
        %v1623 = vadd.f32 %v888, %v1495
        %v1624 = vadd.f32 %v890, %v1496
        %v1625 = vadd.f32 %v1081, %v1497
        %v1626 = vadd.f32 %v1083, %v1498
        %v1627 = vadd.f32 %v892, %v1499
        %v1628 = vadd.f32 %v894, %v1500
        %v1629 = vadd.f32 %v1085, %v1501
        %v1630 = vadd.f32 %v1087, %v1502
        %v1631 = vadd.f32 %v898, %v1503
        %v1632 = vadd.f32 %v900, %v1504
        %v1633 = vadd.f32 %v1091, %v1505
        %v1634 = vadd.f32 %v1093, %v1506
        %v1635 = vadd.f32 %v902, %v1507
        %v1636 = vadd.f32 %v904, %v1508
        %v1637 = vadd.f32 %v1095, %v1509
        %v1638 = vadd.f32 %v1097, %v1510
        %v1639 = vadd.f32 %v908, %v1511
        %v1640 = vadd.f32 %v910, %v1512
        %v1641 = vadd.f32 %v1101, %v1513
        %v1642 = vadd.f32 %v1103, %v1514
        %v1643 = vadd.f32 %v912, %v1515
        %v1644 = vadd.f32 %v914, %v1516
        %v1645 = vadd.f32 %v1105, %v1517
        %v1646 = vadd.f32 %v1107, %v1518
        %v1647 = vadd.f32 %v918, %v1519
        %v1648 = vadd.f32 %v920, %v1520
        %v1649 = vadd.f32 %v1111, %v1521
        %v1650 = vadd.f32 %v1113, %v1522
        %v1651 = vadd.f32 %v922, %v1523
        %v1652 = vadd.f32 %v924, %v1524
        %v1653 = vadd.f32 %v1115, %v1525
        %v1654 = vadd.f32 %v1117, %v1526
        %v1655 = vadd.f32 %v928, %v1527
        %v1656 = vadd.f32 %v930, %v1528
        %v1657 = vadd.f32 %v1121, %v1529
        %v1658 = vadd.f32 %v1123, %v1530
        %v1659 = vadd.f32 %v932, %v1531
        %v1660 = vadd.f32 %v934, %v1532
        %v1661 = vadd.f32 %v1125, %v1533
        %v1662 = vadd.f32 %v1127, %v1534
        %v1663 = vadd.f32 %v938, %v1535
        %v1664 = vadd.f32 %v940, %v1536
        %v1665 = vadd.f32 %v1131, %v1537
        %v1666 = vadd.f32 %v1133, %v1538
        %v1667 = vadd.f32 %v942, %v1539
        %v1668 = vadd.f32 %v944, %v1540
        %v1669 = vadd.f32 %v1135, %v1541
        %v1670 = vadd.f32 %v1137, %v1542
        %v1671 = vadd.f32 %v948, %v1543
        %v1672 = vadd.f32 %v950, %v1544
        %v1673 = vadd.f32 %v1141, %v1545
        %v1674 = vadd.f32 %v1143, %v1546
        %v1675 = vadd.f32 %v952, %v1547
        %v1676 = vadd.f32 %v954, %v1548
        %v1677 = vadd.f32 %v1145, %v1549
        %v1678 = vadd.f32 %v1147, %v1550
        %v1679 = vadd.f32 %v958, %v1551
        %v1680 = vadd.f32 %v960, %v1552
        %v1681 = vadd.f32 %v1151, %v1553
        %v1682 = vadd.f32 %v1153, %v1554
        %v1683 = vadd.f32 %v962, %v1555
        %v1684 = vadd.f32 %v964, %v1556
        %v1685 = vadd.f32 %v1155, %v1557
        %v1686 = vadd.f32 %v1157, %v1558
        %v1687 = vadd.f32 %v968, %v1559
        %v1688 = vadd.f32 %v970, %v1560
        %v1689 = vadd.f32 %v1161, %v1561
        %v1690 = vadd.f32 %v1163, %v1562
        %v1691 = vadd.f32 %v972, %v1563
        %v1692 = vadd.f32 %v974, %v1564
        %v1693 = vadd.f32 %v1165, %v1565
        %v1694 = vadd.f32 %v1167, %v1566
        %v1695 = vadd.f32 %v978, %v1567
        %v1696 = vadd.f32 %v980, %v1568
        %v1697 = vadd.f32 %v1171, %v1569
        %v1698 = vadd.f32 %v1173, %v1570
        %v1699 = vadd.f32 %v982, %v1571
        %v1700 = vadd.f32 %v984, %v1572
        %v1701 = vadd.f32 %v1175, %v1573
        %v1702 = vadd.f32 %v1177, %v1574
        %v1703 = vadd.f32 %v988, %v1575
        %v1704 = vadd.f32 %v990, %v1576
        %v1705 = vadd.f32 %v1181, %v1577
        %v1706 = vadd.f32 %v1183, %v1578
        %v1707 = vadd.f32 %v992, %v1579
        %v1708 = vadd.f32 %v994, %v1580
        %v1709 = vadd.f32 %v1185, %v1581
        %v1710 = vadd.f32 %v1187, %v1582
        %v1711 = vadd.f32 %v998, %v1583
        %v1712 = vadd.f32 %v1000, %v1584
        %v1713 = vadd.f32 %v1191, %v1585
        %v1714 = vadd.f32 %v1193, %v1586
        %v1715 = vadd.f32 %v1002, %v1587
        %v1716 = vadd.f32 %v1004, %v1588
        %v1717 = vadd.f32 %v1195, %v1589
        %v1718 = vadd.f32 %v1197, %v1590
        %v1719 = vadd.f32 %v1008, %v1591
        %v1720 = vadd.f32 %v1010, %v1592
        %v1721 = vadd.f32 %v1201, %v1593
        %v1722 = vadd.f32 %v1203, %v1594
        %v1723 = vadd.f32 %v1012, %v1595
        %v1724 = vadd.f32 %v1014, %v1596
        %v1725 = vadd.f32 %v1205, %v1597
        %v1726 = vadd.f32 %v1207, %v1598
        %v1727 = vadd.f32 %v1018, %v1599
        %v1728 = vadd.f32 %v1020, %v1600
        %v1729 = vadd.f32 %v1211, %v1601
        %v1730 = vadd.f32 %v1213, %v1602
        %v1731 = vadd.f32 %v1022, %v1603
        %v1732 = vadd.f32 %v1024, %v1604
        %v1733 = vadd.f32 %v1215, %v1605
        %v1734 = vadd.f32 %v1217, %v1606
        %v1735 = vadd.f32 %v1028, %v1607
        %v1736 = vadd.f32 %v1030, %v1608
        %v1737 = vadd.f32 %v1221, %v1609
        %v1738 = vadd.f32 %v1223, %v1610
        %v1739 = vadd.f32 %v1032, %v1611
        %v1740 = vadd.f32 %v1034, %v1612
        %v1741 = vadd.f32 %v1225, %v1613
        %v1742 = vadd.f32 %v1227, %v1614
        %v1743 = vadd.f32 %v1038, %v1615
        %v1744 = vadd.f32 %v1040, %v1616
        %v1745 = vadd.f32 %v1231, %v1617
        %v1746 = vadd.f32 %v1233, %v1618
        %v1747 = vadd.f32 %v1042, %v1619
        %v1748 = vadd.f32 %v1044, %v1620
        %v1749 = vadd.f32 %v1235, %v1621
        %v1750 = vadd.f32 %v1237, %v1622
        %v1751 = vmul.f32 %v1623, 0.7978846
        %v1752 = vmul.f32 %v1624, 0.7978846
        %v1753 = vmul.f32 %v1625, 0.7978846
        %v1754 = vmul.f32 %v1626, 0.7978846
        %v1755 = vmul.f32 %v1627, 0.7978846
        %v1756 = vmul.f32 %v1628, 0.7978846
        %v1757 = vmul.f32 %v1629, 0.7978846
        %v1758 = vmul.f32 %v1630, 0.7978846
        %v1759 = vmul.f32 %v1631, 0.7978846
        %v1760 = vmul.f32 %v1632, 0.7978846
        %v1761 = vmul.f32 %v1633, 0.7978846
        %v1762 = vmul.f32 %v1634, 0.7978846
        %v1763 = vmul.f32 %v1635, 0.7978846
        %v1764 = vmul.f32 %v1636, 0.7978846
        %v1765 = vmul.f32 %v1637, 0.7978846
        %v1766 = vmul.f32 %v1638, 0.7978846
        %v1767 = vmul.f32 %v1639, 0.7978846
        %v1768 = vmul.f32 %v1640, 0.7978846
        %v1769 = vmul.f32 %v1641, 0.7978846
        %v1770 = vmul.f32 %v1642, 0.7978846
        %v1771 = vmul.f32 %v1643, 0.7978846
        %v1772 = vmul.f32 %v1644, 0.7978846
        %v1773 = vmul.f32 %v1645, 0.7978846
        %v1774 = vmul.f32 %v1646, 0.7978846
        %v1775 = vmul.f32 %v1647, 0.7978846
        %v1776 = vmul.f32 %v1648, 0.7978846
        %v1777 = vmul.f32 %v1649, 0.7978846
        %v1778 = vmul.f32 %v1650, 0.7978846
        %v1779 = vmul.f32 %v1651, 0.7978846
        %v1780 = vmul.f32 %v1652, 0.7978846
        %v1781 = vmul.f32 %v1653, 0.7978846
        %v1782 = vmul.f32 %v1654, 0.7978846
        %v1783 = vmul.f32 %v1655, 0.7978846
        %v1784 = vmul.f32 %v1656, 0.7978846
        %v1785 = vmul.f32 %v1657, 0.7978846
        %v1786 = vmul.f32 %v1658, 0.7978846
        %v1787 = vmul.f32 %v1659, 0.7978846
        %v1788 = vmul.f32 %v1660, 0.7978846
        %v1789 = vmul.f32 %v1661, 0.7978846
        %v1790 = vmul.f32 %v1662, 0.7978846
        %v1791 = vmul.f32 %v1663, 0.7978846
        %v1792 = vmul.f32 %v1664, 0.7978846
        %v1793 = vmul.f32 %v1665, 0.7978846
        %v1794 = vmul.f32 %v1666, 0.7978846
        %v1795 = vmul.f32 %v1667, 0.7978846
        %v1796 = vmul.f32 %v1668, 0.7978846
        %v1797 = vmul.f32 %v1669, 0.7978846
        %v1798 = vmul.f32 %v1670, 0.7978846
        %v1799 = vmul.f32 %v1671, 0.7978846
        %v1800 = vmul.f32 %v1672, 0.7978846
        %v1801 = vmul.f32 %v1673, 0.7978846
        %v1802 = vmul.f32 %v1674, 0.7978846
        %v1803 = vmul.f32 %v1675, 0.7978846
        %v1804 = vmul.f32 %v1676, 0.7978846
        %v1805 = vmul.f32 %v1677, 0.7978846
        %v1806 = vmul.f32 %v1678, 0.7978846
        %v1807 = vmul.f32 %v1679, 0.7978846
        %v1808 = vmul.f32 %v1680, 0.7978846
        %v1809 = vmul.f32 %v1681, 0.7978846
        %v1810 = vmul.f32 %v1682, 0.7978846
        %v1811 = vmul.f32 %v1683, 0.7978846
        %v1812 = vmul.f32 %v1684, 0.7978846
        %v1813 = vmul.f32 %v1685, 0.7978846
        %v1814 = vmul.f32 %v1686, 0.7978846
        %v1815 = vmul.f32 %v1687, 0.7978846
        %v1816 = vmul.f32 %v1688, 0.7978846
        %v1817 = vmul.f32 %v1689, 0.7978846
        %v1818 = vmul.f32 %v1690, 0.7978846
        %v1819 = vmul.f32 %v1691, 0.7978846
        %v1820 = vmul.f32 %v1692, 0.7978846
        %v1821 = vmul.f32 %v1693, 0.7978846
        %v1822 = vmul.f32 %v1694, 0.7978846
        %v1823 = vmul.f32 %v1695, 0.7978846
        %v1824 = vmul.f32 %v1696, 0.7978846
        %v1825 = vmul.f32 %v1697, 0.7978846
        %v1826 = vmul.f32 %v1698, 0.7978846
        %v1827 = vmul.f32 %v1699, 0.7978846
        %v1828 = vmul.f32 %v1700, 0.7978846
        %v1829 = vmul.f32 %v1701, 0.7978846
        %v1830 = vmul.f32 %v1702, 0.7978846
        %v1831 = vmul.f32 %v1703, 0.7978846
        %v1832 = vmul.f32 %v1704, 0.7978846
        %v1833 = vmul.f32 %v1705, 0.7978846
        %v1834 = vmul.f32 %v1706, 0.7978846
        %v1835 = vmul.f32 %v1707, 0.7978846
        %v1836 = vmul.f32 %v1708, 0.7978846
        %v1837 = vmul.f32 %v1709, 0.7978846
        %v1838 = vmul.f32 %v1710, 0.7978846
        %v1839 = vmul.f32 %v1711, 0.7978846
        %v1840 = vmul.f32 %v1712, 0.7978846
        %v1841 = vmul.f32 %v1713, 0.7978846
        %v1842 = vmul.f32 %v1714, 0.7978846
        %v1843 = vmul.f32 %v1715, 0.7978846
        %v1844 = vmul.f32 %v1716, 0.7978846
        %v1845 = vmul.f32 %v1717, 0.7978846
        %v1846 = vmul.f32 %v1718, 0.7978846
        %v1847 = vmul.f32 %v1719, 0.7978846
        %v1848 = vmul.f32 %v1720, 0.7978846
        %v1849 = vmul.f32 %v1721, 0.7978846
        %v1850 = vmul.f32 %v1722, 0.7978846
        %v1851 = vmul.f32 %v1723, 0.7978846
        %v1852 = vmul.f32 %v1724, 0.7978846
        %v1853 = vmul.f32 %v1725, 0.7978846
        %v1854 = vmul.f32 %v1726, 0.7978846
        %v1855 = vmul.f32 %v1727, 0.7978846
        %v1856 = vmul.f32 %v1728, 0.7978846
        %v1857 = vmul.f32 %v1729, 0.7978846
        %v1858 = vmul.f32 %v1730, 0.7978846
        %v1859 = vmul.f32 %v1731, 0.7978846
        %v1860 = vmul.f32 %v1732, 0.7978846
        %v1861 = vmul.f32 %v1733, 0.7978846
        %v1862 = vmul.f32 %v1734, 0.7978846
        %v1863 = vmul.f32 %v1735, 0.7978846
        %v1864 = vmul.f32 %v1736, 0.7978846
        %v1865 = vmul.f32 %v1737, 0.7978846
        %v1866 = vmul.f32 %v1738, 0.7978846
        %v1867 = vmul.f32 %v1739, 0.7978846
        %v1868 = vmul.f32 %v1740, 0.7978846
        %v1869 = vmul.f32 %v1741, 0.7978846
        %v1870 = vmul.f32 %v1742, 0.7978846
        %v1871 = vmul.f32 %v1743, 0.7978846
        %v1872 = vmul.f32 %v1744, 0.7978846
        %v1873 = vmul.f32 %v1745, 0.7978846
        %v1874 = vmul.f32 %v1746, 0.7978846
        %v1875 = vmul.f32 %v1747, 0.7978846
        %v1876 = vmul.f32 %v1748, 0.7978846
        %v1877 = vmul.f32 %v1749, 0.7978846
        %v1878 = vmul.f32 %v1750, 0.7978846
        %v1879 = vtanh.pop %v1751
        %v1880 = vtanh.pop %v1752
        %v1881 = vtanh.pop %v1753
        %v1882 = vtanh.pop %v1754
        %v1883 = vtanh.pop %v1755
        %v1884 = vtanh.pop %v1756
        %v1885 = vtanh.pop %v1757
        %v1886 = vtanh.pop %v1758
        %v1887 = vtanh.pop %v1759
        %v1888 = vtanh.pop %v1760
        %v1889 = vtanh.pop %v1761
        %v1890 = vtanh.pop %v1762
        %v1891 = vtanh.pop %v1763
        %v1892 = vtanh.pop %v1764
        %v1893 = vtanh.pop %v1765
        %v1894 = vtanh.pop %v1766
        %v1895 = vtanh.pop %v1767
        %v1896 = vtanh.pop %v1768
        %v1897 = vtanh.pop %v1769
        %v1898 = vtanh.pop %v1770
        %v1899 = vtanh.pop %v1771
        %v1900 = vtanh.pop %v1772
        %v1901 = vtanh.pop %v1773
        %v1902 = vtanh.pop %v1774
        %v1903 = vtanh.pop %v1775
        %v1904 = vtanh.pop %v1776
        %v1905 = vtanh.pop %v1777
        %v1906 = vtanh.pop %v1778
        %v1907 = vtanh.pop %v1779
        %v1908 = vtanh.pop %v1780
        %v1909 = vtanh.pop %v1781
        %v1910 = vtanh.pop %v1782
        %v1911 = vtanh.pop %v1783
        %v1912 = vtanh.pop %v1784
        %v1913 = vtanh.pop %v1785
        %v1914 = vtanh.pop %v1786
        %v1915 = vtanh.pop %v1787
        %v1916 = vtanh.pop %v1788
        %v1917 = vtanh.pop %v1789
        %v1918 = vtanh.pop %v1790
        %v1919 = vtanh.pop %v1791
        %v1920 = vtanh.pop %v1792
        %v1921 = vtanh.pop %v1793
        %v1922 = vtanh.pop %v1794
        %v1923 = vtanh.pop %v1795
        %v1924 = vtanh.pop %v1796
        %v1925 = vtanh.pop %v1797
        %v1926 = vtanh.pop %v1798
        %v1927 = vtanh.pop %v1799
        %v1928 = vtanh.pop %v1800
        %v1929 = vtanh.pop %v1801
        %v1930 = vtanh.pop %v1802
        %v1931 = vtanh.pop %v1803
        %v1932 = vtanh.pop %v1804
        %v1933 = vtanh.pop %v1805
        %v1934 = vtanh.pop %v1806
        %v1935 = vtanh.pop %v1807
        %v1936 = vtanh.pop %v1808
        %v1937 = vtanh.pop %v1809
        %v1938 = vtanh.pop %v1810
        %v1939 = vtanh.pop %v1811
        %v1940 = vtanh.pop %v1812
        %v1941 = vtanh.pop %v1813
        %v1942 = vtanh.pop %v1814
        %v1943 = vtanh.pop %v1815
        %v1944 = vtanh.pop %v1816
        %v1945 = vtanh.pop %v1817
        %v1946 = vtanh.pop %v1818
        %v1947 = vtanh.pop %v1819
        %v1948 = vtanh.pop %v1820
        %v1949 = vtanh.pop %v1821
        %v1950 = vtanh.pop %v1822
        %v1951 = vtanh.pop %v1823
        %v1952 = vtanh.pop %v1824
        %v1953 = vtanh.pop %v1825
        %v1954 = vtanh.pop %v1826
        %v1955 = vtanh.pop %v1827
        %v1956 = vtanh.pop %v1828
        %v1957 = vtanh.pop %v1829
        %v1958 = vtanh.pop %v1830
        %v1959 = vtanh.pop %v1831
        %v1960 = vtanh.pop %v1832
        %v1961 = vtanh.pop %v1833
        %v1962 = vtanh.pop %v1834
        %v1963 = vtanh.pop %v1835
        %v1964 = vtanh.pop %v1836
        %v1965 = vtanh.pop %v1837
        %v1966 = vtanh.pop %v1838
        %v1967 = vtanh.pop %v1839
        %v1968 = vtanh.pop %v1840
        %v1969 = vtanh.pop %v1841
        %v1970 = vtanh.pop %v1842
        %v1971 = vtanh.pop %v1843
        %v1972 = vtanh.pop %v1844
        %v1973 = vtanh.pop %v1845
        %v1974 = vtanh.pop %v1846
        %v1975 = vtanh.pop %v1847
        %v1976 = vtanh.pop %v1848
        %v1977 = vtanh.pop %v1849
        %v1978 = vtanh.pop %v1850
        %v1979 = vtanh.pop %v1851
        %v1980 = vtanh.pop %v1852
        %v1981 = vtanh.pop %v1853
        %v1982 = vtanh.pop %v1854
        %v1983 = vtanh.pop %v1855
        %v1984 = vtanh.pop %v1856
        %v1985 = vtanh.pop %v1857
        %v1986 = vtanh.pop %v1858
        %v1987 = vtanh.pop %v1859
        %v1988 = vtanh.pop %v1860
        %v1989 = vtanh.pop %v1861
        %v1990 = vtanh.pop %v1862
        %v1991 = vtanh.pop %v1863
        %v1992 = vtanh.pop %v1864
        %v1993 = vtanh.pop %v1865
        %v1994 = vtanh.pop %v1866
        %v1995 = vtanh.pop %v1867
        %v1996 = vtanh.pop %v1868
        %v1997 = vtanh.pop %v1869
        %v1998 = vtanh.pop %v1870
        %v1999 = vtanh.pop %v1871
        %v2000 = vtanh.pop %v1872
        %v2001 = vtanh.pop %v1873
        %v2002 = vtanh.pop %v1874
        %v2003 = vtanh.pop %v1875
        %v2004 = vtanh.pop %v1876
        %v2005 = vtanh.pop %v1877
        %v2006 = vtanh.pop %v1878
        %v2007 = vadd.f32 %v1879, 1.0
        %v2008 = vadd.f32 %v1880, 1.0
        %v2009 = vadd.f32 %v1881, 1.0
        %v2010 = vadd.f32 %v1882, 1.0
        %v2011 = vadd.f32 %v1883, 1.0
        %v2012 = vadd.f32 %v1884, 1.0
        %v2013 = vadd.f32 %v1885, 1.0
        %v2014 = vadd.f32 %v1886, 1.0
        %v2015 = vadd.f32 %v1887, 1.0
        %v2016 = vadd.f32 %v1888, 1.0
        %v2017 = vadd.f32 %v1889, 1.0
        %v2018 = vadd.f32 %v1890, 1.0
        %v2019 = vadd.f32 %v1891, 1.0
        %v2020 = vadd.f32 %v1892, 1.0
        %v2021 = vadd.f32 %v1893, 1.0
        %v2022 = vadd.f32 %v1894, 1.0
        %v2023 = vadd.f32 %v1895, 1.0
        %v2024 = vadd.f32 %v1896, 1.0
        %v2025 = vadd.f32 %v1897, 1.0
        %v2026 = vadd.f32 %v1898, 1.0
        %v2027 = vadd.f32 %v1899, 1.0
        %v2028 = vadd.f32 %v1900, 1.0
        %v2029 = vadd.f32 %v1901, 1.0
        %v2030 = vadd.f32 %v1902, 1.0
        %v2031 = vadd.f32 %v1903, 1.0
        %v2032 = vadd.f32 %v1904, 1.0
        %v2033 = vadd.f32 %v1905, 1.0
        %v2034 = vadd.f32 %v1906, 1.0
        %v2035 = vadd.f32 %v1907, 1.0
        %v2036 = vadd.f32 %v1908, 1.0
        %v2037 = vadd.f32 %v1909, 1.0
        %v2038 = vadd.f32 %v1910, 1.0
        %v2039 = vadd.f32 %v1911, 1.0
        %v2040 = vadd.f32 %v1912, 1.0
        %v2041 = vadd.f32 %v1913, 1.0
        %v2042 = vadd.f32 %v1914, 1.0
        %v2043 = vadd.f32 %v1915, 1.0
        %v2044 = vadd.f32 %v1916, 1.0
        %v2045 = vadd.f32 %v1917, 1.0
        %v2046 = vadd.f32 %v1918, 1.0
        %v2047 = vadd.f32 %v1919, 1.0
        %v2048 = vadd.f32 %v1920, 1.0
        %v2049 = vadd.f32 %v1921, 1.0
        %v2050 = vadd.f32 %v1922, 1.0
        %v2051 = vadd.f32 %v1923, 1.0
        %v2052 = vadd.f32 %v1924, 1.0
        %v2053 = vadd.f32 %v1925, 1.0
        %v2054 = vadd.f32 %v1926, 1.0
        %v2055 = vadd.f32 %v1927, 1.0
        %v2056 = vadd.f32 %v1928, 1.0
        %v2057 = vadd.f32 %v1929, 1.0
        %v2058 = vadd.f32 %v1930, 1.0
        %v2059 = vadd.f32 %v1931, 1.0
        %v2060 = vadd.f32 %v1932, 1.0
        %v2061 = vadd.f32 %v1933, 1.0
        %v2062 = vadd.f32 %v1934, 1.0
        %v2063 = vadd.f32 %v1935, 1.0
        %v2064 = vadd.f32 %v1936, 1.0
        %v2065 = vadd.f32 %v1937, 1.0
        %v2066 = vadd.f32 %v1938, 1.0
        %v2067 = vadd.f32 %v1939, 1.0
        %v2068 = vadd.f32 %v1940, 1.0
        %v2069 = vadd.f32 %v1941, 1.0
        %v2070 = vadd.f32 %v1942, 1.0
        %v2071 = vadd.f32 %v1943, 1.0
        %v2072 = vadd.f32 %v1944, 1.0
        %v2073 = vadd.f32 %v1945, 1.0
        %v2074 = vadd.f32 %v1946, 1.0
        %v2075 = vadd.f32 %v1947, 1.0
        %v2076 = vadd.f32 %v1948, 1.0
        %v2077 = vadd.f32 %v1949, 1.0
        %v2078 = vadd.f32 %v1950, 1.0
        %v2079 = vadd.f32 %v1951, 1.0
        %v2080 = vadd.f32 %v1952, 1.0
        %v2081 = vadd.f32 %v1953, 1.0
        %v2082 = vadd.f32 %v1954, 1.0
        %v2083 = vadd.f32 %v1955, 1.0
        %v2084 = vadd.f32 %v1956, 1.0
        %v2085 = vadd.f32 %v1957, 1.0
        %v2086 = vadd.f32 %v1958, 1.0
        %v2087 = vadd.f32 %v1959, 1.0
        %v2088 = vadd.f32 %v1960, 1.0
        %v2089 = vadd.f32 %v1961, 1.0
        %v2090 = vadd.f32 %v1962, 1.0
        %v2091 = vadd.f32 %v1963, 1.0
        %v2092 = vadd.f32 %v1964, 1.0
        %v2093 = vadd.f32 %v1965, 1.0
        %v2094 = vadd.f32 %v1966, 1.0
        %v2095 = vadd.f32 %v1967, 1.0
        %v2096 = vadd.f32 %v1968, 1.0
        %v2097 = vadd.f32 %v1969, 1.0
        %v2098 = vadd.f32 %v1970, 1.0
        %v2099 = vadd.f32 %v1971, 1.0
        %v2100 = vadd.f32 %v1972, 1.0
        %v2101 = vadd.f32 %v1973, 1.0
        %v2102 = vadd.f32 %v1974, 1.0
        %v2103 = vadd.f32 %v1975, 1.0
        %v2104 = vadd.f32 %v1976, 1.0
        %v2105 = vadd.f32 %v1977, 1.0
        %v2106 = vadd.f32 %v1978, 1.0
        %v2107 = vadd.f32 %v1979, 1.0
        %v2108 = vadd.f32 %v1980, 1.0
        %v2109 = vadd.f32 %v1981, 1.0
        %v2110 = vadd.f32 %v1982, 1.0
        %v2111 = vadd.f32 %v1983, 1.0
        %v2112 = vadd.f32 %v1984, 1.0
        %v2113 = vadd.f32 %v1985, 1.0
        %v2114 = vadd.f32 %v1986, 1.0
        %v2115 = vadd.f32 %v1987, 1.0
        %v2116 = vadd.f32 %v1988, 1.0
        %v2117 = vadd.f32 %v1989, 1.0
        %v2118 = vadd.f32 %v1990, 1.0
        %v2119 = vadd.f32 %v1991, 1.0
        %v2120 = vadd.f32 %v1992, 1.0
        %v2121 = vadd.f32 %v1993, 1.0
        %v2122 = vadd.f32 %v1994, 1.0
        %v2123 = vadd.f32 %v1995, 1.0
        %v2124 = vadd.f32 %v1996, 1.0
        %v2125 = vadd.f32 %v1997, 1.0
        %v2126 = vadd.f32 %v1998, 1.0
        %v2127 = vadd.f32 %v1999, 1.0
        %v2128 = vadd.f32 %v2000, 1.0
        %v2129 = vadd.f32 %v2001, 1.0
        %v2130 = vadd.f32 %v2002, 1.0
        %v2131 = vadd.f32 %v2003, 1.0
        %v2132 = vadd.f32 %v2004, 1.0
        %v2133 = vadd.f32 %v2005, 1.0
        %v2134 = vadd.f32 %v2006, 1.0
        %v2135 = vmul.f32 %v2007, 0.5
        %v2136 = vmul.f32 %v2008, 0.5
        %v2137 = vmul.f32 %v2009, 0.5
        %v2138 = vmul.f32 %v2010, 0.5
        %v2139 = vmul.f32 %v2011, 0.5
        %v2140 = vmul.f32 %v2012, 0.5
        %v2141 = vmul.f32 %v2013, 0.5
        %v2142 = vmul.f32 %v2014, 0.5
        %v2143 = vmul.f32 %v2015, 0.5
        %v2144 = vmul.f32 %v2016, 0.5
        %v2145 = vmul.f32 %v2017, 0.5
        %v2146 = vmul.f32 %v2018, 0.5
        %v2147 = vmul.f32 %v2019, 0.5
        %v2148 = vmul.f32 %v2020, 0.5
        %v2149 = vmul.f32 %v2021, 0.5
        %v2150 = vmul.f32 %v2022, 0.5
        %v2151 = vmul.f32 %v2023, 0.5
        %v2152 = vmul.f32 %v2024, 0.5
        %v2153 = vmul.f32 %v2025, 0.5
        %v2154 = vmul.f32 %v2026, 0.5
        %v2155 = vmul.f32 %v2027, 0.5
        %v2156 = vmul.f32 %v2028, 0.5
        %v2157 = vmul.f32 %v2029, 0.5
        %v2158 = vmul.f32 %v2030, 0.5
        %v2159 = vmul.f32 %v2031, 0.5
        %v2160 = vmul.f32 %v2032, 0.5
        %v2161 = vmul.f32 %v2033, 0.5
        %v2162 = vmul.f32 %v2034, 0.5
        %v2163 = vmul.f32 %v2035, 0.5
        %v2164 = vmul.f32 %v2036, 0.5
        %v2165 = vmul.f32 %v2037, 0.5
        %v2166 = vmul.f32 %v2038, 0.5
        %v2167 = vmul.f32 %v2039, 0.5
        %v2168 = vmul.f32 %v2040, 0.5
        %v2169 = vmul.f32 %v2041, 0.5
        %v2170 = vmul.f32 %v2042, 0.5
        %v2171 = vmul.f32 %v2043, 0.5
        %v2172 = vmul.f32 %v2044, 0.5
        %v2173 = vmul.f32 %v2045, 0.5
        %v2174 = vmul.f32 %v2046, 0.5
        %v2175 = vmul.f32 %v2047, 0.5
        %v2176 = vmul.f32 %v2048, 0.5
        %v2177 = vmul.f32 %v2049, 0.5
        %v2178 = vmul.f32 %v2050, 0.5
        %v2179 = vmul.f32 %v2051, 0.5
        %v2180 = vmul.f32 %v2052, 0.5
        %v2181 = vmul.f32 %v2053, 0.5
        %v2182 = vmul.f32 %v2054, 0.5
        %v2183 = vmul.f32 %v2055, 0.5
        %v2184 = vmul.f32 %v2056, 0.5
        %v2185 = vmul.f32 %v2057, 0.5
        %v2186 = vmul.f32 %v2058, 0.5
        %v2187 = vmul.f32 %v2059, 0.5
        %v2188 = vmul.f32 %v2060, 0.5
        %v2189 = vmul.f32 %v2061, 0.5
        %v2190 = vmul.f32 %v2062, 0.5
        %v2191 = vmul.f32 %v2063, 0.5
        %v2192 = vmul.f32 %v2064, 0.5
        %v2193 = vmul.f32 %v2065, 0.5
        %v2194 = vmul.f32 %v2066, 0.5
        %v2195 = vmul.f32 %v2067, 0.5
        %v2196 = vmul.f32 %v2068, 0.5
        %v2197 = vmul.f32 %v2069, 0.5
        %v2198 = vmul.f32 %v2070, 0.5
        %v2199 = vmul.f32 %v2071, 0.5
        %v2200 = vmul.f32 %v2072, 0.5
        %v2201 = vmul.f32 %v2073, 0.5
        %v2202 = vmul.f32 %v2074, 0.5
        %v2203 = vmul.f32 %v2075, 0.5
        %v2204 = vmul.f32 %v2076, 0.5
        %v2205 = vmul.f32 %v2077, 0.5
        %v2206 = vmul.f32 %v2078, 0.5
        %v2207 = vmul.f32 %v2079, 0.5
        %v2208 = vmul.f32 %v2080, 0.5
        %v2209 = vmul.f32 %v2081, 0.5
        %v2210 = vmul.f32 %v2082, 0.5
        %v2211 = vmul.f32 %v2083, 0.5
        %v2212 = vmul.f32 %v2084, 0.5
        %v2213 = vmul.f32 %v2085, 0.5
        %v2214 = vmul.f32 %v2086, 0.5
        %v2215 = vmul.f32 %v2087, 0.5
        %v2216 = vmul.f32 %v2088, 0.5
        %v2217 = vmul.f32 %v2089, 0.5
        %v2218 = vmul.f32 %v2090, 0.5
        %v2219 = vmul.f32 %v2091, 0.5
        %v2220 = vmul.f32 %v2092, 0.5
        %v2221 = vmul.f32 %v2093, 0.5
        %v2222 = vmul.f32 %v2094, 0.5
        %v2223 = vmul.f32 %v2095, 0.5
        %v2224 = vmul.f32 %v2096, 0.5
        %v2225 = vmul.f32 %v2097, 0.5
        %v2226 = vmul.f32 %v2098, 0.5
        %v2227 = vmul.f32 %v2099, 0.5
        %v2228 = vmul.f32 %v2100, 0.5
        %v2229 = vmul.f32 %v2101, 0.5
        %v2230 = vmul.f32 %v2102, 0.5
        %v2231 = vmul.f32 %v2103, 0.5
        %v2232 = vmul.f32 %v2104, 0.5
        %v2233 = vmul.f32 %v2105, 0.5
        %v2234 = vmul.f32 %v2106, 0.5
        %v2235 = vmul.f32 %v2107, 0.5
        %v2236 = vmul.f32 %v2108, 0.5
        %v2237 = vmul.f32 %v2109, 0.5
        %v2238 = vmul.f32 %v2110, 0.5
        %v2239 = vmul.f32 %v2111, 0.5
        %v2240 = vmul.f32 %v2112, 0.5
        %v2241 = vmul.f32 %v2113, 0.5
        %v2242 = vmul.f32 %v2114, 0.5
        %v2243 = vmul.f32 %v2115, 0.5
        %v2244 = vmul.f32 %v2116, 0.5
        %v2245 = vmul.f32 %v2117, 0.5
        %v2246 = vmul.f32 %v2118, 0.5
        %v2247 = vmul.f32 %v2119, 0.5
        %v2248 = vmul.f32 %v2120, 0.5
        %v2249 = vmul.f32 %v2121, 0.5
        %v2250 = vmul.f32 %v2122, 0.5
        %v2251 = vmul.f32 %v2123, 0.5
        %v2252 = vmul.f32 %v2124, 0.5
        %v2253 = vmul.f32 %v2125, 0.5
        %v2254 = vmul.f32 %v2126, 0.5
        %v2255 = vmul.f32 %v2127, 0.5
        %v2256 = vmul.f32 %v2128, 0.5
        %v2257 = vmul.f32 %v2129, 0.5
        %v2258 = vmul.f32 %v2130, 0.5
        %v2259 = vmul.f32 %v2131, 0.5
        %v2260 = vmul.f32 %v2132, 0.5
        %v2261 = vmul.f32 %v2133, 0.5
        %v2262 = vmul.f32 %v2134, 0.5
        %v2263 = vmul.f32 %v888, %v2135
        %v2264 = vmul.f32 %v890, %v2136
        %v2265 = vmul.f32 %v1081, %v2137
        %v2266 = vmul.f32 %v1083, %v2138
        %v2267 = vmul.f32 %v892, %v2139
        %v2268 = vmul.f32 %v894, %v2140
        %v2269 = vmul.f32 %v1085, %v2141
        %v2270 = vmul.f32 %v1087, %v2142
        %v2271 = vmul.f32 %v898, %v2143
        %v2272 = vmul.f32 %v900, %v2144
        %v2273 = vmul.f32 %v1091, %v2145
        %v2274 = vmul.f32 %v1093, %v2146
        %v2275 = vmul.f32 %v902, %v2147
        %v2276 = vmul.f32 %v904, %v2148
        %v2277 = vmul.f32 %v1095, %v2149
        %v2278 = vmul.f32 %v1097, %v2150
        %v2279 = vmul.f32 %v908, %v2151
        %v2280 = vmul.f32 %v910, %v2152
        %v2281 = vmul.f32 %v1101, %v2153
        %v2282 = vmul.f32 %v1103, %v2154
        %v2283 = vmul.f32 %v912, %v2155
        %v2284 = vmul.f32 %v914, %v2156
        %v2285 = vmul.f32 %v1105, %v2157
        %v2286 = vmul.f32 %v1107, %v2158
        %v2287 = vmul.f32 %v918, %v2159
        %v2288 = vmul.f32 %v920, %v2160
        %v2289 = vmul.f32 %v1111, %v2161
        %v2290 = vmul.f32 %v1113, %v2162
        %v2291 = vmul.f32 %v922, %v2163
        %v2292 = vmul.f32 %v924, %v2164
        %v2293 = vmul.f32 %v1115, %v2165
        %v2294 = vmul.f32 %v1117, %v2166
        %v2295 = vmul.f32 %v928, %v2167
        %v2296 = vmul.f32 %v930, %v2168
        %v2297 = vmul.f32 %v1121, %v2169
        %v2298 = vmul.f32 %v1123, %v2170
        %v2299 = vmul.f32 %v932, %v2171
        %v2300 = vmul.f32 %v934, %v2172
        %v2301 = vmul.f32 %v1125, %v2173
        %v2302 = vmul.f32 %v1127, %v2174
        %v2303 = vmul.f32 %v938, %v2175
        %v2304 = vmul.f32 %v940, %v2176
        %v2305 = vmul.f32 %v1131, %v2177
        %v2306 = vmul.f32 %v1133, %v2178
        %v2307 = vmul.f32 %v942, %v2179
        %v2308 = vmul.f32 %v944, %v2180
        %v2309 = vmul.f32 %v1135, %v2181
        %v2310 = vmul.f32 %v1137, %v2182
        %v2311 = vmul.f32 %v948, %v2183
        %v2312 = vmul.f32 %v950, %v2184
        %v2313 = vmul.f32 %v1141, %v2185
        %v2314 = vmul.f32 %v1143, %v2186
        %v2315 = vmul.f32 %v952, %v2187
        %v2316 = vmul.f32 %v954, %v2188
        %v2317 = vmul.f32 %v1145, %v2189
        %v2318 = vmul.f32 %v1147, %v2190
        %v2319 = vmul.f32 %v958, %v2191
        %v2320 = vmul.f32 %v960, %v2192
        %v2321 = vmul.f32 %v1151, %v2193
        %v2322 = vmul.f32 %v1153, %v2194
        %v2323 = vmul.f32 %v962, %v2195
        %v2324 = vmul.f32 %v964, %v2196
        %v2325 = vmul.f32 %v1155, %v2197
        %v2326 = vmul.f32 %v1157, %v2198
        %v2327 = vmul.f32 %v968, %v2199
        %v2328 = vmul.f32 %v970, %v2200
        %v2329 = vmul.f32 %v1161, %v2201
        %v2330 = vmul.f32 %v1163, %v2202
        %v2331 = vmul.f32 %v972, %v2203
        %v2332 = vmul.f32 %v974, %v2204
        %v2333 = vmul.f32 %v1165, %v2205
        %v2334 = vmul.f32 %v1167, %v2206
        %v2335 = vmul.f32 %v978, %v2207
        %v2336 = vmul.f32 %v980, %v2208
        %v2337 = vmul.f32 %v1171, %v2209
        %v2338 = vmul.f32 %v1173, %v2210
        %v2339 = vmul.f32 %v982, %v2211
        %v2340 = vmul.f32 %v984, %v2212
        %v2341 = vmul.f32 %v1175, %v2213
        %v2342 = vmul.f32 %v1177, %v2214
        %v2343 = vmul.f32 %v988, %v2215
        %v2344 = vmul.f32 %v990, %v2216
        %v2345 = vmul.f32 %v1181, %v2217
        %v2346 = vmul.f32 %v1183, %v2218
        %v2347 = vmul.f32 %v992, %v2219
        %v2348 = vmul.f32 %v994, %v2220
        %v2349 = vmul.f32 %v1185, %v2221
        %v2350 = vmul.f32 %v1187, %v2222
        %v2351 = vmul.f32 %v998, %v2223
        %v2352 = vmul.f32 %v1000, %v2224
        %v2353 = vmul.f32 %v1191, %v2225
        %v2354 = vmul.f32 %v1193, %v2226
        %v2355 = vmul.f32 %v1002, %v2227
        %v2356 = vmul.f32 %v1004, %v2228
        %v2357 = vmul.f32 %v1195, %v2229
        %v2358 = vmul.f32 %v1197, %v2230
        %v2359 = vmul.f32 %v1008, %v2231
        %v2360 = vmul.f32 %v1010, %v2232
        %v2361 = vmul.f32 %v1201, %v2233
        %v2362 = vmul.f32 %v1203, %v2234
        %v2363 = vmul.f32 %v1012, %v2235
        %v2364 = vmul.f32 %v1014, %v2236
        %v2365 = vmul.f32 %v1205, %v2237
        %v2366 = vmul.f32 %v1207, %v2238
        %v2367 = vmul.f32 %v1018, %v2239
        %v2368 = vmul.f32 %v1020, %v2240
        %v2369 = vmul.f32 %v1211, %v2241
        %v2370 = vmul.f32 %v1213, %v2242
        %v2371 = vmul.f32 %v1022, %v2243
        %v2372 = vmul.f32 %v1024, %v2244
        %v2373 = vmul.f32 %v1215, %v2245
        %v2374 = vmul.f32 %v1217, %v2246
        %v2375 = vmul.f32 %v1028, %v2247
        %v2376 = vmul.f32 %v1030, %v2248
        %v2377 = vmul.f32 %v1221, %v2249
        %v2378 = vmul.f32 %v1223, %v2250
        %v2379 = vmul.f32 %v1032, %v2251
        %v2380 = vmul.f32 %v1034, %v2252
        %v2381 = vmul.f32 %v1225, %v2253
        %v2382 = vmul.f32 %v1227, %v2254
        %v2383 = vmul.f32 %v1038, %v2255
        %v2384 = vmul.f32 %v1040, %v2256
        %v2385 = vmul.f32 %v1231, %v2257
        %v2386 = vmul.f32 %v1233, %v2258
        %v2387 = vmul.f32 %v1042, %v2259
        %v2388 = vmul.f32 %v1044, %v2260
        %v2389 = vmul.f32 %v1235, %v2261
        %v2390 = vmul.f32 %v1237, %v2262
        %v2391 = vld [vmem:[#allocation2] sm:$0xff]
        %v2392 = vld [vmem:[#allocation2 + $0x8] sm:$0xff]
        %v2393 = vld [vmem:[#allocation2 + $0x10] sm:$0xff]
        %v2394 = vld [vmem:[#allocation2 + $0x18] sm:$0xff]
        %v2395 = vld [vmem:[#allocation2 + $0x20] sm:$0xff]
        %v2396 = vld [vmem:[#allocation2 + $0x28] sm:$0xff]
        %v2397 = vld [vmem:[#allocation2 + $0x30] sm:$0xff]
        %v2398 = vld [vmem:[#allocation2 + $0x38] sm:$0xff]
        %v2399 = vld [vmem:[#allocation2 + $0x40] sm:$0xff]
        %v2400 = vld [vmem:[#allocation2 + $0x48] sm:$0xff]
        %v2401 = vld [vmem:[#allocation2 + $0x50] sm:$0xff]
        %v2402 = vld [vmem:[#allocation2 + $0x58] sm:$0xff]
        %v2403 = vld [vmem:[#allocation2 + $0x60] sm:$0xff]
        %v2404 = vld [vmem:[#allocation2 + $0x68] sm:$0xff]
        %v2405 = vld [vmem:[#allocation2 + $0x70] sm:$0xff]
        %v2406 = vld [vmem:[#allocation2 + $0x78] sm:$0xff]
        %v2407 = vld [vmem:[#allocation2 + $0x80] sm:$0xff]
        %v2408 = vld [vmem:[#allocation2 + $0x88] sm:$0xff]
        %v2409 = vld [vmem:[#allocation2 + $0x90] sm:$0xff]
        %v2410 = vld [vmem:[#allocation2 + $0x98] sm:$0xff]
        %v2411 = vld [vmem:[#allocation2 + $0xa0] sm:$0xff]
        %v2412 = vld [vmem:[#allocation2 + $0xa8] sm:$0xff]
        %v2413 = vld [vmem:[#allocation2 + $0xb0] sm:$0xff]
        %v2414 = vld [vmem:[#allocation2 + $0xb8] sm:$0xff]
        %v2415 = vld [vmem:[#allocation2 + $0xc0] sm:$0xff]
        %v2416 = vld [vmem:[#allocation2 + $0xc8] sm:$0xff]
        %v2417 = vld [vmem:[#allocation2 + $0xd0] sm:$0xff]
        %v2418 = vld [vmem:[#allocation2 + $0xd8] sm:$0xff]
        %v2419 = vld [vmem:[#allocation2 + $0xe0] sm:$0xff]
        %v2420 = vld [vmem:[#allocation2 + $0xe8] sm:$0xff]
        %v2421 = vld [vmem:[#allocation2 + $0xf0] sm:$0xff]
        %v2422 = vld [vmem:[#allocation2 + $0xf8] sm:$0xff]
        %v2423 = vld [vmem:[#allocation2 + $0x100] sm:$0xff]
        %v2424 = vld [vmem:[#allocation2 + $0x108] sm:$0xff]
        %v2425 = vld [vmem:[#allocation2 + $0x110] sm:$0xff]
        %v2426 = vld [vmem:[#allocation2 + $0x118] sm:$0xff]
        %v2427 = vld [vmem:[#allocation2 + $0x120] sm:$0xff]
        %v2428 = vld [vmem:[#allocation2 + $0x128] sm:$0xff]
        %v2429 = vld [vmem:[#allocation2 + $0x130] sm:$0xff]
        %v2430 = vld [vmem:[#allocation2 + $0x138] sm:$0xff]
        %v2431 = vld [vmem:[#allocation2 + $0x140] sm:$0xff]
        %v2432 = vld [vmem:[#allocation2 + $0x148] sm:$0xff]
        %v2433 = vld [vmem:[#allocation2 + $0x150] sm:$0xff]
        %v2434 = vld [vmem:[#allocation2 + $0x158] sm:$0xff]
        %v2435 = vld [vmem:[#allocation2 + $0x160] sm:$0xff]
        %v2436 = vld [vmem:[#allocation2 + $0x168] sm:$0xff]
        %v2437 = vld [vmem:[#allocation2 + $0x170] sm:$0xff]
        %v2438 = vld [vmem:[#allocation2 + $0x178] sm:$0xff]
        %v2439 = vld [vmem:[#allocation2 + $0x180] sm:$0xff]
        %v2440 = vld [vmem:[#allocation2 + $0x188] sm:$0xff]
        %v2441 = vld [vmem:[#allocation2 + $0x190] sm:$0xff]
        %v2442 = vld [vmem:[#allocation2 + $0x198] sm:$0xff]
        %v2443 = vld [vmem:[#allocation2 + $0x1a0] sm:$0xff]
        %v2444 = vld [vmem:[#allocation2 + $0x1a8] sm:$0xff]
        %v2445 = vld [vmem:[#allocation2 + $0x1b0] sm:$0xff]
        %v2446 = vld [vmem:[#allocation2 + $0x1b8] sm:$0xff]
        %v2447 = vld [vmem:[#allocation2 + $0x1c0] sm:$0xff]
        %v2448 = vld [vmem:[#allocation2 + $0x1c8] sm:$0xff]
        %v2449 = vld [vmem:[#allocation2 + $0x1d0] sm:$0xff]
        %v2450 = vld [vmem:[#allocation2 + $0x1d8] sm:$0xff]
        %v2451 = vld [vmem:[#allocation2 + $0x1e0] sm:$0xff]
        %v2452 = vld [vmem:[#allocation2 + $0x1e8] sm:$0xff]
        %v2453 = vld [vmem:[#allocation2 + $0x1f0] sm:$0xff]
        %v2454 = vld [vmem:[#allocation2 + $0x1f8] sm:$0xff]
        %v2455 = vpack.c.bf16 %v2267, %v2263
        %v2456 = vpack.c.bf16 %v2268, %v2264
        %v2457 = vpack.c.bf16 %v2269, %v2265
        %v2458 = vpack.c.bf16 %v2270, %v2266
        %v2459 = vpack.c.bf16 %v2275, %v2271
        %v2460 = vpack.c.bf16 %v2276, %v2272
        %v2461 = vpack.c.bf16 %v2277, %v2273
        %v2462 = vpack.c.bf16 %v2278, %v2274
        %v2463 = vpack.c.bf16 %v2283, %v2279
        %v2464 = vpack.c.bf16 %v2284, %v2280
        %v2465 = vpack.c.bf16 %v2285, %v2281
        %v2466 = vpack.c.bf16 %v2286, %v2282
        %v2467 = vpack.c.bf16 %v2291, %v2287
        %v2468 = vpack.c.bf16 %v2292, %v2288
        %v2469 = vpack.c.bf16 %v2293, %v2289
        %v2470 = vpack.c.bf16 %v2294, %v2290
        %v2471 = vpack.c.bf16 %v2299, %v2295
        %v2472 = vpack.c.bf16 %v2300, %v2296
        %v2473 = vpack.c.bf16 %v2301, %v2297
        %v2474 = vpack.c.bf16 %v2302, %v2298
        %v2475 = vpack.c.bf16 %v2307, %v2303
        %v2476 = vpack.c.bf16 %v2308, %v2304
        %v2477 = vpack.c.bf16 %v2309, %v2305
        %v2478 = vpack.c.bf16 %v2310, %v2306
        %v2479 = vpack.c.bf16 %v2315, %v2311
        %v2480 = vpack.c.bf16 %v2316, %v2312
        %v2481 = vpack.c.bf16 %v2317, %v2313
        %v2482 = vpack.c.bf16 %v2318, %v2314
        %v2483 = vpack.c.bf16 %v2323, %v2319
        %v2484 = vpack.c.bf16 %v2324, %v2320
        %v2485 = vpack.c.bf16 %v2325, %v2321
        %v2486 = vpack.c.bf16 %v2326, %v2322
        %v2487 = vpack.c.bf16 %v2331, %v2327
        %v2488 = vpack.c.bf16 %v2332, %v2328
        %v2489 = vpack.c.bf16 %v2333, %v2329
        %v2490 = vpack.c.bf16 %v2334, %v2330
        %v2491 = vpack.c.bf16 %v2339, %v2335
        %v2492 = vpack.c.bf16 %v2340, %v2336
        %v2493 = vpack.c.bf16 %v2341, %v2337
        %v2494 = vpack.c.bf16 %v2342, %v2338
        %v2495 = vpack.c.bf16 %v2347, %v2343
        %v2496 = vpack.c.bf16 %v2348, %v2344
        %v2497 = vpack.c.bf16 %v2349, %v2345
        %v2498 = vpack.c.bf16 %v2350, %v2346
        %v2499 = vpack.c.bf16 %v2355, %v2351
        %v2500 = vpack.c.bf16 %v2356, %v2352
        %v2501 = vpack.c.bf16 %v2357, %v2353
        %v2502 = vpack.c.bf16 %v2358, %v2354
        %v2503 = vpack.c.bf16 %v2363, %v2359
        %v2504 = vpack.c.bf16 %v2364, %v2360
        %v2505 = vpack.c.bf16 %v2365, %v2361
        %v2506 = vpack.c.bf16 %v2366, %v2362
        %v2507 = vpack.c.bf16 %v2371, %v2367
        %v2508 = vpack.c.bf16 %v2372, %v2368
        %v2509 = vpack.c.bf16 %v2373, %v2369
        %v2510 = vpack.c.bf16 %v2374, %v2370
        %v2511 = vpack.c.bf16 %v2379, %v2375
        %v2512 = vpack.c.bf16 %v2380, %v2376
        %v2513 = vpack.c.bf16 %v2381, %v2377
        %v2514 = vpack.c.bf16 %v2382, %v2378
        %v2515 = vpack.c.bf16 %v2387, %v2383
        %v2516 = vpack.c.bf16 %v2388, %v2384
        %v2517 = vpack.c.bf16 %v2389, %v2385
        %v2518 = vpack.c.bf16 %v2390, %v2386
        %v2519 = vld [vmem:[#allocation8] sm:$0xff]
        %v2520 = vld [vmem:[#allocation8 + $0x8] sm:$0xff]
        %v2521 = vld [vmem:[#allocation8 + $0x10] sm:$0xff]
        %v2522 = vld [vmem:[#allocation8 + $0x18] sm:$0xff]
        %v2523 = vld [vmem:[#allocation8 + $0x20] sm:$0xff]
        %v2524 = vld [vmem:[#allocation8 + $0x28] sm:$0xff]
        %v2525 = vld [vmem:[#allocation8 + $0x30] sm:$0xff]
        %v2526 = vld [vmem:[#allocation8 + $0x38] sm:$0xff]
        %v2527 = vld [vmem:[#allocation8 + $0x40] sm:$0xff]
        %v2528 = vld [vmem:[#allocation8 + $0x48] sm:$0xff]
        %v2529 = vld [vmem:[#allocation8 + $0x50] sm:$0xff]
        %v2530 = vld [vmem:[#allocation8 + $0x58] sm:$0xff]
        %v2531 = vld [vmem:[#allocation8 + $0x60] sm:$0xff]
        %v2532 = vld [vmem:[#allocation8 + $0x68] sm:$0xff]
        %v2533 = vld [vmem:[#allocation8 + $0x70] sm:$0xff]
        %v2534 = vld [vmem:[#allocation8 + $0x78] sm:$0xff]
        %v2535 = vld [vmem:[#allocation8 + $0x80] sm:$0xff]
        %v2536 = vld [vmem:[#allocation8 + $0x88] sm:$0xff]
        %v2537 = vld [vmem:[#allocation8 + $0x90] sm:$0xff]
        %v2538 = vld [vmem:[#allocation8 + $0x98] sm:$0xff]
        %v2539 = vld [vmem:[#allocation8 + $0xa0] sm:$0xff]
        %v2540 = vld [vmem:[#allocation8 + $0xa8] sm:$0xff]
        %v2541 = vld [vmem:[#allocation8 + $0xb0] sm:$0xff]
        %v2542 = vld [vmem:[#allocation8 + $0xb8] sm:$0xff]
        %v2543 = vld [vmem:[#allocation8 + $0xc0] sm:$0xff]
        %v2544 = vld [vmem:[#allocation8 + $0xc8] sm:$0xff]
        %v2545 = vld [vmem:[#allocation8 + $0xd0] sm:$0xff]
        %v2546 = vld [vmem:[#allocation8 + $0xd8] sm:$0xff]
        %v2547 = vld [vmem:[#allocation8 + $0xe0] sm:$0xff]
        %v2548 = vld [vmem:[#allocation8 + $0xe8] sm:$0xff]
        %v2549 = vld [vmem:[#allocation8 + $0xf0] sm:$0xff]
        %v2550 = vld [vmem:[#allocation8 + $0xf8] sm:$0xff]
        %v2551 = vld [vmem:[#allocation8 + $0x100] sm:$0xff]
        %v2552 = vld [vmem:[#allocation8 + $0x108] sm:$0xff]
        %v2553 = vld [vmem:[#allocation8 + $0x110] sm:$0xff]
        %v2554 = vld [vmem:[#allocation8 + $0x118] sm:$0xff]
        %v2555 = vld [vmem:[#allocation8 + $0x120] sm:$0xff]
        %v2556 = vld [vmem:[#allocation8 + $0x128] sm:$0xff]
        %v2557 = vld [vmem:[#allocation8 + $0x130] sm:$0xff]
        %v2558 = vld [vmem:[#allocation8 + $0x138] sm:$0xff]
        %v2559 = vld [vmem:[#allocation8 + $0x140] sm:$0xff]
        %v2560 = vld [vmem:[#allocation8 + $0x148] sm:$0xff]
        %v2561 = vld [vmem:[#allocation8 + $0x150] sm:$0xff]
        %v2562 = vld [vmem:[#allocation8 + $0x158] sm:$0xff]
        %v2563 = vld [vmem:[#allocation8 + $0x160] sm:$0xff]
        %v2564 = vld [vmem:[#allocation8 + $0x168] sm:$0xff]
        %v2565 = vld [vmem:[#allocation8 + $0x170] sm:$0xff]
        %v2566 = vld [vmem:[#allocation8 + $0x178] sm:$0xff]
        %v2567 = vld [vmem:[#allocation8 + $0x180] sm:$0xff]
        %v2568 = vld [vmem:[#allocation8 + $0x188] sm:$0xff]
        %v2569 = vld [vmem:[#allocation8 + $0x190] sm:$0xff]
        %v2570 = vld [vmem:[#allocation8 + $0x198] sm:$0xff]
        %v2571 = vld [vmem:[#allocation8 + $0x1a0] sm:$0xff]
        %v2572 = vld [vmem:[#allocation8 + $0x1a8] sm:$0xff]
        %v2573 = vld [vmem:[#allocation8 + $0x1b0] sm:$0xff]
        %v2574 = vld [vmem:[#allocation8 + $0x1b8] sm:$0xff]
        %v2575 = vld [vmem:[#allocation8 + $0x1c0] sm:$0xff]
        %v2576 = vld [vmem:[#allocation8 + $0x1c8] sm:$0xff]
        %v2577 = vld [vmem:[#allocation8 + $0x1d0] sm:$0xff]
        %v2578 = vld [vmem:[#allocation8 + $0x1d8] sm:$0xff]
        %v2579 = vld [vmem:[#allocation8 + $0x1e0] sm:$0xff]
        %v2580 = vld [vmem:[#allocation8 + $0x1e8] sm:$0xff]
        %v2581 = vld [vmem:[#allocation8 + $0x1f0] sm:$0xff]
        %v2582 = vld [vmem:[#allocation8 + $0x1f8] sm:$0xff]
        %v2647 = vunpack.c.l.b16 %v2519
        %v2648 = vunpack.c.h.b16 %v2519
        %v2649 = vunpack.c.l.b16 %v2520
        %v2650 = vunpack.c.h.b16 %v2520
        %v2651 = vunpack.c.l.b16 %v2521
        %v2652 = vunpack.c.h.b16 %v2521
        %v2653 = vunpack.c.l.b16 %v2522
        %v2654 = vunpack.c.h.b16 %v2522
        %v2655 = vunpack.c.l.b16 %v2523
        %v2656 = vunpack.c.h.b16 %v2523
        %v2657 = vunpack.c.l.b16 %v2524
        %v2658 = vunpack.c.h.b16 %v2524
        %v2659 = vunpack.c.l.b16 %v2525
        %v2660 = vunpack.c.h.b16 %v2525
        %v2661 = vunpack.c.l.b16 %v2526
        %v2662 = vunpack.c.h.b16 %v2526
        %v2663 = vunpack.c.l.b16 %v2527
        %v2664 = vunpack.c.h.b16 %v2527
        %v2665 = vunpack.c.l.b16 %v2528
        %v2666 = vunpack.c.h.b16 %v2528
        %v2667 = vunpack.c.l.b16 %v2529
        %v2668 = vunpack.c.h.b16 %v2529
        %v2669 = vunpack.c.l.b16 %v2530
        %v2670 = vunpack.c.h.b16 %v2530
        %v2671 = vunpack.c.l.b16 %v2531
        %v2672 = vunpack.c.h.b16 %v2531
        %v2673 = vunpack.c.l.b16 %v2532
        %v2674 = vunpack.c.h.b16 %v2532
        %v2675 = vunpack.c.l.b16 %v2533
        %v2676 = vunpack.c.h.b16 %v2533
        %v2677 = vunpack.c.l.b16 %v2534
        %v2678 = vunpack.c.h.b16 %v2534
        %v2679 = vunpack.c.l.b16 %v2535
        %v2680 = vunpack.c.h.b16 %v2535
        %v2681 = vunpack.c.l.b16 %v2536
        %v2682 = vunpack.c.h.b16 %v2536
        %v2683 = vunpack.c.l.b16 %v2537
        %v2684 = vunpack.c.h.b16 %v2537
        %v2685 = vunpack.c.l.b16 %v2538
        %v2686 = vunpack.c.h.b16 %v2538
        %v2687 = vunpack.c.l.b16 %v2539
        %v2688 = vunpack.c.h.b16 %v2539
        %v2689 = vunpack.c.l.b16 %v2540
        %v2690 = vunpack.c.h.b16 %v2540
        %v2691 = vunpack.c.l.b16 %v2541
        %v2692 = vunpack.c.h.b16 %v2541
        %v2693 = vunpack.c.l.b16 %v2542
        %v2694 = vunpack.c.h.b16 %v2542
        %v2695 = vunpack.c.l.b16 %v2543
        %v2696 = vunpack.c.h.b16 %v2543
        %v2697 = vunpack.c.l.b16 %v2544
        %v2698 = vunpack.c.h.b16 %v2544
        %v2699 = vunpack.c.l.b16 %v2545
        %v2700 = vunpack.c.h.b16 %v2545
        %v2701 = vunpack.c.l.b16 %v2546
        %v2702 = vunpack.c.h.b16 %v2546
        %v2703 = vunpack.c.l.b16 %v2547
        %v2704 = vunpack.c.h.b16 %v2547
        %v2705 = vunpack.c.l.b16 %v2548
        %v2706 = vunpack.c.h.b16 %v2548
        %v2707 = vunpack.c.l.b16 %v2549
        %v2708 = vunpack.c.h.b16 %v2549
        %v2709 = vunpack.c.l.b16 %v2550
        %v2710 = vunpack.c.h.b16 %v2550
        %v2711 = vunpack.c.l.b16 %v2551
        %v2712 = vunpack.c.h.b16 %v2551
        %v2713 = vunpack.c.l.b16 %v2552
        %v2714 = vunpack.c.h.b16 %v2552
        %v2715 = vunpack.c.l.b16 %v2553
        %v2716 = vunpack.c.h.b16 %v2553
        %v2717 = vunpack.c.l.b16 %v2554
        %v2718 = vunpack.c.h.b16 %v2554
        %v2719 = vunpack.c.l.b16 %v2555
        %v2720 = vunpack.c.h.b16 %v2555
        %v2721 = vunpack.c.l.b16 %v2556
        %v2722 = vunpack.c.h.b16 %v2556
        %v2723 = vunpack.c.l.b16 %v2557
        %v2724 = vunpack.c.h.b16 %v2557
        %v2725 = vunpack.c.l.b16 %v2558
        %v2726 = vunpack.c.h.b16 %v2558
        %v2727 = vunpack.c.l.b16 %v2559
        %v2728 = vunpack.c.h.b16 %v2559
        %v2729 = vunpack.c.l.b16 %v2560
        %v2730 = vunpack.c.h.b16 %v2560
        %v2731 = vunpack.c.l.b16 %v2561
        %v2732 = vunpack.c.h.b16 %v2561
        %v2733 = vunpack.c.l.b16 %v2562
        %v2734 = vunpack.c.h.b16 %v2562
        %v2735 = vunpack.c.l.b16 %v2563
        %v2736 = vunpack.c.h.b16 %v2563
        %v2737 = vunpack.c.l.b16 %v2564
        %v2738 = vunpack.c.h.b16 %v2564
        %v2739 = vunpack.c.l.b16 %v2565
        %v2740 = vunpack.c.h.b16 %v2565
        %v2741 = vunpack.c.l.b16 %v2566
        %v2742 = vunpack.c.h.b16 %v2566
        %v2743 = vunpack.c.l.b16 %v2567
        %v2744 = vunpack.c.h.b16 %v2567
        %v2745 = vunpack.c.l.b16 %v2568
        %v2746 = vunpack.c.h.b16 %v2568
        %v2747 = vunpack.c.l.b16 %v2569
        %v2748 = vunpack.c.h.b16 %v2569
        %v2749 = vunpack.c.l.b16 %v2570
        %v2750 = vunpack.c.h.b16 %v2570
        %v2751 = vunpack.c.l.b16 %v2571
        %v2752 = vunpack.c.h.b16 %v2571
        %v2753 = vunpack.c.l.b16 %v2572
        %v2754 = vunpack.c.h.b16 %v2572
        %v2755 = vunpack.c.l.b16 %v2573
        %v2756 = vunpack.c.h.b16 %v2573
        %v2757 = vunpack.c.l.b16 %v2574
        %v2758 = vunpack.c.h.b16 %v2574
        %v2759 = vunpack.c.l.b16 %v2575
        %v2760 = vunpack.c.h.b16 %v2575
        %v2761 = vunpack.c.l.b16 %v2576
        %v2762 = vunpack.c.h.b16 %v2576
        %v2763 = vunpack.c.l.b16 %v2577
        %v2764 = vunpack.c.h.b16 %v2577
        %v2765 = vunpack.c.l.b16 %v2578
        %v2766 = vunpack.c.h.b16 %v2578
        %v2767 = vunpack.c.l.b16 %v2579
        %v2768 = vunpack.c.h.b16 %v2579
        %v2769 = vunpack.c.l.b16 %v2580
        %v2770 = vunpack.c.h.b16 %v2580
        %v2771 = vunpack.c.l.b16 %v2581
        %v2772 = vunpack.c.h.b16 %v2581
        %v2773 = vunpack.c.l.b16 %v2582
        %v2774 = vunpack.c.h.b16 %v2582
        %v2775 = vpack.c.b16 %v2649, %v2647
        %v2776 = vpack.c.b16 %v2650, %v2648
        %v2777 = vpack.c.b16 %v2653, %v2651
        %v2778 = vpack.c.b16 %v2654, %v2652
        %v2779 = vpack.c.b16 %v2657, %v2655
        %v2780 = vpack.c.b16 %v2658, %v2656
        %v2781 = vpack.c.b16 %v2661, %v2659
        %v2782 = vpack.c.b16 %v2662, %v2660
        %v2783 = vpack.c.b16 %v2665, %v2663
        %v2784 = vpack.c.b16 %v2666, %v2664
        %v2785 = vpack.c.b16 %v2669, %v2667
        %v2786 = vpack.c.b16 %v2670, %v2668
        %v2787 = vpack.c.b16 %v2673, %v2671
        %v2788 = vpack.c.b16 %v2674, %v2672
        %v2789 = vpack.c.b16 %v2677, %v2675
        %v2790 = vpack.c.b16 %v2678, %v2676
        %v2791 = vpack.c.b16 %v2681, %v2679
        %v2792 = vpack.c.b16 %v2682, %v2680
        %v2793 = vpack.c.b16 %v2685, %v2683
        %v2794 = vpack.c.b16 %v2686, %v2684
        %v2795 = vpack.c.b16 %v2689, %v2687
        %v2796 = vpack.c.b16 %v2690, %v2688
        %v2797 = vpack.c.b16 %v2693, %v2691
        %v2798 = vpack.c.b16 %v2694, %v2692
        %v2799 = vpack.c.b16 %v2697, %v2695
        %v2800 = vpack.c.b16 %v2698, %v2696
        %v2801 = vpack.c.b16 %v2701, %v2699
        %v2802 = vpack.c.b16 %v2702, %v2700
        %v2803 = vpack.c.b16 %v2705, %v2703
        %v2804 = vpack.c.b16 %v2706, %v2704
        %v2805 = vpack.c.b16 %v2709, %v2707
        %v2806 = vpack.c.b16 %v2710, %v2708
        %v2807 = vpack.c.b16 %v2713, %v2711
        %v2808 = vpack.c.b16 %v2714, %v2712
        %v2809 = vpack.c.b16 %v2717, %v2715
        %v2810 = vpack.c.b16 %v2718, %v2716
        %v2811 = vpack.c.b16 %v2721, %v2719
        %v2812 = vpack.c.b16 %v2722, %v2720
        %v2813 = vpack.c.b16 %v2725, %v2723
        %v2814 = vpack.c.b16 %v2726, %v2724
        %v2815 = vpack.c.b16 %v2729, %v2727
        %v2816 = vpack.c.b16 %v2730, %v2728
        %v2817 = vpack.c.b16 %v2733, %v2731
        %v2818 = vpack.c.b16 %v2734, %v2732
        %v2819 = vpack.c.b16 %v2737, %v2735
        %v2820 = vpack.c.b16 %v2738, %v2736
        %v2821 = vpack.c.b16 %v2741, %v2739
        %v2822 = vpack.c.b16 %v2742, %v2740
        %v2823 = vpack.c.b16 %v2745, %v2743
        %v2824 = vpack.c.b16 %v2746, %v2744
        %v2825 = vpack.c.b16 %v2749, %v2747
        %v2826 = vpack.c.b16 %v2750, %v2748
        %v2827 = vpack.c.b16 %v2753, %v2751
        %v2828 = vpack.c.b16 %v2754, %v2752
        %v2829 = vpack.c.b16 %v2757, %v2755
        %v2830 = vpack.c.b16 %v2758, %v2756
        %v2831 = vpack.c.b16 %v2761, %v2759
        %v2832 = vpack.c.b16 %v2762, %v2760
        %v2833 = vpack.c.b16 %v2765, %v2763
        %v2834 = vpack.c.b16 %v2766, %v2764
        %v2835 = vpack.c.b16 %v2769, %v2767
        %v2836 = vpack.c.b16 %v2770, %v2768
        %v2837 = vpack.c.b16 %v2773, %v2771
        %v2838 = vpack.c.b16 %v2774, %v2772
        %2903 = vmatprep.subr.bf16.mxu0 %v2776
        %2904 = vmatpush1.bf16.msra.mxu0 %v2775
        %2905 = vmatprep.subr.bf16.mxu0 %v2778
        %2906 = vmatpush1.bf16.msra.mxu0 %v2777
        %2907 = vmatprep.subr.bf16.mxu0 %v2780
        %2908 = vmatpush1.bf16.msra.mxu0 %v2779
        %2909 = vmatprep.subr.bf16.mxu0 %v2782
        %2910 = vmatpush1.bf16.msra.mxu0 %v2781
        %2911 = vmatprep.subr.bf16.mxu0 %v2784
        %2912 = vmatpush1.bf16.msra.mxu0 %v2783
        %2913 = vmatprep.subr.bf16.mxu0 %v2786
        %2914 = vmatpush1.bf16.msra.mxu0 %v2785
        %2915 = vmatprep.subr.bf16.mxu0 %v2788
        %2916 = vmatpush1.bf16.msra.mxu0 %v2787
        %2917 = vmatprep.subr.bf16.mxu0 %v2790
        %2918 = vmatpush1.bf16.msra.mxu0 %v2789
        %2919 = vmatprep.subr.bf16.mxu0 %v2792
        %2920 = vmatpush1.bf16.msra.mxu0 %v2791
        %2921 = vmatprep.subr.bf16.mxu0 %v2794
        %2922 = vmatpush1.bf16.msra.mxu0 %v2793
        %2923 = vmatprep.subr.bf16.mxu0 %v2796
        %2924 = vmatpush1.bf16.msra.mxu0 %v2795
        %2925 = vmatprep.subr.bf16.mxu0 %v2798
        %2926 = vmatpush1.bf16.msra.mxu0 %v2797
        %2927 = vmatprep.subr.bf16.mxu0 %v2800
        %2928 = vmatpush1.bf16.msra.mxu0 %v2799
        %2929 = vmatprep.subr.bf16.mxu0 %v2802
        %2930 = vmatpush1.bf16.msra.mxu0 %v2801
        %2931 = vmatprep.subr.bf16.mxu0 %v2804
        %2932 = vmatpush1.bf16.msra.mxu0 %v2803
        %2933 = vmatprep.subr.bf16.mxu0 %v2806
        %2934 = vmatpush1.bf16.msra.mxu0 %v2805
        %2935 = vmatprep.mubr.bf16.mxu0 %v2456
        %2936 = vmatmul.mubr.bf16.gmra.mrb[0].mxu0 %v2455
        %v2937 = vpop.f32.mrb[0].mxu0
        %v2938 = vadd.f32 0.0, %v2937
        %v2939 = vpop.f32.mrb[0].mxu0
        %v2940 = vadd.f32 0.0, %v2939
        %v2941 = vpop.f32.mrb[0].mxu0
        %v2942 = vadd.f32 0.0, %v2941
        %v2943 = vpop.f32.mrb[0].mxu0
        %v2944 = vadd.f32 0.0, %v2943
        %2945 = vmatprep.mubr.bf16.mxu0 %v2460
        %2946 = vmatmul.mubr.bf16.gmra.mrb[0].mxu0 %v2459
        %v2947 = vpop.f32.mrb[0].mxu0
        %v2948 = vadd.f32 0.0, %v2947
        %v2949 = vpop.f32.mrb[0].mxu0
        %v2950 = vadd.f32 0.0, %v2949
        %v2951 = vpop.f32.mrb[0].mxu0
        %v2952 = vadd.f32 0.0, %v2951
        %v2953 = vpop.f32.mrb[0].mxu0
        %v2954 = vadd.f32 0.0, %v2953
        %2955 = vmatprep.mubr.bf16.mxu0 %v2464
        %2956 = vmatmul.mubr.bf16.gmra.mrb[0].mxu0 %v2463
        %v2957 = vpop.f32.mrb[0].mxu0
        %v2958 = vadd.f32 0.0, %v2957
        %v2959 = vpop.f32.mrb[0].mxu0
        %v2960 = vadd.f32 0.0, %v2959
        %v2961 = vpop.f32.mrb[0].mxu0
        %v2962 = vadd.f32 0.0, %v2961
        %v2963 = vpop.f32.mrb[0].mxu0
        %v2964 = vadd.f32 0.0, %v2963
        %2965 = vmatprep.mubr.bf16.mxu0 %v2468
        %2966 = vmatmul.mubr.bf16.gmra.mrb[0].mxu0 %v2467
        %v2967 = vpop.f32.mrb[0].mxu0
        %v2968 = vadd.f32 0.0, %v2967
        %v2969 = vpop.f32.mrb[0].mxu0
        %v2970 = vadd.f32 0.0, %v2969
        %v2971 = vpop.f32.mrb[0].mxu0
        %v2972 = vadd.f32 0.0, %v2971
        %v2973 = vpop.f32.mrb[0].mxu0
        %v2974 = vadd.f32 0.0, %v2973
        %2975 = vmatprep.mubr.bf16.mxu0 %v2472
        %2976 = vmatmul.mubr.bf16.gmra.mrb[0].mxu0 %v2471
        %v2977 = vpop.f32.mrb[0].mxu0
        %v2978 = vadd.f32 0.0, %v2977
        %v2979 = vpop.f32.mrb[0].mxu0
        %v2980 = vadd.f32 0.0, %v2979
        %v2981 = vpop.f32.mrb[0].mxu0
        %v2982 = vadd.f32 0.0, %v2981
        %v2983 = vpop.f32.mrb[0].mxu0
        %v2984 = vadd.f32 0.0, %v2983
        %2985 = vmatprep.mubr.bf16.mxu0 %v2476
        %2986 = vmatmul.mubr.bf16.gmra.mrb[0].mxu0 %v2475
        %v2987 = vpop.f32.mrb[0].mxu0
        %v2988 = vadd.f32 0.0, %v2987
        %v2989 = vpop.f32.mrb[0].mxu0
        %v2990 = vadd.f32 0.0, %v2989
        %v2991 = vpop.f32.mrb[0].mxu0
        %v2992 = vadd.f32 0.0, %v2991
        %v2993 = vpop.f32.mrb[0].mxu0
        %v2994 = vadd.f32 0.0, %v2993
        %2995 = vmatprep.mubr.bf16.mxu0 %v2480
        %2996 = vmatmul.mubr.bf16.gmra.mrb[0].mxu0 %v2479
        %v2997 = vpop.f32.mrb[0].mxu0
        %v2998 = vadd.f32 0.0, %v2997
        %v2999 = vpop.f32.mrb[0].mxu0
        %v3000 = vadd.f32 0.0, %v2999
        %v3001 = vpop.f32.mrb[0].mxu0
        %v3002 = vadd.f32 0.0, %v3001
        %v3003 = vpop.f32.mrb[0].mxu0
        %v3004 = vadd.f32 0.0, %v3003
        %3005 = vmatprep.mubr.bf16.mxu0 %v2484
        %3006 = vmatmul.mubr.bf16.gmra.mrb[0].mxu0 %v2483
        %v3007 = vpop.f32.mrb[0].mxu0
        %v3008 = vadd.f32 0.0, %v3007
        %v3009 = vpop.f32.mrb[0].mxu0
        %v3010 = vadd.f32 0.0, %v3009
        %v3011 = vpop.f32.mrb[0].mxu0
        %v3012 = vadd.f32 0.0, %v3011
        %v3013 = vpop.f32.mrb[0].mxu0
        %v3014 = vadd.f32 0.0, %v3013
        %3015 = vmatprep.mubr.bf16.mxu0 %v2488
        %3016 = vmatmul.mubr.bf16.gmra.mrb[0].mxu0 %v2487
        %v3017 = vpop.f32.mrb[0].mxu0
        %v3018 = vadd.f32 0.0, %v3017
        %v3019 = vpop.f32.mrb[0].mxu0
        %v3020 = vadd.f32 0.0, %v3019
        %v3021 = vpop.f32.mrb[0].mxu0
        %v3022 = vadd.f32 0.0, %v3021
        %v3023 = vpop.f32.mrb[0].mxu0
        %v3024 = vadd.f32 0.0, %v3023
        %3025 = vmatprep.mubr.bf16.mxu0 %v2492
        %3026 = vmatmul.mubr.bf16.gmra.mrb[0].mxu0 %v2491
        %v3027 = vpop.f32.mrb[0].mxu0
        %v3028 = vadd.f32 0.0, %v3027
        %v3029 = vpop.f32.mrb[0].mxu0
        %v3030 = vadd.f32 0.0, %v3029
        %v3031 = vpop.f32.mrb[0].mxu0
        %v3032 = vadd.f32 0.0, %v3031
        %v3033 = vpop.f32.mrb[0].mxu0
        %v3034 = vadd.f32 0.0, %v3033
        %3035 = vmatprep.mubr.bf16.mxu0 %v2496
        %3036 = vmatmul.mubr.bf16.gmra.mrb[0].mxu0 %v2495
        %v3037 = vpop.f32.mrb[0].mxu0
        %v3038 = vadd.f32 0.0, %v3037
        %v3039 = vpop.f32.mrb[0].mxu0
        %v3040 = vadd.f32 0.0, %v3039
        %v3041 = vpop.f32.mrb[0].mxu0
        %v3042 = vadd.f32 0.0, %v3041
        %v3043 = vpop.f32.mrb[0].mxu0
        %v3044 = vadd.f32 0.0, %v3043
        %3045 = vmatprep.mubr.bf16.mxu0 %v2500
        %3046 = vmatmul.mubr.bf16.gmra.mrb[0].mxu0 %v2499
        %v3047 = vpop.f32.mrb[0].mxu0
        %v3048 = vadd.f32 0.0, %v3047
        %v3049 = vpop.f32.mrb[0].mxu0
        %v3050 = vadd.f32 0.0, %v3049
        %v3051 = vpop.f32.mrb[0].mxu0
        %v3052 = vadd.f32 0.0, %v3051
        %v3053 = vpop.f32.mrb[0].mxu0
        %v3054 = vadd.f32 0.0, %v3053
        %3055 = vmatprep.mubr.bf16.mxu0 %v2504
        %3056 = vmatmul.mubr.bf16.gmra.mrb[0].mxu0 %v2503
        %v3057 = vpop.f32.mrb[0].mxu0
        %v3058 = vadd.f32 0.0, %v3057
        %v3059 = vpop.f32.mrb[0].mxu0
        %v3060 = vadd.f32 0.0, %v3059
        %v3061 = vpop.f32.mrb[0].mxu0
        %v3062 = vadd.f32 0.0, %v3061
        %v3063 = vpop.f32.mrb[0].mxu0
        %v3064 = vadd.f32 0.0, %v3063
        %3065 = vmatprep.mubr.bf16.mxu0 %v2508
        %3066 = vmatmul.mubr.bf16.gmra.mrb[0].mxu0 %v2507
        %v3067 = vpop.f32.mrb[0].mxu0
        %v3068 = vadd.f32 0.0, %v3067
        %v3069 = vpop.f32.mrb[0].mxu0
        %v3070 = vadd.f32 0.0, %v3069
        %v3071 = vpop.f32.mrb[0].mxu0
        %v3072 = vadd.f32 0.0, %v3071
        %v3073 = vpop.f32.mrb[0].mxu0
        %v3074 = vadd.f32 0.0, %v3073
        %3075 = vmatprep.mubr.bf16.mxu0 %v2512
        %3076 = vmatmul.mubr.bf16.gmra.mrb[0].mxu0 %v2511
        %v3077 = vpop.f32.mrb[0].mxu0
        %v3078 = vadd.f32 0.0, %v3077
        %v3079 = vpop.f32.mrb[0].mxu0
        %v3080 = vadd.f32 0.0, %v3079
        %v3081 = vpop.f32.mrb[0].mxu0
        %v3082 = vadd.f32 0.0, %v3081
        %v3083 = vpop.f32.mrb[0].mxu0
        %v3084 = vadd.f32 0.0, %v3083
        %3085 = vmatprep.mubr.bf16.mxu0 %v2516
        %3086 = vmatmul.mubr.bf16.gmra.mrb[0].mxu0 %v2515
        %v3087 = vpop.f32.mrb[0].mxu0
        %v3088 = vadd.f32 0.0, %v3087
        %v3089 = vpop.f32.mrb[0].mxu0
        %v3090 = vadd.f32 0.0, %v3089
        %v3091 = vpop.f32.mrb[0].mxu0
        %v3092 = vadd.f32 0.0, %v3091
        %v3093 = vpop.f32.mrb[0].mxu0
        %v3094 = vadd.f32 0.0, %v3093
        %3095 = vdwg.mxu0
        %3096 = vmatprep.subr.bf16.mxu0 %v2808
        %3097 = vmatpush1.bf16.msra.mxu0 %v2807
        %3098 = vmatprep.subr.bf16.mxu0 %v2810
        %3099 = vmatpush1.bf16.msra.mxu0 %v2809
        %3100 = vmatprep.subr.bf16.mxu0 %v2812
        %3101 = vmatpush1.bf16.msra.mxu0 %v2811
        %3102 = vmatprep.subr.bf16.mxu0 %v2814
        %3103 = vmatpush1.bf16.msra.mxu0 %v2813
        %3104 = vmatprep.subr.bf16.mxu0 %v2816
        %3105 = vmatpush1.bf16.msra.mxu0 %v2815
        %3106 = vmatprep.subr.bf16.mxu0 %v2818
        %3107 = vmatpush1.bf16.msra.mxu0 %v2817
        %3108 = vmatprep.subr.bf16.mxu0 %v2820
        %3109 = vmatpush1.bf16.msra.mxu0 %v2819
        %3110 = vmatprep.subr.bf16.mxu0 %v2822
        %3111 = vmatpush1.bf16.msra.mxu0 %v2821
        %3112 = vmatprep.subr.bf16.mxu0 %v2824
        %3113 = vmatpush1.bf16.msra.mxu0 %v2823
        %3114 = vmatprep.subr.bf16.mxu0 %v2826
        %3115 = vmatpush1.bf16.msra.mxu0 %v2825
        %3116 = vmatprep.subr.bf16.mxu0 %v2828
        %3117 = vmatpush1.bf16.msra.mxu0 %v2827
        %3118 = vmatprep.subr.bf16.mxu0 %v2830
        %3119 = vmatpush1.bf16.msra.mxu0 %v2829
        %3120 = vmatprep.subr.bf16.mxu0 %v2832
        %3121 = vmatpush1.bf16.msra.mxu0 %v2831
        %3122 = vmatprep.subr.bf16.mxu0 %v2834
        %3123 = vmatpush1.bf16.msra.mxu0 %v2833
        %3124 = vmatprep.subr.bf16.mxu0 %v2836
        %3125 = vmatpush1.bf16.msra.mxu0 %v2835
        %3126 = vmatprep.subr.bf16.mxu0 %v2838
        %3127 = vmatpush1.bf16.msra.mxu0 %v2837
        %3128 = vmatprep.mubr.bf16.mxu0 %v2458
        %3129 = vmatmul.mubr.bf16.gmra.mrb[0].mxu0 %v2457
        %v3130 = vpop.f32.mrb[0].mxu0
        %v3131 = vadd.f32 %v2938, %v3130
        %v3132 = vpop.f32.mrb[0].mxu0
        %v3133 = vadd.f32 %v2940, %v3132
        %v3134 = vpop.f32.mrb[0].mxu0
        %v3135 = vadd.f32 %v2942, %v3134
        %v3136 = vpop.f32.mrb[0].mxu0
        %v3137 = vadd.f32 %v2944, %v3136
        %3138 = vmatprep.mubr.bf16.mxu0 %v2462
        %3139 = vmatmul.mubr.bf16.gmra.mrb[0].mxu0 %v2461
        %v3140 = vpop.f32.mrb[0].mxu0
        %v3141 = vadd.f32 %v2948, %v3140
        %v3142 = vpop.f32.mrb[0].mxu0
        %v3143 = vadd.f32 %v2950, %v3142
        %v3144 = vpop.f32.mrb[0].mxu0
        %v3145 = vadd.f32 %v2952, %v3144
        %v3146 = vpop.f32.mrb[0].mxu0
        %v3147 = vadd.f32 %v2954, %v3146
        %3148 = vmatprep.mubr.bf16.mxu0 %v2466
        %3149 = vmatmul.mubr.bf16.gmra.mrb[0].mxu0 %v2465
        %v3150 = vpop.f32.mrb[0].mxu0
        %v3151 = vadd.f32 %v2958, %v3150
        %v3152 = vpop.f32.mrb[0].mxu0
        %v3153 = vadd.f32 %v2960, %v3152
        %v3154 = vpop.f32.mrb[0].mxu0
        %v3155 = vadd.f32 %v2962, %v3154
        %v3156 = vpop.f32.mrb[0].mxu0
        %v3157 = vadd.f32 %v2964, %v3156
        %3158 = vmatprep.mubr.bf16.mxu0 %v2470
        %3159 = vmatmul.mubr.bf16.gmra.mrb[0].mxu0 %v2469
        %v3160 = vpop.f32.mrb[0].mxu0
        %v3161 = vadd.f32 %v2968, %v3160
        %v3162 = vpop.f32.mrb[0].mxu0
        %v3163 = vadd.f32 %v2970, %v3162
        %v3164 = vpop.f32.mrb[0].mxu0
        %v3165 = vadd.f32 %v2972, %v3164
        %v3166 = vpop.f32.mrb[0].mxu0
        %v3167 = vadd.f32 %v2974, %v3166
        %3168 = vmatprep.mubr.bf16.mxu0 %v2474
        %3169 = vmatmul.mubr.bf16.gmra.mrb[0].mxu0 %v2473
        %v3170 = vpop.f32.mrb[0].mxu0
        %v3171 = vadd.f32 %v2978, %v3170
        %v3172 = vpop.f32.mrb[0].mxu0
        %v3173 = vadd.f32 %v2980, %v3172
        %v3174 = vpop.f32.mrb[0].mxu0
        %v3175 = vadd.f32 %v2982, %v3174
        %v3176 = vpop.f32.mrb[0].mxu0
        %v3177 = vadd.f32 %v2984, %v3176
        %3178 = vmatprep.mubr.bf16.mxu0 %v2478
        %3179 = vmatmul.mubr.bf16.gmra.mrb[0].mxu0 %v2477
        %v3180 = vpop.f32.mrb[0].mxu0
        %v3181 = vadd.f32 %v2988, %v3180
        %v3182 = vpop.f32.mrb[0].mxu0
        %v3183 = vadd.f32 %v2990, %v3182
        %v3184 = vpop.f32.mrb[0].mxu0
        %v3185 = vadd.f32 %v2992, %v3184
        %v3186 = vpop.f32.mrb[0].mxu0
        %v3187 = vadd.f32 %v2994, %v3186
        %3188 = vmatprep.mubr.bf16.mxu0 %v2482
        %3189 = vmatmul.mubr.bf16.gmra.mrb[0].mxu0 %v2481
        %v3190 = vpop.f32.mrb[0].mxu0
        %v3191 = vadd.f32 %v2998, %v3190
        %v3192 = vpop.f32.mrb[0].mxu0
        %v3193 = vadd.f32 %v3000, %v3192
        %v3194 = vpop.f32.mrb[0].mxu0
        %v3195 = vadd.f32 %v3002, %v3194
        %v3196 = vpop.f32.mrb[0].mxu0
        %v3197 = vadd.f32 %v3004, %v3196
        %3198 = vmatprep.mubr.bf16.mxu0 %v2486
        %3199 = vmatmul.mubr.bf16.gmra.mrb[0].mxu0 %v2485
        %v3200 = vpop.f32.mrb[0].mxu0
        %v3201 = vadd.f32 %v3008, %v3200
        %v3202 = vpop.f32.mrb[0].mxu0
        %v3203 = vadd.f32 %v3010, %v3202
        %v3204 = vpop.f32.mrb[0].mxu0
        %v3205 = vadd.f32 %v3012, %v3204
        %v3206 = vpop.f32.mrb[0].mxu0
        %v3207 = vadd.f32 %v3014, %v3206
        %3208 = vmatprep.mubr.bf16.mxu0 %v2490
        %3209 = vmatmul.mubr.bf16.gmra.mrb[0].mxu0 %v2489
        %v3210 = vpop.f32.mrb[0].mxu0
        %v3211 = vadd.f32 %v3018, %v3210
        %v3212 = vpop.f32.mrb[0].mxu0
        %v3213 = vadd.f32 %v3020, %v3212
        %v3214 = vpop.f32.mrb[0].mxu0
        %v3215 = vadd.f32 %v3022, %v3214
        %v3216 = vpop.f32.mrb[0].mxu0
        %v3217 = vadd.f32 %v3024, %v3216
        %3218 = vmatprep.mubr.bf16.mxu0 %v2494
        %3219 = vmatmul.mubr.bf16.gmra.mrb[0].mxu0 %v2493
        %v3220 = vpop.f32.mrb[0].mxu0
        %v3221 = vadd.f32 %v3028, %v3220
        %v3222 = vpop.f32.mrb[0].mxu0
        %v3223 = vadd.f32 %v3030, %v3222
        %v3224 = vpop.f32.mrb[0].mxu0
        %v3225 = vadd.f32 %v3032, %v3224
        %v3226 = vpop.f32.mrb[0].mxu0
        %v3227 = vadd.f32 %v3034, %v3226
        %3228 = vmatprep.mubr.bf16.mxu0 %v2498
        %3229 = vmatmul.mubr.bf16.gmra.mrb[0].mxu0 %v2497
        %v3230 = vpop.f32.mrb[0].mxu0
        %v3231 = vadd.f32 %v3038, %v3230
        %v3232 = vpop.f32.mrb[0].mxu0
        %v3233 = vadd.f32 %v3040, %v3232
        %v3234 = vpop.f32.mrb[0].mxu0
        %v3235 = vadd.f32 %v3042, %v3234
        %v3236 = vpop.f32.mrb[0].mxu0
        %v3237 = vadd.f32 %v3044, %v3236
        %3238 = vmatprep.mubr.bf16.mxu0 %v2502
        %3239 = vmatmul.mubr.bf16.gmra.mrb[0].mxu0 %v2501
        %v3240 = vpop.f32.mrb[0].mxu0
        %v3241 = vadd.f32 %v3048, %v3240
        %v3242 = vpop.f32.mrb[0].mxu0
        %v3243 = vadd.f32 %v3050, %v3242
        %v3244 = vpop.f32.mrb[0].mxu0
        %v3245 = vadd.f32 %v3052, %v3244
        %v3246 = vpop.f32.mrb[0].mxu0
        %v3247 = vadd.f32 %v3054, %v3246
        %3248 = vmatprep.mubr.bf16.mxu0 %v2506
        %3249 = vmatmul.mubr.bf16.gmra.mrb[0].mxu0 %v2505
        %v3250 = vpop.f32.mrb[0].mxu0
        %v3251 = vadd.f32 %v3058, %v3250
        %v3252 = vpop.f32.mrb[0].mxu0
        %v3253 = vadd.f32 %v3060, %v3252
        %v3254 = vpop.f32.mrb[0].mxu0
        %v3255 = vadd.f32 %v3062, %v3254
        %v3256 = vpop.f32.mrb[0].mxu0
        %v3257 = vadd.f32 %v3064, %v3256
        %3258 = vmatprep.mubr.bf16.mxu0 %v2510
        %3259 = vmatmul.mubr.bf16.gmra.mrb[0].mxu0 %v2509
        %v3260 = vpop.f32.mrb[0].mxu0
        %v3261 = vadd.f32 %v3068, %v3260
        %v3262 = vpop.f32.mrb[0].mxu0
        %v3263 = vadd.f32 %v3070, %v3262
        %v3264 = vpop.f32.mrb[0].mxu0
        %v3265 = vadd.f32 %v3072, %v3264
        %v3266 = vpop.f32.mrb[0].mxu0
        %v3267 = vadd.f32 %v3074, %v3266
        %3268 = vmatprep.mubr.bf16.mxu0 %v2514
        %3269 = vmatmul.mubr.bf16.gmra.mrb[0].mxu0 %v2513
        %v3270 = vpop.f32.mrb[0].mxu0
        %v3271 = vadd.f32 %v3078, %v3270
        %v3272 = vpop.f32.mrb[0].mxu0
        %v3273 = vadd.f32 %v3080, %v3272
        %v3274 = vpop.f32.mrb[0].mxu0
        %v3275 = vadd.f32 %v3082, %v3274
        %v3276 = vpop.f32.mrb[0].mxu0
        %v3277 = vadd.f32 %v3084, %v3276
        %3278 = vmatprep.mubr.bf16.mxu0 %v2518
        %3279 = vmatmul.mubr.bf16.gmra.mrb[0].mxu0 %v2517
        %v3280 = vpop.f32.mrb[0].mxu0
        %v3281 = vadd.f32 %v3088, %v3280
        %v3282 = vpop.f32.mrb[0].mxu0
        %v3283 = vadd.f32 %v3090, %v3282
        %v3284 = vpop.f32.mrb[0].mxu0
        %v3285 = vadd.f32 %v3092, %v3284
        %v3286 = vpop.f32.mrb[0].mxu0
        %v3287 = vadd.f32 %v3094, %v3286
        %3288 = vdwg.mxu0
        %v3289 = vadd.f32 %v2391, %v3131
        %v3290 = vadd.f32 %v2392, %v3133
        %v3291 = vadd.f32 %v2393, %v3135
        %v3292 = vadd.f32 %v2394, %v3137
        %v3293 = vadd.f32 %v2395, %v3141
        %v3294 = vadd.f32 %v2396, %v3143
        %v3295 = vadd.f32 %v2397, %v3145
        %v3296 = vadd.f32 %v2398, %v3147
        %v3297 = vadd.f32 %v2399, %v3151
        %v3298 = vadd.f32 %v2400, %v3153
        %v3299 = vadd.f32 %v2401, %v3155
        %v3300 = vadd.f32 %v2402, %v3157
        %v3301 = vadd.f32 %v2403, %v3161
        %v3302 = vadd.f32 %v2404, %v3163
        %v3303 = vadd.f32 %v2405, %v3165
        %v3304 = vadd.f32 %v2406, %v3167
        %v3305 = vadd.f32 %v2407, %v3171
        %v3306 = vadd.f32 %v2408, %v3173
        %v3307 = vadd.f32 %v2409, %v3175
        %v3308 = vadd.f32 %v2410, %v3177
        %v3309 = vadd.f32 %v2411, %v3181
        %v3310 = vadd.f32 %v2412, %v3183
        %v3311 = vadd.f32 %v2413, %v3185
        %v3312 = vadd.f32 %v2414, %v3187
        %v3313 = vadd.f32 %v2415, %v3191
        %v3314 = vadd.f32 %v2416, %v3193
        %v3315 = vadd.f32 %v2417, %v3195
        %v3316 = vadd.f32 %v2418, %v3197
        %v3317 = vadd.f32 %v2419, %v3201
        %v3318 = vadd.f32 %v2420, %v3203
        %v3319 = vadd.f32 %v2421, %v3205
        %v3320 = vadd.f32 %v2422, %v3207
        %v3321 = vadd.f32 %v2423, %v3211
        %v3322 = vadd.f32 %v2424, %v3213
        %v3323 = vadd.f32 %v2425, %v3215
        %v3324 = vadd.f32 %v2426, %v3217
        %v3325 = vadd.f32 %v2427, %v3221
        %v3326 = vadd.f32 %v2428, %v3223
        %v3327 = vadd.f32 %v2429, %v3225
        %v3328 = vadd.f32 %v2430, %v3227
        %v3329 = vadd.f32 %v2431, %v3231
        %v3330 = vadd.f32 %v2432, %v3233
        %v3331 = vadd.f32 %v2433, %v3235
        %v3332 = vadd.f32 %v2434, %v3237
        %v3333 = vadd.f32 %v2435, %v3241
        %v3334 = vadd.f32 %v2436, %v3243
        %v3335 = vadd.f32 %v2437, %v3245
        %v3336 = vadd.f32 %v2438, %v3247
        %v3337 = vadd.f32 %v2439, %v3251
        %v3338 = vadd.f32 %v2440, %v3253
        %v3339 = vadd.f32 %v2441, %v3255
        %v3340 = vadd.f32 %v2442, %v3257
        %v3341 = vadd.f32 %v2443, %v3261
        %v3342 = vadd.f32 %v2444, %v3263
        %v3343 = vadd.f32 %v2445, %v3265
        %v3344 = vadd.f32 %v2446, %v3267
        %v3345 = vadd.f32 %v2447, %v3271
        %v3346 = vadd.f32 %v2448, %v3273
        %v3347 = vadd.f32 %v2449, %v3275
        %v3348 = vadd.f32 %v2450, %v3277
        %v3349 = vadd.f32 %v2451, %v3281
        %v3350 = vadd.f32 %v2452, %v3283
        %v3351 = vadd.f32 %v2453, %v3285
        %v3352 = vadd.f32 %v2454, %v3287
        %3353 = vst [vmem:[#allocation2] sm:$0xff] %v3289
        %3354 = vst [vmem:[#allocation2 + $0x8] sm:$0xff] %v3290
        %3355 = vst [vmem:[#allocation2 + $0x10] sm:$0xff] %v3291
        %3356 = vst [vmem:[#allocation2 + $0x18] sm:$0xff] %v3292
        %3357 = vst [vmem:[#allocation2 + $0x20] sm:$0xff] %v3293
        %3358 = vst [vmem:[#allocation2 + $0x28] sm:$0xff] %v3294
        %3359 = vst [vmem:[#allocation2 + $0x30] sm:$0xff] %v3295
        %3360 = vst [vmem:[#allocation2 + $0x38] sm:$0xff] %v3296
        %3361 = vst [vmem:[#allocation2 + $0x40] sm:$0xff] %v3297
        %3362 = vst [vmem:[#allocation2 + $0x48] sm:$0xff] %v3298
        %3363 = vst [vmem:[#allocation2 + $0x50] sm:$0xff] %v3299
        %3364 = vst [vmem:[#allocation2 + $0x58] sm:$0xff] %v3300
        %3365 = vst [vmem:[#allocation2 + $0x60] sm:$0xff] %v3301
        %3366 = vst [vmem:[#allocation2 + $0x68] sm:$0xff] %v3302
        %3367 = vst [vmem:[#allocation2 + $0x70] sm:$0xff] %v3303
        %3368 = vst [vmem:[#allocation2 + $0x78] sm:$0xff] %v3304
        %3369 = vst [vmem:[#allocation2 + $0x80] sm:$0xff] %v3305
        %3370 = vst [vmem:[#allocation2 + $0x88] sm:$0xff] %v3306
        %3371 = vst [vmem:[#allocation2 + $0x90] sm:$0xff] %v3307
        %3372 = vst [vmem:[#allocation2 + $0x98] sm:$0xff] %v3308
        %3373 = vst [vmem:[#allocation2 + $0xa0] sm:$0xff] %v3309
        %3374 = vst [vmem:[#allocation2 + $0xa8] sm:$0xff] %v3310
        %3375 = vst [vmem:[#allocation2 + $0xb0] sm:$0xff] %v3311
        %3376 = vst [vmem:[#allocation2 + $0xb8] sm:$0xff] %v3312
        %3377 = vst [vmem:[#allocation2 + $0xc0] sm:$0xff] %v3313
        %3378 = vst [vmem:[#allocation2 + $0xc8] sm:$0xff] %v3314
        %3379 = vst [vmem:[#allocation2 + $0xd0] sm:$0xff] %v3315
        %3380 = vst [vmem:[#allocation2 + $0xd8] sm:$0xff] %v3316
        %3381 = vst [vmem:[#allocation2 + $0xe0] sm:$0xff] %v3317
        %3382 = vst [vmem:[#allocation2 + $0xe8] sm:$0xff] %v3318
        %3383 = vst [vmem:[#allocation2 + $0xf0] sm:$0xff] %v3319
        %3384 = vst [vmem:[#allocation2 + $0xf8] sm:$0xff] %v3320
        %3385 = vst [vmem:[#allocation2 + $0x100] sm:$0xff] %v3321
        %3386 = vst [vmem:[#allocation2 + $0x108] sm:$0xff] %v3322
        %3387 = vst [vmem:[#allocation2 + $0x110] sm:$0xff] %v3323
        %3388 = vst [vmem:[#allocation2 + $0x118] sm:$0xff] %v3324
        %3389 = vst [vmem:[#allocation2 + $0x120] sm:$0xff] %v3325
        %3390 = vst [vmem:[#allocation2 + $0x128] sm:$0xff] %v3326
        %3391 = vst [vmem:[#allocation2 + $0x130] sm:$0xff] %v3327
        %3392 = vst [vmem:[#allocation2 + $0x138] sm:$0xff] %v3328
        %3393 = vst [vmem:[#allocation2 + $0x140] sm:$0xff] %v3329
        %3394 = vst [vmem:[#allocation2 + $0x148] sm:$0xff] %v3330
        %3395 = vst [vmem:[#allocation2 + $0x150] sm:$0xff] %v3331
        %3396 = vst [vmem:[#allocation2 + $0x158] sm:$0xff] %v3332
        %3397 = vst [vmem:[#allocation2 + $0x160] sm:$0xff] %v3333
        %3398 = vst [vmem:[#allocation2 + $0x168] sm:$0xff] %v3334
        %3399 = vst [vmem:[#allocation2 + $0x170] sm:$0xff] %v3335
        %3400 = vst [vmem:[#allocation2 + $0x178] sm:$0xff] %v3336
        %3401 = vst [vmem:[#allocation2 + $0x180] sm:$0xff] %v3337
        %3402 = vst [vmem:[#allocation2 + $0x188] sm:$0xff] %v3338
        %3403 = vst [vmem:[#allocation2 + $0x190] sm:$0xff] %v3339
        %3404 = vst [vmem:[#allocation2 + $0x198] sm:$0xff] %v3340
        %3405 = vst [vmem:[#allocation2 + $0x1a0] sm:$0xff] %v3341
        %3406 = vst [vmem:[#allocation2 + $0x1a8] sm:$0xff] %v3342
        %3407 = vst [vmem:[#allocation2 + $0x1b0] sm:$0xff] %v3343
        %3408 = vst [vmem:[#allocation2 + $0x1b8] sm:$0xff] %v3344
        %3409 = vst [vmem:[#allocation2 + $0x1c0] sm:$0xff] %v3345
        %3410 = vst [vmem:[#allocation2 + $0x1c8] sm:$0xff] %v3346
        %3411 = vst [vmem:[#allocation2 + $0x1d0] sm:$0xff] %v3347
        %3412 = vst [vmem:[#allocation2 + $0x1d8] sm:$0xff] %v3348
        %3413 = vst [vmem:[#allocation2 + $0x1e0] sm:$0xff] %v3349
        %3414 = vst [vmem:[#allocation2 + $0x1e8] sm:$0xff] %v3350
        %3415 = vst [vmem:[#allocation2 + $0x1f0] sm:$0xff] %v3351
        %3416 = vst [vmem:[#allocation2 + $0x1f8] sm:$0xff] %v3352
        %s3417 = scalar_lea.vmem [#allocation6], 512
        %v3418 = vld [vmem:[%s3417] sm:$0xff]
        %v3419 = vld [vmem:[%s3417 + $0x8] sm:$0xff]
        %v3420 = vld [vmem:[%s3417 + $0x10] sm:$0xff]
        %v3421 = vld [vmem:[%s3417 + $0x18] sm:$0xff]
        %v3422 = vld [vmem:[%s3417 + $0x20] sm:$0xff]
        %v3423 = vld [vmem:[%s3417 + $0x28] sm:$0xff]
        %v3424 = vld [vmem:[%s3417 + $0x30] sm:$0xff]
        %v3425 = vld [vmem:[%s3417 + $0x38] sm:$0xff]
        %v3426 = vld [vmem:[%s3417 + $0x40] sm:$0xff]
        %v3427 = vld [vmem:[%s3417 + $0x48] sm:$0xff]
        %v3428 = vld [vmem:[%s3417 + $0x50] sm:$0xff]
        %v3429 = vld [vmem:[%s3417 + $0x58] sm:$0xff]
        %v3430 = vld [vmem:[%s3417 + $0x60] sm:$0xff]
        %v3431 = vld [vmem:[%s3417 + $0x68] sm:$0xff]
        %v3432 = vld [vmem:[%s3417 + $0x70] sm:$0xff]
        %v3433 = vld [vmem:[%s3417 + $0x78] sm:$0xff]
        %v3434 = vld [vmem:[%s3417 + $0x80] sm:$0xff]
        %v3435 = vld [vmem:[%s3417 + $0x88] sm:$0xff]
        %v3436 = vld [vmem:[%s3417 + $0x90] sm:$0xff]
        %v3437 = vld [vmem:[%s3417 + $0x98] sm:$0xff]
        %v3438 = vld [vmem:[%s3417 + $0xa0] sm:$0xff]
        %v3439 = vld [vmem:[%s3417 + $0xa8] sm:$0xff]
        %v3440 = vld [vmem:[%s3417 + $0xb0] sm:$0xff]
        %v3441 = vld [vmem:[%s3417 + $0xb8] sm:$0xff]
        %v3442 = vld [vmem:[%s3417 + $0xc0] sm:$0xff]
        %v3443 = vld [vmem:[%s3417 + $0xc8] sm:$0xff]
        %v3444 = vld [vmem:[%s3417 + $0xd0] sm:$0xff]
        %v3445 = vld [vmem:[%s3417 + $0xd8] sm:$0xff]
        %v3446 = vld [vmem:[%s3417 + $0xe0] sm:$0xff]
        %v3447 = vld [vmem:[%s3417 + $0xe8] sm:$0xff]
        %v3448 = vld [vmem:[%s3417 + $0xf0] sm:$0xff]
        %v3449 = vld [vmem:[%s3417 + $0xf8] sm:$0xff]
        %v3450 = vld [vmem:[%s3417 + $0x100] sm:$0xff]
        %v3451 = vld [vmem:[%s3417 + $0x108] sm:$0xff]
        %v3452 = vld [vmem:[%s3417 + $0x110] sm:$0xff]
        %v3453 = vld [vmem:[%s3417 + $0x118] sm:$0xff]
        %v3454 = vld [vmem:[%s3417 + $0x120] sm:$0xff]
        %v3455 = vld [vmem:[%s3417 + $0x128] sm:$0xff]
        %v3456 = vld [vmem:[%s3417 + $0x130] sm:$0xff]
        %v3457 = vld [vmem:[%s3417 + $0x138] sm:$0xff]
        %v3458 = vld [vmem:[%s3417 + $0x140] sm:$0xff]
        %v3459 = vld [vmem:[%s3417 + $0x148] sm:$0xff]
        %v3460 = vld [vmem:[%s3417 + $0x150] sm:$0xff]
        %v3461 = vld [vmem:[%s3417 + $0x158] sm:$0xff]
        %v3462 = vld [vmem:[%s3417 + $0x160] sm:$0xff]
        %v3463 = vld [vmem:[%s3417 + $0x168] sm:$0xff]
        %v3464 = vld [vmem:[%s3417 + $0x170] sm:$0xff]
        %v3465 = vld [vmem:[%s3417 + $0x178] sm:$0xff]
        %v3466 = vld [vmem:[%s3417 + $0x180] sm:$0xff]
        %v3467 = vld [vmem:[%s3417 + $0x188] sm:$0xff]
        %v3468 = vld [vmem:[%s3417 + $0x190] sm:$0xff]
        %v3469 = vld [vmem:[%s3417 + $0x198] sm:$0xff]
        %v3470 = vld [vmem:[%s3417 + $0x1a0] sm:$0xff]
        %v3471 = vld [vmem:[%s3417 + $0x1a8] sm:$0xff]
        %v3472 = vld [vmem:[%s3417 + $0x1b0] sm:$0xff]
        %v3473 = vld [vmem:[%s3417 + $0x1b8] sm:$0xff]
        %v3474 = vld [vmem:[%s3417 + $0x1c0] sm:$0xff]
        %v3475 = vld [vmem:[%s3417 + $0x1c8] sm:$0xff]
        %v3476 = vld [vmem:[%s3417 + $0x1d0] sm:$0xff]
        %v3477 = vld [vmem:[%s3417 + $0x1d8] sm:$0xff]
        %v3478 = vld [vmem:[%s3417 + $0x1e0] sm:$0xff]
        %v3479 = vld [vmem:[%s3417 + $0x1e8] sm:$0xff]
        %v3480 = vld [vmem:[%s3417 + $0x1f0] sm:$0xff]
        %v3481 = vld [vmem:[%s3417 + $0x1f8] sm:$0xff]
        %s3482 = scalar_lea.vmem %s2, 4
        %v3483 = vld [vmem:[%s3482] sm:$0xf]
        %v3485 = vlaneseq
        %v3486 = vshrl.u32 %v3485, 7
        %v3487 = vsub.s32 0, %v3486
        %v3488 = vrot.slane %v3483, %v3487
        %v3489 = vlaneseq
        %v3490 = vshrl.u32 %v3489, 7
        %v3491 = vsub.s32 1, %v3490
        %v3492 = vrot.slane %v3483, %v3491
        %v3493 = vlaneseq
        %v3494 = vshrl.u32 %v3493, 7
        %v3495 = vsub.s32 2, %v3494
        %v3496 = vrot.slane %v3483, %v3495
        %v3497 = vlaneseq
        %v3498 = vshrl.u32 %v3497, 7
        %v3499 = vsub.s32 3, %v3498
        %v3500 = vrot.slane %v3483, %v3499
        %v3569 = vunpack.c.l.b16 %v3418
        %v3570 = vunpack.c.h.b16 %v3418
        %v3571 = vunpack.c.l.b16 %v3419
        %v3572 = vunpack.c.h.b16 %v3419
        %v3573 = vunpack.c.l.b16 %v3420
        %v3574 = vunpack.c.h.b16 %v3420
        %v3575 = vunpack.c.l.b16 %v3421
        %v3576 = vunpack.c.h.b16 %v3421
        %v3577 = vunpack.c.l.b16 %v3422
        %v3578 = vunpack.c.h.b16 %v3422
        %v3579 = vunpack.c.l.b16 %v3423
        %v3580 = vunpack.c.h.b16 %v3423
        %v3581 = vunpack.c.l.b16 %v3424
        %v3582 = vunpack.c.h.b16 %v3424
        %v3583 = vunpack.c.l.b16 %v3425
        %v3584 = vunpack.c.h.b16 %v3425
        %v3585 = vunpack.c.l.b16 %v3426
        %v3586 = vunpack.c.h.b16 %v3426
        %v3587 = vunpack.c.l.b16 %v3427
        %v3588 = vunpack.c.h.b16 %v3427
        %v3589 = vunpack.c.l.b16 %v3428
        %v3590 = vunpack.c.h.b16 %v3428
        %v3591 = vunpack.c.l.b16 %v3429
        %v3592 = vunpack.c.h.b16 %v3429
        %v3593 = vunpack.c.l.b16 %v3430
        %v3594 = vunpack.c.h.b16 %v3430
        %v3595 = vunpack.c.l.b16 %v3431
        %v3596 = vunpack.c.h.b16 %v3431
        %v3597 = vunpack.c.l.b16 %v3432
        %v3598 = vunpack.c.h.b16 %v3432
        %v3599 = vunpack.c.l.b16 %v3433
        %v3600 = vunpack.c.h.b16 %v3433
        %v3601 = vunpack.c.l.b16 %v3434
        %v3602 = vunpack.c.h.b16 %v3434
        %v3603 = vunpack.c.l.b16 %v3435
        %v3604 = vunpack.c.h.b16 %v3435
        %v3605 = vunpack.c.l.b16 %v3436
        %v3606 = vunpack.c.h.b16 %v3436
        %v3607 = vunpack.c.l.b16 %v3437
        %v3608 = vunpack.c.h.b16 %v3437
        %v3609 = vunpack.c.l.b16 %v3438
        %v3610 = vunpack.c.h.b16 %v3438
        %v3611 = vunpack.c.l.b16 %v3439
        %v3612 = vunpack.c.h.b16 %v3439
        %v3613 = vunpack.c.l.b16 %v3440
        %v3614 = vunpack.c.h.b16 %v3440
        %v3615 = vunpack.c.l.b16 %v3441
        %v3616 = vunpack.c.h.b16 %v3441
        %v3617 = vunpack.c.l.b16 %v3442
        %v3618 = vunpack.c.h.b16 %v3442
        %v3619 = vunpack.c.l.b16 %v3443
        %v3620 = vunpack.c.h.b16 %v3443
        %v3621 = vunpack.c.l.b16 %v3444
        %v3622 = vunpack.c.h.b16 %v3444
        %v3623 = vunpack.c.l.b16 %v3445
        %v3624 = vunpack.c.h.b16 %v3445
        %v3625 = vunpack.c.l.b16 %v3446
        %v3626 = vunpack.c.h.b16 %v3446
        %v3627 = vunpack.c.l.b16 %v3447
        %v3628 = vunpack.c.h.b16 %v3447
        %v3629 = vunpack.c.l.b16 %v3448
        %v3630 = vunpack.c.h.b16 %v3448
        %v3631 = vunpack.c.l.b16 %v3449
        %v3632 = vunpack.c.h.b16 %v3449
        %v3633 = vunpack.c.l.b16 %v3450
        %v3634 = vunpack.c.h.b16 %v3450
        %v3635 = vunpack.c.l.b16 %v3451
        %v3636 = vunpack.c.h.b16 %v3451
        %v3637 = vunpack.c.l.b16 %v3452
        %v3638 = vunpack.c.h.b16 %v3452
        %v3639 = vunpack.c.l.b16 %v3453
        %v3640 = vunpack.c.h.b16 %v3453
        %v3641 = vunpack.c.l.b16 %v3454
        %v3642 = vunpack.c.h.b16 %v3454
        %v3643 = vunpack.c.l.b16 %v3455
        %v3644 = vunpack.c.h.b16 %v3455
        %v3645 = vunpack.c.l.b16 %v3456
        %v3646 = vunpack.c.h.b16 %v3456
        %v3647 = vunpack.c.l.b16 %v3457
        %v3648 = vunpack.c.h.b16 %v3457
        %v3649 = vunpack.c.l.b16 %v3458
        %v3650 = vunpack.c.h.b16 %v3458
        %v3651 = vunpack.c.l.b16 %v3459
        %v3652 = vunpack.c.h.b16 %v3459
        %v3653 = vunpack.c.l.b16 %v3460
        %v3654 = vunpack.c.h.b16 %v3460
        %v3655 = vunpack.c.l.b16 %v3461
        %v3656 = vunpack.c.h.b16 %v3461
        %v3657 = vunpack.c.l.b16 %v3462
        %v3658 = vunpack.c.h.b16 %v3462
        %v3659 = vunpack.c.l.b16 %v3463
        %v3660 = vunpack.c.h.b16 %v3463
        %v3661 = vunpack.c.l.b16 %v3464
        %v3662 = vunpack.c.h.b16 %v3464
        %v3663 = vunpack.c.l.b16 %v3465
        %v3664 = vunpack.c.h.b16 %v3465
        %v3665 = vunpack.c.l.b16 %v3466
        %v3666 = vunpack.c.h.b16 %v3466
        %v3667 = vunpack.c.l.b16 %v3467
        %v3668 = vunpack.c.h.b16 %v3467
        %v3669 = vunpack.c.l.b16 %v3468
        %v3670 = vunpack.c.h.b16 %v3468
        %v3671 = vunpack.c.l.b16 %v3469
        %v3672 = vunpack.c.h.b16 %v3469
        %v3673 = vunpack.c.l.b16 %v3470
        %v3674 = vunpack.c.h.b16 %v3470
        %v3675 = vunpack.c.l.b16 %v3471
        %v3676 = vunpack.c.h.b16 %v3471
        %v3677 = vunpack.c.l.b16 %v3472
        %v3678 = vunpack.c.h.b16 %v3472
        %v3679 = vunpack.c.l.b16 %v3473
        %v3680 = vunpack.c.h.b16 %v3473
        %v3681 = vunpack.c.l.b16 %v3474
        %v3682 = vunpack.c.h.b16 %v3474
        %v3683 = vunpack.c.l.b16 %v3475
        %v3684 = vunpack.c.h.b16 %v3475
        %v3685 = vunpack.c.l.b16 %v3476
        %v3686 = vunpack.c.h.b16 %v3476
        %v3687 = vunpack.c.l.b16 %v3477
        %v3688 = vunpack.c.h.b16 %v3477
        %v3689 = vunpack.c.l.b16 %v3478
        %v3690 = vunpack.c.h.b16 %v3478
        %v3691 = vunpack.c.l.b16 %v3479
        %v3692 = vunpack.c.h.b16 %v3479
        %v3693 = vunpack.c.l.b16 %v3480
        %v3694 = vunpack.c.h.b16 %v3480
        %v3695 = vunpack.c.l.b16 %v3481
        %v3696 = vunpack.c.h.b16 %v3481
        %v3697 = vpack.c.b16 %v3573, %v3569
        %v3698 = vpack.c.b16 %v3574, %v3570
        %v3699 = vpack.c.b16 %v3575, %v3571
        %v3700 = vpack.c.b16 %v3576, %v3572
        %v3701 = vpack.c.b16 %v3581, %v3577
        %v3702 = vpack.c.b16 %v3582, %v3578
        %v3703 = vpack.c.b16 %v3583, %v3579
        %v3704 = vpack.c.b16 %v3584, %v3580
        %v3705 = vpack.c.b16 %v3589, %v3585
        %v3706 = vpack.c.b16 %v3590, %v3586
        %v3707 = vpack.c.b16 %v3591, %v3587
        %v3708 = vpack.c.b16 %v3592, %v3588
        %v3709 = vpack.c.b16 %v3597, %v3593
        %v3710 = vpack.c.b16 %v3598, %v3594
        %v3711 = vpack.c.b16 %v3599, %v3595
        %v3712 = vpack.c.b16 %v3600, %v3596
        %v3713 = vpack.c.b16 %v3605, %v3601
        %v3714 = vpack.c.b16 %v3606, %v3602
        %v3715 = vpack.c.b16 %v3607, %v3603
        %v3716 = vpack.c.b16 %v3608, %v3604
        %v3717 = vpack.c.b16 %v3613, %v3609
        %v3718 = vpack.c.b16 %v3614, %v3610
        %v3719 = vpack.c.b16 %v3615, %v3611
        %v3720 = vpack.c.b16 %v3616, %v3612
        %v3721 = vpack.c.b16 %v3621, %v3617
        %v3722 = vpack.c.b16 %v3622, %v3618
        %v3723 = vpack.c.b16 %v3623, %v3619
        %v3724 = vpack.c.b16 %v3624, %v3620
        %v3725 = vpack.c.b16 %v3629, %v3625
        %v3726 = vpack.c.b16 %v3630, %v3626
        %v3727 = vpack.c.b16 %v3631, %v3627
        %v3728 = vpack.c.b16 %v3632, %v3628
        %v3729 = vpack.c.b16 %v3637, %v3633
        %v3730 = vpack.c.b16 %v3638, %v3634
        %v3731 = vpack.c.b16 %v3639, %v3635
        %v3732 = vpack.c.b16 %v3640, %v3636
        %v3733 = vpack.c.b16 %v3645, %v3641
        %v3734 = vpack.c.b16 %v3646, %v3642
        %v3735 = vpack.c.b16 %v3647, %v3643
        %v3736 = vpack.c.b16 %v3648, %v3644
        %v3737 = vpack.c.b16 %v3653, %v3649
        %v3738 = vpack.c.b16 %v3654, %v3650
        %v3739 = vpack.c.b16 %v3655, %v3651
        %v3740 = vpack.c.b16 %v3656, %v3652
        %v3741 = vpack.c.b16 %v3661, %v3657
        %v3742 = vpack.c.b16 %v3662, %v3658
        %v3743 = vpack.c.b16 %v3663, %v3659
        %v3744 = vpack.c.b16 %v3664, %v3660
        %v3745 = vpack.c.b16 %v3669, %v3665
        %v3746 = vpack.c.b16 %v3670, %v3666
        %v3747 = vpack.c.b16 %v3671, %v3667
        %v3748 = vpack.c.b16 %v3672, %v3668
        %v3749 = vpack.c.b16 %v3677, %v3673
        %v3750 = vpack.c.b16 %v3678, %v3674
        %v3751 = vpack.c.b16 %v3679, %v3675
        %v3752 = vpack.c.b16 %v3680, %v3676
        %v3753 = vpack.c.b16 %v3685, %v3681
        %v3754 = vpack.c.b16 %v3686, %v3682
        %v3755 = vpack.c.b16 %v3687, %v3683
        %v3756 = vpack.c.b16 %v3688, %v3684
        %v3757 = vpack.c.b16 %v3693, %v3689
        %v3758 = vpack.c.b16 %v3694, %v3690
        %v3759 = vpack.c.b16 %v3695, %v3691
        %v3760 = vpack.c.b16 %v3696, %v3692
        %3825 = vmatprep.subr.bf16.mxu0 %v3698
        %3826 = vmatpush1.bf16.msra.mxu0 %v3697
        %3827 = vmatprep.subr.bf16.mxu0 %v3702
        %3828 = vmatpush1.bf16.msra.mxu0 %v3701
        %3829 = vmatprep.subr.bf16.mxu0 %v3706
        %3830 = vmatpush1.bf16.msra.mxu0 %v3705
        %3831 = vmatprep.subr.bf16.mxu0 %v3710
        %3832 = vmatpush1.bf16.msra.mxu0 %v3709
        %3833 = vmatprep.subr.bf16.mxu0 %v3714
        %3834 = vmatpush1.bf16.msra.mxu0 %v3713
        %3835 = vmatprep.subr.bf16.mxu0 %v3718
        %3836 = vmatpush1.bf16.msra.mxu0 %v3717
        %3837 = vmatprep.subr.bf16.mxu0 %v3722
        %3838 = vmatpush1.bf16.msra.mxu0 %v3721
        %3839 = vmatprep.subr.bf16.mxu0 %v3726
        %3840 = vmatpush1.bf16.msra.mxu0 %v3725
        %3841 = vmatprep.subr.bf16.mxu0 %v3730
        %3842 = vmatpush1.bf16.msra.mxu0 %v3729
        %3843 = vmatprep.subr.bf16.mxu0 %v3734
        %3844 = vmatpush1.bf16.msra.mxu0 %v3733
        %3845 = vmatprep.subr.bf16.mxu0 %v3738
        %3846 = vmatpush1.bf16.msra.mxu0 %v3737
        %3847 = vmatprep.subr.bf16.mxu0 %v3742
        %3848 = vmatpush1.bf16.msra.mxu0 %v3741
        %3849 = vmatprep.subr.bf16.mxu0 %v3746
        %3850 = vmatpush1.bf16.msra.mxu0 %v3745
        %3851 = vmatprep.subr.bf16.mxu0 %v3750
        %3852 = vmatpush1.bf16.msra.mxu0 %v3749
        %3853 = vmatprep.subr.bf16.mxu0 %v3754
        %3854 = vmatpush1.bf16.msra.mxu0 %v3753
        %3855 = vmatprep.subr.bf16.mxu0 %v3758
        %3856 = vmatpush1.bf16.msra.mxu0 %v3757
        %3857 = vmatprep.mubr.bf16.mxu0 %v416
        %3858 = vmatmul.mubr.bf16.gmra.mrb[0].mxu0 %v415
        %v3859 = vpop.f32.mrb[0].mxu0
        %v3860 = vadd.f32 %v3488, %v3859
        %v3861 = vpop.f32.mrb[0].mxu0
        %v3862 = vadd.f32 %v3492, %v3861
        %v3863 = vpop.f32.mrb[0].mxu0
        %v3864 = vadd.f32 %v3488, %v3863
        %v3865 = vpop.f32.mrb[0].mxu0
        %v3866 = vadd.f32 %v3492, %v3865
        %3867 = vmatprep.mubr.bf16.mxu0 %v418
        %3868 = vmatmul.mubr.bf16.gmra.mrb[0].mxu0 %v417
        %v3869 = vpop.f32.mrb[0].mxu0
        %v3870 = vadd.f32 %v3488, %v3869
        %v3871 = vpop.f32.mrb[0].mxu0
        %v3872 = vadd.f32 %v3492, %v3871
        %v3873 = vpop.f32.mrb[0].mxu0
        %v3874 = vadd.f32 %v3488, %v3873
        %v3875 = vpop.f32.mrb[0].mxu0
        %v3876 = vadd.f32 %v3492, %v3875
        %3877 = vmatprep.mubr.bf16.mxu0 %v420
        %3878 = vmatmul.mubr.bf16.gmra.mrb[0].mxu0 %v419
        %v3879 = vpop.f32.mrb[0].mxu0
        %v3880 = vadd.f32 %v3488, %v3879
        %v3881 = vpop.f32.mrb[0].mxu0
        %v3882 = vadd.f32 %v3492, %v3881
        %v3883 = vpop.f32.mrb[0].mxu0
        %v3884 = vadd.f32 %v3488, %v3883
        %v3885 = vpop.f32.mrb[0].mxu0
        %v3886 = vadd.f32 %v3492, %v3885
        %3887 = vmatprep.mubr.bf16.mxu0 %v422
        %3888 = vmatmul.mubr.bf16.gmra.mrb[0].mxu0 %v421
        %v3889 = vpop.f32.mrb[0].mxu0
        %v3890 = vadd.f32 %v3488, %v3889
        %v3891 = vpop.f32.mrb[0].mxu0
        %v3892 = vadd.f32 %v3492, %v3891
        %v3893 = vpop.f32.mrb[0].mxu0
        %v3894 = vadd.f32 %v3488, %v3893
        %v3895 = vpop.f32.mrb[0].mxu0
        %v3896 = vadd.f32 %v3492, %v3895
        %3897 = vmatprep.mubr.bf16.mxu0 %v424
        %3898 = vmatmul.mubr.bf16.gmra.mrb[0].mxu0 %v423
        %v3899 = vpop.f32.mrb[0].mxu0
        %v3900 = vadd.f32 %v3488, %v3899
        %v3901 = vpop.f32.mrb[0].mxu0
        %v3902 = vadd.f32 %v3492, %v3901
        %v3903 = vpop.f32.mrb[0].mxu0
        %v3904 = vadd.f32 %v3488, %v3903
        %v3905 = vpop.f32.mrb[0].mxu0
        %v3906 = vadd.f32 %v3492, %v3905
        %3907 = vmatprep.mubr.bf16.mxu0 %v426
        %3908 = vmatmul.mubr.bf16.gmra.mrb[0].mxu0 %v425
        %v3909 = vpop.f32.mrb[0].mxu0
        %v3910 = vadd.f32 %v3488, %v3909
        %v3911 = vpop.f32.mrb[0].mxu0
        %v3912 = vadd.f32 %v3492, %v3911
        %v3913 = vpop.f32.mrb[0].mxu0
        %v3914 = vadd.f32 %v3488, %v3913
        %v3915 = vpop.f32.mrb[0].mxu0
        %v3916 = vadd.f32 %v3492, %v3915
        %3917 = vmatprep.mubr.bf16.mxu0 %v428
        %3918 = vmatmul.mubr.bf16.gmra.mrb[0].mxu0 %v427
        %v3919 = vpop.f32.mrb[0].mxu0
        %v3920 = vadd.f32 %v3488, %v3919
        %v3921 = vpop.f32.mrb[0].mxu0
        %v3922 = vadd.f32 %v3492, %v3921
        %v3923 = vpop.f32.mrb[0].mxu0
        %v3924 = vadd.f32 %v3488, %v3923
        %v3925 = vpop.f32.mrb[0].mxu0
        %v3926 = vadd.f32 %v3492, %v3925
        %3927 = vmatprep.mubr.bf16.mxu0 %v430
        %3928 = vmatmul.mubr.bf16.gmra.mrb[0].mxu0 %v429
        %v3929 = vpop.f32.mrb[0].mxu0
        %v3930 = vadd.f32 %v3488, %v3929
        %v3931 = vpop.f32.mrb[0].mxu0
        %v3932 = vadd.f32 %v3492, %v3931
        %v3933 = vpop.f32.mrb[0].mxu0
        %v3934 = vadd.f32 %v3488, %v3933
        %v3935 = vpop.f32.mrb[0].mxu0
        %v3936 = vadd.f32 %v3492, %v3935
        %3937 = vmatprep.mubr.bf16.mxu0 %v432
        %3938 = vmatmul.mubr.bf16.gmra.mrb[0].mxu0 %v431
        %v3939 = vpop.f32.mrb[0].mxu0
        %v3940 = vadd.f32 %v3488, %v3939
        %v3941 = vpop.f32.mrb[0].mxu0
        %v3942 = vadd.f32 %v3492, %v3941
        %v3943 = vpop.f32.mrb[0].mxu0
        %v3944 = vadd.f32 %v3488, %v3943
        %v3945 = vpop.f32.mrb[0].mxu0
        %v3946 = vadd.f32 %v3492, %v3945
        %3947 = vmatprep.mubr.bf16.mxu0 %v434
        %3948 = vmatmul.mubr.bf16.gmra.mrb[0].mxu0 %v433
        %v3949 = vpop.f32.mrb[0].mxu0
        %v3950 = vadd.f32 %v3488, %v3949
        %v3951 = vpop.f32.mrb[0].mxu0
        %v3952 = vadd.f32 %v3492, %v3951
        %v3953 = vpop.f32.mrb[0].mxu0
        %v3954 = vadd.f32 %v3488, %v3953
        %v3955 = vpop.f32.mrb[0].mxu0
        %v3956 = vadd.f32 %v3492, %v3955
        %3957 = vmatprep.mubr.bf16.mxu0 %v436
        %3958 = vmatmul.mubr.bf16.gmra.mrb[0].mxu0 %v435
        %v3959 = vpop.f32.mrb[0].mxu0
        %v3960 = vadd.f32 %v3488, %v3959
        %v3961 = vpop.f32.mrb[0].mxu0
        %v3962 = vadd.f32 %v3492, %v3961
        %v3963 = vpop.f32.mrb[0].mxu0
        %v3964 = vadd.f32 %v3488, %v3963
        %v3965 = vpop.f32.mrb[0].mxu0
        %v3966 = vadd.f32 %v3492, %v3965
        %3967 = vmatprep.mubr.bf16.mxu0 %v438
        %3968 = vmatmul.mubr.bf16.gmra.mrb[0].mxu0 %v437
        %v3969 = vpop.f32.mrb[0].mxu0
        %v3970 = vadd.f32 %v3488, %v3969
        %v3971 = vpop.f32.mrb[0].mxu0
        %v3972 = vadd.f32 %v3492, %v3971
        %v3973 = vpop.f32.mrb[0].mxu0
        %v3974 = vadd.f32 %v3488, %v3973
        %v3975 = vpop.f32.mrb[0].mxu0
        %v3976 = vadd.f32 %v3492, %v3975
        %3977 = vmatprep.mubr.bf16.mxu0 %v440
        %3978 = vmatmul.mubr.bf16.gmra.mrb[0].mxu0 %v439
        %v3979 = vpop.f32.mrb[0].mxu0
        %v3980 = vadd.f32 %v3488, %v3979
        %v3981 = vpop.f32.mrb[0].mxu0
        %v3982 = vadd.f32 %v3492, %v3981
        %v3983 = vpop.f32.mrb[0].mxu0
        %v3984 = vadd.f32 %v3488, %v3983
        %v3985 = vpop.f32.mrb[0].mxu0
        %v3986 = vadd.f32 %v3492, %v3985
        %3987 = vmatprep.mubr.bf16.mxu0 %v442
        %3988 = vmatmul.mubr.bf16.gmra.mrb[0].mxu0 %v441
        %v3989 = vpop.f32.mrb[0].mxu0
        %v3990 = vadd.f32 %v3488, %v3989
        %v3991 = vpop.f32.mrb[0].mxu0
        %v3992 = vadd.f32 %v3492, %v3991
        %v3993 = vpop.f32.mrb[0].mxu0
        %v3994 = vadd.f32 %v3488, %v3993
        %v3995 = vpop.f32.mrb[0].mxu0
        %v3996 = vadd.f32 %v3492, %v3995
        %3997 = vmatprep.mubr.bf16.mxu0 %v444
        %3998 = vmatmul.mubr.bf16.gmra.mrb[0].mxu0 %v443
        %v3999 = vpop.f32.mrb[0].mxu0
        %v4000 = vadd.f32 %v3488, %v3999
        %v4001 = vpop.f32.mrb[0].mxu0
        %v4002 = vadd.f32 %v3492, %v4001
        %v4003 = vpop.f32.mrb[0].mxu0
        %v4004 = vadd.f32 %v3488, %v4003
        %v4005 = vpop.f32.mrb[0].mxu0
        %v4006 = vadd.f32 %v3492, %v4005
        %4007 = vmatprep.mubr.bf16.mxu0 %v446
        %4008 = vmatmul.mubr.bf16.gmra.mrb[0].mxu0 %v445
        %v4009 = vpop.f32.mrb[0].mxu0
        %v4010 = vadd.f32 %v3488, %v4009
        %v4011 = vpop.f32.mrb[0].mxu0
        %v4012 = vadd.f32 %v3492, %v4011
        %v4013 = vpop.f32.mrb[0].mxu0
        %v4014 = vadd.f32 %v3488, %v4013
        %v4015 = vpop.f32.mrb[0].mxu0
        %v4016 = vadd.f32 %v3492, %v4015
        %4017 = vdwg.mxu0
        %4018 = vmatprep.subr.bf16.mxu0 %v3700
        %4019 = vmatpush1.bf16.msra.mxu0 %v3699
        %4020 = vmatprep.subr.bf16.mxu0 %v3704
        %4021 = vmatpush1.bf16.msra.mxu0 %v3703
        %4022 = vmatprep.subr.bf16.mxu0 %v3708
        %4023 = vmatpush1.bf16.msra.mxu0 %v3707
        %4024 = vmatprep.subr.bf16.mxu0 %v3712
        %4025 = vmatpush1.bf16.msra.mxu0 %v3711
        %4026 = vmatprep.subr.bf16.mxu0 %v3716
        %4027 = vmatpush1.bf16.msra.mxu0 %v3715
        %4028 = vmatprep.subr.bf16.mxu0 %v3720
        %4029 = vmatpush1.bf16.msra.mxu0 %v3719
        %4030 = vmatprep.subr.bf16.mxu0 %v3724
        %4031 = vmatpush1.bf16.msra.mxu0 %v3723
        %4032 = vmatprep.subr.bf16.mxu0 %v3728
        %4033 = vmatpush1.bf16.msra.mxu0 %v3727
        %4034 = vmatprep.subr.bf16.mxu0 %v3732
        %4035 = vmatpush1.bf16.msra.mxu0 %v3731
        %4036 = vmatprep.subr.bf16.mxu0 %v3736
        %4037 = vmatpush1.bf16.msra.mxu0 %v3735
        %4038 = vmatprep.subr.bf16.mxu0 %v3740
        %4039 = vmatpush1.bf16.msra.mxu0 %v3739
        %4040 = vmatprep.subr.bf16.mxu0 %v3744
        %4041 = vmatpush1.bf16.msra.mxu0 %v3743
        %4042 = vmatprep.subr.bf16.mxu0 %v3748
        %4043 = vmatpush1.bf16.msra.mxu0 %v3747
        %4044 = vmatprep.subr.bf16.mxu0 %v3752
        %4045 = vmatpush1.bf16.msra.mxu0 %v3751
        %4046 = vmatprep.subr.bf16.mxu0 %v3756
        %4047 = vmatpush1.bf16.msra.mxu0 %v3755
        %4048 = vmatprep.subr.bf16.mxu0 %v3760
        %4049 = vmatpush1.bf16.msra.mxu0 %v3759
        %4050 = vmatprep.mubr.bf16.mxu0 %v416
        %4051 = vmatmul.mubr.bf16.gmra.mrb[0].mxu0 %v415
        %v4052 = vpop.f32.mrb[0].mxu0
        %v4053 = vadd.f32 %v3496, %v4052
        %v4054 = vpop.f32.mrb[0].mxu0
        %v4055 = vadd.f32 %v3500, %v4054
        %v4056 = vpop.f32.mrb[0].mxu0
        %v4057 = vadd.f32 %v3496, %v4056
        %v4058 = vpop.f32.mrb[0].mxu0
        %v4059 = vadd.f32 %v3500, %v4058
        %4060 = vmatprep.mubr.bf16.mxu0 %v418
        %4061 = vmatmul.mubr.bf16.gmra.mrb[0].mxu0 %v417
        %v4062 = vpop.f32.mrb[0].mxu0
        %v4063 = vadd.f32 %v3496, %v4062
        %v4064 = vpop.f32.mrb[0].mxu0
        %v4065 = vadd.f32 %v3500, %v4064
        %v4066 = vpop.f32.mrb[0].mxu0
        %v4067 = vadd.f32 %v3496, %v4066
        %v4068 = vpop.f32.mrb[0].mxu0
        %v4069 = vadd.f32 %v3500, %v4068
        %4070 = vmatprep.mubr.bf16.mxu0 %v420
        %4071 = vmatmul.mubr.bf16.gmra.mrb[0].mxu0 %v419
        %v4072 = vpop.f32.mrb[0].mxu0
        %v4073 = vadd.f32 %v3496, %v4072
        %v4074 = vpop.f32.mrb[0].mxu0
        %v4075 = vadd.f32 %v3500, %v4074
        %v4076 = vpop.f32.mrb[0].mxu0
        %v4077 = vadd.f32 %v3496, %v4076
        %v4078 = vpop.f32.mrb[0].mxu0
        %v4079 = vadd.f32 %v3500, %v4078
        %4080 = vmatprep.mubr.bf16.mxu0 %v422
        %4081 = vmatmul.mubr.bf16.gmra.mrb[0].mxu0 %v421
        %v4082 = vpop.f32.mrb[0].mxu0
        %v4083 = vadd.f32 %v3496, %v4082
        %v4084 = vpop.f32.mrb[0].mxu0
        %v4085 = vadd.f32 %v3500, %v4084
        %v4086 = vpop.f32.mrb[0].mxu0
        %v4087 = vadd.f32 %v3496, %v4086
        %v4088 = vpop.f32.mrb[0].mxu0
        %v4089 = vadd.f32 %v3500, %v4088
        %4090 = vmatprep.mubr.bf16.mxu0 %v424
        %4091 = vmatmul.mubr.bf16.gmra.mrb[0].mxu0 %v423
        %v4092 = vpop.f32.mrb[0].mxu0
        %v4093 = vadd.f32 %v3496, %v4092
        %v4094 = vpop.f32.mrb[0].mxu0
        %v4095 = vadd.f32 %v3500, %v4094
        %v4096 = vpop.f32.mrb[0].mxu0
        %v4097 = vadd.f32 %v3496, %v4096
        %v4098 = vpop.f32.mrb[0].mxu0
        %v4099 = vadd.f32 %v3500, %v4098
        %4100 = vmatprep.mubr.bf16.mxu0 %v426
        %4101 = vmatmul.mubr.bf16.gmra.mrb[0].mxu0 %v425
        %v4102 = vpop.f32.mrb[0].mxu0
        %v4103 = vadd.f32 %v3496, %v4102
        %v4104 = vpop.f32.mrb[0].mxu0
        %v4105 = vadd.f32 %v3500, %v4104
        %v4106 = vpop.f32.mrb[0].mxu0
        %v4107 = vadd.f32 %v3496, %v4106
        %v4108 = vpop.f32.mrb[0].mxu0
        %v4109 = vadd.f32 %v3500, %v4108
        %4110 = vmatprep.mubr.bf16.mxu0 %v428
        %4111 = vmatmul.mubr.bf16.gmra.mrb[0].mxu0 %v427
        %v4112 = vpop.f32.mrb[0].mxu0
        %v4113 = vadd.f32 %v3496, %v4112
        %v4114 = vpop.f32.mrb[0].mxu0
        %v4115 = vadd.f32 %v3500, %v4114
        %v4116 = vpop.f32.mrb[0].mxu0
        %v4117 = vadd.f32 %v3496, %v4116
        %v4118 = vpop.f32.mrb[0].mxu0
        %v4119 = vadd.f32 %v3500, %v4118
        %4120 = vmatprep.mubr.bf16.mxu0 %v430
        %4121 = vmatmul.mubr.bf16.gmra.mrb[0].mxu0 %v429
        %v4122 = vpop.f32.mrb[0].mxu0
        %v4123 = vadd.f32 %v3496, %v4122
        %v4124 = vpop.f32.mrb[0].mxu0
        %v4125 = vadd.f32 %v3500, %v4124
        %v4126 = vpop.f32.mrb[0].mxu0
        %v4127 = vadd.f32 %v3496, %v4126
        %v4128 = vpop.f32.mrb[0].mxu0
        %v4129 = vadd.f32 %v3500, %v4128
        %4130 = vmatprep.mubr.bf16.mxu0 %v432
        %4131 = vmatmul.mubr.bf16.gmra.mrb[0].mxu0 %v431
        %v4132 = vpop.f32.mrb[0].mxu0
        %v4133 = vadd.f32 %v3496, %v4132
        %v4134 = vpop.f32.mrb[0].mxu0
        %v4135 = vadd.f32 %v3500, %v4134
        %v4136 = vpop.f32.mrb[0].mxu0
        %v4137 = vadd.f32 %v3496, %v4136
        %v4138 = vpop.f32.mrb[0].mxu0
        %v4139 = vadd.f32 %v3500, %v4138
        %4140 = vmatprep.mubr.bf16.mxu0 %v434
        %4141 = vmatmul.mubr.bf16.gmra.mrb[0].mxu0 %v433
        %v4142 = vpop.f32.mrb[0].mxu0
        %v4143 = vadd.f32 %v3496, %v4142
        %v4144 = vpop.f32.mrb[0].mxu0
        %v4145 = vadd.f32 %v3500, %v4144
        %v4146 = vpop.f32.mrb[0].mxu0
        %v4147 = vadd.f32 %v3496, %v4146
        %v4148 = vpop.f32.mrb[0].mxu0
        %v4149 = vadd.f32 %v3500, %v4148
        %4150 = vmatprep.mubr.bf16.mxu0 %v436
        %4151 = vmatmul.mubr.bf16.gmra.mrb[0].mxu0 %v435
        %v4152 = vpop.f32.mrb[0].mxu0
        %v4153 = vadd.f32 %v3496, %v4152
        %v4154 = vpop.f32.mrb[0].mxu0
        %v4155 = vadd.f32 %v3500, %v4154
        %v4156 = vpop.f32.mrb[0].mxu0
        %v4157 = vadd.f32 %v3496, %v4156
        %v4158 = vpop.f32.mrb[0].mxu0
        %v4159 = vadd.f32 %v3500, %v4158
        %4160 = vmatprep.mubr.bf16.mxu0 %v438
        %4161 = vmatmul.mubr.bf16.gmra.mrb[0].mxu0 %v437
        %v4162 = vpop.f32.mrb[0].mxu0
        %v4163 = vadd.f32 %v3496, %v4162
        %v4164 = vpop.f32.mrb[0].mxu0
        %v4165 = vadd.f32 %v3500, %v4164
        %v4166 = vpop.f32.mrb[0].mxu0
        %v4167 = vadd.f32 %v3496, %v4166
        %v4168 = vpop.f32.mrb[0].mxu0
        %v4169 = vadd.f32 %v3500, %v4168
        %4170 = vmatprep.mubr.bf16.mxu0 %v440
        %4171 = vmatmul.mubr.bf16.gmra.mrb[0].mxu0 %v439
        %v4172 = vpop.f32.mrb[0].mxu0
        %v4173 = vadd.f32 %v3496, %v4172
        %v4174 = vpop.f32.mrb[0].mxu0
        %v4175 = vadd.f32 %v3500, %v4174
        %v4176 = vpop.f32.mrb[0].mxu0
        %v4177 = vadd.f32 %v3496, %v4176
        %v4178 = vpop.f32.mrb[0].mxu0
        %v4179 = vadd.f32 %v3500, %v4178
        %4180 = vmatprep.mubr.bf16.mxu0 %v442
        %4181 = vmatmul.mubr.bf16.gmra.mrb[0].mxu0 %v441
        %v4182 = vpop.f32.mrb[0].mxu0
        %v4183 = vadd.f32 %v3496, %v4182
        %v4184 = vpop.f32.mrb[0].mxu0
        %v4185 = vadd.f32 %v3500, %v4184
        %v4186 = vpop.f32.mrb[0].mxu0
        %v4187 = vadd.f32 %v3496, %v4186
        %v4188 = vpop.f32.mrb[0].mxu0
        %v4189 = vadd.f32 %v3500, %v4188
        %4190 = vmatprep.mubr.bf16.mxu0 %v444
        %4191 = vmatmul.mubr.bf16.gmra.mrb[0].mxu0 %v443
        %v4192 = vpop.f32.mrb[0].mxu0
        %v4193 = vadd.f32 %v3496, %v4192
        %v4194 = vpop.f32.mrb[0].mxu0
        %v4195 = vadd.f32 %v3500, %v4194
        %v4196 = vpop.f32.mrb[0].mxu0
        %v4197 = vadd.f32 %v3496, %v4196
        %v4198 = vpop.f32.mrb[0].mxu0
        %v4199 = vadd.f32 %v3500, %v4198
        %4200 = vmatprep.mubr.bf16.mxu0 %v446
        %4201 = vmatmul.mubr.bf16.gmra.mrb[0].mxu0 %v445
        %v4202 = vpop.f32.mrb[0].mxu0
        %v4203 = vadd.f32 %v3496, %v4202
        %v4204 = vpop.f32.mrb[0].mxu0
        %v4205 = vadd.f32 %v3500, %v4204
        %v4206 = vpop.f32.mrb[0].mxu0
        %v4207 = vadd.f32 %v3496, %v4206
        %v4208 = vpop.f32.mrb[0].mxu0
        %v4209 = vadd.f32 %v3500, %v4208
        %4210 = vdwg.mxu0
        %v4211 = vmul.f32 %v3860, %v3860
        %v4212 = vmul.f32 %v3862, %v3862
        %v4213 = vmul.f32 %v4053, %v4053
        %v4214 = vmul.f32 %v4055, %v4055
        %v4215 = vmul.f32 %v3864, %v3864
        %v4216 = vmul.f32 %v3866, %v3866
        %v4217 = vmul.f32 %v4057, %v4057
        %v4218 = vmul.f32 %v4059, %v4059
        %v4219 = vmul.f32 %v3870, %v3870
        %v4220 = vmul.f32 %v3872, %v3872
        %v4221 = vmul.f32 %v4063, %v4063
        %v4222 = vmul.f32 %v4065, %v4065
        %v4223 = vmul.f32 %v3874, %v3874
        %v4224 = vmul.f32 %v3876, %v3876
        %v4225 = vmul.f32 %v4067, %v4067
        %v4226 = vmul.f32 %v4069, %v4069
        %v4227 = vmul.f32 %v3880, %v3880
        %v4228 = vmul.f32 %v3882, %v3882
        %v4229 = vmul.f32 %v4073, %v4073
        %v4230 = vmul.f32 %v4075, %v4075
        %v4231 = vmul.f32 %v3884, %v3884
        %v4232 = vmul.f32 %v3886, %v3886
        %v4233 = vmul.f32 %v4077, %v4077
        %v4234 = vmul.f32 %v4079, %v4079
        %v4235 = vmul.f32 %v3890, %v3890
        %v4236 = vmul.f32 %v3892, %v3892
        %v4237 = vmul.f32 %v4083, %v4083
        %v4238 = vmul.f32 %v4085, %v4085
        %v4239 = vmul.f32 %v3894, %v3894
        %v4240 = vmul.f32 %v3896, %v3896
        %v4241 = vmul.f32 %v4087, %v4087
        %v4242 = vmul.f32 %v4089, %v4089
        %v4243 = vmul.f32 %v3900, %v3900
        %v4244 = vmul.f32 %v3902, %v3902
        %v4245 = vmul.f32 %v4093, %v4093
        %v4246 = vmul.f32 %v4095, %v4095
        %v4247 = vmul.f32 %v3904, %v3904
        %v4248 = vmul.f32 %v3906, %v3906
        %v4249 = vmul.f32 %v4097, %v4097
        %v4250 = vmul.f32 %v4099, %v4099
        %v4251 = vmul.f32 %v3910, %v3910
        %v4252 = vmul.f32 %v3912, %v3912
        %v4253 = vmul.f32 %v4103, %v4103
        %v4254 = vmul.f32 %v4105, %v4105
        %v4255 = vmul.f32 %v3914, %v3914
        %v4256 = vmul.f32 %v3916, %v3916
        %v4257 = vmul.f32 %v4107, %v4107
        %v4258 = vmul.f32 %v4109, %v4109
        %v4259 = vmul.f32 %v3920, %v3920
        %v4260 = vmul.f32 %v3922, %v3922
        %v4261 = vmul.f32 %v4113, %v4113
        %v4262 = vmul.f32 %v4115, %v4115
        %v4263 = vmul.f32 %v3924, %v3924
        %v4264 = vmul.f32 %v3926, %v3926
        %v4265 = vmul.f32 %v4117, %v4117
        %v4266 = vmul.f32 %v4119, %v4119
        %v4267 = vmul.f32 %v3930, %v3930
        %v4268 = vmul.f32 %v3932, %v3932
        %v4269 = vmul.f32 %v4123, %v4123
        %v4270 = vmul.f32 %v4125, %v4125
        %v4271 = vmul.f32 %v3934, %v3934
        %v4272 = vmul.f32 %v3936, %v3936
        %v4273 = vmul.f32 %v4127, %v4127
        %v4274 = vmul.f32 %v4129, %v4129
        %v4275 = vmul.f32 %v3940, %v3940
        %v4276 = vmul.f32 %v3942, %v3942
        %v4277 = vmul.f32 %v4133, %v4133
        %v4278 = vmul.f32 %v4135, %v4135
        %v4279 = vmul.f32 %v3944, %v3944
        %v4280 = vmul.f32 %v3946, %v3946
        %v4281 = vmul.f32 %v4137, %v4137
        %v4282 = vmul.f32 %v4139, %v4139
        %v4283 = vmul.f32 %v3950, %v3950
        %v4284 = vmul.f32 %v3952, %v3952
        %v4285 = vmul.f32 %v4143, %v4143
        %v4286 = vmul.f32 %v4145, %v4145
        %v4287 = vmul.f32 %v3954, %v3954
        %v4288 = vmul.f32 %v3956, %v3956
        %v4289 = vmul.f32 %v4147, %v4147
        %v4290 = vmul.f32 %v4149, %v4149
        %v4291 = vmul.f32 %v3960, %v3960
        %v4292 = vmul.f32 %v3962, %v3962
        %v4293 = vmul.f32 %v4153, %v4153
        %v4294 = vmul.f32 %v4155, %v4155
        %v4295 = vmul.f32 %v3964, %v3964
        %v4296 = vmul.f32 %v3966, %v3966
        %v4297 = vmul.f32 %v4157, %v4157
        %v4298 = vmul.f32 %v4159, %v4159
        %v4299 = vmul.f32 %v3970, %v3970
        %v4300 = vmul.f32 %v3972, %v3972
        %v4301 = vmul.f32 %v4163, %v4163
        %v4302 = vmul.f32 %v4165, %v4165
        %v4303 = vmul.f32 %v3974, %v3974
        %v4304 = vmul.f32 %v3976, %v3976
        %v4305 = vmul.f32 %v4167, %v4167
        %v4306 = vmul.f32 %v4169, %v4169
        %v4307 = vmul.f32 %v3980, %v3980
        %v4308 = vmul.f32 %v3982, %v3982
        %v4309 = vmul.f32 %v4173, %v4173
        %v4310 = vmul.f32 %v4175, %v4175
        %v4311 = vmul.f32 %v3984, %v3984
        %v4312 = vmul.f32 %v3986, %v3986
        %v4313 = vmul.f32 %v4177, %v4177
        %v4314 = vmul.f32 %v4179, %v4179
        %v4315 = vmul.f32 %v3990, %v3990
        %v4316 = vmul.f32 %v3992, %v3992
        %v4317 = vmul.f32 %v4183, %v4183
        %v4318 = vmul.f32 %v4185, %v4185
        %v4319 = vmul.f32 %v3994, %v3994
        %v4320 = vmul.f32 %v3996, %v3996
        %v4321 = vmul.f32 %v4187, %v4187
        %v4322 = vmul.f32 %v4189, %v4189
        %v4323 = vmul.f32 %v4000, %v4000
        %v4324 = vmul.f32 %v4002, %v4002
        %v4325 = vmul.f32 %v4193, %v4193
        %v4326 = vmul.f32 %v4195, %v4195
        %v4327 = vmul.f32 %v4004, %v4004
        %v4328 = vmul.f32 %v4006, %v4006
        %v4329 = vmul.f32 %v4197, %v4197
        %v4330 = vmul.f32 %v4199, %v4199
        %v4331 = vmul.f32 %v4010, %v4010
        %v4332 = vmul.f32 %v4012, %v4012
        %v4333 = vmul.f32 %v4203, %v4203
        %v4334 = vmul.f32 %v4205, %v4205
        %v4335 = vmul.f32 %v4014, %v4014
        %v4336 = vmul.f32 %v4016, %v4016
        %v4337 = vmul.f32 %v4207, %v4207
        %v4338 = vmul.f32 %v4209, %v4209
        %v4339 = vmul.f32 %v3860, %v4211
        %v4340 = vmul.f32 %v3862, %v4212
        %v4341 = vmul.f32 %v4053, %v4213
        %v4342 = vmul.f32 %v4055, %v4214
        %v4343 = vmul.f32 %v3864, %v4215
        %v4344 = vmul.f32 %v3866, %v4216
        %v4345 = vmul.f32 %v4057, %v4217
        %v4346 = vmul.f32 %v4059, %v4218
        %v4347 = vmul.f32 %v3870, %v4219
        %v4348 = vmul.f32 %v3872, %v4220
        %v4349 = vmul.f32 %v4063, %v4221
        %v4350 = vmul.f32 %v4065, %v4222
        %v4351 = vmul.f32 %v3874, %v4223
        %v4352 = vmul.f32 %v3876, %v4224
        %v4353 = vmul.f32 %v4067, %v4225
        %v4354 = vmul.f32 %v4069, %v4226
        %v4355 = vmul.f32 %v3880, %v4227
        %v4356 = vmul.f32 %v3882, %v4228
        %v4357 = vmul.f32 %v4073, %v4229
        %v4358 = vmul.f32 %v4075, %v4230
        %v4359 = vmul.f32 %v3884, %v4231
        %v4360 = vmul.f32 %v3886, %v4232
        %v4361 = vmul.f32 %v4077, %v4233
        %v4362 = vmul.f32 %v4079, %v4234
        %v4363 = vmul.f32 %v3890, %v4235
        %v4364 = vmul.f32 %v3892, %v4236
        %v4365 = vmul.f32 %v4083, %v4237
        %v4366 = vmul.f32 %v4085, %v4238
        %v4367 = vmul.f32 %v3894, %v4239
        %v4368 = vmul.f32 %v3896, %v4240
        %v4369 = vmul.f32 %v4087, %v4241
        %v4370 = vmul.f32 %v4089, %v4242
        %v4371 = vmul.f32 %v3900, %v4243
        %v4372 = vmul.f32 %v3902, %v4244
        %v4373 = vmul.f32 %v4093, %v4245
        %v4374 = vmul.f32 %v4095, %v4246
        %v4375 = vmul.f32 %v3904, %v4247
        %v4376 = vmul.f32 %v3906, %v4248
        %v4377 = vmul.f32 %v4097, %v4249
        %v4378 = vmul.f32 %v4099, %v4250
        %v4379 = vmul.f32 %v3910, %v4251
        %v4380 = vmul.f32 %v3912, %v4252
        %v4381 = vmul.f32 %v4103, %v4253
        %v4382 = vmul.f32 %v4105, %v4254
        %v4383 = vmul.f32 %v3914, %v4255
        %v4384 = vmul.f32 %v3916, %v4256
        %v4385 = vmul.f32 %v4107, %v4257
        %v4386 = vmul.f32 %v4109, %v4258
        %v4387 = vmul.f32 %v3920, %v4259
        %v4388 = vmul.f32 %v3922, %v4260
        %v4389 = vmul.f32 %v4113, %v4261
        %v4390 = vmul.f32 %v4115, %v4262
        %v4391 = vmul.f32 %v3924, %v4263
        %v4392 = vmul.f32 %v3926, %v4264
        %v4393 = vmul.f32 %v4117, %v4265
        %v4394 = vmul.f32 %v4119, %v4266
        %v4395 = vmul.f32 %v3930, %v4267
        %v4396 = vmul.f32 %v3932, %v4268
        %v4397 = vmul.f32 %v4123, %v4269
        %v4398 = vmul.f32 %v4125, %v4270
        %v4399 = vmul.f32 %v3934, %v4271
        %v4400 = vmul.f32 %v3936, %v4272
        %v4401 = vmul.f32 %v4127, %v4273
        %v4402 = vmul.f32 %v4129, %v4274
        %v4403 = vmul.f32 %v3940, %v4275
        %v4404 = vmul.f32 %v3942, %v4276
        %v4405 = vmul.f32 %v4133, %v4277
        %v4406 = vmul.f32 %v4135, %v4278
        %v4407 = vmul.f32 %v3944, %v4279
        %v4408 = vmul.f32 %v3946, %v4280
        %v4409 = vmul.f32 %v4137, %v4281
        %v4410 = vmul.f32 %v4139, %v4282
        %v4411 = vmul.f32 %v3950, %v4283
        %v4412 = vmul.f32 %v3952, %v4284
        %v4413 = vmul.f32 %v4143, %v4285
        %v4414 = vmul.f32 %v4145, %v4286
        %v4415 = vmul.f32 %v3954, %v4287
        %v4416 = vmul.f32 %v3956, %v4288
        %v4417 = vmul.f32 %v4147, %v4289
        %v4418 = vmul.f32 %v4149, %v4290
        %v4419 = vmul.f32 %v3960, %v4291
        %v4420 = vmul.f32 %v3962, %v4292
        %v4421 = vmul.f32 %v4153, %v4293
        %v4422 = vmul.f32 %v4155, %v4294
        %v4423 = vmul.f32 %v3964, %v4295
        %v4424 = vmul.f32 %v3966, %v4296
        %v4425 = vmul.f32 %v4157, %v4297
        %v4426 = vmul.f32 %v4159, %v4298
        %v4427 = vmul.f32 %v3970, %v4299
        %v4428 = vmul.f32 %v3972, %v4300
        %v4429 = vmul.f32 %v4163, %v4301
        %v4430 = vmul.f32 %v4165, %v4302
        %v4431 = vmul.f32 %v3974, %v4303
        %v4432 = vmul.f32 %v3976, %v4304
        %v4433 = vmul.f32 %v4167, %v4305
        %v4434 = vmul.f32 %v4169, %v4306
        %v4435 = vmul.f32 %v3980, %v4307
        %v4436 = vmul.f32 %v3982, %v4308
        %v4437 = vmul.f32 %v4173, %v4309
        %v4438 = vmul.f32 %v4175, %v4310
        %v4439 = vmul.f32 %v3984, %v4311
        %v4440 = vmul.f32 %v3986, %v4312
        %v4441 = vmul.f32 %v4177, %v4313
        %v4442 = vmul.f32 %v4179, %v4314
        %v4443 = vmul.f32 %v3990, %v4315
        %v4444 = vmul.f32 %v3992, %v4316
        %v4445 = vmul.f32 %v4183, %v4317
        %v4446 = vmul.f32 %v4185, %v4318
        %v4447 = vmul.f32 %v3994, %v4319
        %v4448 = vmul.f32 %v3996, %v4320
        %v4449 = vmul.f32 %v4187, %v4321
        %v4450 = vmul.f32 %v4189, %v4322
        %v4451 = vmul.f32 %v4000, %v4323
        %v4452 = vmul.f32 %v4002, %v4324
        %v4453 = vmul.f32 %v4193, %v4325
        %v4454 = vmul.f32 %v4195, %v4326
        %v4455 = vmul.f32 %v4004, %v4327
        %v4456 = vmul.f32 %v4006, %v4328
        %v4457 = vmul.f32 %v4197, %v4329
        %v4458 = vmul.f32 %v4199, %v4330
        %v4459 = vmul.f32 %v4010, %v4331
        %v4460 = vmul.f32 %v4012, %v4332
        %v4461 = vmul.f32 %v4203, %v4333
        %v4462 = vmul.f32 %v4205, %v4334
        %v4463 = vmul.f32 %v4014, %v4335
        %v4464 = vmul.f32 %v4016, %v4336
        %v4465 = vmul.f32 %v4207, %v4337
        %v4466 = vmul.f32 %v4209, %v4338
        %v4467 = vmul.f32 %v4339, 0.044715
        %v4468 = vmul.f32 %v4340, 0.044715
        %v4469 = vmul.f32 %v4341, 0.044715
        %v4470 = vmul.f32 %v4342, 0.044715
        %v4471 = vmul.f32 %v4343, 0.044715
        %v4472 = vmul.f32 %v4344, 0.044715
        %v4473 = vmul.f32 %v4345, 0.044715
        %v4474 = vmul.f32 %v4346, 0.044715
        %v4475 = vmul.f32 %v4347, 0.044715
        %v4476 = vmul.f32 %v4348, 0.044715
        %v4477 = vmul.f32 %v4349, 0.044715
        %v4478 = vmul.f32 %v4350, 0.044715
        %v4479 = vmul.f32 %v4351, 0.044715
        %v4480 = vmul.f32 %v4352, 0.044715
        %v4481 = vmul.f32 %v4353, 0.044715
        %v4482 = vmul.f32 %v4354, 0.044715
        %v4483 = vmul.f32 %v4355, 0.044715
        %v4484 = vmul.f32 %v4356, 0.044715
        %v4485 = vmul.f32 %v4357, 0.044715
        %v4486 = vmul.f32 %v4358, 0.044715
        %v4487 = vmul.f32 %v4359, 0.044715
        %v4488 = vmul.f32 %v4360, 0.044715
        %v4489 = vmul.f32 %v4361, 0.044715
        %v4490 = vmul.f32 %v4362, 0.044715
        %v4491 = vmul.f32 %v4363, 0.044715
        %v4492 = vmul.f32 %v4364, 0.044715
        %v4493 = vmul.f32 %v4365, 0.044715
        %v4494 = vmul.f32 %v4366, 0.044715
        %v4495 = vmul.f32 %v4367, 0.044715
        %v4496 = vmul.f32 %v4368, 0.044715
        %v4497 = vmul.f32 %v4369, 0.044715
        %v4498 = vmul.f32 %v4370, 0.044715
        %v4499 = vmul.f32 %v4371, 0.044715
        %v4500 = vmul.f32 %v4372, 0.044715
        %v4501 = vmul.f32 %v4373, 0.044715
        %v4502 = vmul.f32 %v4374, 0.044715
        %v4503 = vmul.f32 %v4375, 0.044715
        %v4504 = vmul.f32 %v4376, 0.044715
        %v4505 = vmul.f32 %v4377, 0.044715
        %v4506 = vmul.f32 %v4378, 0.044715
        %v4507 = vmul.f32 %v4379, 0.044715
        %v4508 = vmul.f32 %v4380, 0.044715
        %v4509 = vmul.f32 %v4381, 0.044715
        %v4510 = vmul.f32 %v4382, 0.044715
        %v4511 = vmul.f32 %v4383, 0.044715
        %v4512 = vmul.f32 %v4384, 0.044715
        %v4513 = vmul.f32 %v4385, 0.044715
        %v4514 = vmul.f32 %v4386, 0.044715
        %v4515 = vmul.f32 %v4387, 0.044715
        %v4516 = vmul.f32 %v4388, 0.044715
        %v4517 = vmul.f32 %v4389, 0.044715
        %v4518 = vmul.f32 %v4390, 0.044715
        %v4519 = vmul.f32 %v4391, 0.044715
        %v4520 = vmul.f32 %v4392, 0.044715
        %v4521 = vmul.f32 %v4393, 0.044715
        %v4522 = vmul.f32 %v4394, 0.044715
        %v4523 = vmul.f32 %v4395, 0.044715
        %v4524 = vmul.f32 %v4396, 0.044715
        %v4525 = vmul.f32 %v4397, 0.044715
        %v4526 = vmul.f32 %v4398, 0.044715
        %v4527 = vmul.f32 %v4399, 0.044715
        %v4528 = vmul.f32 %v4400, 0.044715
        %v4529 = vmul.f32 %v4401, 0.044715
        %v4530 = vmul.f32 %v4402, 0.044715
        %v4531 = vmul.f32 %v4403, 0.044715
        %v4532 = vmul.f32 %v4404, 0.044715
        %v4533 = vmul.f32 %v4405, 0.044715
        %v4534 = vmul.f32 %v4406, 0.044715
        %v4535 = vmul.f32 %v4407, 0.044715
        %v4536 = vmul.f32 %v4408, 0.044715
        %v4537 = vmul.f32 %v4409, 0.044715
        %v4538 = vmul.f32 %v4410, 0.044715
        %v4539 = vmul.f32 %v4411, 0.044715
        %v4540 = vmul.f32 %v4412, 0.044715
        %v4541 = vmul.f32 %v4413, 0.044715
        %v4542 = vmul.f32 %v4414, 0.044715
        %v4543 = vmul.f32 %v4415, 0.044715
        %v4544 = vmul.f32 %v4416, 0.044715
        %v4545 = vmul.f32 %v4417, 0.044715
        %v4546 = vmul.f32 %v4418, 0.044715
        %v4547 = vmul.f32 %v4419, 0.044715
        %v4548 = vmul.f32 %v4420, 0.044715
        %v4549 = vmul.f32 %v4421, 0.044715
        %v4550 = vmul.f32 %v4422, 0.044715
        %v4551 = vmul.f32 %v4423, 0.044715
        %v4552 = vmul.f32 %v4424, 0.044715
        %v4553 = vmul.f32 %v4425, 0.044715
        %v4554 = vmul.f32 %v4426, 0.044715
        %v4555 = vmul.f32 %v4427, 0.044715
        %v4556 = vmul.f32 %v4428, 0.044715
        %v4557 = vmul.f32 %v4429, 0.044715
        %v4558 = vmul.f32 %v4430, 0.044715
        %v4559 = vmul.f32 %v4431, 0.044715
        %v4560 = vmul.f32 %v4432, 0.044715
        %v4561 = vmul.f32 %v4433, 0.044715
        %v4562 = vmul.f32 %v4434, 0.044715
        %v4563 = vmul.f32 %v4435, 0.044715
        %v4564 = vmul.f32 %v4436, 0.044715
        %v4565 = vmul.f32 %v4437, 0.044715
        %v4566 = vmul.f32 %v4438, 0.044715
        %v4567 = vmul.f32 %v4439, 0.044715
        %v4568 = vmul.f32 %v4440, 0.044715
        %v4569 = vmul.f32 %v4441, 0.044715
        %v4570 = vmul.f32 %v4442, 0.044715
        %v4571 = vmul.f32 %v4443, 0.044715
        %v4572 = vmul.f32 %v4444, 0.044715
        %v4573 = vmul.f32 %v4445, 0.044715
        %v4574 = vmul.f32 %v4446, 0.044715
        %v4575 = vmul.f32 %v4447, 0.044715
        %v4576 = vmul.f32 %v4448, 0.044715
        %v4577 = vmul.f32 %v4449, 0.044715
        %v4578 = vmul.f32 %v4450, 0.044715
        %v4579 = vmul.f32 %v4451, 0.044715
        %v4580 = vmul.f32 %v4452, 0.044715
        %v4581 = vmul.f32 %v4453, 0.044715
        %v4582 = vmul.f32 %v4454, 0.044715
        %v4583 = vmul.f32 %v4455, 0.044715
        %v4584 = vmul.f32 %v4456, 0.044715
        %v4585 = vmul.f32 %v4457, 0.044715
        %v4586 = vmul.f32 %v4458, 0.044715
        %v4587 = vmul.f32 %v4459, 0.044715
        %v4588 = vmul.f32 %v4460, 0.044715
        %v4589 = vmul.f32 %v4461, 0.044715
        %v4590 = vmul.f32 %v4462, 0.044715
        %v4591 = vmul.f32 %v4463, 0.044715
        %v4592 = vmul.f32 %v4464, 0.044715
        %v4593 = vmul.f32 %v4465, 0.044715
        %v4594 = vmul.f32 %v4466, 0.044715
        %v4595 = vadd.f32 %v3860, %v4467
        %v4596 = vadd.f32 %v3862, %v4468
        %v4597 = vadd.f32 %v4053, %v4469
        %v4598 = vadd.f32 %v4055, %v4470
        %v4599 = vadd.f32 %v3864, %v4471
        %v4600 = vadd.f32 %v3866, %v4472
        %v4601 = vadd.f32 %v4057, %v4473
        %v4602 = vadd.f32 %v4059, %v4474
        %v4603 = vadd.f32 %v3870, %v4475
        %v4604 = vadd.f32 %v3872, %v4476
        %v4605 = vadd.f32 %v4063, %v4477
        %v4606 = vadd.f32 %v4065, %v4478
        %v4607 = vadd.f32 %v3874, %v4479
        %v4608 = vadd.f32 %v3876, %v4480
        %v4609 = vadd.f32 %v4067, %v4481
        %v4610 = vadd.f32 %v4069, %v4482
        %v4611 = vadd.f32 %v3880, %v4483
        %v4612 = vadd.f32 %v3882, %v4484
        %v4613 = vadd.f32 %v4073, %v4485
        %v4614 = vadd.f32 %v4075, %v4486
        %v4615 = vadd.f32 %v3884, %v4487
        %v4616 = vadd.f32 %v3886, %v4488
        %v4617 = vadd.f32 %v4077, %v4489
        %v4618 = vadd.f32 %v4079, %v4490
        %v4619 = vadd.f32 %v3890, %v4491
        %v4620 = vadd.f32 %v3892, %v4492
        %v4621 = vadd.f32 %v4083, %v4493
        %v4622 = vadd.f32 %v4085, %v4494
        %v4623 = vadd.f32 %v3894, %v4495
        %v4624 = vadd.f32 %v3896, %v4496
        %v4625 = vadd.f32 %v4087, %v4497
        %v4626 = vadd.f32 %v4089, %v4498
        %v4627 = vadd.f32 %v3900, %v4499
        %v4628 = vadd.f32 %v3902, %v4500
        %v4629 = vadd.f32 %v4093, %v4501
        %v4630 = vadd.f32 %v4095, %v4502
        %v4631 = vadd.f32 %v3904, %v4503
        %v4632 = vadd.f32 %v3906, %v4504
        %v4633 = vadd.f32 %v4097, %v4505
        %v4634 = vadd.f32 %v4099, %v4506
        %v4635 = vadd.f32 %v3910, %v4507
        %v4636 = vadd.f32 %v3912, %v4508
        %v4637 = vadd.f32 %v4103, %v4509
        %v4638 = vadd.f32 %v4105, %v4510
        %v4639 = vadd.f32 %v3914, %v4511
        %v4640 = vadd.f32 %v3916, %v4512
        %v4641 = vadd.f32 %v4107, %v4513
        %v4642 = vadd.f32 %v4109, %v4514
        %v4643 = vadd.f32 %v3920, %v4515
        %v4644 = vadd.f32 %v3922, %v4516
        %v4645 = vadd.f32 %v4113, %v4517
        %v4646 = vadd.f32 %v4115, %v4518
        %v4647 = vadd.f32 %v3924, %v4519
        %v4648 = vadd.f32 %v3926, %v4520
        %v4649 = vadd.f32 %v4117, %v4521
        %v4650 = vadd.f32 %v4119, %v4522
        %v4651 = vadd.f32 %v3930, %v4523
        %v4652 = vadd.f32 %v3932, %v4524
        %v4653 = vadd.f32 %v4123, %v4525
        %v4654 = vadd.f32 %v4125, %v4526
        %v4655 = vadd.f32 %v3934, %v4527
        %v4656 = vadd.f32 %v3936, %v4528
        %v4657 = vadd.f32 %v4127, %v4529
        %v4658 = vadd.f32 %v4129, %v4530
        %v4659 = vadd.f32 %v3940, %v4531
        %v4660 = vadd.f32 %v3942, %v4532
        %v4661 = vadd.f32 %v4133, %v4533
        %v4662 = vadd.f32 %v4135, %v4534
        %v4663 = vadd.f32 %v3944, %v4535
        %v4664 = vadd.f32 %v3946, %v4536
        %v4665 = vadd.f32 %v4137, %v4537
        %v4666 = vadd.f32 %v4139, %v4538
        %v4667 = vadd.f32 %v3950, %v4539
        %v4668 = vadd.f32 %v3952, %v4540
        %v4669 = vadd.f32 %v4143, %v4541
        %v4670 = vadd.f32 %v4145, %v4542
        %v4671 = vadd.f32 %v3954, %v4543
        %v4672 = vadd.f32 %v3956, %v4544
        %v4673 = vadd.f32 %v4147, %v4545
        %v4674 = vadd.f32 %v4149, %v4546
        %v4675 = vadd.f32 %v3960, %v4547
        %v4676 = vadd.f32 %v3962, %v4548
        %v4677 = vadd.f32 %v4153, %v4549
        %v4678 = vadd.f32 %v4155, %v4550
        %v4679 = vadd.f32 %v3964, %v4551
        %v4680 = vadd.f32 %v3966, %v4552
        %v4681 = vadd.f32 %v4157, %v4553
        %v4682 = vadd.f32 %v4159, %v4554
        %v4683 = vadd.f32 %v3970, %v4555
        %v4684 = vadd.f32 %v3972, %v4556
        %v4685 = vadd.f32 %v4163, %v4557
        %v4686 = vadd.f32 %v4165, %v4558
        %v4687 = vadd.f32 %v3974, %v4559
        %v4688 = vadd.f32 %v3976, %v4560
        %v4689 = vadd.f32 %v4167, %v4561
        %v4690 = vadd.f32 %v4169, %v4562
        %v4691 = vadd.f32 %v3980, %v4563
        %v4692 = vadd.f32 %v3982, %v4564
        %v4693 = vadd.f32 %v4173, %v4565
        %v4694 = vadd.f32 %v4175, %v4566
        %v4695 = vadd.f32 %v3984, %v4567
        %v4696 = vadd.f32 %v3986, %v4568
        %v4697 = vadd.f32 %v4177, %v4569
        %v4698 = vadd.f32 %v4179, %v4570
        %v4699 = vadd.f32 %v3990, %v4571
        %v4700 = vadd.f32 %v3992, %v4572
        %v4701 = vadd.f32 %v4183, %v4573
        %v4702 = vadd.f32 %v4185, %v4574
        %v4703 = vadd.f32 %v3994, %v4575
        %v4704 = vadd.f32 %v3996, %v4576
        %v4705 = vadd.f32 %v4187, %v4577
        %v4706 = vadd.f32 %v4189, %v4578
        %v4707 = vadd.f32 %v4000, %v4579
        %v4708 = vadd.f32 %v4002, %v4580
        %v4709 = vadd.f32 %v4193, %v4581
        %v4710 = vadd.f32 %v4195, %v4582
        %v4711 = vadd.f32 %v4004, %v4583
        %v4712 = vadd.f32 %v4006, %v4584
        %v4713 = vadd.f32 %v4197, %v4585
        %v4714 = vadd.f32 %v4199, %v4586
        %v4715 = vadd.f32 %v4010, %v4587
        %v4716 = vadd.f32 %v4012, %v4588
        %v4717 = vadd.f32 %v4203, %v4589
        %v4718 = vadd.f32 %v4205, %v4590
        %v4719 = vadd.f32 %v4014, %v4591
        %v4720 = vadd.f32 %v4016, %v4592
        %v4721 = vadd.f32 %v4207, %v4593
        %v4722 = vadd.f32 %v4209, %v4594
        %v4723 = vmul.f32 %v4595, 0.7978846
        %v4724 = vmul.f32 %v4596, 0.7978846
        %v4725 = vmul.f32 %v4597, 0.7978846
        %v4726 = vmul.f32 %v4598, 0.7978846
        %v4727 = vmul.f32 %v4599, 0.7978846
        %v4728 = vmul.f32 %v4600, 0.7978846
        %v4729 = vmul.f32 %v4601, 0.7978846
        %v4730 = vmul.f32 %v4602, 0.7978846
        %v4731 = vmul.f32 %v4603, 0.7978846
        %v4732 = vmul.f32 %v4604, 0.7978846
        %v4733 = vmul.f32 %v4605, 0.7978846
        %v4734 = vmul.f32 %v4606, 0.7978846
        %v4735 = vmul.f32 %v4607, 0.7978846
        %v4736 = vmul.f32 %v4608, 0.7978846
        %v4737 = vmul.f32 %v4609, 0.7978846
        %v4738 = vmul.f32 %v4610, 0.7978846
        %v4739 = vmul.f32 %v4611, 0.7978846
        %v4740 = vmul.f32 %v4612, 0.7978846
        %v4741 = vmul.f32 %v4613, 0.7978846
        %v4742 = vmul.f32 %v4614, 0.7978846
        %v4743 = vmul.f32 %v4615, 0.7978846
        %v4744 = vmul.f32 %v4616, 0.7978846
        %v4745 = vmul.f32 %v4617, 0.7978846
        %v4746 = vmul.f32 %v4618, 0.7978846
        %v4747 = vmul.f32 %v4619, 0.7978846
        %v4748 = vmul.f32 %v4620, 0.7978846
        %v4749 = vmul.f32 %v4621, 0.7978846
        %v4750 = vmul.f32 %v4622, 0.7978846
        %v4751 = vmul.f32 %v4623, 0.7978846
        %v4752 = vmul.f32 %v4624, 0.7978846
        %v4753 = vmul.f32 %v4625, 0.7978846
        %v4754 = vmul.f32 %v4626, 0.7978846
        %v4755 = vmul.f32 %v4627, 0.7978846
        %v4756 = vmul.f32 %v4628, 0.7978846
        %v4757 = vmul.f32 %v4629, 0.7978846
        %v4758 = vmul.f32 %v4630, 0.7978846
        %v4759 = vmul.f32 %v4631, 0.7978846
        %v4760 = vmul.f32 %v4632, 0.7978846
        %v4761 = vmul.f32 %v4633, 0.7978846
        %v4762 = vmul.f32 %v4634, 0.7978846
        %v4763 = vmul.f32 %v4635, 0.7978846
        %v4764 = vmul.f32 %v4636, 0.7978846
        %v4765 = vmul.f32 %v4637, 0.7978846
        %v4766 = vmul.f32 %v4638, 0.7978846
        %v4767 = vmul.f32 %v4639, 0.7978846
        %v4768 = vmul.f32 %v4640, 0.7978846
        %v4769 = vmul.f32 %v4641, 0.7978846
        %v4770 = vmul.f32 %v4642, 0.7978846
        %v4771 = vmul.f32 %v4643, 0.7978846
        %v4772 = vmul.f32 %v4644, 0.7978846
        %v4773 = vmul.f32 %v4645, 0.7978846
        %v4774 = vmul.f32 %v4646, 0.7978846
        %v4775 = vmul.f32 %v4647, 0.7978846
        %v4776 = vmul.f32 %v4648, 0.7978846
        %v4777 = vmul.f32 %v4649, 0.7978846
        %v4778 = vmul.f32 %v4650, 0.7978846
        %v4779 = vmul.f32 %v4651, 0.7978846
        %v4780 = vmul.f32 %v4652, 0.7978846
        %v4781 = vmul.f32 %v4653, 0.7978846
        %v4782 = vmul.f32 %v4654, 0.7978846
        %v4783 = vmul.f32 %v4655, 0.7978846
        %v4784 = vmul.f32 %v4656, 0.7978846
        %v4785 = vmul.f32 %v4657, 0.7978846
        %v4786 = vmul.f32 %v4658, 0.7978846
        %v4787 = vmul.f32 %v4659, 0.7978846
        %v4788 = vmul.f32 %v4660, 0.7978846
        %v4789 = vmul.f32 %v4661, 0.7978846
        %v4790 = vmul.f32 %v4662, 0.7978846
        %v4791 = vmul.f32 %v4663, 0.7978846
        %v4792 = vmul.f32 %v4664, 0.7978846
        %v4793 = vmul.f32 %v4665, 0.7978846
        %v4794 = vmul.f32 %v4666, 0.7978846
        %v4795 = vmul.f32 %v4667, 0.7978846
        %v4796 = vmul.f32 %v4668, 0.7978846
        %v4797 = vmul.f32 %v4669, 0.7978846
        %v4798 = vmul.f32 %v4670, 0.7978846
        %v4799 = vmul.f32 %v4671, 0.7978846
        %v4800 = vmul.f32 %v4672, 0.7978846
        %v4801 = vmul.f32 %v4673, 0.7978846
        %v4802 = vmul.f32 %v4674, 0.7978846
        %v4803 = vmul.f32 %v4675, 0.7978846
        %v4804 = vmul.f32 %v4676, 0.7978846
        %v4805 = vmul.f32 %v4677, 0.7978846
        %v4806 = vmul.f32 %v4678, 0.7978846
        %v4807 = vmul.f32 %v4679, 0.7978846
        %v4808 = vmul.f32 %v4680, 0.7978846
        %v4809 = vmul.f32 %v4681, 0.7978846
        %v4810 = vmul.f32 %v4682, 0.7978846
        %v4811 = vmul.f32 %v4683, 0.7978846
        %v4812 = vmul.f32 %v4684, 0.7978846
        %v4813 = vmul.f32 %v4685, 0.7978846
        %v4814 = vmul.f32 %v4686, 0.7978846
        %v4815 = vmul.f32 %v4687, 0.7978846
        %v4816 = vmul.f32 %v4688, 0.7978846
        %v4817 = vmul.f32 %v4689, 0.7978846
        %v4818 = vmul.f32 %v4690, 0.7978846
        %v4819 = vmul.f32 %v4691, 0.7978846
        %v4820 = vmul.f32 %v4692, 0.7978846
        %v4821 = vmul.f32 %v4693, 0.7978846
        %v4822 = vmul.f32 %v4694, 0.7978846
        %v4823 = vmul.f32 %v4695, 0.7978846
        %v4824 = vmul.f32 %v4696, 0.7978846
        %v4825 = vmul.f32 %v4697, 0.7978846
        %v4826 = vmul.f32 %v4698, 0.7978846
        %v4827 = vmul.f32 %v4699, 0.7978846
        %v4828 = vmul.f32 %v4700, 0.7978846
        %v4829 = vmul.f32 %v4701, 0.7978846
        %v4830 = vmul.f32 %v4702, 0.7978846
        %v4831 = vmul.f32 %v4703, 0.7978846
        %v4832 = vmul.f32 %v4704, 0.7978846
        %v4833 = vmul.f32 %v4705, 0.7978846
        %v4834 = vmul.f32 %v4706, 0.7978846
        %v4835 = vmul.f32 %v4707, 0.7978846
        %v4836 = vmul.f32 %v4708, 0.7978846
        %v4837 = vmul.f32 %v4709, 0.7978846
        %v4838 = vmul.f32 %v4710, 0.7978846
        %v4839 = vmul.f32 %v4711, 0.7978846
        %v4840 = vmul.f32 %v4712, 0.7978846
        %v4841 = vmul.f32 %v4713, 0.7978846
        %v4842 = vmul.f32 %v4714, 0.7978846
        %v4843 = vmul.f32 %v4715, 0.7978846
        %v4844 = vmul.f32 %v4716, 0.7978846
        %v4845 = vmul.f32 %v4717, 0.7978846
        %v4846 = vmul.f32 %v4718, 0.7978846
        %v4847 = vmul.f32 %v4719, 0.7978846
        %v4848 = vmul.f32 %v4720, 0.7978846
        %v4849 = vmul.f32 %v4721, 0.7978846
        %v4850 = vmul.f32 %v4722, 0.7978846
        %v4851 = vtanh.pop %v4723
        %v4852 = vtanh.pop %v4724
        %v4853 = vtanh.pop %v4725
        %v4854 = vtanh.pop %v4726
        %v4855 = vtanh.pop %v4727
        %v4856 = vtanh.pop %v4728
        %v4857 = vtanh.pop %v4729
        %v4858 = vtanh.pop %v4730
        %v4859 = vtanh.pop %v4731
        %v4860 = vtanh.pop %v4732
        %v4861 = vtanh.pop %v4733
        %v4862 = vtanh.pop %v4734
        %v4863 = vtanh.pop %v4735
        %v4864 = vtanh.pop %v4736
        %v4865 = vtanh.pop %v4737
        %v4866 = vtanh.pop %v4738
        %v4867 = vtanh.pop %v4739
        %v4868 = vtanh.pop %v4740
        %v4869 = vtanh.pop %v4741
        %v4870 = vtanh.pop %v4742
        %v4871 = vtanh.pop %v4743
        %v4872 = vtanh.pop %v4744
        %v4873 = vtanh.pop %v4745
        %v4874 = vtanh.pop %v4746
        %v4875 = vtanh.pop %v4747
        %v4876 = vtanh.pop %v4748
        %v4877 = vtanh.pop %v4749
        %v4878 = vtanh.pop %v4750
        %v4879 = vtanh.pop %v4751
        %v4880 = vtanh.pop %v4752
        %v4881 = vtanh.pop %v4753
        %v4882 = vtanh.pop %v4754
        %v4883 = vtanh.pop %v4755
        %v4884 = vtanh.pop %v4756
        %v4885 = vtanh.pop %v4757
        %v4886 = vtanh.pop %v4758
        %v4887 = vtanh.pop %v4759
        %v4888 = vtanh.pop %v4760
        %v4889 = vtanh.pop %v4761
        %v4890 = vtanh.pop %v4762
        %v4891 = vtanh.pop %v4763
        %v4892 = vtanh.pop %v4764
        %v4893 = vtanh.pop %v4765
        %v4894 = vtanh.pop %v4766
        %v4895 = vtanh.pop %v4767
        %v4896 = vtanh.pop %v4768
        %v4897 = vtanh.pop %v4769
        %v4898 = vtanh.pop %v4770
        %v4899 = vtanh.pop %v4771
        %v4900 = vtanh.pop %v4772
        %v4901 = vtanh.pop %v4773
        %v4902 = vtanh.pop %v4774
        %v4903 = vtanh.pop %v4775
        %v4904 = vtanh.pop %v4776
        %v4905 = vtanh.pop %v4777
        %v4906 = vtanh.pop %v4778
        %v4907 = vtanh.pop %v4779
        %v4908 = vtanh.pop %v4780
        %v4909 = vtanh.pop %v4781
        %v4910 = vtanh.pop %v4782
        %v4911 = vtanh.pop %v4783
        %v4912 = vtanh.pop %v4784
        %v4913 = vtanh.pop %v4785
        %v4914 = vtanh.pop %v4786
        %v4915 = vtanh.pop %v4787
        %v4916 = vtanh.pop %v4788
        %v4917 = vtanh.pop %v4789
        %v4918 = vtanh.pop %v4790
        %v4919 = vtanh.pop %v4791
        %v4920 = vtanh.pop %v4792
        %v4921 = vtanh.pop %v4793
        %v4922 = vtanh.pop %v4794
        %v4923 = vtanh.pop %v4795
        %v4924 = vtanh.pop %v4796
        %v4925 = vtanh.pop %v4797
        %v4926 = vtanh.pop %v4798
        %v4927 = vtanh.pop %v4799
        %v4928 = vtanh.pop %v4800
        %v4929 = vtanh.pop %v4801
        %v4930 = vtanh.pop %v4802
        %v4931 = vtanh.pop %v4803
        %v4932 = vtanh.pop %v4804
        %v4933 = vtanh.pop %v4805
        %v4934 = vtanh.pop %v4806
        %v4935 = vtanh.pop %v4807
        %v4936 = vtanh.pop %v4808
        %v4937 = vtanh.pop %v4809
        %v4938 = vtanh.pop %v4810
        %v4939 = vtanh.pop %v4811
        %v4940 = vtanh.pop %v4812
        %v4941 = vtanh.pop %v4813
        %v4942 = vtanh.pop %v4814
        %v4943 = vtanh.pop %v4815
        %v4944 = vtanh.pop %v4816
        %v4945 = vtanh.pop %v4817
        %v4946 = vtanh.pop %v4818
        %v4947 = vtanh.pop %v4819
        %v4948 = vtanh.pop %v4820
        %v4949 = vtanh.pop %v4821
        %v4950 = vtanh.pop %v4822
        %v4951 = vtanh.pop %v4823
        %v4952 = vtanh.pop %v4824
        %v4953 = vtanh.pop %v4825
        %v4954 = vtanh.pop %v4826
        %v4955 = vtanh.pop %v4827
        %v4956 = vtanh.pop %v4828
        %v4957 = vtanh.pop %v4829
        %v4958 = vtanh.pop %v4830
        %v4959 = vtanh.pop %v4831
        %v4960 = vtanh.pop %v4832
        %v4961 = vtanh.pop %v4833
        %v4962 = vtanh.pop %v4834
        %v4963 = vtanh.pop %v4835
        %v4964 = vtanh.pop %v4836
        %v4965 = vtanh.pop %v4837
        %v4966 = vtanh.pop %v4838
        %v4967 = vtanh.pop %v4839
        %v4968 = vtanh.pop %v4840
        %v4969 = vtanh.pop %v4841
        %v4970 = vtanh.pop %v4842
        %v4971 = vtanh.pop %v4843
        %v4972 = vtanh.pop %v4844
        %v4973 = vtanh.pop %v4845
        %v4974 = vtanh.pop %v4846
        %v4975 = vtanh.pop %v4847
        %v4976 = vtanh.pop %v4848
        %v4977 = vtanh.pop %v4849
        %v4978 = vtanh.pop %v4850
        %v4979 = vadd.f32 %v4851, 1.0
        %v4980 = vadd.f32 %v4852, 1.0
        %v4981 = vadd.f32 %v4853, 1.0
        %v4982 = vadd.f32 %v4854, 1.0
        %v4983 = vadd.f32 %v4855, 1.0
        %v4984 = vadd.f32 %v4856, 1.0
        %v4985 = vadd.f32 %v4857, 1.0
        %v4986 = vadd.f32 %v4858, 1.0
        %v4987 = vadd.f32 %v4859, 1.0
        %v4988 = vadd.f32 %v4860, 1.0
        %v4989 = vadd.f32 %v4861, 1.0
        %v4990 = vadd.f32 %v4862, 1.0
        %v4991 = vadd.f32 %v4863, 1.0
        %v4992 = vadd.f32 %v4864, 1.0
        %v4993 = vadd.f32 %v4865, 1.0
        %v4994 = vadd.f32 %v4866, 1.0
        %v4995 = vadd.f32 %v4867, 1.0
        %v4996 = vadd.f32 %v4868, 1.0
        %v4997 = vadd.f32 %v4869, 1.0
        %v4998 = vadd.f32 %v4870, 1.0
        %v4999 = vadd.f32 %v4871, 1.0
        %v5000 = vadd.f32 %v4872, 1.0
        %v5001 = vadd.f32 %v4873, 1.0
        %v5002 = vadd.f32 %v4874, 1.0
        %v5003 = vadd.f32 %v4875, 1.0
        %v5004 = vadd.f32 %v4876, 1.0
        %v5005 = vadd.f32 %v4877, 1.0
        %v5006 = vadd.f32 %v4878, 1.0
        %v5007 = vadd.f32 %v4879, 1.0
        %v5008 = vadd.f32 %v4880, 1.0
        %v5009 = vadd.f32 %v4881, 1.0
        %v5010 = vadd.f32 %v4882, 1.0
        %v5011 = vadd.f32 %v4883, 1.0
        %v5012 = vadd.f32 %v4884, 1.0
        %v5013 = vadd.f32 %v4885, 1.0
        %v5014 = vadd.f32 %v4886, 1.0
        %v5015 = vadd.f32 %v4887, 1.0
        %v5016 = vadd.f32 %v4888, 1.0
        %v5017 = vadd.f32 %v4889, 1.0
        %v5018 = vadd.f32 %v4890, 1.0
        %v5019 = vadd.f32 %v4891, 1.0
        %v5020 = vadd.f32 %v4892, 1.0
        %v5021 = vadd.f32 %v4893, 1.0
        %v5022 = vadd.f32 %v4894, 1.0
        %v5023 = vadd.f32 %v4895, 1.0
        %v5024 = vadd.f32 %v4896, 1.0
        %v5025 = vadd.f32 %v4897, 1.0
        %v5026 = vadd.f32 %v4898, 1.0
        %v5027 = vadd.f32 %v4899, 1.0
        %v5028 = vadd.f32 %v4900, 1.0
        %v5029 = vadd.f32 %v4901, 1.0
        %v5030 = vadd.f32 %v4902, 1.0
        %v5031 = vadd.f32 %v4903, 1.0
        %v5032 = vadd.f32 %v4904, 1.0
        %v5033 = vadd.f32 %v4905, 1.0
        %v5034 = vadd.f32 %v4906, 1.0
        %v5035 = vadd.f32 %v4907, 1.0
        %v5036 = vadd.f32 %v4908, 1.0
        %v5037 = vadd.f32 %v4909, 1.0
        %v5038 = vadd.f32 %v4910, 1.0
        %v5039 = vadd.f32 %v4911, 1.0
        %v5040 = vadd.f32 %v4912, 1.0
        %v5041 = vadd.f32 %v4913, 1.0
        %v5042 = vadd.f32 %v4914, 1.0
        %v5043 = vadd.f32 %v4915, 1.0
        %v5044 = vadd.f32 %v4916, 1.0
        %v5045 = vadd.f32 %v4917, 1.0
        %v5046 = vadd.f32 %v4918, 1.0
        %v5047 = vadd.f32 %v4919, 1.0
        %v5048 = vadd.f32 %v4920, 1.0
        %v5049 = vadd.f32 %v4921, 1.0
        %v5050 = vadd.f32 %v4922, 1.0
        %v5051 = vadd.f32 %v4923, 1.0
        %v5052 = vadd.f32 %v4924, 1.0
        %v5053 = vadd.f32 %v4925, 1.0
        %v5054 = vadd.f32 %v4926, 1.0
        %v5055 = vadd.f32 %v4927, 1.0
        %v5056 = vadd.f32 %v4928, 1.0
        %v5057 = vadd.f32 %v4929, 1.0
        %v5058 = vadd.f32 %v4930, 1.0
        %v5059 = vadd.f32 %v4931, 1.0
        %v5060 = vadd.f32 %v4932, 1.0
        %v5061 = vadd.f32 %v4933, 1.0
        %v5062 = vadd.f32 %v4934, 1.0
        %v5063 = vadd.f32 %v4935, 1.0
        %v5064 = vadd.f32 %v4936, 1.0
        %v5065 = vadd.f32 %v4937, 1.0
        %v5066 = vadd.f32 %v4938, 1.0
        %v5067 = vadd.f32 %v4939, 1.0
        %v5068 = vadd.f32 %v4940, 1.0
        %v5069 = vadd.f32 %v4941, 1.0
        %v5070 = vadd.f32 %v4942, 1.0
        %v5071 = vadd.f32 %v4943, 1.0
        %v5072 = vadd.f32 %v4944, 1.0
        %v5073 = vadd.f32 %v4945, 1.0
        %v5074 = vadd.f32 %v4946, 1.0
        %v5075 = vadd.f32 %v4947, 1.0
        %v5076 = vadd.f32 %v4948, 1.0
        %v5077 = vadd.f32 %v4949, 1.0
        %v5078 = vadd.f32 %v4950, 1.0
        %v5079 = vadd.f32 %v4951, 1.0
        %v5080 = vadd.f32 %v4952, 1.0
        %v5081 = vadd.f32 %v4953, 1.0
        %v5082 = vadd.f32 %v4954, 1.0
        %v5083 = vadd.f32 %v4955, 1.0
        %v5084 = vadd.f32 %v4956, 1.0
        %v5085 = vadd.f32 %v4957, 1.0
        %v5086 = vadd.f32 %v4958, 1.0
        %v5087 = vadd.f32 %v4959, 1.0
        %v5088 = vadd.f32 %v4960, 1.0
        %v5089 = vadd.f32 %v4961, 1.0
        %v5090 = vadd.f32 %v4962, 1.0
        %v5091 = vadd.f32 %v4963, 1.0
        %v5092 = vadd.f32 %v4964, 1.0
        %v5093 = vadd.f32 %v4965, 1.0
        %v5094 = vadd.f32 %v4966, 1.0
        %v5095 = vadd.f32 %v4967, 1.0
        %v5096 = vadd.f32 %v4968, 1.0
        %v5097 = vadd.f32 %v4969, 1.0
        %v5098 = vadd.f32 %v4970, 1.0
        %v5099 = vadd.f32 %v4971, 1.0
        %v5100 = vadd.f32 %v4972, 1.0
        %v5101 = vadd.f32 %v4973, 1.0
        %v5102 = vadd.f32 %v4974, 1.0
        %v5103 = vadd.f32 %v4975, 1.0
        %v5104 = vadd.f32 %v4976, 1.0
        %v5105 = vadd.f32 %v4977, 1.0
        %v5106 = vadd.f32 %v4978, 1.0
        %v5107 = vmul.f32 %v4979, 0.5
        %v5108 = vmul.f32 %v4980, 0.5
        %v5109 = vmul.f32 %v4981, 0.5
        %v5110 = vmul.f32 %v4982, 0.5
        %v5111 = vmul.f32 %v4983, 0.5
        %v5112 = vmul.f32 %v4984, 0.5
        %v5113 = vmul.f32 %v4985, 0.5
        %v5114 = vmul.f32 %v4986, 0.5
        %v5115 = vmul.f32 %v4987, 0.5
        %v5116 = vmul.f32 %v4988, 0.5
        %v5117 = vmul.f32 %v4989, 0.5
        %v5118 = vmul.f32 %v4990, 0.5
        %v5119 = vmul.f32 %v4991, 0.5
        %v5120 = vmul.f32 %v4992, 0.5
        %v5121 = vmul.f32 %v4993, 0.5
        %v5122 = vmul.f32 %v4994, 0.5
        %v5123 = vmul.f32 %v4995, 0.5
        %v5124 = vmul.f32 %v4996, 0.5
        %v5125 = vmul.f32 %v4997, 0.5
        %v5126 = vmul.f32 %v4998, 0.5
        %v5127 = vmul.f32 %v4999, 0.5
        %v5128 = vmul.f32 %v5000, 0.5
        %v5129 = vmul.f32 %v5001, 0.5
        %v5130 = vmul.f32 %v5002, 0.5
        %v5131 = vmul.f32 %v5003, 0.5
        %v5132 = vmul.f32 %v5004, 0.5
        %v5133 = vmul.f32 %v5005, 0.5
        %v5134 = vmul.f32 %v5006, 0.5
        %v5135 = vmul.f32 %v5007, 0.5
        %v5136 = vmul.f32 %v5008, 0.5
        %v5137 = vmul.f32 %v5009, 0.5
        %v5138 = vmul.f32 %v5010, 0.5
        %v5139 = vmul.f32 %v5011, 0.5
        %v5140 = vmul.f32 %v5012, 0.5
        %v5141 = vmul.f32 %v5013, 0.5
        %v5142 = vmul.f32 %v5014, 0.5
        %v5143 = vmul.f32 %v5015, 0.5
        %v5144 = vmul.f32 %v5016, 0.5
        %v5145 = vmul.f32 %v5017, 0.5
        %v5146 = vmul.f32 %v5018, 0.5
        %v5147 = vmul.f32 %v5019, 0.5
        %v5148 = vmul.f32 %v5020, 0.5
        %v5149 = vmul.f32 %v5021, 0.5
        %v5150 = vmul.f32 %v5022, 0.5
        %v5151 = vmul.f32 %v5023, 0.5
        %v5152 = vmul.f32 %v5024, 0.5
        %v5153 = vmul.f32 %v5025, 0.5
        %v5154 = vmul.f32 %v5026, 0.5
        %v5155 = vmul.f32 %v5027, 0.5
        %v5156 = vmul.f32 %v5028, 0.5
        %v5157 = vmul.f32 %v5029, 0.5
        %v5158 = vmul.f32 %v5030, 0.5
        %v5159 = vmul.f32 %v5031, 0.5
        %v5160 = vmul.f32 %v5032, 0.5
        %v5161 = vmul.f32 %v5033, 0.5
        %v5162 = vmul.f32 %v5034, 0.5
        %v5163 = vmul.f32 %v5035, 0.5
        %v5164 = vmul.f32 %v5036, 0.5
        %v5165 = vmul.f32 %v5037, 0.5
        %v5166 = vmul.f32 %v5038, 0.5
        %v5167 = vmul.f32 %v5039, 0.5
        %v5168 = vmul.f32 %v5040, 0.5
        %v5169 = vmul.f32 %v5041, 0.5
        %v5170 = vmul.f32 %v5042, 0.5
        %v5171 = vmul.f32 %v5043, 0.5
        %v5172 = vmul.f32 %v5044, 0.5
        %v5173 = vmul.f32 %v5045, 0.5
        %v5174 = vmul.f32 %v5046, 0.5
        %v5175 = vmul.f32 %v5047, 0.5
        %v5176 = vmul.f32 %v5048, 0.5
        %v5177 = vmul.f32 %v5049, 0.5
        %v5178 = vmul.f32 %v5050, 0.5
        %v5179 = vmul.f32 %v5051, 0.5
        %v5180 = vmul.f32 %v5052, 0.5
        %v5181 = vmul.f32 %v5053, 0.5
        %v5182 = vmul.f32 %v5054, 0.5
        %v5183 = vmul.f32 %v5055, 0.5
        %v5184 = vmul.f32 %v5056, 0.5
        %v5185 = vmul.f32 %v5057, 0.5
        %v5186 = vmul.f32 %v5058, 0.5
        %v5187 = vmul.f32 %v5059, 0.5
        %v5188 = vmul.f32 %v5060, 0.5
        %v5189 = vmul.f32 %v5061, 0.5
        %v5190 = vmul.f32 %v5062, 0.5
        %v5191 = vmul.f32 %v5063, 0.5
        %v5192 = vmul.f32 %v5064, 0.5
        %v5193 = vmul.f32 %v5065, 0.5
        %v5194 = vmul.f32 %v5066, 0.5
        %v5195 = vmul.f32 %v5067, 0.5
        %v5196 = vmul.f32 %v5068, 0.5
        %v5197 = vmul.f32 %v5069, 0.5
        %v5198 = vmul.f32 %v5070, 0.5
        %v5199 = vmul.f32 %v5071, 0.5
        %v5200 = vmul.f32 %v5072, 0.5
        %v5201 = vmul.f32 %v5073, 0.5
        %v5202 = vmul.f32 %v5074, 0.5
        %v5203 = vmul.f32 %v5075, 0.5
        %v5204 = vmul.f32 %v5076, 0.5
        %v5205 = vmul.f32 %v5077, 0.5
        %v5206 = vmul.f32 %v5078, 0.5
        %v5207 = vmul.f32 %v5079, 0.5
        %v5208 = vmul.f32 %v5080, 0.5
        %v5209 = vmul.f32 %v5081, 0.5
        %v5210 = vmul.f32 %v5082, 0.5
        %v5211 = vmul.f32 %v5083, 0.5
        %v5212 = vmul.f32 %v5084, 0.5
        %v5213 = vmul.f32 %v5085, 0.5
        %v5214 = vmul.f32 %v5086, 0.5
        %v5215 = vmul.f32 %v5087, 0.5
        %v5216 = vmul.f32 %v5088, 0.5
        %v5217 = vmul.f32 %v5089, 0.5
        %v5218 = vmul.f32 %v5090, 0.5
        %v5219 = vmul.f32 %v5091, 0.5
        %v5220 = vmul.f32 %v5092, 0.5
        %v5221 = vmul.f32 %v5093, 0.5
        %v5222 = vmul.f32 %v5094, 0.5
        %v5223 = vmul.f32 %v5095, 0.5
        %v5224 = vmul.f32 %v5096, 0.5
        %v5225 = vmul.f32 %v5097, 0.5
        %v5226 = vmul.f32 %v5098, 0.5
        %v5227 = vmul.f32 %v5099, 0.5
        %v5228 = vmul.f32 %v5100, 0.5
        %v5229 = vmul.f32 %v5101, 0.5
        %v5230 = vmul.f32 %v5102, 0.5
        %v5231 = vmul.f32 %v5103, 0.5
        %v5232 = vmul.f32 %v5104, 0.5
        %v5233 = vmul.f32 %v5105, 0.5
        %v5234 = vmul.f32 %v5106, 0.5
        %v5235 = vmul.f32 %v3860, %v5107
        %v5236 = vmul.f32 %v3862, %v5108
        %v5237 = vmul.f32 %v4053, %v5109
        %v5238 = vmul.f32 %v4055, %v5110
        %v5239 = vmul.f32 %v3864, %v5111
        %v5240 = vmul.f32 %v3866, %v5112
        %v5241 = vmul.f32 %v4057, %v5113
        %v5242 = vmul.f32 %v4059, %v5114
        %v5243 = vmul.f32 %v3870, %v5115
        %v5244 = vmul.f32 %v3872, %v5116
        %v5245 = vmul.f32 %v4063, %v5117
        %v5246 = vmul.f32 %v4065, %v5118
        %v5247 = vmul.f32 %v3874, %v5119
        %v5248 = vmul.f32 %v3876, %v5120
        %v5249 = vmul.f32 %v4067, %v5121
        %v5250 = vmul.f32 %v4069, %v5122
        %v5251 = vmul.f32 %v3880, %v5123
        %v5252 = vmul.f32 %v3882, %v5124
        %v5253 = vmul.f32 %v4073, %v5125
        %v5254 = vmul.f32 %v4075, %v5126
        %v5255 = vmul.f32 %v3884, %v5127
        %v5256 = vmul.f32 %v3886, %v5128
        %v5257 = vmul.f32 %v4077, %v5129
        %v5258 = vmul.f32 %v4079, %v5130
        %v5259 = vmul.f32 %v3890, %v5131
        %v5260 = vmul.f32 %v3892, %v5132
        %v5261 = vmul.f32 %v4083, %v5133
        %v5262 = vmul.f32 %v4085, %v5134
        %v5263 = vmul.f32 %v3894, %v5135
        %v5264 = vmul.f32 %v3896, %v5136
        %v5265 = vmul.f32 %v4087, %v5137
        %v5266 = vmul.f32 %v4089, %v5138
        %v5267 = vmul.f32 %v3900, %v5139
        %v5268 = vmul.f32 %v3902, %v5140
        %v5269 = vmul.f32 %v4093, %v5141
        %v5270 = vmul.f32 %v4095, %v5142
        %v5271 = vmul.f32 %v3904, %v5143
        %v5272 = vmul.f32 %v3906, %v5144
        %v5273 = vmul.f32 %v4097, %v5145
        %v5274 = vmul.f32 %v4099, %v5146
        %v5275 = vmul.f32 %v3910, %v5147
        %v5276 = vmul.f32 %v3912, %v5148
        %v5277 = vmul.f32 %v4103, %v5149
        %v5278 = vmul.f32 %v4105, %v5150
        %v5279 = vmul.f32 %v3914, %v5151
        %v5280 = vmul.f32 %v3916, %v5152
        %v5281 = vmul.f32 %v4107, %v5153
        %v5282 = vmul.f32 %v4109, %v5154
        %v5283 = vmul.f32 %v3920, %v5155
        %v5284 = vmul.f32 %v3922, %v5156
        %v5285 = vmul.f32 %v4113, %v5157
        %v5286 = vmul.f32 %v4115, %v5158
        %v5287 = vmul.f32 %v3924, %v5159
        %v5288 = vmul.f32 %v3926, %v5160
        %v5289 = vmul.f32 %v4117, %v5161
        %v5290 = vmul.f32 %v4119, %v5162
        %v5291 = vmul.f32 %v3930, %v5163
        %v5292 = vmul.f32 %v3932, %v5164
        %v5293 = vmul.f32 %v4123, %v5165
        %v5294 = vmul.f32 %v4125, %v5166
        %v5295 = vmul.f32 %v3934, %v5167
        %v5296 = vmul.f32 %v3936, %v5168
        %v5297 = vmul.f32 %v4127, %v5169
        %v5298 = vmul.f32 %v4129, %v5170
        %v5299 = vmul.f32 %v3940, %v5171
        %v5300 = vmul.f32 %v3942, %v5172
        %v5301 = vmul.f32 %v4133, %v5173
        %v5302 = vmul.f32 %v4135, %v5174
        %v5303 = vmul.f32 %v3944, %v5175
        %v5304 = vmul.f32 %v3946, %v5176
        %v5305 = vmul.f32 %v4137, %v5177
        %v5306 = vmul.f32 %v4139, %v5178
        %v5307 = vmul.f32 %v3950, %v5179
        %v5308 = vmul.f32 %v3952, %v5180
        %v5309 = vmul.f32 %v4143, %v5181
        %v5310 = vmul.f32 %v4145, %v5182
        %v5311 = vmul.f32 %v3954, %v5183
        %v5312 = vmul.f32 %v3956, %v5184
        %v5313 = vmul.f32 %v4147, %v5185
        %v5314 = vmul.f32 %v4149, %v5186
        %v5315 = vmul.f32 %v3960, %v5187
        %v5316 = vmul.f32 %v3962, %v5188
        %v5317 = vmul.f32 %v4153, %v5189
        %v5318 = vmul.f32 %v4155, %v5190
        %v5319 = vmul.f32 %v3964, %v5191
        %v5320 = vmul.f32 %v3966, %v5192
        %v5321 = vmul.f32 %v4157, %v5193
        %v5322 = vmul.f32 %v4159, %v5194
        %v5323 = vmul.f32 %v3970, %v5195
        %v5324 = vmul.f32 %v3972, %v5196
        %v5325 = vmul.f32 %v4163, %v5197
        %v5326 = vmul.f32 %v4165, %v5198
        %v5327 = vmul.f32 %v3974, %v5199
        %v5328 = vmul.f32 %v3976, %v5200
        %v5329 = vmul.f32 %v4167, %v5201
        %v5330 = vmul.f32 %v4169, %v5202
        %v5331 = vmul.f32 %v3980, %v5203
        %v5332 = vmul.f32 %v3982, %v5204
        %v5333 = vmul.f32 %v4173, %v5205
        %v5334 = vmul.f32 %v4175, %v5206
        %v5335 = vmul.f32 %v3984, %v5207
        %v5336 = vmul.f32 %v3986, %v5208
        %v5337 = vmul.f32 %v4177, %v5209
        %v5338 = vmul.f32 %v4179, %v5210
        %v5339 = vmul.f32 %v3990, %v5211
        %v5340 = vmul.f32 %v3992, %v5212
        %v5341 = vmul.f32 %v4183, %v5213
        %v5342 = vmul.f32 %v4185, %v5214
        %v5343 = vmul.f32 %v3994, %v5215
        %v5344 = vmul.f32 %v3996, %v5216
        %v5345 = vmul.f32 %v4187, %v5217
        %v5346 = vmul.f32 %v4189, %v5218
        %v5347 = vmul.f32 %v4000, %v5219
        %v5348 = vmul.f32 %v4002, %v5220
        %v5349 = vmul.f32 %v4193, %v5221
        %v5350 = vmul.f32 %v4195, %v5222
        %v5351 = vmul.f32 %v4004, %v5223
        %v5352 = vmul.f32 %v4006, %v5224
        %v5353 = vmul.f32 %v4197, %v5225
        %v5354 = vmul.f32 %v4199, %v5226
        %v5355 = vmul.f32 %v4010, %v5227
        %v5356 = vmul.f32 %v4012, %v5228
        %v5357 = vmul.f32 %v4203, %v5229
        %v5358 = vmul.f32 %v4205, %v5230
        %v5359 = vmul.f32 %v4014, %v5231
        %v5360 = vmul.f32 %v4016, %v5232
        %v5361 = vmul.f32 %v4207, %v5233
        %v5362 = vmul.f32 %v4209, %v5234
        %v5363 = vld [vmem:[#allocation2] sm:$0xff]
        %v5364 = vld [vmem:[#allocation2 + $0x8] sm:$0xff]
        %v5365 = vld [vmem:[#allocation2 + $0x10] sm:$0xff]
        %v5366 = vld [vmem:[#allocation2 + $0x18] sm:$0xff]
        %v5367 = vld [vmem:[#allocation2 + $0x20] sm:$0xff]
        %v5368 = vld [vmem:[#allocation2 + $0x28] sm:$0xff]
        %v5369 = vld [vmem:[#allocation2 + $0x30] sm:$0xff]
        %v5370 = vld [vmem:[#allocation2 + $0x38] sm:$0xff]
        %v5371 = vld [vmem:[#allocation2 + $0x40] sm:$0xff]
        %v5372 = vld [vmem:[#allocation2 + $0x48] sm:$0xff]
        %v5373 = vld [vmem:[#allocation2 + $0x50] sm:$0xff]
        %v5374 = vld [vmem:[#allocation2 + $0x58] sm:$0xff]
        %v5375 = vld [vmem:[#allocation2 + $0x60] sm:$0xff]
        %v5376 = vld [vmem:[#allocation2 + $0x68] sm:$0xff]
        %v5377 = vld [vmem:[#allocation2 + $0x70] sm:$0xff]
        %v5378 = vld [vmem:[#allocation2 + $0x78] sm:$0xff]
        %v5379 = vld [vmem:[#allocation2 + $0x80] sm:$0xff]
        %v5380 = vld [vmem:[#allocation2 + $0x88] sm:$0xff]
        %v5381 = vld [vmem:[#allocation2 + $0x90] sm:$0xff]
        %v5382 = vld [vmem:[#allocation2 + $0x98] sm:$0xff]
        %v5383 = vld [vmem:[#allocation2 + $0xa0] sm:$0xff]
        %v5384 = vld [vmem:[#allocation2 + $0xa8] sm:$0xff]
        %v5385 = vld [vmem:[#allocation2 + $0xb0] sm:$0xff]
        %v5386 = vld [vmem:[#allocation2 + $0xb8] sm:$0xff]
        %v5387 = vld [vmem:[#allocation2 + $0xc0] sm:$0xff]
        %v5388 = vld [vmem:[#allocation2 + $0xc8] sm:$0xff]
        %v5389 = vld [vmem:[#allocation2 + $0xd0] sm:$0xff]
        %v5390 = vld [vmem:[#allocation2 + $0xd8] sm:$0xff]
        %v5391 = vld [vmem:[#allocation2 + $0xe0] sm:$0xff]
        %v5392 = vld [vmem:[#allocation2 + $0xe8] sm:$0xff]
        %v5393 = vld [vmem:[#allocation2 + $0xf0] sm:$0xff]
        %v5394 = vld [vmem:[#allocation2 + $0xf8] sm:$0xff]
        %v5395 = vld [vmem:[#allocation2 + $0x100] sm:$0xff]
        %v5396 = vld [vmem:[#allocation2 + $0x108] sm:$0xff]
        %v5397 = vld [vmem:[#allocation2 + $0x110] sm:$0xff]
        %v5398 = vld [vmem:[#allocation2 + $0x118] sm:$0xff]
        %v5399 = vld [vmem:[#allocation2 + $0x120] sm:$0xff]
        %v5400 = vld [vmem:[#allocation2 + $0x128] sm:$0xff]
        %v5401 = vld [vmem:[#allocation2 + $0x130] sm:$0xff]
        %v5402 = vld [vmem:[#allocation2 + $0x138] sm:$0xff]
        %v5403 = vld [vmem:[#allocation2 + $0x140] sm:$0xff]
        %v5404 = vld [vmem:[#allocation2 + $0x148] sm:$0xff]
        %v5405 = vld [vmem:[#allocation2 + $0x150] sm:$0xff]
        %v5406 = vld [vmem:[#allocation2 + $0x158] sm:$0xff]
        %v5407 = vld [vmem:[#allocation2 + $0x160] sm:$0xff]
        %v5408 = vld [vmem:[#allocation2 + $0x168] sm:$0xff]
        %v5409 = vld [vmem:[#allocation2 + $0x170] sm:$0xff]
        %v5410 = vld [vmem:[#allocation2 + $0x178] sm:$0xff]
        %v5411 = vld [vmem:[#allocation2 + $0x180] sm:$0xff]
        %v5412 = vld [vmem:[#allocation2 + $0x188] sm:$0xff]
        %v5413 = vld [vmem:[#allocation2 + $0x190] sm:$0xff]
        %v5414 = vld [vmem:[#allocation2 + $0x198] sm:$0xff]
        %v5415 = vld [vmem:[#allocation2 + $0x1a0] sm:$0xff]
        %v5416 = vld [vmem:[#allocation2 + $0x1a8] sm:$0xff]
        %v5417 = vld [vmem:[#allocation2 + $0x1b0] sm:$0xff]
        %v5418 = vld [vmem:[#allocation2 + $0x1b8] sm:$0xff]
        %v5419 = vld [vmem:[#allocation2 + $0x1c0] sm:$0xff]
        %v5420 = vld [vmem:[#allocation2 + $0x1c8] sm:$0xff]
        %v5421 = vld [vmem:[#allocation2 + $0x1d0] sm:$0xff]
        %v5422 = vld [vmem:[#allocation2 + $0x1d8] sm:$0xff]
        %v5423 = vld [vmem:[#allocation2 + $0x1e0] sm:$0xff]
        %v5424 = vld [vmem:[#allocation2 + $0x1e8] sm:$0xff]
        %v5425 = vld [vmem:[#allocation2 + $0x1f0] sm:$0xff]
        %v5426 = vld [vmem:[#allocation2 + $0x1f8] sm:$0xff]
        %v5427 = vpack.c.bf16 %v5239, %v5235
        %v5428 = vpack.c.bf16 %v5240, %v5236
        %v5429 = vpack.c.bf16 %v5241, %v5237
        %v5430 = vpack.c.bf16 %v5242, %v5238
        %v5431 = vpack.c.bf16 %v5247, %v5243
        %v5432 = vpack.c.bf16 %v5248, %v5244
        %v5433 = vpack.c.bf16 %v5249, %v5245
        %v5434 = vpack.c.bf16 %v5250, %v5246
        %v5435 = vpack.c.bf16 %v5255, %v5251
        %v5436 = vpack.c.bf16 %v5256, %v5252
        %v5437 = vpack.c.bf16 %v5257, %v5253
        %v5438 = vpack.c.bf16 %v5258, %v5254
        %v5439 = vpack.c.bf16 %v5263, %v5259
        %v5440 = vpack.c.bf16 %v5264, %v5260
        %v5441 = vpack.c.bf16 %v5265, %v5261
        %v5442 = vpack.c.bf16 %v5266, %v5262
        %v5443 = vpack.c.bf16 %v5271, %v5267
        %v5444 = vpack.c.bf16 %v5272, %v5268
        %v5445 = vpack.c.bf16 %v5273, %v5269
        %v5446 = vpack.c.bf16 %v5274, %v5270
        %v5447 = vpack.c.bf16 %v5279, %v5275
        %v5448 = vpack.c.bf16 %v5280, %v5276
        %v5449 = vpack.c.bf16 %v5281, %v5277
        %v5450 = vpack.c.bf16 %v5282, %v5278
        %v5451 = vpack.c.bf16 %v5287, %v5283
        %v5452 = vpack.c.bf16 %v5288, %v5284
        %v5453 = vpack.c.bf16 %v5289, %v5285
        %v5454 = vpack.c.bf16 %v5290, %v5286
        %v5455 = vpack.c.bf16 %v5295, %v5291
        %v5456 = vpack.c.bf16 %v5296, %v5292
        %v5457 = vpack.c.bf16 %v5297, %v5293
        %v5458 = vpack.c.bf16 %v5298, %v5294
        %v5459 = vpack.c.bf16 %v5303, %v5299
        %v5460 = vpack.c.bf16 %v5304, %v5300
        %v5461 = vpack.c.bf16 %v5305, %v5301
        %v5462 = vpack.c.bf16 %v5306, %v5302
        %v5463 = vpack.c.bf16 %v5311, %v5307
        %v5464 = vpack.c.bf16 %v5312, %v5308
        %v5465 = vpack.c.bf16 %v5313, %v5309
        %v5466 = vpack.c.bf16 %v5314, %v5310
        %v5467 = vpack.c.bf16 %v5319, %v5315
        %v5468 = vpack.c.bf16 %v5320, %v5316
        %v5469 = vpack.c.bf16 %v5321, %v5317
        %v5470 = vpack.c.bf16 %v5322, %v5318
        %v5471 = vpack.c.bf16 %v5327, %v5323
        %v5472 = vpack.c.bf16 %v5328, %v5324
        %v5473 = vpack.c.bf16 %v5329, %v5325
        %v5474 = vpack.c.bf16 %v5330, %v5326
        %v5475 = vpack.c.bf16 %v5335, %v5331
        %v5476 = vpack.c.bf16 %v5336, %v5332
        %v5477 = vpack.c.bf16 %v5337, %v5333
        %v5478 = vpack.c.bf16 %v5338, %v5334
        %v5479 = vpack.c.bf16 %v5343, %v5339
        %v5480 = vpack.c.bf16 %v5344, %v5340
        %v5481 = vpack.c.bf16 %v5345, %v5341
        %v5482 = vpack.c.bf16 %v5346, %v5342
        %v5483 = vpack.c.bf16 %v5351, %v5347
        %v5484 = vpack.c.bf16 %v5352, %v5348
        %v5485 = vpack.c.bf16 %v5353, %v5349
        %v5486 = vpack.c.bf16 %v5354, %v5350
        %v5487 = vpack.c.bf16 %v5359, %v5355
        %v5488 = vpack.c.bf16 %v5360, %v5356
        %v5489 = vpack.c.bf16 %v5361, %v5357
        %v5490 = vpack.c.bf16 %v5362, %v5358
        %s5491 = scalar_lea.vmem [#allocation8], 512
        %v5492 = vld [vmem:[%s5491] sm:$0xff]
        %v5493 = vld [vmem:[%s5491 + $0x8] sm:$0xff]
        %v5494 = vld [vmem:[%s5491 + $0x10] sm:$0xff]
        %v5495 = vld [vmem:[%s5491 + $0x18] sm:$0xff]
        %v5496 = vld [vmem:[%s5491 + $0x20] sm:$0xff]
        %v5497 = vld [vmem:[%s5491 + $0x28] sm:$0xff]
        %v5498 = vld [vmem:[%s5491 + $0x30] sm:$0xff]
        %v5499 = vld [vmem:[%s5491 + $0x38] sm:$0xff]
        %v5500 = vld [vmem:[%s5491 + $0x40] sm:$0xff]
        %v5501 = vld [vmem:[%s5491 + $0x48] sm:$0xff]
        %v5502 = vld [vmem:[%s5491 + $0x50] sm:$0xff]
        %v5503 = vld [vmem:[%s5491 + $0x58] sm:$0xff]
        %v5504 = vld [vmem:[%s5491 + $0x60] sm:$0xff]
        %v5505 = vld [vmem:[%s5491 + $0x68] sm:$0xff]
        %v5506 = vld [vmem:[%s5491 + $0x70] sm:$0xff]
        %v5507 = vld [vmem:[%s5491 + $0x78] sm:$0xff]
        %v5508 = vld [vmem:[%s5491 + $0x80] sm:$0xff]
        %v5509 = vld [vmem:[%s5491 + $0x88] sm:$0xff]
        %v5510 = vld [vmem:[%s5491 + $0x90] sm:$0xff]
        %v5511 = vld [vmem:[%s5491 + $0x98] sm:$0xff]
        %v5512 = vld [vmem:[%s5491 + $0xa0] sm:$0xff]
        %v5513 = vld [vmem:[%s5491 + $0xa8] sm:$0xff]
        %v5514 = vld [vmem:[%s5491 + $0xb0] sm:$0xff]
        %v5515 = vld [vmem:[%s5491 + $0xb8] sm:$0xff]
        %v5516 = vld [vmem:[%s5491 + $0xc0] sm:$0xff]
        %v5517 = vld [vmem:[%s5491 + $0xc8] sm:$0xff]
        %v5518 = vld [vmem:[%s5491 + $0xd0] sm:$0xff]
        %v5519 = vld [vmem:[%s5491 + $0xd8] sm:$0xff]
        %v5520 = vld [vmem:[%s5491 + $0xe0] sm:$0xff]
        %v5521 = vld [vmem:[%s5491 + $0xe8] sm:$0xff]
        %v5522 = vld [vmem:[%s5491 + $0xf0] sm:$0xff]
        %v5523 = vld [vmem:[%s5491 + $0xf8] sm:$0xff]
        %v5524 = vld [vmem:[%s5491 + $0x100] sm:$0xff]
        %v5525 = vld [vmem:[%s5491 + $0x108] sm:$0xff]
        %v5526 = vld [vmem:[%s5491 + $0x110] sm:$0xff]
        %v5527 = vld [vmem:[%s5491 + $0x118] sm:$0xff]
        %v5528 = vld [vmem:[%s5491 + $0x120] sm:$0xff]
        %v5529 = vld [vmem:[%s5491 + $0x128] sm:$0xff]
        %v5530 = vld [vmem:[%s5491 + $0x130] sm:$0xff]
        %v5531 = vld [vmem:[%s5491 + $0x138] sm:$0xff]
        %v5532 = vld [vmem:[%s5491 + $0x140] sm:$0xff]
        %v5533 = vld [vmem:[%s5491 + $0x148] sm:$0xff]
        %v5534 = vld [vmem:[%s5491 + $0x150] sm:$0xff]
        %v5535 = vld [vmem:[%s5491 + $0x158] sm:$0xff]
        %v5536 = vld [vmem:[%s5491 + $0x160] sm:$0xff]
        %v5537 = vld [vmem:[%s5491 + $0x168] sm:$0xff]
        %v5538 = vld [vmem:[%s5491 + $0x170] sm:$0xff]
        %v5539 = vld [vmem:[%s5491 + $0x178] sm:$0xff]
        %v5540 = vld [vmem:[%s5491 + $0x180] sm:$0xff]
        %v5541 = vld [vmem:[%s5491 + $0x188] sm:$0xff]
        %v5542 = vld [vmem:[%s5491 + $0x190] sm:$0xff]
        %v5543 = vld [vmem:[%s5491 + $0x198] sm:$0xff]
        %v5544 = vld [vmem:[%s5491 + $0x1a0] sm:$0xff]
        %v5545 = vld [vmem:[%s5491 + $0x1a8] sm:$0xff]
        %v5546 = vld [vmem:[%s5491 + $0x1b0] sm:$0xff]
        %v5547 = vld [vmem:[%s5491 + $0x1b8] sm:$0xff]
        %v5548 = vld [vmem:[%s5491 + $0x1c0] sm:$0xff]
        %v5549 = vld [vmem:[%s5491 + $0x1c8] sm:$0xff]
        %v5550 = vld [vmem:[%s5491 + $0x1d0] sm:$0xff]
        %v5551 = vld [vmem:[%s5491 + $0x1d8] sm:$0xff]
        %v5552 = vld [vmem:[%s5491 + $0x1e0] sm:$0xff]
        %v5553 = vld [vmem:[%s5491 + $0x1e8] sm:$0xff]
        %v5554 = vld [vmem:[%s5491 + $0x1f0] sm:$0xff]
        %v5555 = vld [vmem:[%s5491 + $0x1f8] sm:$0xff]
        %v5620 = vunpack.c.l.b16 %v5492
        %v5621 = vunpack.c.h.b16 %v5492
        %v5622 = vunpack.c.l.b16 %v5493
        %v5623 = vunpack.c.h.b16 %v5493
        %v5624 = vunpack.c.l.b16 %v5494
        %v5625 = vunpack.c.h.b16 %v5494
        %v5626 = vunpack.c.l.b16 %v5495
        %v5627 = vunpack.c.h.b16 %v5495
        %v5628 = vunpack.c.l.b16 %v5496
        %v5629 = vunpack.c.h.b16 %v5496
        %v5630 = vunpack.c.l.b16 %v5497
        %v5631 = vunpack.c.h.b16 %v5497
        %v5632 = vunpack.c.l.b16 %v5498
        %v5633 = vunpack.c.h.b16 %v5498
        %v5634 = vunpack.c.l.b16 %v5499
        %v5635 = vunpack.c.h.b16 %v5499
        %v5636 = vunpack.c.l.b16 %v5500
        %v5637 = vunpack.c.h.b16 %v5500
        %v5638 = vunpack.c.l.b16 %v5501
        %v5639 = vunpack.c.h.b16 %v5501
        %v5640 = vunpack.c.l.b16 %v5502
        %v5641 = vunpack.c.h.b16 %v5502
        %v5642 = vunpack.c.l.b16 %v5503
        %v5643 = vunpack.c.h.b16 %v5503
        %v5644 = vunpack.c.l.b16 %v5504
        %v5645 = vunpack.c.h.b16 %v5504
        %v5646 = vunpack.c.l.b16 %v5505
        %v5647 = vunpack.c.h.b16 %v5505
        %v5648 = vunpack.c.l.b16 %v5506
        %v5649 = vunpack.c.h.b16 %v5506
        %v5650 = vunpack.c.l.b16 %v5507
        %v5651 = vunpack.c.h.b16 %v5507
        %v5652 = vunpack.c.l.b16 %v5508
        %v5653 = vunpack.c.h.b16 %v5508
        %v5654 = vunpack.c.l.b16 %v5509
        %v5655 = vunpack.c.h.b16 %v5509
        %v5656 = vunpack.c.l.b16 %v5510
        %v5657 = vunpack.c.h.b16 %v5510
        %v5658 = vunpack.c.l.b16 %v5511
        %v5659 = vunpack.c.h.b16 %v5511
        %v5660 = vunpack.c.l.b16 %v5512
        %v5661 = vunpack.c.h.b16 %v5512
        %v5662 = vunpack.c.l.b16 %v5513
        %v5663 = vunpack.c.h.b16 %v5513
        %v5664 = vunpack.c.l.b16 %v5514
        %v5665 = vunpack.c.h.b16 %v5514
        %v5666 = vunpack.c.l.b16 %v5515
        %v5667 = vunpack.c.h.b16 %v5515
        %v5668 = vunpack.c.l.b16 %v5516
        %v5669 = vunpack.c.h.b16 %v5516
        %v5670 = vunpack.c.l.b16 %v5517
        %v5671 = vunpack.c.h.b16 %v5517
        %v5672 = vunpack.c.l.b16 %v5518
        %v5673 = vunpack.c.h.b16 %v5518
        %v5674 = vunpack.c.l.b16 %v5519
        %v5675 = vunpack.c.h.b16 %v5519
        %v5676 = vunpack.c.l.b16 %v5520
        %v5677 = vunpack.c.h.b16 %v5520
        %v5678 = vunpack.c.l.b16 %v5521
        %v5679 = vunpack.c.h.b16 %v5521
        %v5680 = vunpack.c.l.b16 %v5522
        %v5681 = vunpack.c.h.b16 %v5522
        %v5682 = vunpack.c.l.b16 %v5523
        %v5683 = vunpack.c.h.b16 %v5523
        %v5684 = vunpack.c.l.b16 %v5524
        %v5685 = vunpack.c.h.b16 %v5524
        %v5686 = vunpack.c.l.b16 %v5525
        %v5687 = vunpack.c.h.b16 %v5525
        %v5688 = vunpack.c.l.b16 %v5526
        %v5689 = vunpack.c.h.b16 %v5526
        %v5690 = vunpack.c.l.b16 %v5527
        %v5691 = vunpack.c.h.b16 %v5527
        %v5692 = vunpack.c.l.b16 %v5528
        %v5693 = vunpack.c.h.b16 %v5528
        %v5694 = vunpack.c.l.b16 %v5529
        %v5695 = vunpack.c.h.b16 %v5529
        %v5696 = vunpack.c.l.b16 %v5530
        %v5697 = vunpack.c.h.b16 %v5530
        %v5698 = vunpack.c.l.b16 %v5531
        %v5699 = vunpack.c.h.b16 %v5531
        %v5700 = vunpack.c.l.b16 %v5532
        %v5701 = vunpack.c.h.b16 %v5532
        %v5702 = vunpack.c.l.b16 %v5533
        %v5703 = vunpack.c.h.b16 %v5533
        %v5704 = vunpack.c.l.b16 %v5534
        %v5705 = vunpack.c.h.b16 %v5534
        %v5706 = vunpack.c.l.b16 %v5535
        %v5707 = vunpack.c.h.b16 %v5535
        %v5708 = vunpack.c.l.b16 %v5536
        %v5709 = vunpack.c.h.b16 %v5536
        %v5710 = vunpack.c.l.b16 %v5537
        %v5711 = vunpack.c.h.b16 %v5537
        %v5712 = vunpack.c.l.b16 %v5538
        %v5713 = vunpack.c.h.b16 %v5538
        %v5714 = vunpack.c.l.b16 %v5539
        %v5715 = vunpack.c.h.b16 %v5539
        %v5716 = vunpack.c.l.b16 %v5540
        %v5717 = vunpack.c.h.b16 %v5540
        %v5718 = vunpack.c.l.b16 %v5541
        %v5719 = vunpack.c.h.b16 %v5541
        %v5720 = vunpack.c.l.b16 %v5542
        %v5721 = vunpack.c.h.b16 %v5542
        %v5722 = vunpack.c.l.b16 %v5543
        %v5723 = vunpack.c.h.b16 %v5543
        %v5724 = vunpack.c.l.b16 %v5544
        %v5725 = vunpack.c.h.b16 %v5544
        %v5726 = vunpack.c.l.b16 %v5545
        %v5727 = vunpack.c.h.b16 %v5545
        %v5728 = vunpack.c.l.b16 %v5546
        %v5729 = vunpack.c.h.b16 %v5546
        %v5730 = vunpack.c.l.b16 %v5547
        %v5731 = vunpack.c.h.b16 %v5547
        %v5732 = vunpack.c.l.b16 %v5548
        %v5733 = vunpack.c.h.b16 %v5548
        %v5734 = vunpack.c.l.b16 %v5549
        %v5735 = vunpack.c.h.b16 %v5549
        %v5736 = vunpack.c.l.b16 %v5550
        %v5737 = vunpack.c.h.b16 %v5550
        %v5738 = vunpack.c.l.b16 %v5551
        %v5739 = vunpack.c.h.b16 %v5551
        %v5740 = vunpack.c.l.b16 %v5552
        %v5741 = vunpack.c.h.b16 %v5552
        %v5742 = vunpack.c.l.b16 %v5553
        %v5743 = vunpack.c.h.b16 %v5553
        %v5744 = vunpack.c.l.b16 %v5554
        %v5745 = vunpack.c.h.b16 %v5554
        %v5746 = vunpack.c.l.b16 %v5555
        %v5747 = vunpack.c.h.b16 %v5555
        %v5748 = vpack.c.b16 %v5622, %v5620
        %v5749 = vpack.c.b16 %v5623, %v5621
        %v5750 = vpack.c.b16 %v5626, %v5624
        %v5751 = vpack.c.b16 %v5627, %v5625
        %v5752 = vpack.c.b16 %v5630, %v5628
        %v5753 = vpack.c.b16 %v5631, %v5629
        %v5754 = vpack.c.b16 %v5634, %v5632
        %v5755 = vpack.c.b16 %v5635, %v5633
        %v5756 = vpack.c.b16 %v5638, %v5636
        %v5757 = vpack.c.b16 %v5639, %v5637
        %v5758 = vpack.c.b16 %v5642, %v5640
        %v5759 = vpack.c.b16 %v5643, %v5641
        %v5760 = vpack.c.b16 %v5646, %v5644
        %v5761 = vpack.c.b16 %v5647, %v5645
        %v5762 = vpack.c.b16 %v5650, %v5648
        %v5763 = vpack.c.b16 %v5651, %v5649
        %v5764 = vpack.c.b16 %v5654, %v5652
        %v5765 = vpack.c.b16 %v5655, %v5653
        %v5766 = vpack.c.b16 %v5658, %v5656
        %v5767 = vpack.c.b16 %v5659, %v5657
        %v5768 = vpack.c.b16 %v5662, %v5660
        %v5769 = vpack.c.b16 %v5663, %v5661
        %v5770 = vpack.c.b16 %v5666, %v5664
        %v5771 = vpack.c.b16 %v5667, %v5665
        %v5772 = vpack.c.b16 %v5670, %v5668
        %v5773 = vpack.c.b16 %v5671, %v5669
        %v5774 = vpack.c.b16 %v5674, %v5672
        %v5775 = vpack.c.b16 %v5675, %v5673
        %v5776 = vpack.c.b16 %v5678, %v5676
        %v5777 = vpack.c.b16 %v5679, %v5677
        %v5778 = vpack.c.b16 %v5682, %v5680
        %v5779 = vpack.c.b16 %v5683, %v5681
        %v5780 = vpack.c.b16 %v5686, %v5684
        %v5781 = vpack.c.b16 %v5687, %v5685
        %v5782 = vpack.c.b16 %v5690, %v5688
        %v5783 = vpack.c.b16 %v5691, %v5689
        %v5784 = vpack.c.b16 %v5694, %v5692
        %v5785 = vpack.c.b16 %v5695, %v5693
        %v5786 = vpack.c.b16 %v5698, %v5696
        %v5787 = vpack.c.b16 %v5699, %v5697
        %v5788 = vpack.c.b16 %v5702, %v5700
        %v5789 = vpack.c.b16 %v5703, %v5701
        %v5790 = vpack.c.b16 %v5706, %v5704
        %v5791 = vpack.c.b16 %v5707, %v5705
        %v5792 = vpack.c.b16 %v5710, %v5708
        %v5793 = vpack.c.b16 %v5711, %v5709
        %v5794 = vpack.c.b16 %v5714, %v5712
        %v5795 = vpack.c.b16 %v5715, %v5713
        %v5796 = vpack.c.b16 %v5718, %v5716
        %v5797 = vpack.c.b16 %v5719, %v5717
        %v5798 = vpack.c.b16 %v5722, %v5720
        %v5799 = vpack.c.b16 %v5723, %v5721
        %v5800 = vpack.c.b16 %v5726, %v5724
        %v5801 = vpack.c.b16 %v5727, %v5725
        %v5802 = vpack.c.b16 %v5730, %v5728
        %v5803 = vpack.c.b16 %v5731, %v5729
        %v5804 = vpack.c.b16 %v5734, %v5732
        %v5805 = vpack.c.b16 %v5735, %v5733
        %v5806 = vpack.c.b16 %v5738, %v5736
        %v5807 = vpack.c.b16 %v5739, %v5737
        %v5808 = vpack.c.b16 %v5742, %v5740
        %v5809 = vpack.c.b16 %v5743, %v5741
        %v5810 = vpack.c.b16 %v5746, %v5744
        %v5811 = vpack.c.b16 %v5747, %v5745
        %5876 = vmatprep.subr.bf16.mxu0 %v5749
        %5877 = vmatpush1.bf16.msra.mxu0 %v5748
        %5878 = vmatprep.subr.bf16.mxu0 %v5751
        %5879 = vmatpush1.bf16.msra.mxu0 %v5750
        %5880 = vmatprep.subr.bf16.mxu0 %v5753
        %5881 = vmatpush1.bf16.msra.mxu0 %v5752
        %5882 = vmatprep.subr.bf16.mxu0 %v5755
        %5883 = vmatpush1.bf16.msra.mxu0 %v5754
        %5884 = vmatprep.subr.bf16.mxu0 %v5757
        %5885 = vmatpush1.bf16.msra.mxu0 %v5756
        %5886 = vmatprep.subr.bf16.mxu0 %v5759
        %5887 = vmatpush1.bf16.msra.mxu0 %v5758
        %5888 = vmatprep.subr.bf16.mxu0 %v5761
        %5889 = vmatpush1.bf16.msra.mxu0 %v5760
        %5890 = vmatprep.subr.bf16.mxu0 %v5763
        %5891 = vmatpush1.bf16.msra.mxu0 %v5762
        %5892 = vmatprep.subr.bf16.mxu0 %v5765
        %5893 = vmatpush1.bf16.msra.mxu0 %v5764
        %5894 = vmatprep.subr.bf16.mxu0 %v5767
        %5895 = vmatpush1.bf16.msra.mxu0 %v5766
        %5896 = vmatprep.subr.bf16.mxu0 %v5769
        %5897 = vmatpush1.bf16.msra.mxu0 %v5768
        %5898 = vmatprep.subr.bf16.mxu0 %v5771
        %5899 = vmatpush1.bf16.msra.mxu0 %v5770
        %5900 = vmatprep.subr.bf16.mxu0 %v5773
        %5901 = vmatpush1.bf16.msra.mxu0 %v5772
        %5902 = vmatprep.subr.bf16.mxu0 %v5775
        %5903 = vmatpush1.bf16.msra.mxu0 %v5774
        %5904 = vmatprep.subr.bf16.mxu0 %v5777
        %5905 = vmatpush1.bf16.msra.mxu0 %v5776
        %5906 = vmatprep.subr.bf16.mxu0 %v5779
        %5907 = vmatpush1.bf16.msra.mxu0 %v5778
        %5908 = vmatprep.mubr.bf16.mxu0 %v5428
        %5909 = vmatmul.mubr.bf16.gmra.mrb[0].mxu0 %v5427
        %v5910 = vpop.f32.mrb[0].mxu0
        %v5911 = vadd.f32 0.0, %v5910
        %v5912 = vpop.f32.mrb[0].mxu0
        %v5913 = vadd.f32 0.0, %v5912
        %v5914 = vpop.f32.mrb[0].mxu0
        %v5915 = vadd.f32 0.0, %v5914
        %v5916 = vpop.f32.mrb[0].mxu0
        %v5917 = vadd.f32 0.0, %v5916
        %5918 = vmatprep.mubr.bf16.mxu0 %v5432
        %5919 = vmatmul.mubr.bf16.gmra.mrb[0].mxu0 %v5431
        %v5920 = vpop.f32.mrb[0].mxu0
        %v5921 = vadd.f32 0.0, %v5920
        %v5922 = vpop.f32.mrb[0].mxu0
        %v5923 = vadd.f32 0.0, %v5922
        %v5924 = vpop.f32.mrb[0].mxu0
        %v5925 = vadd.f32 0.0, %v5924
        %v5926 = vpop.f32.mrb[0].mxu0
        %v5927 = vadd.f32 0.0, %v5926
        %5928 = vmatprep.mubr.bf16.mxu0 %v5436
        %5929 = vmatmul.mubr.bf16.gmra.mrb[0].mxu0 %v5435
        %v5930 = vpop.f32.mrb[0].mxu0
        %v5931 = vadd.f32 0.0, %v5930
        %v5932 = vpop.f32.mrb[0].mxu0
        %v5933 = vadd.f32 0.0, %v5932
        %v5934 = vpop.f32.mrb[0].mxu0
        %v5935 = vadd.f32 0.0, %v5934
        %v5936 = vpop.f32.mrb[0].mxu0
        %v5937 = vadd.f32 0.0, %v5936
        %5938 = vmatprep.mubr.bf16.mxu0 %v5440
        %5939 = vmatmul.mubr.bf16.gmra.mrb[0].mxu0 %v5439
        %v5940 = vpop.f32.mrb[0].mxu0
        %v5941 = vadd.f32 0.0, %v5940
        %v5942 = vpop.f32.mrb[0].mxu0
        %v5943 = vadd.f32 0.0, %v5942
        %v5944 = vpop.f32.mrb[0].mxu0
        %v5945 = vadd.f32 0.0, %v5944
        %v5946 = vpop.f32.mrb[0].mxu0
        %v5947 = vadd.f32 0.0, %v5946
        %5948 = vmatprep.mubr.bf16.mxu0 %v5444
        %5949 = vmatmul.mubr.bf16.gmra.mrb[0].mxu0 %v5443
        %v5950 = vpop.f32.mrb[0].mxu0
        %v5951 = vadd.f32 0.0, %v5950
        %v5952 = vpop.f32.mrb[0].mxu0
        %v5953 = vadd.f32 0.0, %v5952
        %v5954 = vpop.f32.mrb[0].mxu0
        %v5955 = vadd.f32 0.0, %v5954
        %v5956 = vpop.f32.mrb[0].mxu0
        %v5957 = vadd.f32 0.0, %v5956
        %5958 = vmatprep.mubr.bf16.mxu0 %v5448
        %5959 = vmatmul.mubr.bf16.gmra.mrb[0].mxu0 %v5447
        %v5960 = vpop.f32.mrb[0].mxu0
        %v5961 = vadd.f32 0.0, %v5960
        %v5962 = vpop.f32.mrb[0].mxu0
        %v5963 = vadd.f32 0.0, %v5962
        %v5964 = vpop.f32.mrb[0].mxu0
        %v5965 = vadd.f32 0.0, %v5964
        %v5966 = vpop.f32.mrb[0].mxu0
        %v5967 = vadd.f32 0.0, %v5966
        %5968 = vmatprep.mubr.bf16.mxu0 %v5452
        %5969 = vmatmul.mubr.bf16.gmra.mrb[0].mxu0 %v5451
        %v5970 = vpop.f32.mrb[0].mxu0
        %v5971 = vadd.f32 0.0, %v5970
        %v5972 = vpop.f32.mrb[0].mxu0
        %v5973 = vadd.f32 0.0, %v5972
        %v5974 = vpop.f32.mrb[0].mxu0
        %v5975 = vadd.f32 0.0, %v5974
        %v5976 = vpop.f32.mrb[0].mxu0
        %v5977 = vadd.f32 0.0, %v5976
        %5978 = vmatprep.mubr.bf16.mxu0 %v5456
        %5979 = vmatmul.mubr.bf16.gmra.mrb[0].mxu0 %v5455
        %v5980 = vpop.f32.mrb[0].mxu0
        %v5981 = vadd.f32 0.0, %v5980
        %v5982 = vpop.f32.mrb[0].mxu0
        %v5983 = vadd.f32 0.0, %v5982
        %v5984 = vpop.f32.mrb[0].mxu0
        %v5985 = vadd.f32 0.0, %v5984
        %v5986 = vpop.f32.mrb[0].mxu0
        %v5987 = vadd.f32 0.0, %v5986
        %5988 = vmatprep.mubr.bf16.mxu0 %v5460
        %5989 = vmatmul.mubr.bf16.gmra.mrb[0].mxu0 %v5459
        %v5990 = vpop.f32.mrb[0].mxu0
        %v5991 = vadd.f32 0.0, %v5990
        %v5992 = vpop.f32.mrb[0].mxu0
        %v5993 = vadd.f32 0.0, %v5992
        %v5994 = vpop.f32.mrb[0].mxu0
        %v5995 = vadd.f32 0.0, %v5994
        %v5996 = vpop.f32.mrb[0].mxu0
        %v5997 = vadd.f32 0.0, %v5996
        %5998 = vmatprep.mubr.bf16.mxu0 %v5464
        %5999 = vmatmul.mubr.bf16.gmra.mrb[0].mxu0 %v5463
        %v6000 = vpop.f32.mrb[0].mxu0
        %v6001 = vadd.f32 0.0, %v6000
        %v6002 = vpop.f32.mrb[0].mxu0
        %v6003 = vadd.f32 0.0, %v6002
        %v6004 = vpop.f32.mrb[0].mxu0
        %v6005 = vadd.f32 0.0, %v6004
        %v6006 = vpop.f32.mrb[0].mxu0
        %v6007 = vadd.f32 0.0, %v6006
        %6008 = vmatprep.mubr.bf16.mxu0 %v5468
        %6009 = vmatmul.mubr.bf16.gmra.mrb[0].mxu0 %v5467
        %v6010 = vpop.f32.mrb[0].mxu0
        %v6011 = vadd.f32 0.0, %v6010
        %v6012 = vpop.f32.mrb[0].mxu0
        %v6013 = vadd.f32 0.0, %v6012
        %v6014 = vpop.f32.mrb[0].mxu0
        %v6015 = vadd.f32 0.0, %v6014
        %v6016 = vpop.f32.mrb[0].mxu0
        %v6017 = vadd.f32 0.0, %v6016
        %6018 = vmatprep.mubr.bf16.mxu0 %v5472
        %6019 = vmatmul.mubr.bf16.gmra.mrb[0].mxu0 %v5471
        %v6020 = vpop.f32.mrb[0].mxu0
        %v6021 = vadd.f32 0.0, %v6020
        %v6022 = vpop.f32.mrb[0].mxu0
        %v6023 = vadd.f32 0.0, %v6022
        %v6024 = vpop.f32.mrb[0].mxu0
        %v6025 = vadd.f32 0.0, %v6024
        %v6026 = vpop.f32.mrb[0].mxu0
        %v6027 = vadd.f32 0.0, %v6026
        %6028 = vmatprep.mubr.bf16.mxu0 %v5476
        %6029 = vmatmul.mubr.bf16.gmra.mrb[0].mxu0 %v5475
        %v6030 = vpop.f32.mrb[0].mxu0
        %v6031 = vadd.f32 0.0, %v6030
        %v6032 = vpop.f32.mrb[0].mxu0
        %v6033 = vadd.f32 0.0, %v6032
        %v6034 = vpop.f32.mrb[0].mxu0
        %v6035 = vadd.f32 0.0, %v6034
        %v6036 = vpop.f32.mrb[0].mxu0
        %v6037 = vadd.f32 0.0, %v6036
        %6038 = vmatprep.mubr.bf16.mxu0 %v5480
        %6039 = vmatmul.mubr.bf16.gmra.mrb[0].mxu0 %v5479
        %v6040 = vpop.f32.mrb[0].mxu0
        %v6041 = vadd.f32 0.0, %v6040
        %v6042 = vpop.f32.mrb[0].mxu0
        %v6043 = vadd.f32 0.0, %v6042
        %v6044 = vpop.f32.mrb[0].mxu0
        %v6045 = vadd.f32 0.0, %v6044
        %v6046 = vpop.f32.mrb[0].mxu0
        %v6047 = vadd.f32 0.0, %v6046
        %6048 = vmatprep.mubr.bf16.mxu0 %v5484
        %6049 = vmatmul.mubr.bf16.gmra.mrb[0].mxu0 %v5483
        %v6050 = vpop.f32.mrb[0].mxu0
        %v6051 = vadd.f32 0.0, %v6050
        %v6052 = vpop.f32.mrb[0].mxu0
        %v6053 = vadd.f32 0.0, %v6052
        %v6054 = vpop.f32.mrb[0].mxu0
        %v6055 = vadd.f32 0.0, %v6054
        %v6056 = vpop.f32.mrb[0].mxu0
        %v6057 = vadd.f32 0.0, %v6056
        %6058 = vmatprep.mubr.bf16.mxu0 %v5488
        %6059 = vmatmul.mubr.bf16.gmra.mrb[0].mxu0 %v5487
        %v6060 = vpop.f32.mrb[0].mxu0
        %v6061 = vadd.f32 0.0, %v6060
        %v6062 = vpop.f32.mrb[0].mxu0
        %v6063 = vadd.f32 0.0, %v6062
        %v6064 = vpop.f32.mrb[0].mxu0
        %v6065 = vadd.f32 0.0, %v6064
        %v6066 = vpop.f32.mrb[0].mxu0
        %v6067 = vadd.f32 0.0, %v6066
        %6068 = vdwg.mxu0
        %6069 = vmatprep.subr.bf16.mxu0 %v5781
        %6070 = vmatpush1.bf16.msra.mxu0 %v5780
        %6071 = vmatprep.subr.bf16.mxu0 %v5783
        %6072 = vmatpush1.bf16.msra.mxu0 %v5782
        %6073 = vmatprep.subr.bf16.mxu0 %v5785
        %6074 = vmatpush1.bf16.msra.mxu0 %v5784
        %6075 = vmatprep.subr.bf16.mxu0 %v5787
        %6076 = vmatpush1.bf16.msra.mxu0 %v5786
        %6077 = vmatprep.subr.bf16.mxu0 %v5789
        %6078 = vmatpush1.bf16.msra.mxu0 %v5788
        %6079 = vmatprep.subr.bf16.mxu0 %v5791
        %6080 = vmatpush1.bf16.msra.mxu0 %v5790
        %6081 = vmatprep.subr.bf16.mxu0 %v5793
        %6082 = vmatpush1.bf16.msra.mxu0 %v5792
        %6083 = vmatprep.subr.bf16.mxu0 %v5795
        %6084 = vmatpush1.bf16.msra.mxu0 %v5794
        %6085 = vmatprep.subr.bf16.mxu0 %v5797
        %6086 = vmatpush1.bf16.msra.mxu0 %v5796
        %6087 = vmatprep.subr.bf16.mxu0 %v5799
        %6088 = vmatpush1.bf16.msra.mxu0 %v5798
        %6089 = vmatprep.subr.bf16.mxu0 %v5801
        %6090 = vmatpush1.bf16.msra.mxu0 %v5800
        %6091 = vmatprep.subr.bf16.mxu0 %v5803
        %6092 = vmatpush1.bf16.msra.mxu0 %v5802
        %6093 = vmatprep.subr.bf16.mxu0 %v5805
        %6094 = vmatpush1.bf16.msra.mxu0 %v5804
        %6095 = vmatprep.subr.bf16.mxu0 %v5807
        %6096 = vmatpush1.bf16.msra.mxu0 %v5806
        %6097 = vmatprep.subr.bf16.mxu0 %v5809
        %6098 = vmatpush1.bf16.msra.mxu0 %v5808
        %6099 = vmatprep.subr.bf16.mxu0 %v5811
        %6100 = vmatpush1.bf16.msra.mxu0 %v5810
        %6101 = vmatprep.mubr.bf16.mxu0 %v5430
        %6102 = vmatmul.mubr.bf16.gmra.mrb[0].mxu0 %v5429
        %v6103 = vpop.f32.mrb[0].mxu0
        %v6104 = vadd.f32 %v5911, %v6103
        %v6105 = vpop.f32.mrb[0].mxu0
        %v6106 = vadd.f32 %v5913, %v6105
        %v6107 = vpop.f32.mrb[0].mxu0
        %v6108 = vadd.f32 %v5915, %v6107
        %v6109 = vpop.f32.mrb[0].mxu0
        %v6110 = vadd.f32 %v5917, %v6109
        %6111 = vmatprep.mubr.bf16.mxu0 %v5434
        %6112 = vmatmul.mubr.bf16.gmra.mrb[0].mxu0 %v5433
        %v6113 = vpop.f32.mrb[0].mxu0
        %v6114 = vadd.f32 %v5921, %v6113
        %v6115 = vpop.f32.mrb[0].mxu0
        %v6116 = vadd.f32 %v5923, %v6115
        %v6117 = vpop.f32.mrb[0].mxu0
        %v6118 = vadd.f32 %v5925, %v6117
        %v6119 = vpop.f32.mrb[0].mxu0
        %v6120 = vadd.f32 %v5927, %v6119
        %6121 = vmatprep.mubr.bf16.mxu0 %v5438
        %6122 = vmatmul.mubr.bf16.gmra.mrb[0].mxu0 %v5437
        %v6123 = vpop.f32.mrb[0].mxu0
        %v6124 = vadd.f32 %v5931, %v6123
        %v6125 = vpop.f32.mrb[0].mxu0
        %v6126 = vadd.f32 %v5933, %v6125
        %v6127 = vpop.f32.mrb[0].mxu0
        %v6128 = vadd.f32 %v5935, %v6127
        %v6129 = vpop.f32.mrb[0].mxu0
        %v6130 = vadd.f32 %v5937, %v6129
        %6131 = vmatprep.mubr.bf16.mxu0 %v5442
        %6132 = vmatmul.mubr.bf16.gmra.mrb[0].mxu0 %v5441
        %v6133 = vpop.f32.mrb[0].mxu0
        %v6134 = vadd.f32 %v5941, %v6133
        %v6135 = vpop.f32.mrb[0].mxu0
        %v6136 = vadd.f32 %v5943, %v6135
        %v6137 = vpop.f32.mrb[0].mxu0
        %v6138 = vadd.f32 %v5945, %v6137
        %v6139 = vpop.f32.mrb[0].mxu0
        %v6140 = vadd.f32 %v5947, %v6139
        %6141 = vmatprep.mubr.bf16.mxu0 %v5446
        %6142 = vmatmul.mubr.bf16.gmra.mrb[0].mxu0 %v5445
        %v6143 = vpop.f32.mrb[0].mxu0
        %v6144 = vadd.f32 %v5951, %v6143
        %v6145 = vpop.f32.mrb[0].mxu0
        %v6146 = vadd.f32 %v5953, %v6145
        %v6147 = vpop.f32.mrb[0].mxu0
        %v6148 = vadd.f32 %v5955, %v6147
        %v6149 = vpop.f32.mrb[0].mxu0
        %v6150 = vadd.f32 %v5957, %v6149
        %6151 = vmatprep.mubr.bf16.mxu0 %v5450
        %6152 = vmatmul.mubr.bf16.gmra.mrb[0].mxu0 %v5449
        %v6153 = vpop.f32.mrb[0].mxu0
        %v6154 = vadd.f32 %v5961, %v6153
        %v6155 = vpop.f32.mrb[0].mxu0
        %v6156 = vadd.f32 %v5963, %v6155
        %v6157 = vpop.f32.mrb[0].mxu0
        %v6158 = vadd.f32 %v5965, %v6157
        %v6159 = vpop.f32.mrb[0].mxu0
        %v6160 = vadd.f32 %v5967, %v6159
        %6161 = vmatprep.mubr.bf16.mxu0 %v5454
        %6162 = vmatmul.mubr.bf16.gmra.mrb[0].mxu0 %v5453
        %v6163 = vpop.f32.mrb[0].mxu0
        %v6164 = vadd.f32 %v5971, %v6163
        %v6165 = vpop.f32.mrb[0].mxu0
        %v6166 = vadd.f32 %v5973, %v6165
        %v6167 = vpop.f32.mrb[0].mxu0
        %v6168 = vadd.f32 %v5975, %v6167
        %v6169 = vpop.f32.mrb[0].mxu0
        %v6170 = vadd.f32 %v5977, %v6169
        %6171 = vmatprep.mubr.bf16.mxu0 %v5458
        %6172 = vmatmul.mubr.bf16.gmra.mrb[0].mxu0 %v5457
        %v6173 = vpop.f32.mrb[0].mxu0
        %v6174 = vadd.f32 %v5981, %v6173
        %v6175 = vpop.f32.mrb[0].mxu0
        %v6176 = vadd.f32 %v5983, %v6175
        %v6177 = vpop.f32.mrb[0].mxu0
        %v6178 = vadd.f32 %v5985, %v6177
        %v6179 = vpop.f32.mrb[0].mxu0
        %v6180 = vadd.f32 %v5987, %v6179
        %6181 = vmatprep.mubr.bf16.mxu0 %v5462
        %6182 = vmatmul.mubr.bf16.gmra.mrb[0].mxu0 %v5461
        %v6183 = vpop.f32.mrb[0].mxu0
        %v6184 = vadd.f32 %v5991, %v6183
        %v6185 = vpop.f32.mrb[0].mxu0
        %v6186 = vadd.f32 %v5993, %v6185
        %v6187 = vpop.f32.mrb[0].mxu0
        %v6188 = vadd.f32 %v5995, %v6187
        %v6189 = vpop.f32.mrb[0].mxu0
        %v6190 = vadd.f32 %v5997, %v6189
        %6191 = vmatprep.mubr.bf16.mxu0 %v5466
        %6192 = vmatmul.mubr.bf16.gmra.mrb[0].mxu0 %v5465
        %v6193 = vpop.f32.mrb[0].mxu0
        %v6194 = vadd.f32 %v6001, %v6193
        %v6195 = vpop.f32.mrb[0].mxu0
        %v6196 = vadd.f32 %v6003, %v6195
        %v6197 = vpop.f32.mrb[0].mxu0
        %v6198 = vadd.f32 %v6005, %v6197
        %v6199 = vpop.f32.mrb[0].mxu0
        %v6200 = vadd.f32 %v6007, %v6199
        %6201 = vmatprep.mubr.bf16.mxu0 %v5470
        %6202 = vmatmul.mubr.bf16.gmra.mrb[0].mxu0 %v5469
        %v6203 = vpop.f32.mrb[0].mxu0
        %v6204 = vadd.f32 %v6011, %v6203
        %v6205 = vpop.f32.mrb[0].mxu0
        %v6206 = vadd.f32 %v6013, %v6205
        %v6207 = vpop.f32.mrb[0].mxu0
        %v6208 = vadd.f32 %v6015, %v6207
        %v6209 = vpop.f32.mrb[0].mxu0
        %v6210 = vadd.f32 %v6017, %v6209
        %6211 = vmatprep.mubr.bf16.mxu0 %v5474
        %6212 = vmatmul.mubr.bf16.gmra.mrb[0].mxu0 %v5473
        %v6213 = vpop.f32.mrb[0].mxu0
        %v6214 = vadd.f32 %v6021, %v6213
        %v6215 = vpop.f32.mrb[0].mxu0
        %v6216 = vadd.f32 %v6023, %v6215
        %v6217 = vpop.f32.mrb[0].mxu0
        %v6218 = vadd.f32 %v6025, %v6217
        %v6219 = vpop.f32.mrb[0].mxu0
        %v6220 = vadd.f32 %v6027, %v6219
        %6221 = vmatprep.mubr.bf16.mxu0 %v5478
        %6222 = vmatmul.mubr.bf16.gmra.mrb[0].mxu0 %v5477
        %v6223 = vpop.f32.mrb[0].mxu0
        %v6224 = vadd.f32 %v6031, %v6223
        %v6225 = vpop.f32.mrb[0].mxu0
        %v6226 = vadd.f32 %v6033, %v6225
        %v6227 = vpop.f32.mrb[0].mxu0
        %v6228 = vadd.f32 %v6035, %v6227
        %v6229 = vpop.f32.mrb[0].mxu0
        %v6230 = vadd.f32 %v6037, %v6229
        %6231 = vmatprep.mubr.bf16.mxu0 %v5482
        %6232 = vmatmul.mubr.bf16.gmra.mrb[0].mxu0 %v5481
        %v6233 = vpop.f32.mrb[0].mxu0
        %v6234 = vadd.f32 %v6041, %v6233
        %v6235 = vpop.f32.mrb[0].mxu0
        %v6236 = vadd.f32 %v6043, %v6235
        %v6237 = vpop.f32.mrb[0].mxu0
        %v6238 = vadd.f32 %v6045, %v6237
        %v6239 = vpop.f32.mrb[0].mxu0
        %v6240 = vadd.f32 %v6047, %v6239
        %6241 = vmatprep.mubr.bf16.mxu0 %v5486
        %6242 = vmatmul.mubr.bf16.gmra.mrb[0].mxu0 %v5485
        %v6243 = vpop.f32.mrb[0].mxu0
        %v6244 = vadd.f32 %v6051, %v6243
        %v6245 = vpop.f32.mrb[0].mxu0
        %v6246 = vadd.f32 %v6053, %v6245
        %v6247 = vpop.f32.mrb[0].mxu0
        %v6248 = vadd.f32 %v6055, %v6247
        %v6249 = vpop.f32.mrb[0].mxu0
        %v6250 = vadd.f32 %v6057, %v6249
        %6251 = vmatprep.mubr.bf16.mxu0 %v5490
        %6252 = vmatmul.mubr.bf16.gmra.mrb[0].mxu0 %v5489
        %v6253 = vpop.f32.mrb[0].mxu0
        %v6254 = vadd.f32 %v6061, %v6253
        %v6255 = vpop.f32.mrb[0].mxu0
        %v6256 = vadd.f32 %v6063, %v6255
        %v6257 = vpop.f32.mrb[0].mxu0
        %v6258 = vadd.f32 %v6065, %v6257
        %v6259 = vpop.f32.mrb[0].mxu0
        %v6260 = vadd.f32 %v6067, %v6259
        %6261 = vdwg.mxu0
        %v6262 = vadd.f32 %v5363, %v6104
        %v6263 = vadd.f32 %v5364, %v6106
        %v6264 = vadd.f32 %v5365, %v6108
        %v6265 = vadd.f32 %v5366, %v6110
        %v6266 = vadd.f32 %v5367, %v6114
        %v6267 = vadd.f32 %v5368, %v6116
        %v6268 = vadd.f32 %v5369, %v6118
        %v6269 = vadd.f32 %v5370, %v6120
        %v6270 = vadd.f32 %v5371, %v6124
        %v6271 = vadd.f32 %v5372, %v6126
        %v6272 = vadd.f32 %v5373, %v6128
        %v6273 = vadd.f32 %v5374, %v6130
        %v6274 = vadd.f32 %v5375, %v6134
        %v6275 = vadd.f32 %v5376, %v6136
        %v6276 = vadd.f32 %v5377, %v6138
        %v6277 = vadd.f32 %v5378, %v6140
        %v6278 = vadd.f32 %v5379, %v6144
        %v6279 = vadd.f32 %v5380, %v6146
        %v6280 = vadd.f32 %v5381, %v6148
        %v6281 = vadd.f32 %v5382, %v6150
        %v6282 = vadd.f32 %v5383, %v6154
        %v6283 = vadd.f32 %v5384, %v6156
        %v6284 = vadd.f32 %v5385, %v6158
        %v6285 = vadd.f32 %v5386, %v6160
        %v6286 = vadd.f32 %v5387, %v6164
        %v6287 = vadd.f32 %v5388, %v6166
        %v6288 = vadd.f32 %v5389, %v6168
        %v6289 = vadd.f32 %v5390, %v6170
        %v6290 = vadd.f32 %v5391, %v6174
        %v6291 = vadd.f32 %v5392, %v6176
        %v6292 = vadd.f32 %v5393, %v6178
        %v6293 = vadd.f32 %v5394, %v6180
        %v6294 = vadd.f32 %v5395, %v6184
        %v6295 = vadd.f32 %v5396, %v6186
        %v6296 = vadd.f32 %v5397, %v6188
        %v6297 = vadd.f32 %v5398, %v6190
        %v6298 = vadd.f32 %v5399, %v6194
        %v6299 = vadd.f32 %v5400, %v6196
        %v6300 = vadd.f32 %v5401, %v6198
        %v6301 = vadd.f32 %v5402, %v6200
        %v6302 = vadd.f32 %v5403, %v6204
        %v6303 = vadd.f32 %v5404, %v6206
        %v6304 = vadd.f32 %v5405, %v6208
        %v6305 = vadd.f32 %v5406, %v6210
        %v6306 = vadd.f32 %v5407, %v6214
        %v6307 = vadd.f32 %v5408, %v6216
        %v6308 = vadd.f32 %v5409, %v6218
        %v6309 = vadd.f32 %v5410, %v6220
        %v6310 = vadd.f32 %v5411, %v6224
        %v6311 = vadd.f32 %v5412, %v6226
        %v6312 = vadd.f32 %v5413, %v6228
        %v6313 = vadd.f32 %v5414, %v6230
        %v6314 = vadd.f32 %v5415, %v6234
        %v6315 = vadd.f32 %v5416, %v6236
        %v6316 = vadd.f32 %v5417, %v6238
        %v6317 = vadd.f32 %v5418, %v6240
        %v6318 = vadd.f32 %v5419, %v6244
        %v6319 = vadd.f32 %v5420, %v6246
        %v6320 = vadd.f32 %v5421, %v6248
        %v6321 = vadd.f32 %v5422, %v6250
        %v6322 = vadd.f32 %v5423, %v6254
        %v6323 = vadd.f32 %v5424, %v6256
        %v6324 = vadd.f32 %v5425, %v6258
        %v6325 = vadd.f32 %v5426, %v6260
        %6326 = vst [vmem:[#allocation2] sm:$0xff] %v6262
        %6327 = vst [vmem:[#allocation2 + $0x8] sm:$0xff] %v6263
        %6328 = vst [vmem:[#allocation2 + $0x10] sm:$0xff] %v6264
        %6329 = vst [vmem:[#allocation2 + $0x18] sm:$0xff] %v6265
        %6330 = vst [vmem:[#allocation2 + $0x20] sm:$0xff] %v6266
        %6331 = vst [vmem:[#allocation2 + $0x28] sm:$0xff] %v6267
        %6332 = vst [vmem:[#allocation2 + $0x30] sm:$0xff] %v6268
        %6333 = vst [vmem:[#allocation2 + $0x38] sm:$0xff] %v6269
        %6334 = vst [vmem:[#allocation2 + $0x40] sm:$0xff] %v6270
        %6335 = vst [vmem:[#allocation2 + $0x48] sm:$0xff] %v6271
        %6336 = vst [vmem:[#allocation2 + $0x50] sm:$0xff] %v6272
        %6337 = vst [vmem:[#allocation2 + $0x58] sm:$0xff] %v6273
        %6338 = vst [vmem:[#allocation2 + $0x60] sm:$0xff] %v6274
        %6339 = vst [vmem:[#allocation2 + $0x68] sm:$0xff] %v6275
        %6340 = vst [vmem:[#allocation2 + $0x70] sm:$0xff] %v6276
        %6341 = vst [vmem:[#allocation2 + $0x78] sm:$0xff] %v6277
        %6342 = vst [vmem:[#allocation2 + $0x80] sm:$0xff] %v6278
        %6343 = vst [vmem:[#allocation2 + $0x88] sm:$0xff] %v6279
        %6344 = vst [vmem:[#allocation2 + $0x90] sm:$0xff] %v6280
        %6345 = vst [vmem:[#allocation2 + $0x98] sm:$0xff] %v6281
        %6346 = vst [vmem:[#allocation2 + $0xa0] sm:$0xff] %v6282
        %6347 = vst [vmem:[#allocation2 + $0xa8] sm:$0xff] %v6283
        %6348 = vst [vmem:[#allocation2 + $0xb0] sm:$0xff] %v6284
        %6349 = vst [vmem:[#allocation2 + $0xb8] sm:$0xff] %v6285
        %6350 = vst [vmem:[#allocation2 + $0xc0] sm:$0xff] %v6286
        %6351 = vst [vmem:[#allocation2 + $0xc8] sm:$0xff] %v6287
        %6352 = vst [vmem:[#allocation2 + $0xd0] sm:$0xff] %v6288
        %6353 = vst [vmem:[#allocation2 + $0xd8] sm:$0xff] %v6289
        %6354 = vst [vmem:[#allocation2 + $0xe0] sm:$0xff] %v6290
        %6355 = vst [vmem:[#allocation2 + $0xe8] sm:$0xff] %v6291
        %6356 = vst [vmem:[#allocation2 + $0xf0] sm:$0xff] %v6292
        %6357 = vst [vmem:[#allocation2 + $0xf8] sm:$0xff] %v6293
        %6358 = vst [vmem:[#allocation2 + $0x100] sm:$0xff] %v6294
        %6359 = vst [vmem:[#allocation2 + $0x108] sm:$0xff] %v6295
        %6360 = vst [vmem:[#allocation2 + $0x110] sm:$0xff] %v6296
        %6361 = vst [vmem:[#allocation2 + $0x118] sm:$0xff] %v6297
        %6362 = vst [vmem:[#allocation2 + $0x120] sm:$0xff] %v6298
        %6363 = vst [vmem:[#allocation2 + $0x128] sm:$0xff] %v6299
        %6364 = vst [vmem:[#allocation2 + $0x130] sm:$0xff] %v6300
        %6365 = vst [vmem:[#allocation2 + $0x138] sm:$0xff] %v6301
        %6366 = vst [vmem:[#allocation2 + $0x140] sm:$0xff] %v6302
        %6367 = vst [vmem:[#allocation2 + $0x148] sm:$0xff] %v6303
        %6368 = vst [vmem:[#allocation2 + $0x150] sm:$0xff] %v6304
        %6369 = vst [vmem:[#allocation2 + $0x158] sm:$0xff] %v6305
        %6370 = vst [vmem:[#allocation2 + $0x160] sm:$0xff] %v6306
        %6371 = vst [vmem:[#allocation2 + $0x168] sm:$0xff] %v6307
        %6372 = vst [vmem:[#allocation2 + $0x170] sm:$0xff] %v6308
        %6373 = vst [vmem:[#allocation2 + $0x178] sm:$0xff] %v6309
        %6374 = vst [vmem:[#allocation2 + $0x180] sm:$0xff] %v6310
        %6375 = vst [vmem:[#allocation2 + $0x188] sm:$0xff] %v6311
        %6376 = vst [vmem:[#allocation2 + $0x190] sm:$0xff] %v6312
        %6377 = vst [vmem:[#allocation2 + $0x198] sm:$0xff] %v6313
        %6378 = vst [vmem:[#allocation2 + $0x1a0] sm:$0xff] %v6314
        %6379 = vst [vmem:[#allocation2 + $0x1a8] sm:$0xff] %v6315
        %6380 = vst [vmem:[#allocation2 + $0x1b0] sm:$0xff] %v6316
        %6381 = vst [vmem:[#allocation2 + $0x1b8] sm:$0xff] %v6317
        %6382 = vst [vmem:[#allocation2 + $0x1c0] sm:$0xff] %v6318
        %6383 = vst [vmem:[#allocation2 + $0x1c8] sm:$0xff] %v6319
        %6384 = vst [vmem:[#allocation2 + $0x1d0] sm:$0xff] %v6320
        %6385 = vst [vmem:[#allocation2 + $0x1d8] sm:$0xff] %v6321
        %6386 = vst [vmem:[#allocation2 + $0x1e0] sm:$0xff] %v6322
        %6387 = vst [vmem:[#allocation2 + $0x1e8] sm:$0xff] %v6323
        %6388 = vst [vmem:[#allocation2 + $0x1f0] sm:$0xff] %v6324
        %6389 = vst [vmem:[#allocation2 + $0x1f8] sm:$0xff] %v6325
        %v6390 = vld [vmem:[#allocation2] sm:$0xff]
        %v6391 = vld [vmem:[#allocation2 + $0x8] sm:$0xff]
        %v6392 = vld [vmem:[#allocation2 + $0x10] sm:$0xff]
        %v6393 = vld [vmem:[#allocation2 + $0x18] sm:$0xff]
        %v6394 = vld [vmem:[#allocation2 + $0x20] sm:$0xff]
        %v6395 = vld [vmem:[#allocation2 + $0x28] sm:$0xff]
        %v6396 = vld [vmem:[#allocation2 + $0x30] sm:$0xff]
        %v6397 = vld [vmem:[#allocation2 + $0x38] sm:$0xff]
        %v6398 = vld [vmem:[#allocation2 + $0x40] sm:$0xff]
        %v6399 = vld [vmem:[#allocation2 + $0x48] sm:$0xff]
        %v6400 = vld [vmem:[#allocation2 + $0x50] sm:$0xff]
        %v6401 = vld [vmem:[#allocation2 + $0x58] sm:$0xff]
        %v6402 = vld [vmem:[#allocation2 + $0x60] sm:$0xff]
        %v6403 = vld [vmem:[#allocation2 + $0x68] sm:$0xff]
        %v6404 = vld [vmem:[#allocation2 + $0x70] sm:$0xff]
        %v6405 = vld [vmem:[#allocation2 + $0x78] sm:$0xff]
        %v6406 = vld [vmem:[#allocation2 + $0x80] sm:$0xff]
        %v6407 = vld [vmem:[#allocation2 + $0x88] sm:$0xff]
        %v6408 = vld [vmem:[#allocation2 + $0x90] sm:$0xff]
        %v6409 = vld [vmem:[#allocation2 + $0x98] sm:$0xff]
        %v6410 = vld [vmem:[#allocation2 + $0xa0] sm:$0xff]
        %v6411 = vld [vmem:[#allocation2 + $0xa8] sm:$0xff]
        %v6412 = vld [vmem:[#allocation2 + $0xb0] sm:$0xff]
        %v6413 = vld [vmem:[#allocation2 + $0xb8] sm:$0xff]
        %v6414 = vld [vmem:[#allocation2 + $0xc0] sm:$0xff]
        %v6415 = vld [vmem:[#allocation2 + $0xc8] sm:$0xff]
        %v6416 = vld [vmem:[#allocation2 + $0xd0] sm:$0xff]
        %v6417 = vld [vmem:[#allocation2 + $0xd8] sm:$0xff]
        %v6418 = vld [vmem:[#allocation2 + $0xe0] sm:$0xff]
        %v6419 = vld [vmem:[#allocation2 + $0xe8] sm:$0xff]
        %v6420 = vld [vmem:[#allocation2 + $0xf0] sm:$0xff]
        %v6421 = vld [vmem:[#allocation2 + $0xf8] sm:$0xff]
        %v6422 = vld [vmem:[#allocation2 + $0x100] sm:$0xff]
        %v6423 = vld [vmem:[#allocation2 + $0x108] sm:$0xff]
        %v6424 = vld [vmem:[#allocation2 + $0x110] sm:$0xff]
        %v6425 = vld [vmem:[#allocation2 + $0x118] sm:$0xff]
        %v6426 = vld [vmem:[#allocation2 + $0x120] sm:$0xff]
        %v6427 = vld [vmem:[#allocation2 + $0x128] sm:$0xff]
        %v6428 = vld [vmem:[#allocation2 + $0x130] sm:$0xff]
        %v6429 = vld [vmem:[#allocation2 + $0x138] sm:$0xff]
        %v6430 = vld [vmem:[#allocation2 + $0x140] sm:$0xff]
        %v6431 = vld [vmem:[#allocation2 + $0x148] sm:$0xff]
        %v6432 = vld [vmem:[#allocation2 + $0x150] sm:$0xff]
        %v6433 = vld [vmem:[#allocation2 + $0x158] sm:$0xff]
        %v6434 = vld [vmem:[#allocation2 + $0x160] sm:$0xff]
        %v6435 = vld [vmem:[#allocation2 + $0x168] sm:$0xff]
        %v6436 = vld [vmem:[#allocation2 + $0x170] sm:$0xff]
        %v6437 = vld [vmem:[#allocation2 + $0x178] sm:$0xff]
        %v6438 = vld [vmem:[#allocation2 + $0x180] sm:$0xff]
        %v6439 = vld [vmem:[#allocation2 + $0x188] sm:$0xff]
        %v6440 = vld [vmem:[#allocation2 + $0x190] sm:$0xff]
        %v6441 = vld [vmem:[#allocation2 + $0x198] sm:$0xff]
        %v6442 = vld [vmem:[#allocation2 + $0x1a0] sm:$0xff]
        %v6443 = vld [vmem:[#allocation2 + $0x1a8] sm:$0xff]
        %v6444 = vld [vmem:[#allocation2 + $0x1b0] sm:$0xff]
        %v6445 = vld [vmem:[#allocation2 + $0x1b8] sm:$0xff]
        %v6446 = vld [vmem:[#allocation2 + $0x1c0] sm:$0xff]
        %v6447 = vld [vmem:[#allocation2 + $0x1c8] sm:$0xff]
        %v6448 = vld [vmem:[#allocation2 + $0x1d0] sm:$0xff]
        %v6449 = vld [vmem:[#allocation2 + $0x1d8] sm:$0xff]
        %v6450 = vld [vmem:[#allocation2 + $0x1e0] sm:$0xff]
        %v6451 = vld [vmem:[#allocation2 + $0x1e8] sm:$0xff]
        %v6452 = vld [vmem:[#allocation2 + $0x1f0] sm:$0xff]
        %v6453 = vld [vmem:[#allocation2 + $0x1f8] sm:$0xff]
        %6454 = vst [vmem:[%s272] sm:$0xff] %v6390
        %6455 = vst [vmem:[%s272 + $0x8] sm:$0xff] %v6391
        %6456 = vst [vmem:[%s272 + $0x10] sm:$0xff] %v6392
        %6457 = vst [vmem:[%s272 + $0x18] sm:$0xff] %v6393
        %6458 = vst [vmem:[%s272 + $0x20] sm:$0xff] %v6394
        %6459 = vst [vmem:[%s272 + $0x28] sm:$0xff] %v6395
        %6460 = vst [vmem:[%s272 + $0x30] sm:$0xff] %v6396
        %6461 = vst [vmem:[%s272 + $0x38] sm:$0xff] %v6397
        %6462 = vst [vmem:[%s272 + $0x40] sm:$0xff] %v6398
        %6463 = vst [vmem:[%s272 + $0x48] sm:$0xff] %v6399
        %6464 = vst [vmem:[%s272 + $0x50] sm:$0xff] %v6400
        %6465 = vst [vmem:[%s272 + $0x58] sm:$0xff] %v6401
        %6466 = vst [vmem:[%s272 + $0x60] sm:$0xff] %v6402
        %6467 = vst [vmem:[%s272 + $0x68] sm:$0xff] %v6403
        %6468 = vst [vmem:[%s272 + $0x70] sm:$0xff] %v6404
        %6469 = vst [vmem:[%s272 + $0x78] sm:$0xff] %v6405
        %6470 = vst [vmem:[%s272 + $0x80] sm:$0xff] %v6406
        %6471 = vst [vmem:[%s272 + $0x88] sm:$0xff] %v6407
        %6472 = vst [vmem:[%s272 + $0x90] sm:$0xff] %v6408
        %6473 = vst [vmem:[%s272 + $0x98] sm:$0xff] %v6409
        %6474 = vst [vmem:[%s272 + $0xa0] sm:$0xff] %v6410
        %6475 = vst [vmem:[%s272 + $0xa8] sm:$0xff] %v6411
        %6476 = vst [vmem:[%s272 + $0xb0] sm:$0xff] %v6412
        %6477 = vst [vmem:[%s272 + $0xb8] sm:$0xff] %v6413
        %6478 = vst [vmem:[%s272 + $0xc0] sm:$0xff] %v6414
        %6479 = vst [vmem:[%s272 + $0xc8] sm:$0xff] %v6415
        %6480 = vst [vmem:[%s272 + $0xd0] sm:$0xff] %v6416
        %6481 = vst [vmem:[%s272 + $0xd8] sm:$0xff] %v6417
        %6482 = vst [vmem:[%s272 + $0xe0] sm:$0xff] %v6418
        %6483 = vst [vmem:[%s272 + $0xe8] sm:$0xff] %v6419
        %6484 = vst [vmem:[%s272 + $0xf0] sm:$0xff] %v6420
        %6485 = vst [vmem:[%s272 + $0xf8] sm:$0xff] %v6421
        %6486 = vst [vmem:[%s272 + $0x100] sm:$0xff] %v6422
        %6487 = vst [vmem:[%s272 + $0x108] sm:$0xff] %v6423
        %6488 = vst [vmem:[%s272 + $0x110] sm:$0xff] %v6424
        %6489 = vst [vmem:[%s272 + $0x118] sm:$0xff] %v6425
        %6490 = vst [vmem:[%s272 + $0x120] sm:$0xff] %v6426
        %6491 = vst [vmem:[%s272 + $0x128] sm:$0xff] %v6427
        %6492 = vst [vmem:[%s272 + $0x130] sm:$0xff] %v6428
        %6493 = vst [vmem:[%s272 + $0x138] sm:$0xff] %v6429
        %6494 = vst [vmem:[%s272 + $0x140] sm:$0xff] %v6430
        %6495 = vst [vmem:[%s272 + $0x148] sm:$0xff] %v6431
        %6496 = vst [vmem:[%s272 + $0x150] sm:$0xff] %v6432
        %6497 = vst [vmem:[%s272 + $0x158] sm:$0xff] %v6433
        %6498 = vst [vmem:[%s272 + $0x160] sm:$0xff] %v6434
        %6499 = vst [vmem:[%s272 + $0x168] sm:$0xff] %v6435
        %6500 = vst [vmem:[%s272 + $0x170] sm:$0xff] %v6436
        %6501 = vst [vmem:[%s272 + $0x178] sm:$0xff] %v6437
        %6502 = vst [vmem:[%s272 + $0x180] sm:$0xff] %v6438
        %6503 = vst [vmem:[%s272 + $0x188] sm:$0xff] %v6439
        %6504 = vst [vmem:[%s272 + $0x190] sm:$0xff] %v6440
        %6505 = vst [vmem:[%s272 + $0x198] sm:$0xff] %v6441
        %6506 = vst [vmem:[%s272 + $0x1a0] sm:$0xff] %v6442
        %6507 = vst [vmem:[%s272 + $0x1a8] sm:$0xff] %v6443
        %6508 = vst [vmem:[%s272 + $0x1b0] sm:$0xff] %v6444
        %6509 = vst [vmem:[%s272 + $0x1b8] sm:$0xff] %v6445
        %6510 = vst [vmem:[%s272 + $0x1c0] sm:$0xff] %v6446
        %6511 = vst [vmem:[%s272 + $0x1c8] sm:$0xff] %v6447
        %6512 = vst [vmem:[%s272 + $0x1d0] sm:$0xff] %v6448
        %6513 = vst [vmem:[%s272 + $0x1d8] sm:$0xff] %v6449
        %6514 = vst [vmem:[%s272 + $0x1e0] sm:$0xff] %v6450
        %6515 = vst [vmem:[%s272 + $0x1e8] sm:$0xff] %v6451
        %6516 = vst [vmem:[%s272 + $0x1f0] sm:$0xff] %v6452
        %6517 = vst [vmem:[%s272 + $0x1f8] sm:$0xff] %v6453
        %s6518 = sand.u32 %s141, 1
        %s6519 = scalar_lea.sflag [#allocation5], %s6518
        %s6520 = sand.u32 %s141, 1
        %s6521 = smul.addr %s6520, 512
        %s6522 = scalar_lea.vmem [#allocation9], %s6521
        // Predicated region
        $region53: #{positionwise_ffn_packed.1} parent=39 // pred_check
          %p6523 = pneg %p151
        $region54: #{positionwise_ffn_packed.1} parent=39 // pred_check_branch
          %6525 = sbr.rel (%p6523) target = $region56
        $region55: #{positionwise_ffn_packed.1} parent=39 // pred_region
          %s6526 = smul.u32 32, %s23
          %s6528 = ssub.s32 8192, 8192
          %6529 = vsyncadd %s6519, %s6528
          %s6530 = smul.addr %s6526, 2
          %s6531 = smul.addr %s6530, 128
          %s6532 = scalar_lea.hbm %s5, %s6531
          %s6533 = sshll.u32 %s6522, 4
          %s6534 = int_to_ptr.vmem [resolvable:$true] %s6533
          %6539 = dma.vmem_to_hbm [thread:$0]  %s6534, 8192, %s6532, %s6519, 256, 256, 16
        $region56: #{positionwise_ffn_packed.1} parent=39 // pred_fallthru
          _
      $region40: #{positionwise_ffn_packed.1} parent=5 // pred_fallthru
        _
      %p6540 = scmp.le.s32.totalorder 2, %s18
      // Predicated region
      $region57: #{positionwise_ffn_packed.1} parent=5 // pred_check
        %p6541 = pneg %p6540
      $region58: #{positionwise_ffn_packed.1} parent=5 // pred_check_branch
        %6543 = sbr.rel (%p6541) target = $region60
      $region59: #{positionwise_ffn_packed.1} parent=5 // pred_region
        %s6544 = ssub.s32 %s18, 2
        // Predicated region
        $region61: #{positionwise_ffn_packed.1} parent=59 // pred_check
          %p6545 = pneg %p157
        $region62: #{positionwise_ffn_packed.1} parent=59 // pred_check_branch
          %6547 = sbr.rel (%p6545) target = $region64
        $region63: #{positionwise_ffn_packed.1} parent=59 // pred_region
          %s6548 = sand.u32 %s142, 1
          %s6549 = scalar_lea.sflag [#allocation5], %s6548
          %s6550 = sand.u32 %s142, 1
          %s6551 = smul.addr %s6550, 512
          %s6552 = scalar_lea.vmem [#allocation9], %s6551
          %6553 = dma.done %s6549, 8192
        $region64: #{positionwise_ffn_packed.1} parent=59 // pred_fallthru
          _
      $region60: #{positionwise_ffn_packed.1} parent=5 // pred_fallthru
        _
    $region6: #{positionwise_ffn_packed.1} parent=1 // loop_footer
      %s22 = sadd.s32 1, %s18
    $region7: #{positionwise_ffn_packed.1} parent=1 // loop_footer_branch
      %17 = sbr.rel target = $region3
    $region8: #{positionwise_ffn_packed.1} parent=1 // loop_exit
      _
    %6554 = vsyncpa [#allocation4], 1
    %s6555 = scalar_lea.sflag [#allocation4], 1
    %6556 = vsyncpa %s6555, 1
    %6557 = vsyncpa [#allocation7], 1
    %6558 = vsyncpa [#allocation5], 1
    %s6559 = scalar_lea.sflag [#allocation5], 1
    %6560 = vsyncpa %s6559, 1

</llo_original>
